<compile_context>
chip_gen: v7x
topology: tpu7x:2x2x1
jax: 0.10.0
libtpu: 0.0.40
codegen_flags: <defaults>
</compile_context>

<pallas_src>
import functools

import jax
import jax.numpy as jnp
from jax.experimental import pallas as pl
from jax.experimental.pallas import tpu as pltpu


def encoder_kernel(ids_ref, emb_hbm, wih_ref, whh_ref, b_ref, h0_ref,
                   out_ref, hid_ref, xbuf, gather_sem, *, nb):
    # ids_ref : (t, n)   int32, SMEM (scalar prefetch)
    # emb_hbm : (v, h)   f32,   HBM (pl.ANY)            -- gathered row by row
    # wih_ref : (L, h, h) bf16, VMEM (pre-transposed: kernel does x @ W)
    # whh_ref : (L, h, h) bf16, VMEM (pre-transposed)
    # b_ref   : (L, 1, h) f32,  VMEM (b_ih + b_hh fused)
    # h0_ref  : (L, nb, h) f32  VMEM block (this batch slice)
    # out_ref : (t, nb, h) f32  output block
    # hid_ref : (L, nb, h) f32  output block
    # xbuf    : (t*nb, h) f32   VMEM scratch (gather destination)
    t = ids_ref.shape[0]
    L, _, h = h0_ref.shape
    j = pl.program_id(0)          # batch block index
    col0 = j * nb                 # first global batch column of this block

    # ---- Embedding lookup: DMA-gather rows straight from HBM ---------------
    copies = []
    for i in range(t):                       # static unroll: t*nb row DMAs
        for k in range(nb):
            tok = ids_ref[i, col0 + k]       # scalar read from SMEM
            cp = pltpu.make_async_copy(
                emb_hbm.at[pl.ds(tok, 1)],           # (1, h) row in HBM
                xbuf.at[pl.ds(i * nb + k, 1)],       # (1, h) row in VMEM
                gather_sem)
            cp.start()
            copies.append(cp)
    for cp in copies:                        # overlap all gathers, then wait
        cp.wait()

    # Activations live as values (vregs) from here on.
    x_seq = xbuf[...]                        # (t*nb, h) f32

    # ---- Multi-layer tanh RNN ----------------------------------------------
    # h_t^l = tanh(x_t^l @ W_ih^lT + h_{t-1}^l @ W_hh^lT + b_ih^l + b_hh^l)
    for layer in range(L):                   # static unroll over layers
        w_ih = wih_ref[layer]                # (h, h) bf16
        w_hh = whh_ref[layer]                # (h, h) bf16, hoisted off the chain

        # Batched input projection + fused bias for the whole block sequence:
        # one (t*nb, h) @ (h, h) bf16 MXU matmul, f32 accumulate.
        xproj = (jnp.dot(x_seq.astype(w_ih.dtype), w_ih,
                         preferred_element_type=jnp.float32)
                 + b_ref[layer])             # (t*nb, h) f32
        xproj = xproj.reshape(t, nb, h)

        # Serial recurrence: hidden state carried in vregs; per step only one
        # small bf16 matmul (f32 acc) + f32 add + EUP tanh. No VMEM round-trip.
        h_prev = h0_ref[layer]               # (nb, h) f32
        ys = []
        for i in range(t):                   # static unroll (t is small)
            h_prev = jnp.tanh(
                xproj[i]
                + jnp.dot(h_prev.astype(w_hh.dtype), w_hh,
                          preferred_element_type=jnp.float32))
            ys.append(h_prev)
        hid_ref[layer] = h_prev              # last-time-step hidden state
        x_seq = jnp.concatenate(ys, axis=0)  # (t*nb, h) f32 -> next layer input

    # Single lane-dense store of the last layer's per-step outputs.
    out_ref[...] = x_seq.reshape(t, nb, h).astype(out_ref.dtype)


def encoder_forward(x_ids, emb, w_ih_t, w_hh_t, bias, h0,
                    *, matmul_dtype=jnp.bfloat16):
    t, n = x_ids.shape
    v, h = emb.shape
    L = h0.shape[0]

    # Batch tiling: blocks of 8 rows (sublane-aligned) when possible so v7x's
    # two TensorCores each take a share; otherwise the full batch in one block.
    nb = 8 if (n % 8 == 0) else n
    num_blocks = n // nb

    # MXU operands in bf16 (halves weight bytes, single-pass MXU on v6e/v7x);
    # accumulation, bias and tanh stay f32 inside the kernel.
    w_ih_mx = w_ih_t.astype(matmul_dtype)
    w_hh_mx = w_hh_t.astype(matmul_dtype)
    wbytes = jnp.dtype(matmul_dtype).itemsize

    vmem = pl.BlockSpec(memory_space=pltpu.MemorySpace.VMEM)
    grid_spec = pltpu.PrefetchScalarGridSpec(
        num_scalar_prefetch=1,                       # token ids -> SMEM
        grid=(num_blocks,),
        in_specs=[
            pl.BlockSpec(memory_space=pl.ANY),       # embedding table in HBM
            vmem,                                    # W_ih (L, h, h) bf16
            vmem,                                    # W_hh (L, h, h) bf16
            vmem,                                    # bias (L, 1, h) f32
            pl.BlockSpec((L, nb, h), lambda j, ids: (0, j, 0)),   # h0 slice
        ],
        out_specs=(
            pl.BlockSpec((t, nb, h), lambda j, ids: (0, j, 0)),   # outputs
            pl.BlockSpec((L, nb, h), lambda j, ids: (0, j, 0)),   # hidden
        ),
        scratch_shapes=[
            pltpu.VMEM((t * nb, h), jnp.float32),    # gather destination
            pltpu.SemaphoreType.DMA,                 # shared gather semaphore
        ],
    )

    cost = pl.CostEstimate(
        flops=4 * L * t * n * h * h,                 # xproj + recurrence
        transcendentals=L * t * n * h,               # tanh
        bytes_accessed=(x_ids.size * 4 + t * n * h * 4          # gathered rows
                        + (w_ih_mx.size + w_hh_mx.size) * wbytes
                        + bias.size * 4 + h0.size * 4
                        + t * n * h * 4 + L * n * h * 4),
    )

    return pl.pallas_call(
        functools.partial(encoder_kernel, nb=nb),
        out_shape=(jax.ShapeDtypeStruct((t, n, h), jnp.float32),
                   jax.ShapeDtypeStruct((L, n, h), jnp.float32)),
        grid_spec=grid_spec,
        compiler_params=pltpu.CompilerParams(
            dimension_semantics=("parallel",),       # batch blocks -> 2 TCs on v7x
            vmem_limit_bytes=32 * 1024 * 1024),
        cost_estimate=cost,
    )(x_ids, emb, w_ih_mx, w_hh_mx, bias, h0)


def encoder_reference(x_ids, emb, w_ih_t, w_hh_t, bias, h0,
                      matmul_dtype=jnp.float32):
    """Pure-JAX reference. matmul_dtype mirrors the kernel's MXU operand cast."""
    t, n = x_ids.shape
    h = emb.shape[1]
    L = h0.shape[0]
    out = emb[x_ids]                                  # (t, n, h) f32
    hiddens = []
    for layer in range(L):
        wih = w_ih_t[layer].astype(matmul_dtype)
        whh = w_hh_t[layer].astype(matmul_dtype)
        xproj = (jnp.dot(out.reshape(t * n, h).astype(matmul_dtype), wih,
                         preferred_element_type=jnp.float32)
                 .reshape(t, n, h) + bias[layer])
        hprev = h0[layer]
        ys = []
        for i in range(t):
            hprev = jnp.tanh(
                xproj[i] + jnp.dot(hprev.astype(matmul_dtype), whh,
                                   preferred_element_type=jnp.float32))
            ys.append(hprev)
        out = jnp.stack(ys)
        hiddens.append(hprev)
    return out, jnp.stack(hiddens)


if __name__ == "__main__":
    # Small shapes consistent with the module: tokens (t, n), hidden h, L layers.
    t, n = 8, 16         # seq length, batch (n=16 -> 2 batch blocks of 8)
    v, h = 32, 128       # vocab, hidden size (lane-friendly)
    L = 3                # num_layers

    key = jax.random.PRNGKey(0)
    k_emb, k_wih, k_whh, k_bih, k_bhh, k_h0, k_x = jax.random.split(key, 7)

    bound = 1.0 / jnp.sqrt(h)   # PyTorch nn.RNN init: U(-1/sqrt(h), 1/sqrt(h))
    emb = jax.random.normal(k_emb, (v, h), jnp.float32)          # nn.Embedding ~ N(0,1)
    w_ih = jax.random.uniform(k_wih, (L, h, h), jnp.float32, -bound, bound)
    w_hh = jax.random.uniform(k_whh, (L, h, h), jnp.float32, -bound, bound)
    b_ih = jax.random.uniform(k_bih, (L, h), jnp.float32, -bound, bound)
    b_hh = jax.random.uniform(k_bhh, (L, h), jnp.float32, -bound, bound)

    # Glue: pre-transpose weights (kernel does x @ W) and fuse the two biases.
    w_ih_t = jnp.transpose(w_ih, (0, 2, 1))
    w_hh_t = jnp.transpose(w_hh, (0, 2, 1))
    bias = (b_ih + b_hh).reshape(L, 1, h)

    # The PyTorch forward draws h0 = th.randn(...); use a deterministic normal.
    h0 = jax.random.normal(k_h0, (L, n, h), jnp.float32)

    x_ids = jax.random.randint(k_x, (t, n), 0, v, jnp.int32)

    outputs, hidden = encoder_forward(x_ids, emb, w_ih_t, w_hh_t, bias, h0)
    outputs = jax.block_until_ready(outputs)
    hidden = jax.block_until_ready(hidden)

    assert outputs.shape == (t, n, h) and hidden.shape == (L, n, h)

    # Tight check against a reference that uses the same bf16 MXU operand cast.
    ref_out_bf, ref_hid_bf = encoder_reference(
        x_ids, emb, w_ih_t, w_hh_t, bias, h0, matmul_dtype=jnp.bfloat16)
    assert jnp.allclose(outputs, ref_out_bf, atol=2e-3, rtol=2e-3)
    assert jnp.allclose(hidden, ref_hid_bf, atol=2e-3, rtol=2e-3)

    # Loose sanity check against the full-f32 reference (bf16 MXU error only).
    ref_out_f32, ref_hid_f32 = encoder_reference(
        x_ids, emb, w_ih_t, w_hh_t, bias, h0, matmul_dtype=jnp.float32)
    assert jnp.mean(jnp.abs(outputs - ref_out_f32)) < 3e-2
    assert jnp.mean(jnp.abs(hidden - ref_hid_f32)) < 3e-2

    print("KERNEL_OK")
</pallas_src>

<mosaic_0001>
module attributes {stable_mosaic.version = 11 : i64} {
  func.func @encoder_kernel(%arg0: i32, %arg1: memref<8x16xi32, #tpu.memory_space<smem>>, %arg2: memref<32x128xf32, #tpu.memory_space<any>>, %arg3: memref<3x128x128xbf16, #tpu.memory_space<vmem>>, %arg4: memref<3x128x128xbf16, #tpu.memory_space<vmem>>, %arg5: memref<3x1x128xf32, #tpu.memory_space<vmem>>, %arg6: memref<3x8x128xf32, #tpu.memory_space<vmem>>, %arg7: memref<8x8x128xf32, #tpu.memory_space<vmem>>, %arg8: memref<3x8x128xf32, #tpu.memory_space<vmem>>, %arg9: memref<64x128xf32, #tpu.memory_space<vmem>>, %arg10: memref<!tpu.dma_semaphore, #tpu.memory_space<semaphore_mem>>) attributes {dimension_semantics = [#tpu.dimension_semantics<parallel>], iteration_bounds = array<i64: 2>, scalar_prefetch = 1 : i64, scratch_operands = 2 : i64, tpu.core_type = #tpu.core_type<tc>, window_params = [{}, {pipeline_mode = #tpu.pipeline_mode<synchronous>, transform_indices = @transform_1, window_bounds = array<i64: 3, 128, 128>}, {pipeline_mode = #tpu.pipeline_mode<synchronous>, transform_indices = @transform_2, window_bounds = array<i64: 3, 128, 128>}, {pipeline_mode = #tpu.pipeline_mode<synchronous>, transform_indices = @transform_3, window_bounds = array<i64: 3, 1, 128>}, {transform_indices = @transform_4, window_bounds = array<i64: 3, 8, 128>}, {transform_indices = @transform_5, window_bounds = array<i64: 8, 8, 128>}, {transform_indices = @transform_6, window_bounds = array<i64: 3, 8, 128>}]} {
    %c8_i32 = arith.constant 8 : i32
    %0 = arith.muli %arg0, %c8_i32 : i32
    %c0_i32 = arith.constant 0 : i32
    %1 = arith.addi %0, %c0_i32 : i32
    %c0 = arith.constant 0 : index
    %2 = arith.index_cast %1 : i32 to index
    %3 = memref.load %arg1[%c0, %2] : memref<8x16xi32, #tpu.memory_space<smem>>
    %c0_i32_0 = arith.constant 0 : i32
    %4 = tpu.memref_slice %arg2[%3, %c0_i32_0] : memref<32x128xf32, #tpu.memory_space<any>> -> memref<1x128xf32, #tpu.memory_space<any>>
    %c0_i32_1 = arith.constant 0 : i32
    %c0_i32_2 = arith.constant 0 : i32
    %5 = tpu.memref_slice %arg9[%c0_i32_1, %c0_i32_2] : memref<64x128xf32, #tpu.memory_space<vmem>> -> memref<1x128xf32, #tpu.memory_space<vmem>>
    tpu.enqueue_dma source(%4 : memref<1x128xf32, #tpu.memory_space<any>>) target(%5 : memref<1x128xf32, #tpu.memory_space<vmem>>) target_semaphore(%arg10 : memref<!tpu.dma_semaphore, #tpu.memory_space<semaphore_mem>>)
    %c1_i32 = arith.constant 1 : i32
    %6 = arith.addi %0, %c1_i32 : i32
    %c0_3 = arith.constant 0 : index
    %7 = arith.index_cast %6 : i32 to index
    %8 = memref.load %arg1[%c0_3, %7] : memref<8x16xi32, #tpu.memory_space<smem>>
    %c0_i32_4 = arith.constant 0 : i32
    %9 = tpu.memref_slice %arg2[%8, %c0_i32_4] : memref<32x128xf32, #tpu.memory_space<any>> -> memref<1x128xf32, #tpu.memory_space<any>>
    %c1_i32_5 = arith.constant 1 : i32
    %c0_i32_6 = arith.constant 0 : i32
    %10 = tpu.memref_slice %arg9[%c1_i32_5, %c0_i32_6] : memref<64x128xf32, #tpu.memory_space<vmem>> -> memref<1x128xf32, #tpu.memory_space<vmem>>
    tpu.enqueue_dma source(%9 : memref<1x128xf32, #tpu.memory_space<any>>) target(%10 : memref<1x128xf32, #tpu.memory_space<vmem>>) target_semaphore(%arg10 : memref<!tpu.dma_semaphore, #tpu.memory_space<semaphore_mem>>)
    %c2_i32 = arith.constant 2 : i32
    %11 = arith.addi %0, %c2_i32 : i32
    %c0_7 = arith.constant 0 : index
    %12 = arith.index_cast %11 : i32 to index
    %13 = memref.load %arg1[%c0_7, %12] : memref<8x16xi32, #tpu.memory_space<smem>>
    %c0_i32_8 = arith.constant 0 : i32
    %14 = tpu.memref_slice %arg2[%13, %c0_i32_8] : memref<32x128xf32, #tpu.memory_space<any>> -> memref<1x128xf32, #tpu.memory_space<any>>
    %c2_i32_9 = arith.constant 2 : i32
    %c0_i32_10 = arith.constant 0 : i32
    %15 = tpu.memref_slice %arg9[%c2_i32_9, %c0_i32_10] : memref<64x128xf32, #tpu.memory_space<vmem>> -> memref<1x128xf32, #tpu.memory_space<vmem>>
    tpu.enqueue_dma source(%14 : memref<1x128xf32, #tpu.memory_space<any>>) target(%15 : memref<1x128xf32, #tpu.memory_space<vmem>>) target_semaphore(%arg10 : memref<!tpu.dma_semaphore, #tpu.memory_space<semaphore_mem>>)
    %c3_i32 = arith.constant 3 : i32
    %16 = arith.addi %0, %c3_i32 : i32
    %c0_11 = arith.constant 0 : index
    %17 = arith.index_cast %16 : i32 to index
    %18 = memref.load %arg1[%c0_11, %17] : memref<8x16xi32, #tpu.memory_space<smem>>
    %c0_i32_12 = arith.constant 0 : i32
    %19 = tpu.memref_slice %arg2[%18, %c0_i32_12] : memref<32x128xf32, #tpu.memory_space<any>> -> memref<1x128xf32, #tpu.memory_space<any>>
    %c3_i32_13 = arith.constant 3 : i32
    %c0_i32_14 = arith.constant 0 : i32
    %20 = tpu.memref_slice %arg9[%c3_i32_13, %c0_i32_14] : memref<64x128xf32, #tpu.memory_space<vmem>> -> memref<1x128xf32, #tpu.memory_space<vmem>>
    tpu.enqueue_dma source(%19 : memref<1x128xf32, #tpu.memory_space<any>>) target(%20 : memref<1x128xf32, #tpu.memory_space<vmem>>) target_semaphore(%arg10 : memref<!tpu.dma_semaphore, #tpu.memory_space<semaphore_mem>>)
    %c4_i32 = arith.constant 4 : i32
    %21 = arith.addi %0, %c4_i32 : i32
    %c0_15 = arith.constant 0 : index
    %22 = arith.index_cast %21 : i32 to index
    %23 = memref.load %arg1[%c0_15, %22] : memref<8x16xi32, #tpu.memory_space<smem>>
    %c0_i32_16 = arith.constant 0 : i32
    %24 = tpu.memref_slice %arg2[%23, %c0_i32_16] : memref<32x128xf32, #tpu.memory_space<any>> -> memref<1x128xf32, #tpu.memory_space<any>>
    %c4_i32_17 = arith.constant 4 : i32
    %c0_i32_18 = arith.constant 0 : i32
    %25 = tpu.memref_slice %arg9[%c4_i32_17, %c0_i32_18] : memref<64x128xf32, #tpu.memory_space<vmem>> -> memref<1x128xf32, #tpu.memory_space<vmem>>
    tpu.enqueue_dma source(%24 : memref<1x128xf32, #tpu.memory_space<any>>) target(%25 : memref<1x128xf32, #tpu.memory_space<vmem>>) target_semaphore(%arg10 : memref<!tpu.dma_semaphore, #tpu.memory_space<semaphore_mem>>)
    %c5_i32 = arith.constant 5 : i32
    %26 = arith.addi %0, %c5_i32 : i32
    %c0_19 = arith.constant 0 : index
    %27 = arith.index_cast %26 : i32 to index
    %28 = memref.load %arg1[%c0_19, %27] : memref<8x16xi32, #tpu.memory_space<smem>>
    %c0_i32_20 = arith.constant 0 : i32
    %29 = tpu.memref_slice %arg2[%28, %c0_i32_20] : memref<32x128xf32, #tpu.memory_space<any>> -> memref<1x128xf32, #tpu.memory_space<any>>
    %c5_i32_21 = arith.constant 5 : i32
    %c0_i32_22 = arith.constant 0 : i32
    %30 = tpu.memref_slice %arg9[%c5_i32_21, %c0_i32_22] : memref<64x128xf32, #tpu.memory_space<vmem>> -> memref<1x128xf32, #tpu.memory_space<vmem>>
    tpu.enqueue_dma source(%29 : memref<1x128xf32, #tpu.memory_space<any>>) target(%30 : memref<1x128xf32, #tpu.memory_space<vmem>>) target_semaphore(%arg10 : memref<!tpu.dma_semaphore, #tpu.memory_space<semaphore_mem>>)
    %c6_i32 = arith.constant 6 : i32
    %31 = arith.addi %0, %c6_i32 : i32
    %c0_23 = arith.constant 0 : index
    %32 = arith.index_cast %31 : i32 to index
    %33 = memref.load %arg1[%c0_23, %32] : memref<8x16xi32, #tpu.memory_space<smem>>
    %c0_i32_24 = arith.constant 0 : i32
    %34 = tpu.memref_slice %arg2[%33, %c0_i32_24] : memref<32x128xf32, #tpu.memory_space<any>> -> memref<1x128xf32, #tpu.memory_space<any>>
    %c6_i32_25 = arith.constant 6 : i32
    %c0_i32_26 = arith.constant 0 : i32
    %35 = tpu.memref_slice %arg9[%c6_i32_25, %c0_i32_26] : memref<64x128xf32, #tpu.memory_space<vmem>> -> memref<1x128xf32, #tpu.memory_space<vmem>>
    tpu.enqueue_dma source(%34 : memref<1x128xf32, #tpu.memory_space<any>>) target(%35 : memref<1x128xf32, #tpu.memory_space<vmem>>) target_semaphore(%arg10 : memref<!tpu.dma_semaphore, #tpu.memory_space<semaphore_mem>>)
    %c7_i32 = arith.constant 7 : i32
    %36 = arith.addi %0, %c7_i32 : i32
    %c0_27 = arith.constant 0 : index
    %37 = arith.index_cast %36 : i32 to index
    %38 = memref.load %arg1[%c0_27, %37] : memref<8x16xi32, #tpu.memory_space<smem>>
    %c0_i32_28 = arith.constant 0 : i32
    %39 = tpu.memref_slice %arg2[%38, %c0_i32_28] : memref<32x128xf32, #tpu.memory_space<any>> -> memref<1x128xf32, #tpu.memory_space<any>>
    %c7_i32_29 = arith.constant 7 : i32
    %c0_i32_30 = arith.constant 0 : i32
    %40 = tpu.memref_slice %arg9[%c7_i32_29, %c0_i32_30] : memref<64x128xf32, #tpu.memory_space<vmem>> -> memref<1x128xf32, #tpu.memory_space<vmem>>
    tpu.enqueue_dma source(%39 : memref<1x128xf32, #tpu.memory_space<any>>) target(%40 : memref<1x128xf32, #tpu.memory_space<vmem>>) target_semaphore(%arg10 : memref<!tpu.dma_semaphore, #tpu.memory_space<semaphore_mem>>)
    %c0_i32_31 = arith.constant 0 : i32
    %41 = arith.addi %0, %c0_i32_31 : i32
    %c1 = arith.constant 1 : index
    %42 = arith.index_cast %41 : i32 to index
    %43 = memref.load %arg1[%c1, %42] : memref<8x16xi32, #tpu.memory_space<smem>>
    %c0_i32_32 = arith.constant 0 : i32
    %44 = tpu.memref_slice %arg2[%43, %c0_i32_32] : memref<32x128xf32, #tpu.memory_space<any>> -> memref<1x128xf32, #tpu.memory_space<any>>
    %c8_i32_33 = arith.constant 8 : i32
    %c0_i32_34 = arith.constant 0 : i32
    %45 = tpu.memref_slice %arg9[%c8_i32_33, %c0_i32_34] : memref<64x128xf32, #tpu.memory_space<vmem>> -> memref<1x128xf32, #tpu.memory_space<vmem>>
    tpu.enqueue_dma source(%44 : memref<1x128xf32, #tpu.memory_space<any>>) target(%45 : memref<1x128xf32, #tpu.memory_space<vmem>>) target_semaphore(%arg10 : memref<!tpu.dma_semaphore, #tpu.memory_space<semaphore_mem>>)
    %c1_i32_35 = arith.constant 1 : i32
    %46 = arith.addi %0, %c1_i32_35 : i32
    %c1_36 = arith.constant 1 : index
    %47 = arith.index_cast %46 : i32 to index
    %48 = memref.load %arg1[%c1_36, %47] : memref<8x16xi32, #tpu.memory_space<smem>>
    %c0_i32_37 = arith.constant 0 : i32
    %49 = tpu.memref_slice %arg2[%48, %c0_i32_37] : memref<32x128xf32, #tpu.memory_space<any>> -> memref<1x128xf32, #tpu.memory_space<any>>
    %c9_i32 = arith.constant 9 : i32
    %c0_i32_38 = arith.constant 0 : i32
    %50 = tpu.memref_slice %arg9[%c9_i32, %c0_i32_38] : memref<64x128xf32, #tpu.memory_space<vmem>> -> memref<1x128xf32, #tpu.memory_space<vmem>>
    tpu.enqueue_dma source(%49 : memref<1x128xf32, #tpu.memory_space<any>>) target(%50 : memref<1x128xf32, #tpu.memory_space<vmem>>) target_semaphore(%arg10 : memref<!tpu.dma_semaphore, #tpu.memory_space<semaphore_mem>>)
    %c2_i32_39 = arith.constant 2 : i32
    %51 = arith.addi %0, %c2_i32_39 : i32
    %c1_40 = arith.constant 1 : index
    %52 = arith.index_cast %51 : i32 to index
    %53 = memref.load %arg1[%c1_40, %52] : memref<8x16xi32, #tpu.memory_space<smem>>
    %c0_i32_41 = arith.constant 0 : i32
    %54 = tpu.memref_slice %arg2[%53, %c0_i32_41] : memref<32x128xf32, #tpu.memory_space<any>> -> memref<1x128xf32, #tpu.memory_space<any>>
    %c10_i32 = arith.constant 10 : i32
    %c0_i32_42 = arith.constant 0 : i32
    %55 = tpu.memref_slice %arg9[%c10_i32, %c0_i32_42] : memref<64x128xf32, #tpu.memory_space<vmem>> -> memref<1x128xf32, #tpu.memory_space<vmem>>
    tpu.enqueue_dma source(%54 : memref<1x128xf32, #tpu.memory_space<any>>) target(%55 : memref<1x128xf32, #tpu.memory_space<vmem>>) target_semaphore(%arg10 : memref<!tpu.dma_semaphore, #tpu.memory_space<semaphore_mem>>)
    %c3_i32_43 = arith.constant 3 : i32
    %56 = arith.addi %0, %c3_i32_43 : i32
    %c1_44 = arith.constant 1 : index
    %57 = arith.index_cast %56 : i32 to index
    %58 = memref.load %arg1[%c1_44, %57] : memref<8x16xi32, #tpu.memory_space<smem>>
    %c0_i32_45 = arith.constant 0 : i32
    %59 = tpu.memref_slice %arg2[%58, %c0_i32_45] : memref<32x128xf32, #tpu.memory_space<any>> -> memref<1x128xf32, #tpu.memory_space<any>>
    %c11_i32 = arith.constant 11 : i32
    %c0_i32_46 = arith.constant 0 : i32
    %60 = tpu.memref_slice %arg9[%c11_i32, %c0_i32_46] : memref<64x128xf32, #tpu.memory_space<vmem>> -> memref<1x128xf32, #tpu.memory_space<vmem>>
    tpu.enqueue_dma source(%59 : memref<1x128xf32, #tpu.memory_space<any>>) target(%60 : memref<1x128xf32, #tpu.memory_space<vmem>>) target_semaphore(%arg10 : memref<!tpu.dma_semaphore, #tpu.memory_space<semaphore_mem>>)
    %c4_i32_47 = arith.constant 4 : i32
    %61 = arith.addi %0, %c4_i32_47 : i32
    %c1_48 = arith.constant 1 : index
    %62 = arith.index_cast %61 : i32 to index
    %63 = memref.load %arg1[%c1_48, %62] : memref<8x16xi32, #tpu.memory_space<smem>>
    %c0_i32_49 = arith.constant 0 : i32
    %64 = tpu.memref_slice %arg2[%63, %c0_i32_49] : memref<32x128xf32, #tpu.memory_space<any>> -> memref<1x128xf32, #tpu.memory_space<any>>
    %c12_i32 = arith.constant 12 : i32
    %c0_i32_50 = arith.constant 0 : i32
    %65 = tpu.memref_slice %arg9[%c12_i32, %c0_i32_50] : memref<64x128xf32, #tpu.memory_space<vmem>> -> memref<1x128xf32, #tpu.memory_space<vmem>>
    tpu.enqueue_dma source(%64 : memref<1x128xf32, #tpu.memory_space<any>>) target(%65 : memref<1x128xf32, #tpu.memory_space<vmem>>) target_semaphore(%arg10 : memref<!tpu.dma_semaphore, #tpu.memory_space<semaphore_mem>>)
    %c5_i32_51 = arith.constant 5 : i32
    %66 = arith.addi %0, %c5_i32_51 : i32
    %c1_52 = arith.constant 1 : index
    %67 = arith.index_cast %66 : i32 to index
    %68 = memref.load %arg1[%c1_52, %67] : memref<8x16xi32, #tpu.memory_space<smem>>
    %c0_i32_53 = arith.constant 0 : i32
    %69 = tpu.memref_slice %arg2[%68, %c0_i32_53] : memref<32x128xf32, #tpu.memory_space<any>> -> memref<1x128xf32, #tpu.memory_space<any>>
    %c13_i32 = arith.constant 13 : i32
    %c0_i32_54 = arith.constant 0 : i32
    %70 = tpu.memref_slice %arg9[%c13_i32, %c0_i32_54] : memref<64x128xf32, #tpu.memory_space<vmem>> -> memref<1x128xf32, #tpu.memory_space<vmem>>
    tpu.enqueue_dma source(%69 : memref<1x128xf32, #tpu.memory_space<any>>) target(%70 : memref<1x128xf32, #tpu.memory_space<vmem>>) target_semaphore(%arg10 : memref<!tpu.dma_semaphore, #tpu.memory_space<semaphore_mem>>)
    %c6_i32_55 = arith.constant 6 : i32
    %71 = arith.addi %0, %c6_i32_55 : i32
    %c1_56 = arith.constant 1 : index
    %72 = arith.index_cast %71 : i32 to index
    %73 = memref.load %arg1[%c1_56, %72] : memref<8x16xi32, #tpu.memory_space<smem>>
    %c0_i32_57 = arith.constant 0 : i32
    %74 = tpu.memref_slice %arg2[%73, %c0_i32_57] : memref<32x128xf32, #tpu.memory_space<any>> -> memref<1x128xf32, #tpu.memory_space<any>>
    %c14_i32 = arith.constant 14 : i32
    %c0_i32_58 = arith.constant 0 : i32
    %75 = tpu.memref_slice %arg9[%c14_i32, %c0_i32_58] : memref<64x128xf32, #tpu.memory_space<vmem>> -> memref<1x128xf32, #tpu.memory_space<vmem>>
    tpu.enqueue_dma source(%74 : memref<1x128xf32, #tpu.memory_space<any>>) target(%75 : memref<1x128xf32, #tpu.memory_space<vmem>>) target_semaphore(%arg10 : memref<!tpu.dma_semaphore, #tpu.memory_space<semaphore_mem>>)
    %c7_i32_59 = arith.constant 7 : i32
    %76 = arith.addi %0, %c7_i32_59 : i32
    %c1_60 = arith.constant 1 : index
    %77 = arith.index_cast %76 : i32 to index
    %78 = memref.load %arg1[%c1_60, %77] : memref<8x16xi32, #tpu.memory_space<smem>>
    %c0_i32_61 = arith.constant 0 : i32
    %79 = tpu.memref_slice %arg2[%78, %c0_i32_61] : memref<32x128xf32, #tpu.memory_space<any>> -> memref<1x128xf32, #tpu.memory_space<any>>
    %c15_i32 = arith.constant 15 : i32
    %c0_i32_62 = arith.constant 0 : i32
    %80 = tpu.memref_slice %arg9[%c15_i32, %c0_i32_62] : memref<64x128xf32, #tpu.memory_space<vmem>> -> memref<1x128xf32, #tpu.memory_space<vmem>>
    tpu.enqueue_dma source(%79 : memref<1x128xf32, #tpu.memory_space<any>>) target(%80 : memref<1x128xf32, #tpu.memory_space<vmem>>) target_semaphore(%arg10 : memref<!tpu.dma_semaphore, #tpu.memory_space<semaphore_mem>>)
    %c0_i32_63 = arith.constant 0 : i32
    %81 = arith.addi %0, %c0_i32_63 : i32
    %c2 = arith.constant 2 : index
    %82 = arith.index_cast %81 : i32 to index
    %83 = memref.load %arg1[%c2, %82] : memref<8x16xi32, #tpu.memory_space<smem>>
    %c0_i32_64 = arith.constant 0 : i32
    %84 = tpu.memref_slice %arg2[%83, %c0_i32_64] : memref<32x128xf32, #tpu.memory_space<any>> -> memref<1x128xf32, #tpu.memory_space<any>>
    %c16_i32 = arith.constant 16 : i32
    %c0_i32_65 = arith.constant 0 : i32
    %85 = tpu.memref_slice %arg9[%c16_i32, %c0_i32_65] : memref<64x128xf32, #tpu.memory_space<vmem>> -> memref<1x128xf32, #tpu.memory_space<vmem>>
    tpu.enqueue_dma source(%84 : memref<1x128xf32, #tpu.memory_space<any>>) target(%85 : memref<1x128xf32, #tpu.memory_space<vmem>>) target_semaphore(%arg10 : memref<!tpu.dma_semaphore, #tpu.memory_space<semaphore_mem>>)
    %c1_i32_66 = arith.constant 1 : i32
    %86 = arith.addi %0, %c1_i32_66 : i32
    %c2_67 = arith.constant 2 : index
    %87 = arith.index_cast %86 : i32 to index
    %88 = memref.load %arg1[%c2_67, %87] : memref<8x16xi32, #tpu.memory_space<smem>>
    %c0_i32_68 = arith.constant 0 : i32
    %89 = tpu.memref_slice %arg2[%88, %c0_i32_68] : memref<32x128xf32, #tpu.memory_space<any>> -> memref<1x128xf32, #tpu.memory_space<any>>
    %c17_i32 = arith.constant 17 : i32
    %c0_i32_69 = arith.constant 0 : i32
    %90 = tpu.memref_slice %arg9[%c17_i32, %c0_i32_69] : memref<64x128xf32, #tpu.memory_space<vmem>> -> memref<1x128xf32, #tpu.memory_space<vmem>>
    tpu.enqueue_dma source(%89 : memref<1x128xf32, #tpu.memory_space<any>>) target(%90 : memref<1x128xf32, #tpu.memory_space<vmem>>) target_semaphore(%arg10 : memref<!tpu.dma_semaphore, #tpu.memory_space<semaphore_mem>>)
    %c2_i32_70 = arith.constant 2 : i32
    %91 = arith.addi %0, %c2_i32_70 : i32
    %c2_71 = arith.constant 2 : index
    %92 = arith.index_cast %91 : i32 to index
    %93 = memref.load %arg1[%c2_71, %92] : memref<8x16xi32, #tpu.memory_space<smem>>
    %c0_i32_72 = arith.constant 0 : i32
    %94 = tpu.memref_slice %arg2[%93, %c0_i32_72] : memref<32x128xf32, #tpu.memory_space<any>> -> memref<1x128xf32, #tpu.memory_space<any>>
    %c18_i32 = arith.constant 18 : i32
    %c0_i32_73 = arith.constant 0 : i32
    %95 = tpu.memref_slice %arg9[%c18_i32, %c0_i32_73] : memref<64x128xf32, #tpu.memory_space<vmem>> -> memref<1x128xf32, #tpu.memory_space<vmem>>
    tpu.enqueue_dma source(%94 : memref<1x128xf32, #tpu.memory_space<any>>) target(%95 : memref<1x128xf32, #tpu.memory_space<vmem>>) target_semaphore(%arg10 : memref<!tpu.dma_semaphore, #tpu.memory_space<semaphore_mem>>)
    %c3_i32_74 = arith.constant 3 : i32
    %96 = arith.addi %0, %c3_i32_74 : i32
    %c2_75 = arith.constant 2 : index
    %97 = arith.index_cast %96 : i32 to index
    %98 = memref.load %arg1[%c2_75, %97] : memref<8x16xi32, #tpu.memory_space<smem>>
    %c0_i32_76 = arith.constant 0 : i32
    %99 = tpu.memref_slice %arg2[%98, %c0_i32_76] : memref<32x128xf32, #tpu.memory_space<any>> -> memref<1x128xf32, #tpu.memory_space<any>>
    %c19_i32 = arith.constant 19 : i32
    %c0_i32_77 = arith.constant 0 : i32
    %100 = tpu.memref_slice %arg9[%c19_i32, %c0_i32_77] : memref<64x128xf32, #tpu.memory_space<vmem>> -> memref<1x128xf32, #tpu.memory_space<vmem>>
    tpu.enqueue_dma source(%99 : memref<1x128xf32, #tpu.memory_space<any>>) target(%100 : memref<1x128xf32, #tpu.memory_space<vmem>>) target_semaphore(%arg10 : memref<!tpu.dma_semaphore, #tpu.memory_space<semaphore_mem>>)
    %c4_i32_78 = arith.constant 4 : i32
    %101 = arith.addi %0, %c4_i32_78 : i32
    %c2_79 = arith.constant 2 : index
    %102 = arith.index_cast %101 : i32 to index
    %103 = memref.load %arg1[%c2_79, %102] : memref<8x16xi32, #tpu.memory_space<smem>>
    %c0_i32_80 = arith.constant 0 : i32
    %104 = tpu.memref_slice %arg2[%103, %c0_i32_80] : memref<32x128xf32, #tpu.memory_space<any>> -> memref<1x128xf32, #tpu.memory_space<any>>
    %c20_i32 = arith.constant 20 : i32
    %c0_i32_81 = arith.constant 0 : i32
    %105 = tpu.memref_slice %arg9[%c20_i32, %c0_i32_81] : memref<64x128xf32, #tpu.memory_space<vmem>> -> memref<1x128xf32, #tpu.memory_space<vmem>>
    tpu.enqueue_dma source(%104 : memref<1x128xf32, #tpu.memory_space<any>>) target(%105 : memref<1x128xf32, #tpu.memory_space<vmem>>) target_semaphore(%arg10 : memref<!tpu.dma_semaphore, #tpu.memory_space<semaphore_mem>>)
    %c5_i32_82 = arith.constant 5 : i32
    %106 = arith.addi %0, %c5_i32_82 : i32
    %c2_83 = arith.constant 2 : index
    %107 = arith.index_cast %106 : i32 to index
    %108 = memref.load %arg1[%c2_83, %107] : memref<8x16xi32, #tpu.memory_space<smem>>
    %c0_i32_84 = arith.constant 0 : i32
    %109 = tpu.memref_slice %arg2[%108, %c0_i32_84] : memref<32x128xf32, #tpu.memory_space<any>> -> memref<1x128xf32, #tpu.memory_space<any>>
    %c21_i32 = arith.constant 21 : i32
    %c0_i32_85 = arith.constant 0 : i32
    %110 = tpu.memref_slice %arg9[%c21_i32, %c0_i32_85] : memref<64x128xf32, #tpu.memory_space<vmem>> -> memref<1x128xf32, #tpu.memory_space<vmem>>
    tpu.enqueue_dma source(%109 : memref<1x128xf32, #tpu.memory_space<any>>) target(%110 : memref<1x128xf32, #tpu.memory_space<vmem>>) target_semaphore(%arg10 : memref<!tpu.dma_semaphore, #tpu.memory_space<semaphore_mem>>)
    %c6_i32_86 = arith.constant 6 : i32
    %111 = arith.addi %0, %c6_i32_86 : i32
    %c2_87 = arith.constant 2 : index
    %112 = arith.index_cast %111 : i32 to index
    %113 = memref.load %arg1[%c2_87, %112] : memref<8x16xi32, #tpu.memory_space<smem>>
    %c0_i32_88 = arith.constant 0 : i32
    %114 = tpu.memref_slice %arg2[%113, %c0_i32_88] : memref<32x128xf32, #tpu.memory_space<any>> -> memref<1x128xf32, #tpu.memory_space<any>>
    %c22_i32 = arith.constant 22 : i32
    %c0_i32_89 = arith.constant 0 : i32
    %115 = tpu.memref_slice %arg9[%c22_i32, %c0_i32_89] : memref<64x128xf32, #tpu.memory_space<vmem>> -> memref<1x128xf32, #tpu.memory_space<vmem>>
    tpu.enqueue_dma source(%114 : memref<1x128xf32, #tpu.memory_space<any>>) target(%115 : memref<1x128xf32, #tpu.memory_space<vmem>>) target_semaphore(%arg10 : memref<!tpu.dma_semaphore, #tpu.memory_space<semaphore_mem>>)
    %c7_i32_90 = arith.constant 7 : i32
    %116 = arith.addi %0, %c7_i32_90 : i32
    %c2_91 = arith.constant 2 : index
    %117 = arith.index_cast %116 : i32 to index
    %118 = memref.load %arg1[%c2_91, %117] : memref<8x16xi32, #tpu.memory_space<smem>>
    %c0_i32_92 = arith.constant 0 : i32
    %119 = tpu.memref_slice %arg2[%118, %c0_i32_92] : memref<32x128xf32, #tpu.memory_space<any>> -> memref<1x128xf32, #tpu.memory_space<any>>
    %c23_i32 = arith.constant 23 : i32
    %c0_i32_93 = arith.constant 0 : i32
    %120 = tpu.memref_slice %arg9[%c23_i32, %c0_i32_93] : memref<64x128xf32, #tpu.memory_space<vmem>> -> memref<1x128xf32, #tpu.memory_space<vmem>>
    tpu.enqueue_dma source(%119 : memref<1x128xf32, #tpu.memory_space<any>>) target(%120 : memref<1x128xf32, #tpu.memory_space<vmem>>) target_semaphore(%arg10 : memref<!tpu.dma_semaphore, #tpu.memory_space<semaphore_mem>>)
    %c0_i32_94 = arith.constant 0 : i32
    %121 = arith.addi %0, %c0_i32_94 : i32
    %c3 = arith.constant 3 : index
    %122 = arith.index_cast %121 : i32 to index
    %123 = memref.load %arg1[%c3, %122] : memref<8x16xi32, #tpu.memory_space<smem>>
    %c0_i32_95 = arith.constant 0 : i32
    %124 = tpu.memref_slice %arg2[%123, %c0_i32_95] : memref<32x128xf32, #tpu.memory_space<any>> -> memref<1x128xf32, #tpu.memory_space<any>>
    %c24_i32 = arith.constant 24 : i32
    %c0_i32_96 = arith.constant 0 : i32
    %125 = tpu.memref_slice %arg9[%c24_i32, %c0_i32_96] : memref<64x128xf32, #tpu.memory_space<vmem>> -> memref<1x128xf32, #tpu.memory_space<vmem>>
    tpu.enqueue_dma source(%124 : memref<1x128xf32, #tpu.memory_space<any>>) target(%125 : memref<1x128xf32, #tpu.memory_space<vmem>>) target_semaphore(%arg10 : memref<!tpu.dma_semaphore, #tpu.memory_space<semaphore_mem>>)
    %c1_i32_97 = arith.constant 1 : i32
    %126 = arith.addi %0, %c1_i32_97 : i32
    %c3_98 = arith.constant 3 : index
    %127 = arith.index_cast %126 : i32 to index
    %128 = memref.load %arg1[%c3_98, %127] : memref<8x16xi32, #tpu.memory_space<smem>>
    %c0_i32_99 = arith.constant 0 : i32
    %129 = tpu.memref_slice %arg2[%128, %c0_i32_99] : memref<32x128xf32, #tpu.memory_space<any>> -> memref<1x128xf32, #tpu.memory_space<any>>
    %c25_i32 = arith.constant 25 : i32
    %c0_i32_100 = arith.constant 0 : i32
    %130 = tpu.memref_slice %arg9[%c25_i32, %c0_i32_100] : memref<64x128xf32, #tpu.memory_space<vmem>> -> memref<1x128xf32, #tpu.memory_space<vmem>>
    tpu.enqueue_dma source(%129 : memref<1x128xf32, #tpu.memory_space<any>>) target(%130 : memref<1x128xf32, #tpu.memory_space<vmem>>) target_semaphore(%arg10 : memref<!tpu.dma_semaphore, #tpu.memory_space<semaphore_mem>>)
    %c2_i32_101 = arith.constant 2 : i32
    %131 = arith.addi %0, %c2_i32_101 : i32
    %c3_102 = arith.constant 3 : index
    %132 = arith.index_cast %131 : i32 to index
    %133 = memref.load %arg1[%c3_102, %132] : memref<8x16xi32, #tpu.memory_space<smem>>
    %c0_i32_103 = arith.constant 0 : i32
    %134 = tpu.memref_slice %arg2[%133, %c0_i32_103] : memref<32x128xf32, #tpu.memory_space<any>> -> memref<1x128xf32, #tpu.memory_space<any>>
    %c26_i32 = arith.constant 26 : i32
    %c0_i32_104 = arith.constant 0 : i32
    %135 = tpu.memref_slice %arg9[%c26_i32, %c0_i32_104] : memref<64x128xf32, #tpu.memory_space<vmem>> -> memref<1x128xf32, #tpu.memory_space<vmem>>
    tpu.enqueue_dma source(%134 : memref<1x128xf32, #tpu.memory_space<any>>) target(%135 : memref<1x128xf32, #tpu.memory_space<vmem>>) target_semaphore(%arg10 : memref<!tpu.dma_semaphore, #tpu.memory_space<semaphore_mem>>)
    %c3_i32_105 = arith.constant 3 : i32
    %136 = arith.addi %0, %c3_i32_105 : i32
    %c3_106 = arith.constant 3 : index
    %137 = arith.index_cast %136 : i32 to index
    %138 = memref.load %arg1[%c3_106, %137] : memref<8x16xi32, #tpu.memory_space<smem>>
    %c0_i32_107 = arith.constant 0 : i32
    %139 = tpu.memref_slice %arg2[%138, %c0_i32_107] : memref<32x128xf32, #tpu.memory_space<any>> -> memref<1x128xf32, #tpu.memory_space<any>>
    %c27_i32 = arith.constant 27 : i32
    %c0_i32_108 = arith.constant 0 : i32
    %140 = tpu.memref_slice %arg9[%c27_i32, %c0_i32_108] : memref<64x128xf32, #tpu.memory_space<vmem>> -> memref<1x128xf32, #tpu.memory_space<vmem>>
    tpu.enqueue_dma source(%139 : memref<1x128xf32, #tpu.memory_space<any>>) target(%140 : memref<1x128xf32, #tpu.memory_space<vmem>>) target_semaphore(%arg10 : memref<!tpu.dma_semaphore, #tpu.memory_space<semaphore_mem>>)
    %c4_i32_109 = arith.constant 4 : i32
    %141 = arith.addi %0, %c4_i32_109 : i32
    %c3_110 = arith.constant 3 : index
    %142 = arith.index_cast %141 : i32 to index
    %143 = memref.load %arg1[%c3_110, %142] : memref<8x16xi32, #tpu.memory_space<smem>>
    %c0_i32_111 = arith.constant 0 : i32
    %144 = tpu.memref_slice %arg2[%143, %c0_i32_111] : memref<32x128xf32, #tpu.memory_space<any>> -> memref<1x128xf32, #tpu.memory_space<any>>
    %c28_i32 = arith.constant 28 : i32
    %c0_i32_112 = arith.constant 0 : i32
    %145 = tpu.memref_slice %arg9[%c28_i32, %c0_i32_112] : memref<64x128xf32, #tpu.memory_space<vmem>> -> memref<1x128xf32, #tpu.memory_space<vmem>>
    tpu.enqueue_dma source(%144 : memref<1x128xf32, #tpu.memory_space<any>>) target(%145 : memref<1x128xf32, #tpu.memory_space<vmem>>) target_semaphore(%arg10 : memref<!tpu.dma_semaphore, #tpu.memory_space<semaphore_mem>>)
    %c5_i32_113 = arith.constant 5 : i32
    %146 = arith.addi %0, %c5_i32_113 : i32
    %c3_114 = arith.constant 3 : index
    %147 = arith.index_cast %146 : i32 to index
    %148 = memref.load %arg1[%c3_114, %147] : memref<8x16xi32, #tpu.memory_space<smem>>
    %c0_i32_115 = arith.constant 0 : i32
    %149 = tpu.memref_slice %arg2[%148, %c0_i32_115] : memref<32x128xf32, #tpu.memory_space<any>> -> memref<1x128xf32, #tpu.memory_space<any>>
    %c29_i32 = arith.constant 29 : i32
    %c0_i32_116 = arith.constant 0 : i32
    %150 = tpu.memref_slice %arg9[%c29_i32, %c0_i32_116] : memref<64x128xf32, #tpu.memory_space<vmem>> -> memref<1x128xf32, #tpu.memory_space<vmem>>
    tpu.enqueue_dma source(%149 : memref<1x128xf32, #tpu.memory_space<any>>) target(%150 : memref<1x128xf32, #tpu.memory_space<vmem>>) target_semaphore(%arg10 : memref<!tpu.dma_semaphore, #tpu.memory_space<semaphore_mem>>)
    %c6_i32_117 = arith.constant 6 : i32
    %151 = arith.addi %0, %c6_i32_117 : i32
    %c3_118 = arith.constant 3 : index
    %152 = arith.index_cast %151 : i32 to index
    %153 = memref.load %arg1[%c3_118, %152] : memref<8x16xi32, #tpu.memory_space<smem>>
    %c0_i32_119 = arith.constant 0 : i32
    %154 = tpu.memref_slice %arg2[%153, %c0_i32_119] : memref<32x128xf32, #tpu.memory_space<any>> -> memref<1x128xf32, #tpu.memory_space<any>>
    %c30_i32 = arith.constant 30 : i32
    %c0_i32_120 = arith.constant 0 : i32
    %155 = tpu.memref_slice %arg9[%c30_i32, %c0_i32_120] : memref<64x128xf32, #tpu.memory_space<vmem>> -> memref<1x128xf32, #tpu.memory_space<vmem>>
    tpu.enqueue_dma source(%154 : memref<1x128xf32, #tpu.memory_space<any>>) target(%155 : memref<1x128xf32, #tpu.memory_space<vmem>>) target_semaphore(%arg10 : memref<!tpu.dma_semaphore, #tpu.memory_space<semaphore_mem>>)
    %c7_i32_121 = arith.constant 7 : i32
    %156 = arith.addi %0, %c7_i32_121 : i32
    %c3_122 = arith.constant 3 : index
    %157 = arith.index_cast %156 : i32 to index
    %158 = memref.load %arg1[%c3_122, %157] : memref<8x16xi32, #tpu.memory_space<smem>>
    %c0_i32_123 = arith.constant 0 : i32
    %159 = tpu.memref_slice %arg2[%158, %c0_i32_123] : memref<32x128xf32, #tpu.memory_space<any>> -> memref<1x128xf32, #tpu.memory_space<any>>
    %c31_i32 = arith.constant 31 : i32
    %c0_i32_124 = arith.constant 0 : i32
    %160 = tpu.memref_slice %arg9[%c31_i32, %c0_i32_124] : memref<64x128xf32, #tpu.memory_space<vmem>> -> memref<1x128xf32, #tpu.memory_space<vmem>>
    tpu.enqueue_dma source(%159 : memref<1x128xf32, #tpu.memory_space<any>>) target(%160 : memref<1x128xf32, #tpu.memory_space<vmem>>) target_semaphore(%arg10 : memref<!tpu.dma_semaphore, #tpu.memory_space<semaphore_mem>>)
    %c0_i32_125 = arith.constant 0 : i32
    %161 = arith.addi %0, %c0_i32_125 : i32
    %c4 = arith.constant 4 : index
    %162 = arith.index_cast %161 : i32 to index
    %163 = memref.load %arg1[%c4, %162] : memref<8x16xi32, #tpu.memory_space<smem>>
    %c0_i32_126 = arith.constant 0 : i32
    %164 = tpu.memref_slice %arg2[%163, %c0_i32_126] : memref<32x128xf32, #tpu.memory_space<any>> -> memref<1x128xf32, #tpu.memory_space<any>>
    %c32_i32 = arith.constant 32 : i32
    %c0_i32_127 = arith.constant 0 : i32
    %165 = tpu.memref_slice %arg9[%c32_i32, %c0_i32_127] : memref<64x128xf32, #tpu.memory_space<vmem>> -> memref<1x128xf32, #tpu.memory_space<vmem>>
    tpu.enqueue_dma source(%164 : memref<1x128xf32, #tpu.memory_space<any>>) target(%165 : memref<1x128xf32, #tpu.memory_space<vmem>>) target_semaphore(%arg10 : memref<!tpu.dma_semaphore, #tpu.memory_space<semaphore_mem>>)
    %c1_i32_128 = arith.constant 1 : i32
    %166 = arith.addi %0, %c1_i32_128 : i32
    %c4_129 = arith.constant 4 : index
    %167 = arith.index_cast %166 : i32 to index
    %168 = memref.load %arg1[%c4_129, %167] : memref<8x16xi32, #tpu.memory_space<smem>>
    %c0_i32_130 = arith.constant 0 : i32
    %169 = tpu.memref_slice %arg2[%168, %c0_i32_130] : memref<32x128xf32, #tpu.memory_space<any>> -> memref<1x128xf32, #tpu.memory_space<any>>
    %c33_i32 = arith.constant 33 : i32
    %c0_i32_131 = arith.constant 0 : i32
    %170 = tpu.memref_slice %arg9[%c33_i32, %c0_i32_131] : memref<64x128xf32, #tpu.memory_space<vmem>> -> memref<1x128xf32, #tpu.memory_space<vmem>>
    tpu.enqueue_dma source(%169 : memref<1x128xf32, #tpu.memory_space<any>>) target(%170 : memref<1x128xf32, #tpu.memory_space<vmem>>) target_semaphore(%arg10 : memref<!tpu.dma_semaphore, #tpu.memory_space<semaphore_mem>>)
    %c2_i32_132 = arith.constant 2 : i32
    %171 = arith.addi %0, %c2_i32_132 : i32
    %c4_133 = arith.constant 4 : index
    %172 = arith.index_cast %171 : i32 to index
    %173 = memref.load %arg1[%c4_133, %172] : memref<8x16xi32, #tpu.memory_space<smem>>
    %c0_i32_134 = arith.constant 0 : i32
    %174 = tpu.memref_slice %arg2[%173, %c0_i32_134] : memref<32x128xf32, #tpu.memory_space<any>> -> memref<1x128xf32, #tpu.memory_space<any>>
    %c34_i32 = arith.constant 34 : i32
    %c0_i32_135 = arith.constant 0 : i32
    %175 = tpu.memref_slice %arg9[%c34_i32, %c0_i32_135] : memref<64x128xf32, #tpu.memory_space<vmem>> -> memref<1x128xf32, #tpu.memory_space<vmem>>
    tpu.enqueue_dma source(%174 : memref<1x128xf32, #tpu.memory_space<any>>) target(%175 : memref<1x128xf32, #tpu.memory_space<vmem>>) target_semaphore(%arg10 : memref<!tpu.dma_semaphore, #tpu.memory_space<semaphore_mem>>)
    %c3_i32_136 = arith.constant 3 : i32
    %176 = arith.addi %0, %c3_i32_136 : i32
    %c4_137 = arith.constant 4 : index
    %177 = arith.index_cast %176 : i32 to index
    %178 = memref.load %arg1[%c4_137, %177] : memref<8x16xi32, #tpu.memory_space<smem>>
    %c0_i32_138 = arith.constant 0 : i32
    %179 = tpu.memref_slice %arg2[%178, %c0_i32_138] : memref<32x128xf32, #tpu.memory_space<any>> -> memref<1x128xf32, #tpu.memory_space<any>>
    %c35_i32 = arith.constant 35 : i32
    %c0_i32_139 = arith.constant 0 : i32
    %180 = tpu.memref_slice %arg9[%c35_i32, %c0_i32_139] : memref<64x128xf32, #tpu.memory_space<vmem>> -> memref<1x128xf32, #tpu.memory_space<vmem>>
    tpu.enqueue_dma source(%179 : memref<1x128xf32, #tpu.memory_space<any>>) target(%180 : memref<1x128xf32, #tpu.memory_space<vmem>>) target_semaphore(%arg10 : memref<!tpu.dma_semaphore, #tpu.memory_space<semaphore_mem>>)
    %c4_i32_140 = arith.constant 4 : i32
    %181 = arith.addi %0, %c4_i32_140 : i32
    %c4_141 = arith.constant 4 : index
    %182 = arith.index_cast %181 : i32 to index
    %183 = memref.load %arg1[%c4_141, %182] : memref<8x16xi32, #tpu.memory_space<smem>>
    %c0_i32_142 = arith.constant 0 : i32
    %184 = tpu.memref_slice %arg2[%183, %c0_i32_142] : memref<32x128xf32, #tpu.memory_space<any>> -> memref<1x128xf32, #tpu.memory_space<any>>
    %c36_i32 = arith.constant 36 : i32
    %c0_i32_143 = arith.constant 0 : i32
    %185 = tpu.memref_slice %arg9[%c36_i32, %c0_i32_143] : memref<64x128xf32, #tpu.memory_space<vmem>> -> memref<1x128xf32, #tpu.memory_space<vmem>>
    tpu.enqueue_dma source(%184 : memref<1x128xf32, #tpu.memory_space<any>>) target(%185 : memref<1x128xf32, #tpu.memory_space<vmem>>) target_semaphore(%arg10 : memref<!tpu.dma_semaphore, #tpu.memory_space<semaphore_mem>>)
    %c5_i32_144 = arith.constant 5 : i32
    %186 = arith.addi %0, %c5_i32_144 : i32
    %c4_145 = arith.constant 4 : index
    %187 = arith.index_cast %186 : i32 to index
    %188 = memref.load %arg1[%c4_145, %187] : memref<8x16xi32, #tpu.memory_space<smem>>
    %c0_i32_146 = arith.constant 0 : i32
    %189 = tpu.memref_slice %arg2[%188, %c0_i32_146] : memref<32x128xf32, #tpu.memory_space<any>> -> memref<1x128xf32, #tpu.memory_space<any>>
    %c37_i32 = arith.constant 37 : i32
    %c0_i32_147 = arith.constant 0 : i32
    %190 = tpu.memref_slice %arg9[%c37_i32, %c0_i32_147] : memref<64x128xf32, #tpu.memory_space<vmem>> -> memref<1x128xf32, #tpu.memory_space<vmem>>
    tpu.enqueue_dma source(%189 : memref<1x128xf32, #tpu.memory_space<any>>) target(%190 : memref<1x128xf32, #tpu.memory_space<vmem>>) target_semaphore(%arg10 : memref<!tpu.dma_semaphore, #tpu.memory_space<semaphore_mem>>)
    %c6_i32_148 = arith.constant 6 : i32
    %191 = arith.addi %0, %c6_i32_148 : i32
    %c4_149 = arith.constant 4 : index
    %192 = arith.index_cast %191 : i32 to index
    %193 = memref.load %arg1[%c4_149, %192] : memref<8x16xi32, #tpu.memory_space<smem>>
    %c0_i32_150 = arith.constant 0 : i32
    %194 = tpu.memref_slice %arg2[%193, %c0_i32_150] : memref<32x128xf32, #tpu.memory_space<any>> -> memref<1x128xf32, #tpu.memory_space<any>>
    %c38_i32 = arith.constant 38 : i32
    %c0_i32_151 = arith.constant 0 : i32
    %195 = tpu.memref_slice %arg9[%c38_i32, %c0_i32_151] : memref<64x128xf32, #tpu.memory_space<vmem>> -> memref<1x128xf32, #tpu.memory_space<vmem>>
    tpu.enqueue_dma source(%194 : memref<1x128xf32, #tpu.memory_space<any>>) target(%195 : memref<1x128xf32, #tpu.memory_space<vmem>>) target_semaphore(%arg10 : memref<!tpu.dma_semaphore, #tpu.memory_space<semaphore_mem>>)
    %c7_i32_152 = arith.constant 7 : i32
    %196 = arith.addi %0, %c7_i32_152 : i32
    %c4_153 = arith.constant 4 : index
    %197 = arith.index_cast %196 : i32 to index
    %198 = memref.load %arg1[%c4_153, %197] : memref<8x16xi32, #tpu.memory_space<smem>>
    %c0_i32_154 = arith.constant 0 : i32
    %199 = tpu.memref_slice %arg2[%198, %c0_i32_154] : memref<32x128xf32, #tpu.memory_space<any>> -> memref<1x128xf32, #tpu.memory_space<any>>
    %c39_i32 = arith.constant 39 : i32
    %c0_i32_155 = arith.constant 0 : i32
    %200 = tpu.memref_slice %arg9[%c39_i32, %c0_i32_155] : memref<64x128xf32, #tpu.memory_space<vmem>> -> memref<1x128xf32, #tpu.memory_space<vmem>>
    tpu.enqueue_dma source(%199 : memref<1x128xf32, #tpu.memory_space<any>>) target(%200 : memref<1x128xf32, #tpu.memory_space<vmem>>) target_semaphore(%arg10 : memref<!tpu.dma_semaphore, #tpu.memory_space<semaphore_mem>>)
    %c0_i32_156 = arith.constant 0 : i32
    %201 = arith.addi %0, %c0_i32_156 : i32
    %c5 = arith.constant 5 : index
    %202 = arith.index_cast %201 : i32 to index
    %203 = memref.load %arg1[%c5, %202] : memref<8x16xi32, #tpu.memory_space<smem>>
    %c0_i32_157 = arith.constant 0 : i32
    %204 = tpu.memref_slice %arg2[%203, %c0_i32_157] : memref<32x128xf32, #tpu.memory_space<any>> -> memref<1x128xf32, #tpu.memory_space<any>>
    %c40_i32 = arith.constant 40 : i32
    %c0_i32_158 = arith.constant 0 : i32
    %205 = tpu.memref_slice %arg9[%c40_i32, %c0_i32_158] : memref<64x128xf32, #tpu.memory_space<vmem>> -> memref<1x128xf32, #tpu.memory_space<vmem>>
    tpu.enqueue_dma source(%204 : memref<1x128xf32, #tpu.memory_space<any>>) target(%205 : memref<1x128xf32, #tpu.memory_space<vmem>>) target_semaphore(%arg10 : memref<!tpu.dma_semaphore, #tpu.memory_space<semaphore_mem>>)
    %c1_i32_159 = arith.constant 1 : i32
    %206 = arith.addi %0, %c1_i32_159 : i32
    %c5_160 = arith.constant 5 : index
    %207 = arith.index_cast %206 : i32 to index
    %208 = memref.load %arg1[%c5_160, %207] : memref<8x16xi32, #tpu.memory_space<smem>>
    %c0_i32_161 = arith.constant 0 : i32
    %209 = tpu.memref_slice %arg2[%208, %c0_i32_161] : memref<32x128xf32, #tpu.memory_space<any>> -> memref<1x128xf32, #tpu.memory_space<any>>
    %c41_i32 = arith.constant 41 : i32
    %c0_i32_162 = arith.constant 0 : i32
    %210 = tpu.memref_slice %arg9[%c41_i32, %c0_i32_162] : memref<64x128xf32, #tpu.memory_space<vmem>> -> memref<1x128xf32, #tpu.memory_space<vmem>>
    tpu.enqueue_dma source(%209 : memref<1x128xf32, #tpu.memory_space<any>>) target(%210 : memref<1x128xf32, #tpu.memory_space<vmem>>) target_semaphore(%arg10 : memref<!tpu.dma_semaphore, #tpu.memory_space<semaphore_mem>>)
    %c2_i32_163 = arith.constant 2 : i32
    %211 = arith.addi %0, %c2_i32_163 : i32
    %c5_164 = arith.constant 5 : index
    %212 = arith.index_cast %211 : i32 to index
    %213 = memref.load %arg1[%c5_164, %212] : memref<8x16xi32, #tpu.memory_space<smem>>
    %c0_i32_165 = arith.constant 0 : i32
    %214 = tpu.memref_slice %arg2[%213, %c0_i32_165] : memref<32x128xf32, #tpu.memory_space<any>> -> memref<1x128xf32, #tpu.memory_space<any>>
    %c42_i32 = arith.constant 42 : i32
    %c0_i32_166 = arith.constant 0 : i32
    %215 = tpu.memref_slice %arg9[%c42_i32, %c0_i32_166] : memref<64x128xf32, #tpu.memory_space<vmem>> -> memref<1x128xf32, #tpu.memory_space<vmem>>
    tpu.enqueue_dma source(%214 : memref<1x128xf32, #tpu.memory_space<any>>) target(%215 : memref<1x128xf32, #tpu.memory_space<vmem>>) target_semaphore(%arg10 : memref<!tpu.dma_semaphore, #tpu.memory_space<semaphore_mem>>)
    %c3_i32_167 = arith.constant 3 : i32
    %216 = arith.addi %0, %c3_i32_167 : i32
    %c5_168 = arith.constant 5 : index
    %217 = arith.index_cast %216 : i32 to index
    %218 = memref.load %arg1[%c5_168, %217] : memref<8x16xi32, #tpu.memory_space<smem>>
    %c0_i32_169 = arith.constant 0 : i32
    %219 = tpu.memref_slice %arg2[%218, %c0_i32_169] : memref<32x128xf32, #tpu.memory_space<any>> -> memref<1x128xf32, #tpu.memory_space<any>>
    %c43_i32 = arith.constant 43 : i32
    %c0_i32_170 = arith.constant 0 : i32
    %220 = tpu.memref_slice %arg9[%c43_i32, %c0_i32_170] : memref<64x128xf32, #tpu.memory_space<vmem>> -> memref<1x128xf32, #tpu.memory_space<vmem>>
    tpu.enqueue_dma source(%219 : memref<1x128xf32, #tpu.memory_space<any>>) target(%220 : memref<1x128xf32, #tpu.memory_space<vmem>>) target_semaphore(%arg10 : memref<!tpu.dma_semaphore, #tpu.memory_space<semaphore_mem>>)
    %c4_i32_171 = arith.constant 4 : i32
    %221 = arith.addi %0, %c4_i32_171 : i32
    %c5_172 = arith.constant 5 : index
    %222 = arith.index_cast %221 : i32 to index
    %223 = memref.load %arg1[%c5_172, %222] : memref<8x16xi32, #tpu.memory_space<smem>>
    %c0_i32_173 = arith.constant 0 : i32
    %224 = tpu.memref_slice %arg2[%223, %c0_i32_173] : memref<32x128xf32, #tpu.memory_space<any>> -> memref<1x128xf32, #tpu.memory_space<any>>
    %c44_i32 = arith.constant 44 : i32
    %c0_i32_174 = arith.constant 0 : i32
    %225 = tpu.memref_slice %arg9[%c44_i32, %c0_i32_174] : memref<64x128xf32, #tpu.memory_space<vmem>> -> memref<1x128xf32, #tpu.memory_space<vmem>>
    tpu.enqueue_dma source(%224 : memref<1x128xf32, #tpu.memory_space<any>>) target(%225 : memref<1x128xf32, #tpu.memory_space<vmem>>) target_semaphore(%arg10 : memref<!tpu.dma_semaphore, #tpu.memory_space<semaphore_mem>>)
    %c5_i32_175 = arith.constant 5 : i32
    %226 = arith.addi %0, %c5_i32_175 : i32
    %c5_176 = arith.constant 5 : index
    %227 = arith.index_cast %226 : i32 to index
    %228 = memref.load %arg1[%c5_176, %227] : memref<8x16xi32, #tpu.memory_space<smem>>
    %c0_i32_177 = arith.constant 0 : i32
    %229 = tpu.memref_slice %arg2[%228, %c0_i32_177] : memref<32x128xf32, #tpu.memory_space<any>> -> memref<1x128xf32, #tpu.memory_space<any>>
    %c45_i32 = arith.constant 45 : i32
    %c0_i32_178 = arith.constant 0 : i32
    %230 = tpu.memref_slice %arg9[%c45_i32, %c0_i32_178] : memref<64x128xf32, #tpu.memory_space<vmem>> -> memref<1x128xf32, #tpu.memory_space<vmem>>
    tpu.enqueue_dma source(%229 : memref<1x128xf32, #tpu.memory_space<any>>) target(%230 : memref<1x128xf32, #tpu.memory_space<vmem>>) target_semaphore(%arg10 : memref<!tpu.dma_semaphore, #tpu.memory_space<semaphore_mem>>)
    %c6_i32_179 = arith.constant 6 : i32
    %231 = arith.addi %0, %c6_i32_179 : i32
    %c5_180 = arith.constant 5 : index
    %232 = arith.index_cast %231 : i32 to index
    %233 = memref.load %arg1[%c5_180, %232] : memref<8x16xi32, #tpu.memory_space<smem>>
    %c0_i32_181 = arith.constant 0 : i32
    %234 = tpu.memref_slice %arg2[%233, %c0_i32_181] : memref<32x128xf32, #tpu.memory_space<any>> -> memref<1x128xf32, #tpu.memory_space<any>>
    %c46_i32 = arith.constant 46 : i32
    %c0_i32_182 = arith.constant 0 : i32
    %235 = tpu.memref_slice %arg9[%c46_i32, %c0_i32_182] : memref<64x128xf32, #tpu.memory_space<vmem>> -> memref<1x128xf32, #tpu.memory_space<vmem>>
    tpu.enqueue_dma source(%234 : memref<1x128xf32, #tpu.memory_space<any>>) target(%235 : memref<1x128xf32, #tpu.memory_space<vmem>>) target_semaphore(%arg10 : memref<!tpu.dma_semaphore, #tpu.memory_space<semaphore_mem>>)
    %c7_i32_183 = arith.constant 7 : i32
    %236 = arith.addi %0, %c7_i32_183 : i32
    %c5_184 = arith.constant 5 : index
    %237 = arith.index_cast %236 : i32 to index
    %238 = memref.load %arg1[%c5_184, %237] : memref<8x16xi32, #tpu.memory_space<smem>>
    %c0_i32_185 = arith.constant 0 : i32
    %239 = tpu.memref_slice %arg2[%238, %c0_i32_185] : memref<32x128xf32, #tpu.memory_space<any>> -> memref<1x128xf32, #tpu.memory_space<any>>
    %c47_i32 = arith.constant 47 : i32
    %c0_i32_186 = arith.constant 0 : i32
    %240 = tpu.memref_slice %arg9[%c47_i32, %c0_i32_186] : memref<64x128xf32, #tpu.memory_space<vmem>> -> memref<1x128xf32, #tpu.memory_space<vmem>>
    tpu.enqueue_dma source(%239 : memref<1x128xf32, #tpu.memory_space<any>>) target(%240 : memref<1x128xf32, #tpu.memory_space<vmem>>) target_semaphore(%arg10 : memref<!tpu.dma_semaphore, #tpu.memory_space<semaphore_mem>>)
    %c0_i32_187 = arith.constant 0 : i32
    %241 = arith.addi %0, %c0_i32_187 : i32
    %c6 = arith.constant 6 : index
    %242 = arith.index_cast %241 : i32 to index
    %243 = memref.load %arg1[%c6, %242] : memref<8x16xi32, #tpu.memory_space<smem>>
    %c0_i32_188 = arith.constant 0 : i32
    %244 = tpu.memref_slice %arg2[%243, %c0_i32_188] : memref<32x128xf32, #tpu.memory_space<any>> -> memref<1x128xf32, #tpu.memory_space<any>>
    %c48_i32 = arith.constant 48 : i32
    %c0_i32_189 = arith.constant 0 : i32
    %245 = tpu.memref_slice %arg9[%c48_i32, %c0_i32_189] : memref<64x128xf32, #tpu.memory_space<vmem>> -> memref<1x128xf32, #tpu.memory_space<vmem>>
    tpu.enqueue_dma source(%244 : memref<1x128xf32, #tpu.memory_space<any>>) target(%245 : memref<1x128xf32, #tpu.memory_space<vmem>>) target_semaphore(%arg10 : memref<!tpu.dma_semaphore, #tpu.memory_space<semaphore_mem>>)
    %c1_i32_190 = arith.constant 1 : i32
    %246 = arith.addi %0, %c1_i32_190 : i32
    %c6_191 = arith.constant 6 : index
    %247 = arith.index_cast %246 : i32 to index
    %248 = memref.load %arg1[%c6_191, %247] : memref<8x16xi32, #tpu.memory_space<smem>>
    %c0_i32_192 = arith.constant 0 : i32
    %249 = tpu.memref_slice %arg2[%248, %c0_i32_192] : memref<32x128xf32, #tpu.memory_space<any>> -> memref<1x128xf32, #tpu.memory_space<any>>
    %c49_i32 = arith.constant 49 : i32
    %c0_i32_193 = arith.constant 0 : i32
    %250 = tpu.memref_slice %arg9[%c49_i32, %c0_i32_193] : memref<64x128xf32, #tpu.memory_space<vmem>> -> memref<1x128xf32, #tpu.memory_space<vmem>>
    tpu.enqueue_dma source(%249 : memref<1x128xf32, #tpu.memory_space<any>>) target(%250 : memref<1x128xf32, #tpu.memory_space<vmem>>) target_semaphore(%arg10 : memref<!tpu.dma_semaphore, #tpu.memory_space<semaphore_mem>>)
    %c2_i32_194 = arith.constant 2 : i32
    %251 = arith.addi %0, %c2_i32_194 : i32
    %c6_195 = arith.constant 6 : index
    %252 = arith.index_cast %251 : i32 to index
    %253 = memref.load %arg1[%c6_195, %252] : memref<8x16xi32, #tpu.memory_space<smem>>
    %c0_i32_196 = arith.constant 0 : i32
    %254 = tpu.memref_slice %arg2[%253, %c0_i32_196] : memref<32x128xf32, #tpu.memory_space<any>> -> memref<1x128xf32, #tpu.memory_space<any>>
    %c50_i32 = arith.constant 50 : i32
    %c0_i32_197 = arith.constant 0 : i32
    %255 = tpu.memref_slice %arg9[%c50_i32, %c0_i32_197] : memref<64x128xf32, #tpu.memory_space<vmem>> -> memref<1x128xf32, #tpu.memory_space<vmem>>
    tpu.enqueue_dma source(%254 : memref<1x128xf32, #tpu.memory_space<any>>) target(%255 : memref<1x128xf32, #tpu.memory_space<vmem>>) target_semaphore(%arg10 : memref<!tpu.dma_semaphore, #tpu.memory_space<semaphore_mem>>)
    %c3_i32_198 = arith.constant 3 : i32
    %256 = arith.addi %0, %c3_i32_198 : i32
    %c6_199 = arith.constant 6 : index
    %257 = arith.index_cast %256 : i32 to index
    %258 = memref.load %arg1[%c6_199, %257] : memref<8x16xi32, #tpu.memory_space<smem>>
    %c0_i32_200 = arith.constant 0 : i32
    %259 = tpu.memref_slice %arg2[%258, %c0_i32_200] : memref<32x128xf32, #tpu.memory_space<any>> -> memref<1x128xf32, #tpu.memory_space<any>>
    %c51_i32 = arith.constant 51 : i32
    %c0_i32_201 = arith.constant 0 : i32
    %260 = tpu.memref_slice %arg9[%c51_i32, %c0_i32_201] : memref<64x128xf32, #tpu.memory_space<vmem>> -> memref<1x128xf32, #tpu.memory_space<vmem>>
    tpu.enqueue_dma source(%259 : memref<1x128xf32, #tpu.memory_space<any>>) target(%260 : memref<1x128xf32, #tpu.memory_space<vmem>>) target_semaphore(%arg10 : memref<!tpu.dma_semaphore, #tpu.memory_space<semaphore_mem>>)
    %c4_i32_202 = arith.constant 4 : i32
    %261 = arith.addi %0, %c4_i32_202 : i32
    %c6_203 = arith.constant 6 : index
    %262 = arith.index_cast %261 : i32 to index
    %263 = memref.load %arg1[%c6_203, %262] : memref<8x16xi32, #tpu.memory_space<smem>>
    %c0_i32_204 = arith.constant 0 : i32
    %264 = tpu.memref_slice %arg2[%263, %c0_i32_204] : memref<32x128xf32, #tpu.memory_space<any>> -> memref<1x128xf32, #tpu.memory_space<any>>
    %c52_i32 = arith.constant 52 : i32
    %c0_i32_205 = arith.constant 0 : i32
    %265 = tpu.memref_slice %arg9[%c52_i32, %c0_i32_205] : memref<64x128xf32, #tpu.memory_space<vmem>> -> memref<1x128xf32, #tpu.memory_space<vmem>>
    tpu.enqueue_dma source(%264 : memref<1x128xf32, #tpu.memory_space<any>>) target(%265 : memref<1x128xf32, #tpu.memory_space<vmem>>) target_semaphore(%arg10 : memref<!tpu.dma_semaphore, #tpu.memory_space<semaphore_mem>>)
    %c5_i32_206 = arith.constant 5 : i32
    %266 = arith.addi %0, %c5_i32_206 : i32
    %c6_207 = arith.constant 6 : index
    %267 = arith.index_cast %266 : i32 to index
    %268 = memref.load %arg1[%c6_207, %267] : memref<8x16xi32, #tpu.memory_space<smem>>
    %c0_i32_208 = arith.constant 0 : i32
    %269 = tpu.memref_slice %arg2[%268, %c0_i32_208] : memref<32x128xf32, #tpu.memory_space<any>> -> memref<1x128xf32, #tpu.memory_space<any>>
    %c53_i32 = arith.constant 53 : i32
    %c0_i32_209 = arith.constant 0 : i32
    %270 = tpu.memref_slice %arg9[%c53_i32, %c0_i32_209] : memref<64x128xf32, #tpu.memory_space<vmem>> -> memref<1x128xf32, #tpu.memory_space<vmem>>
    tpu.enqueue_dma source(%269 : memref<1x128xf32, #tpu.memory_space<any>>) target(%270 : memref<1x128xf32, #tpu.memory_space<vmem>>) target_semaphore(%arg10 : memref<!tpu.dma_semaphore, #tpu.memory_space<semaphore_mem>>)
    %c6_i32_210 = arith.constant 6 : i32
    %271 = arith.addi %0, %c6_i32_210 : i32
    %c6_211 = arith.constant 6 : index
    %272 = arith.index_cast %271 : i32 to index
    %273 = memref.load %arg1[%c6_211, %272] : memref<8x16xi32, #tpu.memory_space<smem>>
    %c0_i32_212 = arith.constant 0 : i32
    %274 = tpu.memref_slice %arg2[%273, %c0_i32_212] : memref<32x128xf32, #tpu.memory_space<any>> -> memref<1x128xf32, #tpu.memory_space<any>>
    %c54_i32 = arith.constant 54 : i32
    %c0_i32_213 = arith.constant 0 : i32
    %275 = tpu.memref_slice %arg9[%c54_i32, %c0_i32_213] : memref<64x128xf32, #tpu.memory_space<vmem>> -> memref<1x128xf32, #tpu.memory_space<vmem>>
    tpu.enqueue_dma source(%274 : memref<1x128xf32, #tpu.memory_space<any>>) target(%275 : memref<1x128xf32, #tpu.memory_space<vmem>>) target_semaphore(%arg10 : memref<!tpu.dma_semaphore, #tpu.memory_space<semaphore_mem>>)
    %c7_i32_214 = arith.constant 7 : i32
    %276 = arith.addi %0, %c7_i32_214 : i32
    %c6_215 = arith.constant 6 : index
    %277 = arith.index_cast %276 : i32 to index
    %278 = memref.load %arg1[%c6_215, %277] : memref<8x16xi32, #tpu.memory_space<smem>>
    %c0_i32_216 = arith.constant 0 : i32
    %279 = tpu.memref_slice %arg2[%278, %c0_i32_216] : memref<32x128xf32, #tpu.memory_space<any>> -> memref<1x128xf32, #tpu.memory_space<any>>
    %c55_i32 = arith.constant 55 : i32
    %c0_i32_217 = arith.constant 0 : i32
    %280 = tpu.memref_slice %arg9[%c55_i32, %c0_i32_217] : memref<64x128xf32, #tpu.memory_space<vmem>> -> memref<1x128xf32, #tpu.memory_space<vmem>>
    tpu.enqueue_dma source(%279 : memref<1x128xf32, #tpu.memory_space<any>>) target(%280 : memref<1x128xf32, #tpu.memory_space<vmem>>) target_semaphore(%arg10 : memref<!tpu.dma_semaphore, #tpu.memory_space<semaphore_mem>>)
    %c0_i32_218 = arith.constant 0 : i32
    %281 = arith.addi %0, %c0_i32_218 : i32
    %c7 = arith.constant 7 : index
    %282 = arith.index_cast %281 : i32 to index
    %283 = memref.load %arg1[%c7, %282] : memref<8x16xi32, #tpu.memory_space<smem>>
    %c0_i32_219 = arith.constant 0 : i32
    %284 = tpu.memref_slice %arg2[%283, %c0_i32_219] : memref<32x128xf32, #tpu.memory_space<any>> -> memref<1x128xf32, #tpu.memory_space<any>>
    %c56_i32 = arith.constant 56 : i32
    %c0_i32_220 = arith.constant 0 : i32
    %285 = tpu.memref_slice %arg9[%c56_i32, %c0_i32_220] : memref<64x128xf32, #tpu.memory_space<vmem>> -> memref<1x128xf32, #tpu.memory_space<vmem>>
    tpu.enqueue_dma source(%284 : memref<1x128xf32, #tpu.memory_space<any>>) target(%285 : memref<1x128xf32, #tpu.memory_space<vmem>>) target_semaphore(%arg10 : memref<!tpu.dma_semaphore, #tpu.memory_space<semaphore_mem>>)
    %c1_i32_221 = arith.constant 1 : i32
    %286 = arith.addi %0, %c1_i32_221 : i32
    %c7_222 = arith.constant 7 : index
    %287 = arith.index_cast %286 : i32 to index
    %288 = memref.load %arg1[%c7_222, %287] : memref<8x16xi32, #tpu.memory_space<smem>>
    %c0_i32_223 = arith.constant 0 : i32
    %289 = tpu.memref_slice %arg2[%288, %c0_i32_223] : memref<32x128xf32, #tpu.memory_space<any>> -> memref<1x128xf32, #tpu.memory_space<any>>
    %c57_i32 = arith.constant 57 : i32
    %c0_i32_224 = arith.constant 0 : i32
    %290 = tpu.memref_slice %arg9[%c57_i32, %c0_i32_224] : memref<64x128xf32, #tpu.memory_space<vmem>> -> memref<1x128xf32, #tpu.memory_space<vmem>>
    tpu.enqueue_dma source(%289 : memref<1x128xf32, #tpu.memory_space<any>>) target(%290 : memref<1x128xf32, #tpu.memory_space<vmem>>) target_semaphore(%arg10 : memref<!tpu.dma_semaphore, #tpu.memory_space<semaphore_mem>>)
    %c2_i32_225 = arith.constant 2 : i32
    %291 = arith.addi %0, %c2_i32_225 : i32
    %c7_226 = arith.constant 7 : index
    %292 = arith.index_cast %291 : i32 to index
    %293 = memref.load %arg1[%c7_226, %292] : memref<8x16xi32, #tpu.memory_space<smem>>
    %c0_i32_227 = arith.constant 0 : i32
    %294 = tpu.memref_slice %arg2[%293, %c0_i32_227] : memref<32x128xf32, #tpu.memory_space<any>> -> memref<1x128xf32, #tpu.memory_space<any>>
    %c58_i32 = arith.constant 58 : i32
    %c0_i32_228 = arith.constant 0 : i32
    %295 = tpu.memref_slice %arg9[%c58_i32, %c0_i32_228] : memref<64x128xf32, #tpu.memory_space<vmem>> -> memref<1x128xf32, #tpu.memory_space<vmem>>
    tpu.enqueue_dma source(%294 : memref<1x128xf32, #tpu.memory_space<any>>) target(%295 : memref<1x128xf32, #tpu.memory_space<vmem>>) target_semaphore(%arg10 : memref<!tpu.dma_semaphore, #tpu.memory_space<semaphore_mem>>)
    %c3_i32_229 = arith.constant 3 : i32
    %296 = arith.addi %0, %c3_i32_229 : i32
    %c7_230 = arith.constant 7 : index
    %297 = arith.index_cast %296 : i32 to index
    %298 = memref.load %arg1[%c7_230, %297] : memref<8x16xi32, #tpu.memory_space<smem>>
    %c0_i32_231 = arith.constant 0 : i32
    %299 = tpu.memref_slice %arg2[%298, %c0_i32_231] : memref<32x128xf32, #tpu.memory_space<any>> -> memref<1x128xf32, #tpu.memory_space<any>>
    %c59_i32 = arith.constant 59 : i32
    %c0_i32_232 = arith.constant 0 : i32
    %300 = tpu.memref_slice %arg9[%c59_i32, %c0_i32_232] : memref<64x128xf32, #tpu.memory_space<vmem>> -> memref<1x128xf32, #tpu.memory_space<vmem>>
    tpu.enqueue_dma source(%299 : memref<1x128xf32, #tpu.memory_space<any>>) target(%300 : memref<1x128xf32, #tpu.memory_space<vmem>>) target_semaphore(%arg10 : memref<!tpu.dma_semaphore, #tpu.memory_space<semaphore_mem>>)
    %c4_i32_233 = arith.constant 4 : i32
    %301 = arith.addi %0, %c4_i32_233 : i32
    %c7_234 = arith.constant 7 : index
    %302 = arith.index_cast %301 : i32 to index
    %303 = memref.load %arg1[%c7_234, %302] : memref<8x16xi32, #tpu.memory_space<smem>>
    %c0_i32_235 = arith.constant 0 : i32
    %304 = tpu.memref_slice %arg2[%303, %c0_i32_235] : memref<32x128xf32, #tpu.memory_space<any>> -> memref<1x128xf32, #tpu.memory_space<any>>
    %c60_i32 = arith.constant 60 : i32
    %c0_i32_236 = arith.constant 0 : i32
    %305 = tpu.memref_slice %arg9[%c60_i32, %c0_i32_236] : memref<64x128xf32, #tpu.memory_space<vmem>> -> memref<1x128xf32, #tpu.memory_space<vmem>>
    tpu.enqueue_dma source(%304 : memref<1x128xf32, #tpu.memory_space<any>>) target(%305 : memref<1x128xf32, #tpu.memory_space<vmem>>) target_semaphore(%arg10 : memref<!tpu.dma_semaphore, #tpu.memory_space<semaphore_mem>>)
    %c5_i32_237 = arith.constant 5 : i32
    %306 = arith.addi %0, %c5_i32_237 : i32
    %c7_238 = arith.constant 7 : index
    %307 = arith.index_cast %306 : i32 to index
    %308 = memref.load %arg1[%c7_238, %307] : memref<8x16xi32, #tpu.memory_space<smem>>
    %c0_i32_239 = arith.constant 0 : i32
    %309 = tpu.memref_slice %arg2[%308, %c0_i32_239] : memref<32x128xf32, #tpu.memory_space<any>> -> memref<1x128xf32, #tpu.memory_space<any>>
    %c61_i32 = arith.constant 61 : i32
    %c0_i32_240 = arith.constant 0 : i32
    %310 = tpu.memref_slice %arg9[%c61_i32, %c0_i32_240] : memref<64x128xf32, #tpu.memory_space<vmem>> -> memref<1x128xf32, #tpu.memory_space<vmem>>
    tpu.enqueue_dma source(%309 : memref<1x128xf32, #tpu.memory_space<any>>) target(%310 : memref<1x128xf32, #tpu.memory_space<vmem>>) target_semaphore(%arg10 : memref<!tpu.dma_semaphore, #tpu.memory_space<semaphore_mem>>)
    %c6_i32_241 = arith.constant 6 : i32
    %311 = arith.addi %0, %c6_i32_241 : i32
    %c7_242 = arith.constant 7 : index
    %312 = arith.index_cast %311 : i32 to index
    %313 = memref.load %arg1[%c7_242, %312] : memref<8x16xi32, #tpu.memory_space<smem>>
    %c0_i32_243 = arith.constant 0 : i32
    %314 = tpu.memref_slice %arg2[%313, %c0_i32_243] : memref<32x128xf32, #tpu.memory_space<any>> -> memref<1x128xf32, #tpu.memory_space<any>>
    %c62_i32 = arith.constant 62 : i32
    %c0_i32_244 = arith.constant 0 : i32
    %315 = tpu.memref_slice %arg9[%c62_i32, %c0_i32_244] : memref<64x128xf32, #tpu.memory_space<vmem>> -> memref<1x128xf32, #tpu.memory_space<vmem>>
    tpu.enqueue_dma source(%314 : memref<1x128xf32, #tpu.memory_space<any>>) target(%315 : memref<1x128xf32, #tpu.memory_space<vmem>>) target_semaphore(%arg10 : memref<!tpu.dma_semaphore, #tpu.memory_space<semaphore_mem>>)
    %c7_i32_245 = arith.constant 7 : i32
    %316 = arith.addi %0, %c7_i32_245 : i32
    %c7_246 = arith.constant 7 : index
    %317 = arith.index_cast %316 : i32 to index
    %318 = memref.load %arg1[%c7_246, %317] : memref<8x16xi32, #tpu.memory_space<smem>>
    %c0_i32_247 = arith.constant 0 : i32
    %319 = tpu.memref_slice %arg2[%318, %c0_i32_247] : memref<32x128xf32, #tpu.memory_space<any>> -> memref<1x128xf32, #tpu.memory_space<any>>
    %c63_i32 = arith.constant 63 : i32
    %c0_i32_248 = arith.constant 0 : i32
    %320 = tpu.memref_slice %arg9[%c63_i32, %c0_i32_248] : memref<64x128xf32, #tpu.memory_space<vmem>> -> memref<1x128xf32, #tpu.memory_space<vmem>>
    tpu.enqueue_dma source(%319 : memref<1x128xf32, #tpu.memory_space<any>>) target(%320 : memref<1x128xf32, #tpu.memory_space<vmem>>) target_semaphore(%arg10 : memref<!tpu.dma_semaphore, #tpu.memory_space<semaphore_mem>>)
    %c0_i32_249 = arith.constant 0 : i32
    %321 = tpu.memref_slice %arg2[%3, %c0_i32_249] : memref<32x128xf32, #tpu.memory_space<any>> -> memref<1x128xf32, #tpu.memory_space<any>>
    %c0_i32_250 = arith.constant 0 : i32
    %c0_i32_251 = arith.constant 0 : i32
    %322 = tpu.memref_slice %arg9[%c0_i32_250, %c0_i32_251] : memref<64x128xf32, #tpu.memory_space<vmem>> -> memref<1x128xf32, #tpu.memory_space<vmem>>
    tpu.wait_dma2 semaphore(%arg10 : memref<!tpu.dma_semaphore, #tpu.memory_space<semaphore_mem>>) src(%321 : memref<1x128xf32, #tpu.memory_space<any>>) dst(%322 : memref<1x128xf32, #tpu.memory_space<vmem>>)
    %c0_i32_252 = arith.constant 0 : i32
    %323 = tpu.memref_slice %arg2[%8, %c0_i32_252] : memref<32x128xf32, #tpu.memory_space<any>> -> memref<1x128xf32, #tpu.memory_space<any>>
    %c1_i32_253 = arith.constant 1 : i32
    %c0_i32_254 = arith.constant 0 : i32
    %324 = tpu.memref_slice %arg9[%c1_i32_253, %c0_i32_254] : memref<64x128xf32, #tpu.memory_space<vmem>> -> memref<1x128xf32, #tpu.memory_space<vmem>>
    tpu.wait_dma2 semaphore(%arg10 : memref<!tpu.dma_semaphore, #tpu.memory_space<semaphore_mem>>) src(%323 : memref<1x128xf32, #tpu.memory_space<any>>) dst(%324 : memref<1x128xf32, #tpu.memory_space<vmem>>)
    %c0_i32_255 = arith.constant 0 : i32
    %325 = tpu.memref_slice %arg2[%13, %c0_i32_255] : memref<32x128xf32, #tpu.memory_space<any>> -> memref<1x128xf32, #tpu.memory_space<any>>
    %c2_i32_256 = arith.constant 2 : i32
    %c0_i32_257 = arith.constant 0 : i32
    %326 = tpu.memref_slice %arg9[%c2_i32_256, %c0_i32_257] : memref<64x128xf32, #tpu.memory_space<vmem>> -> memref<1x128xf32, #tpu.memory_space<vmem>>
    tpu.wait_dma2 semaphore(%arg10 : memref<!tpu.dma_semaphore, #tpu.memory_space<semaphore_mem>>) src(%325 : memref<1x128xf32, #tpu.memory_space<any>>) dst(%326 : memref<1x128xf32, #tpu.memory_space<vmem>>)
    %c0_i32_258 = arith.constant 0 : i32
    %327 = tpu.memref_slice %arg2[%18, %c0_i32_258] : memref<32x128xf32, #tpu.memory_space<any>> -> memref<1x128xf32, #tpu.memory_space<any>>
    %c3_i32_259 = arith.constant 3 : i32
    %c0_i32_260 = arith.constant 0 : i32
    %328 = tpu.memref_slice %arg9[%c3_i32_259, %c0_i32_260] : memref<64x128xf32, #tpu.memory_space<vmem>> -> memref<1x128xf32, #tpu.memory_space<vmem>>
    tpu.wait_dma2 semaphore(%arg10 : memref<!tpu.dma_semaphore, #tpu.memory_space<semaphore_mem>>) src(%327 : memref<1x128xf32, #tpu.memory_space<any>>) dst(%328 : memref<1x128xf32, #tpu.memory_space<vmem>>)
    %c0_i32_261 = arith.constant 0 : i32
    %329 = tpu.memref_slice %arg2[%23, %c0_i32_261] : memref<32x128xf32, #tpu.memory_space<any>> -> memref<1x128xf32, #tpu.memory_space<any>>
    %c4_i32_262 = arith.constant 4 : i32
    %c0_i32_263 = arith.constant 0 : i32
    %330 = tpu.memref_slice %arg9[%c4_i32_262, %c0_i32_263] : memref<64x128xf32, #tpu.memory_space<vmem>> -> memref<1x128xf32, #tpu.memory_space<vmem>>
    tpu.wait_dma2 semaphore(%arg10 : memref<!tpu.dma_semaphore, #tpu.memory_space<semaphore_mem>>) src(%329 : memref<1x128xf32, #tpu.memory_space<any>>) dst(%330 : memref<1x128xf32, #tpu.memory_space<vmem>>)
    %c0_i32_264 = arith.constant 0 : i32
    %331 = tpu.memref_slice %arg2[%28, %c0_i32_264] : memref<32x128xf32, #tpu.memory_space<any>> -> memref<1x128xf32, #tpu.memory_space<any>>
    %c5_i32_265 = arith.constant 5 : i32
    %c0_i32_266 = arith.constant 0 : i32
    %332 = tpu.memref_slice %arg9[%c5_i32_265, %c0_i32_266] : memref<64x128xf32, #tpu.memory_space<vmem>> -> memref<1x128xf32, #tpu.memory_space<vmem>>
    tpu.wait_dma2 semaphore(%arg10 : memref<!tpu.dma_semaphore, #tpu.memory_space<semaphore_mem>>) src(%331 : memref<1x128xf32, #tpu.memory_space<any>>) dst(%332 : memref<1x128xf32, #tpu.memory_space<vmem>>)
    %c0_i32_267 = arith.constant 0 : i32
    %333 = tpu.memref_slice %arg2[%33, %c0_i32_267] : memref<32x128xf32, #tpu.memory_space<any>> -> memref<1x128xf32, #tpu.memory_space<any>>
    %c6_i32_268 = arith.constant 6 : i32
    %c0_i32_269 = arith.constant 0 : i32
    %334 = tpu.memref_slice %arg9[%c6_i32_268, %c0_i32_269] : memref<64x128xf32, #tpu.memory_space<vmem>> -> memref<1x128xf32, #tpu.memory_space<vmem>>
    tpu.wait_dma2 semaphore(%arg10 : memref<!tpu.dma_semaphore, #tpu.memory_space<semaphore_mem>>) src(%333 : memref<1x128xf32, #tpu.memory_space<any>>) dst(%334 : memref<1x128xf32, #tpu.memory_space<vmem>>)
    %c0_i32_270 = arith.constant 0 : i32
    %335 = tpu.memref_slice %arg2[%38, %c0_i32_270] : memref<32x128xf32, #tpu.memory_space<any>> -> memref<1x128xf32, #tpu.memory_space<any>>
    %c7_i32_271 = arith.constant 7 : i32
    %c0_i32_272 = arith.constant 0 : i32
    %336 = tpu.memref_slice %arg9[%c7_i32_271, %c0_i32_272] : memref<64x128xf32, #tpu.memory_space<vmem>> -> memref<1x128xf32, #tpu.memory_space<vmem>>
    tpu.wait_dma2 semaphore(%arg10 : memref<!tpu.dma_semaphore, #tpu.memory_space<semaphore_mem>>) src(%335 : memref<1x128xf32, #tpu.memory_space<any>>) dst(%336 : memref<1x128xf32, #tpu.memory_space<vmem>>)
    %c0_i32_273 = arith.constant 0 : i32
    %337 = tpu.memref_slice %arg2[%43, %c0_i32_273] : memref<32x128xf32, #tpu.memory_space<any>> -> memref<1x128xf32, #tpu.memory_space<any>>
    %c8_i32_274 = arith.constant 8 : i32
    %c0_i32_275 = arith.constant 0 : i32
    %338 = tpu.memref_slice %arg9[%c8_i32_274, %c0_i32_275] : memref<64x128xf32, #tpu.memory_space<vmem>> -> memref<1x128xf32, #tpu.memory_space<vmem>>
    tpu.wait_dma2 semaphore(%arg10 : memref<!tpu.dma_semaphore, #tpu.memory_space<semaphore_mem>>) src(%337 : memref<1x128xf32, #tpu.memory_space<any>>) dst(%338 : memref<1x128xf32, #tpu.memory_space<vmem>>)
    %c0_i32_276 = arith.constant 0 : i32
    %339 = tpu.memref_slice %arg2[%48, %c0_i32_276] : memref<32x128xf32, #tpu.memory_space<any>> -> memref<1x128xf32, #tpu.memory_space<any>>
    %c9_i32_277 = arith.constant 9 : i32
    %c0_i32_278 = arith.constant 0 : i32
    %340 = tpu.memref_slice %arg9[%c9_i32_277, %c0_i32_278] : memref<64x128xf32, #tpu.memory_space<vmem>> -> memref<1x128xf32, #tpu.memory_space<vmem>>
    tpu.wait_dma2 semaphore(%arg10 : memref<!tpu.dma_semaphore, #tpu.memory_space<semaphore_mem>>) src(%339 : memref<1x128xf32, #tpu.memory_space<any>>) dst(%340 : memref<1x128xf32, #tpu.memory_space<vmem>>)
    %c0_i32_279 = arith.constant 0 : i32
    %341 = tpu.memref_slice %arg2[%53, %c0_i32_279] : memref<32x128xf32, #tpu.memory_space<any>> -> memref<1x128xf32, #tpu.memory_space<any>>
    %c10_i32_280 = arith.constant 10 : i32
    %c0_i32_281 = arith.constant 0 : i32
    %342 = tpu.memref_slice %arg9[%c10_i32_280, %c0_i32_281] : memref<64x128xf32, #tpu.memory_space<vmem>> -> memref<1x128xf32, #tpu.memory_space<vmem>>
    tpu.wait_dma2 semaphore(%arg10 : memref<!tpu.dma_semaphore, #tpu.memory_space<semaphore_mem>>) src(%341 : memref<1x128xf32, #tpu.memory_space<any>>) dst(%342 : memref<1x128xf32, #tpu.memory_space<vmem>>)
    %c0_i32_282 = arith.constant 0 : i32
    %343 = tpu.memref_slice %arg2[%58, %c0_i32_282] : memref<32x128xf32, #tpu.memory_space<any>> -> memref<1x128xf32, #tpu.memory_space<any>>
    %c11_i32_283 = arith.constant 11 : i32
    %c0_i32_284 = arith.constant 0 : i32
    %344 = tpu.memref_slice %arg9[%c11_i32_283, %c0_i32_284] : memref<64x128xf32, #tpu.memory_space<vmem>> -> memref<1x128xf32, #tpu.memory_space<vmem>>
    tpu.wait_dma2 semaphore(%arg10 : memref<!tpu.dma_semaphore, #tpu.memory_space<semaphore_mem>>) src(%343 : memref<1x128xf32, #tpu.memory_space<any>>) dst(%344 : memref<1x128xf32, #tpu.memory_space<vmem>>)
    %c0_i32_285 = arith.constant 0 : i32
    %345 = tpu.memref_slice %arg2[%63, %c0_i32_285] : memref<32x128xf32, #tpu.memory_space<any>> -> memref<1x128xf32, #tpu.memory_space<any>>
    %c12_i32_286 = arith.constant 12 : i32
    %c0_i32_287 = arith.constant 0 : i32
    %346 = tpu.memref_slice %arg9[%c12_i32_286, %c0_i32_287] : memref<64x128xf32, #tpu.memory_space<vmem>> -> memref<1x128xf32, #tpu.memory_space<vmem>>
    tpu.wait_dma2 semaphore(%arg10 : memref<!tpu.dma_semaphore, #tpu.memory_space<semaphore_mem>>) src(%345 : memref<1x128xf32, #tpu.memory_space<any>>) dst(%346 : memref<1x128xf32, #tpu.memory_space<vmem>>)
    %c0_i32_288 = arith.constant 0 : i32
    %347 = tpu.memref_slice %arg2[%68, %c0_i32_288] : memref<32x128xf32, #tpu.memory_space<any>> -> memref<1x128xf32, #tpu.memory_space<any>>
    %c13_i32_289 = arith.constant 13 : i32
    %c0_i32_290 = arith.constant 0 : i32
    %348 = tpu.memref_slice %arg9[%c13_i32_289, %c0_i32_290] : memref<64x128xf32, #tpu.memory_space<vmem>> -> memref<1x128xf32, #tpu.memory_space<vmem>>
    tpu.wait_dma2 semaphore(%arg10 : memref<!tpu.dma_semaphore, #tpu.memory_space<semaphore_mem>>) src(%347 : memref<1x128xf32, #tpu.memory_space<any>>) dst(%348 : memref<1x128xf32, #tpu.memory_space<vmem>>)
    %c0_i32_291 = arith.constant 0 : i32
    %349 = tpu.memref_slice %arg2[%73, %c0_i32_291] : memref<32x128xf32, #tpu.memory_space<any>> -> memref<1x128xf32, #tpu.memory_space<any>>
    %c14_i32_292 = arith.constant 14 : i32
    %c0_i32_293 = arith.constant 0 : i32
    %350 = tpu.memref_slice %arg9[%c14_i32_292, %c0_i32_293] : memref<64x128xf32, #tpu.memory_space<vmem>> -> memref<1x128xf32, #tpu.memory_space<vmem>>
    tpu.wait_dma2 semaphore(%arg10 : memref<!tpu.dma_semaphore, #tpu.memory_space<semaphore_mem>>) src(%349 : memref<1x128xf32, #tpu.memory_space<any>>) dst(%350 : memref<1x128xf32, #tpu.memory_space<vmem>>)
    %c0_i32_294 = arith.constant 0 : i32
    %351 = tpu.memref_slice %arg2[%78, %c0_i32_294] : memref<32x128xf32, #tpu.memory_space<any>> -> memref<1x128xf32, #tpu.memory_space<any>>
    %c15_i32_295 = arith.constant 15 : i32
    %c0_i32_296 = arith.constant 0 : i32
    %352 = tpu.memref_slice %arg9[%c15_i32_295, %c0_i32_296] : memref<64x128xf32, #tpu.memory_space<vmem>> -> memref<1x128xf32, #tpu.memory_space<vmem>>
    tpu.wait_dma2 semaphore(%arg10 : memref<!tpu.dma_semaphore, #tpu.memory_space<semaphore_mem>>) src(%351 : memref<1x128xf32, #tpu.memory_space<any>>) dst(%352 : memref<1x128xf32, #tpu.memory_space<vmem>>)
    %c0_i32_297 = arith.constant 0 : i32
    %353 = tpu.memref_slice %arg2[%83, %c0_i32_297] : memref<32x128xf32, #tpu.memory_space<any>> -> memref<1x128xf32, #tpu.memory_space<any>>
    %c16_i32_298 = arith.constant 16 : i32
    %c0_i32_299 = arith.constant 0 : i32
    %354 = tpu.memref_slice %arg9[%c16_i32_298, %c0_i32_299] : memref<64x128xf32, #tpu.memory_space<vmem>> -> memref<1x128xf32, #tpu.memory_space<vmem>>
    tpu.wait_dma2 semaphore(%arg10 : memref<!tpu.dma_semaphore, #tpu.memory_space<semaphore_mem>>) src(%353 : memref<1x128xf32, #tpu.memory_space<any>>) dst(%354 : memref<1x128xf32, #tpu.memory_space<vmem>>)
    %c0_i32_300 = arith.constant 0 : i32
    %355 = tpu.memref_slice %arg2[%88, %c0_i32_300] : memref<32x128xf32, #tpu.memory_space<any>> -> memref<1x128xf32, #tpu.memory_space<any>>
    %c17_i32_301 = arith.constant 17 : i32
    %c0_i32_302 = arith.constant 0 : i32
    %356 = tpu.memref_slice %arg9[%c17_i32_301, %c0_i32_302] : memref<64x128xf32, #tpu.memory_space<vmem>> -> memref<1x128xf32, #tpu.memory_space<vmem>>
    tpu.wait_dma2 semaphore(%arg10 : memref<!tpu.dma_semaphore, #tpu.memory_space<semaphore_mem>>) src(%355 : memref<1x128xf32, #tpu.memory_space<any>>) dst(%356 : memref<1x128xf32, #tpu.memory_space<vmem>>)
    %c0_i32_303 = arith.constant 0 : i32
    %357 = tpu.memref_slice %arg2[%93, %c0_i32_303] : memref<32x128xf32, #tpu.memory_space<any>> -> memref<1x128xf32, #tpu.memory_space<any>>
    %c18_i32_304 = arith.constant 18 : i32
    %c0_i32_305 = arith.constant 0 : i32
    %358 = tpu.memref_slice %arg9[%c18_i32_304, %c0_i32_305] : memref<64x128xf32, #tpu.memory_space<vmem>> -> memref<1x128xf32, #tpu.memory_space<vmem>>
    tpu.wait_dma2 semaphore(%arg10 : memref<!tpu.dma_semaphore, #tpu.memory_space<semaphore_mem>>) src(%357 : memref<1x128xf32, #tpu.memory_space<any>>) dst(%358 : memref<1x128xf32, #tpu.memory_space<vmem>>)
    %c0_i32_306 = arith.constant 0 : i32
    %359 = tpu.memref_slice %arg2[%98, %c0_i32_306] : memref<32x128xf32, #tpu.memory_space<any>> -> memref<1x128xf32, #tpu.memory_space<any>>
    %c19_i32_307 = arith.constant 19 : i32
    %c0_i32_308 = arith.constant 0 : i32
    %360 = tpu.memref_slice %arg9[%c19_i32_307, %c0_i32_308] : memref<64x128xf32, #tpu.memory_space<vmem>> -> memref<1x128xf32, #tpu.memory_space<vmem>>
    tpu.wait_dma2 semaphore(%arg10 : memref<!tpu.dma_semaphore, #tpu.memory_space<semaphore_mem>>) src(%359 : memref<1x128xf32, #tpu.memory_space<any>>) dst(%360 : memref<1x128xf32, #tpu.memory_space<vmem>>)
    %c0_i32_309 = arith.constant 0 : i32
    %361 = tpu.memref_slice %arg2[%103, %c0_i32_309] : memref<32x128xf32, #tpu.memory_space<any>> -> memref<1x128xf32, #tpu.memory_space<any>>
    %c20_i32_310 = arith.constant 20 : i32
    %c0_i32_311 = arith.constant 0 : i32
    %362 = tpu.memref_slice %arg9[%c20_i32_310, %c0_i32_311] : memref<64x128xf32, #tpu.memory_space<vmem>> -> memref<1x128xf32, #tpu.memory_space<vmem>>
    tpu.wait_dma2 semaphore(%arg10 : memref<!tpu.dma_semaphore, #tpu.memory_space<semaphore_mem>>) src(%361 : memref<1x128xf32, #tpu.memory_space<any>>) dst(%362 : memref<1x128xf32, #tpu.memory_space<vmem>>)
    %c0_i32_312 = arith.constant 0 : i32
    %363 = tpu.memref_slice %arg2[%108, %c0_i32_312] : memref<32x128xf32, #tpu.memory_space<any>> -> memref<1x128xf32, #tpu.memory_space<any>>
    %c21_i32_313 = arith.constant 21 : i32
    %c0_i32_314 = arith.constant 0 : i32
    %364 = tpu.memref_slice %arg9[%c21_i32_313, %c0_i32_314] : memref<64x128xf32, #tpu.memory_space<vmem>> -> memref<1x128xf32, #tpu.memory_space<vmem>>
    tpu.wait_dma2 semaphore(%arg10 : memref<!tpu.dma_semaphore, #tpu.memory_space<semaphore_mem>>) src(%363 : memref<1x128xf32, #tpu.memory_space<any>>) dst(%364 : memref<1x128xf32, #tpu.memory_space<vmem>>)
    %c0_i32_315 = arith.constant 0 : i32
    %365 = tpu.memref_slice %arg2[%113, %c0_i32_315] : memref<32x128xf32, #tpu.memory_space<any>> -> memref<1x128xf32, #tpu.memory_space<any>>
    %c22_i32_316 = arith.constant 22 : i32
    %c0_i32_317 = arith.constant 0 : i32
    %366 = tpu.memref_slice %arg9[%c22_i32_316, %c0_i32_317] : memref<64x128xf32, #tpu.memory_space<vmem>> -> memref<1x128xf32, #tpu.memory_space<vmem>>
    tpu.wait_dma2 semaphore(%arg10 : memref<!tpu.dma_semaphore, #tpu.memory_space<semaphore_mem>>) src(%365 : memref<1x128xf32, #tpu.memory_space<any>>) dst(%366 : memref<1x128xf32, #tpu.memory_space<vmem>>)
    %c0_i32_318 = arith.constant 0 : i32
    %367 = tpu.memref_slice %arg2[%118, %c0_i32_318] : memref<32x128xf32, #tpu.memory_space<any>> -> memref<1x128xf32, #tpu.memory_space<any>>
    %c23_i32_319 = arith.constant 23 : i32
    %c0_i32_320 = arith.constant 0 : i32
    %368 = tpu.memref_slice %arg9[%c23_i32_319, %c0_i32_320] : memref<64x128xf32, #tpu.memory_space<vmem>> -> memref<1x128xf32, #tpu.memory_space<vmem>>
    tpu.wait_dma2 semaphore(%arg10 : memref<!tpu.dma_semaphore, #tpu.memory_space<semaphore_mem>>) src(%367 : memref<1x128xf32, #tpu.memory_space<any>>) dst(%368 : memref<1x128xf32, #tpu.memory_space<vmem>>)
    %c0_i32_321 = arith.constant 0 : i32
    %369 = tpu.memref_slice %arg2[%123, %c0_i32_321] : memref<32x128xf32, #tpu.memory_space<any>> -> memref<1x128xf32, #tpu.memory_space<any>>
    %c24_i32_322 = arith.constant 24 : i32
    %c0_i32_323 = arith.constant 0 : i32
    %370 = tpu.memref_slice %arg9[%c24_i32_322, %c0_i32_323] : memref<64x128xf32, #tpu.memory_space<vmem>> -> memref<1x128xf32, #tpu.memory_space<vmem>>
    tpu.wait_dma2 semaphore(%arg10 : memref<!tpu.dma_semaphore, #tpu.memory_space<semaphore_mem>>) src(%369 : memref<1x128xf32, #tpu.memory_space<any>>) dst(%370 : memref<1x128xf32, #tpu.memory_space<vmem>>)
    %c0_i32_324 = arith.constant 0 : i32
    %371 = tpu.memref_slice %arg2[%128, %c0_i32_324] : memref<32x128xf32, #tpu.memory_space<any>> -> memref<1x128xf32, #tpu.memory_space<any>>
    %c25_i32_325 = arith.constant 25 : i32
    %c0_i32_326 = arith.constant 0 : i32
    %372 = tpu.memref_slice %arg9[%c25_i32_325, %c0_i32_326] : memref<64x128xf32, #tpu.memory_space<vmem>> -> memref<1x128xf32, #tpu.memory_space<vmem>>
    tpu.wait_dma2 semaphore(%arg10 : memref<!tpu.dma_semaphore, #tpu.memory_space<semaphore_mem>>) src(%371 : memref<1x128xf32, #tpu.memory_space<any>>) dst(%372 : memref<1x128xf32, #tpu.memory_space<vmem>>)
    %c0_i32_327 = arith.constant 0 : i32
    %373 = tpu.memref_slice %arg2[%133, %c0_i32_327] : memref<32x128xf32, #tpu.memory_space<any>> -> memref<1x128xf32, #tpu.memory_space<any>>
    %c26_i32_328 = arith.constant 26 : i32
    %c0_i32_329 = arith.constant 0 : i32
    %374 = tpu.memref_slice %arg9[%c26_i32_328, %c0_i32_329] : memref<64x128xf32, #tpu.memory_space<vmem>> -> memref<1x128xf32, #tpu.memory_space<vmem>>
    tpu.wait_dma2 semaphore(%arg10 : memref<!tpu.dma_semaphore, #tpu.memory_space<semaphore_mem>>) src(%373 : memref<1x128xf32, #tpu.memory_space<any>>) dst(%374 : memref<1x128xf32, #tpu.memory_space<vmem>>)
    %c0_i32_330 = arith.constant 0 : i32
    %375 = tpu.memref_slice %arg2[%138, %c0_i32_330] : memref<32x128xf32, #tpu.memory_space<any>> -> memref<1x128xf32, #tpu.memory_space<any>>
    %c27_i32_331 = arith.constant 27 : i32
    %c0_i32_332 = arith.constant 0 : i32
    %376 = tpu.memref_slice %arg9[%c27_i32_331, %c0_i32_332] : memref<64x128xf32, #tpu.memory_space<vmem>> -> memref<1x128xf32, #tpu.memory_space<vmem>>
    tpu.wait_dma2 semaphore(%arg10 : memref<!tpu.dma_semaphore, #tpu.memory_space<semaphore_mem>>) src(%375 : memref<1x128xf32, #tpu.memory_space<any>>) dst(%376 : memref<1x128xf32, #tpu.memory_space<vmem>>)
    %c0_i32_333 = arith.constant 0 : i32
    %377 = tpu.memref_slice %arg2[%143, %c0_i32_333] : memref<32x128xf32, #tpu.memory_space<any>> -> memref<1x128xf32, #tpu.memory_space<any>>
    %c28_i32_334 = arith.constant 28 : i32
    %c0_i32_335 = arith.constant 0 : i32
    %378 = tpu.memref_slice %arg9[%c28_i32_334, %c0_i32_335] : memref<64x128xf32, #tpu.memory_space<vmem>> -> memref<1x128xf32, #tpu.memory_space<vmem>>
    tpu.wait_dma2 semaphore(%arg10 : memref<!tpu.dma_semaphore, #tpu.memory_space<semaphore_mem>>) src(%377 : memref<1x128xf32, #tpu.memory_space<any>>) dst(%378 : memref<1x128xf32, #tpu.memory_space<vmem>>)
    %c0_i32_336 = arith.constant 0 : i32
    %379 = tpu.memref_slice %arg2[%148, %c0_i32_336] : memref<32x128xf32, #tpu.memory_space<any>> -> memref<1x128xf32, #tpu.memory_space<any>>
    %c29_i32_337 = arith.constant 29 : i32
    %c0_i32_338 = arith.constant 0 : i32
    %380 = tpu.memref_slice %arg9[%c29_i32_337, %c0_i32_338] : memref<64x128xf32, #tpu.memory_space<vmem>> -> memref<1x128xf32, #tpu.memory_space<vmem>>
    tpu.wait_dma2 semaphore(%arg10 : memref<!tpu.dma_semaphore, #tpu.memory_space<semaphore_mem>>) src(%379 : memref<1x128xf32, #tpu.memory_space<any>>) dst(%380 : memref<1x128xf32, #tpu.memory_space<vmem>>)
    %c0_i32_339 = arith.constant 0 : i32
    %381 = tpu.memref_slice %arg2[%153, %c0_i32_339] : memref<32x128xf32, #tpu.memory_space<any>> -> memref<1x128xf32, #tpu.memory_space<any>>
    %c30_i32_340 = arith.constant 30 : i32
    %c0_i32_341 = arith.constant 0 : i32
    %382 = tpu.memref_slice %arg9[%c30_i32_340, %c0_i32_341] : memref<64x128xf32, #tpu.memory_space<vmem>> -> memref<1x128xf32, #tpu.memory_space<vmem>>
    tpu.wait_dma2 semaphore(%arg10 : memref<!tpu.dma_semaphore, #tpu.memory_space<semaphore_mem>>) src(%381 : memref<1x128xf32, #tpu.memory_space<any>>) dst(%382 : memref<1x128xf32, #tpu.memory_space<vmem>>)
    %c0_i32_342 = arith.constant 0 : i32
    %383 = tpu.memref_slice %arg2[%158, %c0_i32_342] : memref<32x128xf32, #tpu.memory_space<any>> -> memref<1x128xf32, #tpu.memory_space<any>>
    %c31_i32_343 = arith.constant 31 : i32
    %c0_i32_344 = arith.constant 0 : i32
    %384 = tpu.memref_slice %arg9[%c31_i32_343, %c0_i32_344] : memref<64x128xf32, #tpu.memory_space<vmem>> -> memref<1x128xf32, #tpu.memory_space<vmem>>
    tpu.wait_dma2 semaphore(%arg10 : memref<!tpu.dma_semaphore, #tpu.memory_space<semaphore_mem>>) src(%383 : memref<1x128xf32, #tpu.memory_space<any>>) dst(%384 : memref<1x128xf32, #tpu.memory_space<vmem>>)
    %c0_i32_345 = arith.constant 0 : i32
    %385 = tpu.memref_slice %arg2[%163, %c0_i32_345] : memref<32x128xf32, #tpu.memory_space<any>> -> memref<1x128xf32, #tpu.memory_space<any>>
    %c32_i32_346 = arith.constant 32 : i32
    %c0_i32_347 = arith.constant 0 : i32
    %386 = tpu.memref_slice %arg9[%c32_i32_346, %c0_i32_347] : memref<64x128xf32, #tpu.memory_space<vmem>> -> memref<1x128xf32, #tpu.memory_space<vmem>>
    tpu.wait_dma2 semaphore(%arg10 : memref<!tpu.dma_semaphore, #tpu.memory_space<semaphore_mem>>) src(%385 : memref<1x128xf32, #tpu.memory_space<any>>) dst(%386 : memref<1x128xf32, #tpu.memory_space<vmem>>)
    %c0_i32_348 = arith.constant 0 : i32
    %387 = tpu.memref_slice %arg2[%168, %c0_i32_348] : memref<32x128xf32, #tpu.memory_space<any>> -> memref<1x128xf32, #tpu.memory_space<any>>
    %c33_i32_349 = arith.constant 33 : i32
    %c0_i32_350 = arith.constant 0 : i32
    %388 = tpu.memref_slice %arg9[%c33_i32_349, %c0_i32_350] : memref<64x128xf32, #tpu.memory_space<vmem>> -> memref<1x128xf32, #tpu.memory_space<vmem>>
    tpu.wait_dma2 semaphore(%arg10 : memref<!tpu.dma_semaphore, #tpu.memory_space<semaphore_mem>>) src(%387 : memref<1x128xf32, #tpu.memory_space<any>>) dst(%388 : memref<1x128xf32, #tpu.memory_space<vmem>>)
    %c0_i32_351 = arith.constant 0 : i32
    %389 = tpu.memref_slice %arg2[%173, %c0_i32_351] : memref<32x128xf32, #tpu.memory_space<any>> -> memref<1x128xf32, #tpu.memory_space<any>>
    %c34_i32_352 = arith.constant 34 : i32
    %c0_i32_353 = arith.constant 0 : i32
    %390 = tpu.memref_slice %arg9[%c34_i32_352, %c0_i32_353] : memref<64x128xf32, #tpu.memory_space<vmem>> -> memref<1x128xf32, #tpu.memory_space<vmem>>
    tpu.wait_dma2 semaphore(%arg10 : memref<!tpu.dma_semaphore, #tpu.memory_space<semaphore_mem>>) src(%389 : memref<1x128xf32, #tpu.memory_space<any>>) dst(%390 : memref<1x128xf32, #tpu.memory_space<vmem>>)
    %c0_i32_354 = arith.constant 0 : i32
    %391 = tpu.memref_slice %arg2[%178, %c0_i32_354] : memref<32x128xf32, #tpu.memory_space<any>> -> memref<1x128xf32, #tpu.memory_space<any>>
    %c35_i32_355 = arith.constant 35 : i32
    %c0_i32_356 = arith.constant 0 : i32
    %392 = tpu.memref_slice %arg9[%c35_i32_355, %c0_i32_356] : memref<64x128xf32, #tpu.memory_space<vmem>> -> memref<1x128xf32, #tpu.memory_space<vmem>>
    tpu.wait_dma2 semaphore(%arg10 : memref<!tpu.dma_semaphore, #tpu.memory_space<semaphore_mem>>) src(%391 : memref<1x128xf32, #tpu.memory_space<any>>) dst(%392 : memref<1x128xf32, #tpu.memory_space<vmem>>)
    %c0_i32_357 = arith.constant 0 : i32
    %393 = tpu.memref_slice %arg2[%183, %c0_i32_357] : memref<32x128xf32, #tpu.memory_space<any>> -> memref<1x128xf32, #tpu.memory_space<any>>
    %c36_i32_358 = arith.constant 36 : i32
    %c0_i32_359 = arith.constant 0 : i32
    %394 = tpu.memref_slice %arg9[%c36_i32_358, %c0_i32_359] : memref<64x128xf32, #tpu.memory_space<vmem>> -> memref<1x128xf32, #tpu.memory_space<vmem>>
    tpu.wait_dma2 semaphore(%arg10 : memref<!tpu.dma_semaphore, #tpu.memory_space<semaphore_mem>>) src(%393 : memref<1x128xf32, #tpu.memory_space<any>>) dst(%394 : memref<1x128xf32, #tpu.memory_space<vmem>>)
    %c0_i32_360 = arith.constant 0 : i32
    %395 = tpu.memref_slice %arg2[%188, %c0_i32_360] : memref<32x128xf32, #tpu.memory_space<any>> -> memref<1x128xf32, #tpu.memory_space<any>>
    %c37_i32_361 = arith.constant 37 : i32
    %c0_i32_362 = arith.constant 0 : i32
    %396 = tpu.memref_slice %arg9[%c37_i32_361, %c0_i32_362] : memref<64x128xf32, #tpu.memory_space<vmem>> -> memref<1x128xf32, #tpu.memory_space<vmem>>
    tpu.wait_dma2 semaphore(%arg10 : memref<!tpu.dma_semaphore, #tpu.memory_space<semaphore_mem>>) src(%395 : memref<1x128xf32, #tpu.memory_space<any>>) dst(%396 : memref<1x128xf32, #tpu.memory_space<vmem>>)
    %c0_i32_363 = arith.constant 0 : i32
    %397 = tpu.memref_slice %arg2[%193, %c0_i32_363] : memref<32x128xf32, #tpu.memory_space<any>> -> memref<1x128xf32, #tpu.memory_space<any>>
    %c38_i32_364 = arith.constant 38 : i32
    %c0_i32_365 = arith.constant 0 : i32
    %398 = tpu.memref_slice %arg9[%c38_i32_364, %c0_i32_365] : memref<64x128xf32, #tpu.memory_space<vmem>> -> memref<1x128xf32, #tpu.memory_space<vmem>>
    tpu.wait_dma2 semaphore(%arg10 : memref<!tpu.dma_semaphore, #tpu.memory_space<semaphore_mem>>) src(%397 : memref<1x128xf32, #tpu.memory_space<any>>) dst(%398 : memref<1x128xf32, #tpu.memory_space<vmem>>)
    %c0_i32_366 = arith.constant 0 : i32
    %399 = tpu.memref_slice %arg2[%198, %c0_i32_366] : memref<32x128xf32, #tpu.memory_space<any>> -> memref<1x128xf32, #tpu.memory_space<any>>
    %c39_i32_367 = arith.constant 39 : i32
    %c0_i32_368 = arith.constant 0 : i32
    %400 = tpu.memref_slice %arg9[%c39_i32_367, %c0_i32_368] : memref<64x128xf32, #tpu.memory_space<vmem>> -> memref<1x128xf32, #tpu.memory_space<vmem>>
    tpu.wait_dma2 semaphore(%arg10 : memref<!tpu.dma_semaphore, #tpu.memory_space<semaphore_mem>>) src(%399 : memref<1x128xf32, #tpu.memory_space<any>>) dst(%400 : memref<1x128xf32, #tpu.memory_space<vmem>>)
    %c0_i32_369 = arith.constant 0 : i32
    %401 = tpu.memref_slice %arg2[%203, %c0_i32_369] : memref<32x128xf32, #tpu.memory_space<any>> -> memref<1x128xf32, #tpu.memory_space<any>>
    %c40_i32_370 = arith.constant 40 : i32
    %c0_i32_371 = arith.constant 0 : i32
    %402 = tpu.memref_slice %arg9[%c40_i32_370, %c0_i32_371] : memref<64x128xf32, #tpu.memory_space<vmem>> -> memref<1x128xf32, #tpu.memory_space<vmem>>
    tpu.wait_dma2 semaphore(%arg10 : memref<!tpu.dma_semaphore, #tpu.memory_space<semaphore_mem>>) src(%401 : memref<1x128xf32, #tpu.memory_space<any>>) dst(%402 : memref<1x128xf32, #tpu.memory_space<vmem>>)
    %c0_i32_372 = arith.constant 0 : i32
    %403 = tpu.memref_slice %arg2[%208, %c0_i32_372] : memref<32x128xf32, #tpu.memory_space<any>> -> memref<1x128xf32, #tpu.memory_space<any>>
    %c41_i32_373 = arith.constant 41 : i32
    %c0_i32_374 = arith.constant 0 : i32
    %404 = tpu.memref_slice %arg9[%c41_i32_373, %c0_i32_374] : memref<64x128xf32, #tpu.memory_space<vmem>> -> memref<1x128xf32, #tpu.memory_space<vmem>>
    tpu.wait_dma2 semaphore(%arg10 : memref<!tpu.dma_semaphore, #tpu.memory_space<semaphore_mem>>) src(%403 : memref<1x128xf32, #tpu.memory_space<any>>) dst(%404 : memref<1x128xf32, #tpu.memory_space<vmem>>)
    %c0_i32_375 = arith.constant 0 : i32
    %405 = tpu.memref_slice %arg2[%213, %c0_i32_375] : memref<32x128xf32, #tpu.memory_space<any>> -> memref<1x128xf32, #tpu.memory_space<any>>
    %c42_i32_376 = arith.constant 42 : i32
    %c0_i32_377 = arith.constant 0 : i32
    %406 = tpu.memref_slice %arg9[%c42_i32_376, %c0_i32_377] : memref<64x128xf32, #tpu.memory_space<vmem>> -> memref<1x128xf32, #tpu.memory_space<vmem>>
    tpu.wait_dma2 semaphore(%arg10 : memref<!tpu.dma_semaphore, #tpu.memory_space<semaphore_mem>>) src(%405 : memref<1x128xf32, #tpu.memory_space<any>>) dst(%406 : memref<1x128xf32, #tpu.memory_space<vmem>>)
    %c0_i32_378 = arith.constant 0 : i32
    %407 = tpu.memref_slice %arg2[%218, %c0_i32_378] : memref<32x128xf32, #tpu.memory_space<any>> -> memref<1x128xf32, #tpu.memory_space<any>>
    %c43_i32_379 = arith.constant 43 : i32
    %c0_i32_380 = arith.constant 0 : i32
    %408 = tpu.memref_slice %arg9[%c43_i32_379, %c0_i32_380] : memref<64x128xf32, #tpu.memory_space<vmem>> -> memref<1x128xf32, #tpu.memory_space<vmem>>
    tpu.wait_dma2 semaphore(%arg10 : memref<!tpu.dma_semaphore, #tpu.memory_space<semaphore_mem>>) src(%407 : memref<1x128xf32, #tpu.memory_space<any>>) dst(%408 : memref<1x128xf32, #tpu.memory_space<vmem>>)
    %c0_i32_381 = arith.constant 0 : i32
    %409 = tpu.memref_slice %arg2[%223, %c0_i32_381] : memref<32x128xf32, #tpu.memory_space<any>> -> memref<1x128xf32, #tpu.memory_space<any>>
    %c44_i32_382 = arith.constant 44 : i32
    %c0_i32_383 = arith.constant 0 : i32
    %410 = tpu.memref_slice %arg9[%c44_i32_382, %c0_i32_383] : memref<64x128xf32, #tpu.memory_space<vmem>> -> memref<1x128xf32, #tpu.memory_space<vmem>>
    tpu.wait_dma2 semaphore(%arg10 : memref<!tpu.dma_semaphore, #tpu.memory_space<semaphore_mem>>) src(%409 : memref<1x128xf32, #tpu.memory_space<any>>) dst(%410 : memref<1x128xf32, #tpu.memory_space<vmem>>)
    %c0_i32_384 = arith.constant 0 : i32
    %411 = tpu.memref_slice %arg2[%228, %c0_i32_384] : memref<32x128xf32, #tpu.memory_space<any>> -> memref<1x128xf32, #tpu.memory_space<any>>
    %c45_i32_385 = arith.constant 45 : i32
    %c0_i32_386 = arith.constant 0 : i32
    %412 = tpu.memref_slice %arg9[%c45_i32_385, %c0_i32_386] : memref<64x128xf32, #tpu.memory_space<vmem>> -> memref<1x128xf32, #tpu.memory_space<vmem>>
    tpu.wait_dma2 semaphore(%arg10 : memref<!tpu.dma_semaphore, #tpu.memory_space<semaphore_mem>>) src(%411 : memref<1x128xf32, #tpu.memory_space<any>>) dst(%412 : memref<1x128xf32, #tpu.memory_space<vmem>>)
    %c0_i32_387 = arith.constant 0 : i32
    %413 = tpu.memref_slice %arg2[%233, %c0_i32_387] : memref<32x128xf32, #tpu.memory_space<any>> -> memref<1x128xf32, #tpu.memory_space<any>>
    %c46_i32_388 = arith.constant 46 : i32
    %c0_i32_389 = arith.constant 0 : i32
    %414 = tpu.memref_slice %arg9[%c46_i32_388, %c0_i32_389] : memref<64x128xf32, #tpu.memory_space<vmem>> -> memref<1x128xf32, #tpu.memory_space<vmem>>
    tpu.wait_dma2 semaphore(%arg10 : memref<!tpu.dma_semaphore, #tpu.memory_space<semaphore_mem>>) src(%413 : memref<1x128xf32, #tpu.memory_space<any>>) dst(%414 : memref<1x128xf32, #tpu.memory_space<vmem>>)
    %c0_i32_390 = arith.constant 0 : i32
    %415 = tpu.memref_slice %arg2[%238, %c0_i32_390] : memref<32x128xf32, #tpu.memory_space<any>> -> memref<1x128xf32, #tpu.memory_space<any>>
    %c47_i32_391 = arith.constant 47 : i32
    %c0_i32_392 = arith.constant 0 : i32
    %416 = tpu.memref_slice %arg9[%c47_i32_391, %c0_i32_392] : memref<64x128xf32, #tpu.memory_space<vmem>> -> memref<1x128xf32, #tpu.memory_space<vmem>>
    tpu.wait_dma2 semaphore(%arg10 : memref<!tpu.dma_semaphore, #tpu.memory_space<semaphore_mem>>) src(%415 : memref<1x128xf32, #tpu.memory_space<any>>) dst(%416 : memref<1x128xf32, #tpu.memory_space<vmem>>)
    %c0_i32_393 = arith.constant 0 : i32
    %417 = tpu.memref_slice %arg2[%243, %c0_i32_393] : memref<32x128xf32, #tpu.memory_space<any>> -> memref<1x128xf32, #tpu.memory_space<any>>
    %c48_i32_394 = arith.constant 48 : i32
    %c0_i32_395 = arith.constant 0 : i32
    %418 = tpu.memref_slice %arg9[%c48_i32_394, %c0_i32_395] : memref<64x128xf32, #tpu.memory_space<vmem>> -> memref<1x128xf32, #tpu.memory_space<vmem>>
    tpu.wait_dma2 semaphore(%arg10 : memref<!tpu.dma_semaphore, #tpu.memory_space<semaphore_mem>>) src(%417 : memref<1x128xf32, #tpu.memory_space<any>>) dst(%418 : memref<1x128xf32, #tpu.memory_space<vmem>>)
    %c0_i32_396 = arith.constant 0 : i32
    %419 = tpu.memref_slice %arg2[%248, %c0_i32_396] : memref<32x128xf32, #tpu.memory_space<any>> -> memref<1x128xf32, #tpu.memory_space<any>>
    %c49_i32_397 = arith.constant 49 : i32
    %c0_i32_398 = arith.constant 0 : i32
    %420 = tpu.memref_slice %arg9[%c49_i32_397, %c0_i32_398] : memref<64x128xf32, #tpu.memory_space<vmem>> -> memref<1x128xf32, #tpu.memory_space<vmem>>
    tpu.wait_dma2 semaphore(%arg10 : memref<!tpu.dma_semaphore, #tpu.memory_space<semaphore_mem>>) src(%419 : memref<1x128xf32, #tpu.memory_space<any>>) dst(%420 : memref<1x128xf32, #tpu.memory_space<vmem>>)
    %c0_i32_399 = arith.constant 0 : i32
    %421 = tpu.memref_slice %arg2[%253, %c0_i32_399] : memref<32x128xf32, #tpu.memory_space<any>> -> memref<1x128xf32, #tpu.memory_space<any>>
    %c50_i32_400 = arith.constant 50 : i32
    %c0_i32_401 = arith.constant 0 : i32
    %422 = tpu.memref_slice %arg9[%c50_i32_400, %c0_i32_401] : memref<64x128xf32, #tpu.memory_space<vmem>> -> memref<1x128xf32, #tpu.memory_space<vmem>>
    tpu.wait_dma2 semaphore(%arg10 : memref<!tpu.dma_semaphore, #tpu.memory_space<semaphore_mem>>) src(%421 : memref<1x128xf32, #tpu.memory_space<any>>) dst(%422 : memref<1x128xf32, #tpu.memory_space<vmem>>)
    %c0_i32_402 = arith.constant 0 : i32
    %423 = tpu.memref_slice %arg2[%258, %c0_i32_402] : memref<32x128xf32, #tpu.memory_space<any>> -> memref<1x128xf32, #tpu.memory_space<any>>
    %c51_i32_403 = arith.constant 51 : i32
    %c0_i32_404 = arith.constant 0 : i32
    %424 = tpu.memref_slice %arg9[%c51_i32_403, %c0_i32_404] : memref<64x128xf32, #tpu.memory_space<vmem>> -> memref<1x128xf32, #tpu.memory_space<vmem>>
    tpu.wait_dma2 semaphore(%arg10 : memref<!tpu.dma_semaphore, #tpu.memory_space<semaphore_mem>>) src(%423 : memref<1x128xf32, #tpu.memory_space<any>>) dst(%424 : memref<1x128xf32, #tpu.memory_space<vmem>>)
    %c0_i32_405 = arith.constant 0 : i32
    %425 = tpu.memref_slice %arg2[%263, %c0_i32_405] : memref<32x128xf32, #tpu.memory_space<any>> -> memref<1x128xf32, #tpu.memory_space<any>>
    %c52_i32_406 = arith.constant 52 : i32
    %c0_i32_407 = arith.constant 0 : i32
    %426 = tpu.memref_slice %arg9[%c52_i32_406, %c0_i32_407] : memref<64x128xf32, #tpu.memory_space<vmem>> -> memref<1x128xf32, #tpu.memory_space<vmem>>
    tpu.wait_dma2 semaphore(%arg10 : memref<!tpu.dma_semaphore, #tpu.memory_space<semaphore_mem>>) src(%425 : memref<1x128xf32, #tpu.memory_space<any>>) dst(%426 : memref<1x128xf32, #tpu.memory_space<vmem>>)
    %c0_i32_408 = arith.constant 0 : i32
    %427 = tpu.memref_slice %arg2[%268, %c0_i32_408] : memref<32x128xf32, #tpu.memory_space<any>> -> memref<1x128xf32, #tpu.memory_space<any>>
    %c53_i32_409 = arith.constant 53 : i32
    %c0_i32_410 = arith.constant 0 : i32
    %428 = tpu.memref_slice %arg9[%c53_i32_409, %c0_i32_410] : memref<64x128xf32, #tpu.memory_space<vmem>> -> memref<1x128xf32, #tpu.memory_space<vmem>>
    tpu.wait_dma2 semaphore(%arg10 : memref<!tpu.dma_semaphore, #tpu.memory_space<semaphore_mem>>) src(%427 : memref<1x128xf32, #tpu.memory_space<any>>) dst(%428 : memref<1x128xf32, #tpu.memory_space<vmem>>)
    %c0_i32_411 = arith.constant 0 : i32
    %429 = tpu.memref_slice %arg2[%273, %c0_i32_411] : memref<32x128xf32, #tpu.memory_space<any>> -> memref<1x128xf32, #tpu.memory_space<any>>
    %c54_i32_412 = arith.constant 54 : i32
    %c0_i32_413 = arith.constant 0 : i32
    %430 = tpu.memref_slice %arg9[%c54_i32_412, %c0_i32_413] : memref<64x128xf32, #tpu.memory_space<vmem>> -> memref<1x128xf32, #tpu.memory_space<vmem>>
    tpu.wait_dma2 semaphore(%arg10 : memref<!tpu.dma_semaphore, #tpu.memory_space<semaphore_mem>>) src(%429 : memref<1x128xf32, #tpu.memory_space<any>>) dst(%430 : memref<1x128xf32, #tpu.memory_space<vmem>>)
    %c0_i32_414 = arith.constant 0 : i32
    %431 = tpu.memref_slice %arg2[%278, %c0_i32_414] : memref<32x128xf32, #tpu.memory_space<any>> -> memref<1x128xf32, #tpu.memory_space<any>>
    %c55_i32_415 = arith.constant 55 : i32
    %c0_i32_416 = arith.constant 0 : i32
    %432 = tpu.memref_slice %arg9[%c55_i32_415, %c0_i32_416] : memref<64x128xf32, #tpu.memory_space<vmem>> -> memref<1x128xf32, #tpu.memory_space<vmem>>
    tpu.wait_dma2 semaphore(%arg10 : memref<!tpu.dma_semaphore, #tpu.memory_space<semaphore_mem>>) src(%431 : memref<1x128xf32, #tpu.memory_space<any>>) dst(%432 : memref<1x128xf32, #tpu.memory_space<vmem>>)
    %c0_i32_417 = arith.constant 0 : i32
    %433 = tpu.memref_slice %arg2[%283, %c0_i32_417] : memref<32x128xf32, #tpu.memory_space<any>> -> memref<1x128xf32, #tpu.memory_space<any>>
    %c56_i32_418 = arith.constant 56 : i32
    %c0_i32_419 = arith.constant 0 : i32
    %434 = tpu.memref_slice %arg9[%c56_i32_418, %c0_i32_419] : memref<64x128xf32, #tpu.memory_space<vmem>> -> memref<1x128xf32, #tpu.memory_space<vmem>>
    tpu.wait_dma2 semaphore(%arg10 : memref<!tpu.dma_semaphore, #tpu.memory_space<semaphore_mem>>) src(%433 : memref<1x128xf32, #tpu.memory_space<any>>) dst(%434 : memref<1x128xf32, #tpu.memory_space<vmem>>)
    %c0_i32_420 = arith.constant 0 : i32
    %435 = tpu.memref_slice %arg2[%288, %c0_i32_420] : memref<32x128xf32, #tpu.memory_space<any>> -> memref<1x128xf32, #tpu.memory_space<any>>
    %c57_i32_421 = arith.constant 57 : i32
    %c0_i32_422 = arith.constant 0 : i32
    %436 = tpu.memref_slice %arg9[%c57_i32_421, %c0_i32_422] : memref<64x128xf32, #tpu.memory_space<vmem>> -> memref<1x128xf32, #tpu.memory_space<vmem>>
    tpu.wait_dma2 semaphore(%arg10 : memref<!tpu.dma_semaphore, #tpu.memory_space<semaphore_mem>>) src(%435 : memref<1x128xf32, #tpu.memory_space<any>>) dst(%436 : memref<1x128xf32, #tpu.memory_space<vmem>>)
    %c0_i32_423 = arith.constant 0 : i32
    %437 = tpu.memref_slice %arg2[%293, %c0_i32_423] : memref<32x128xf32, #tpu.memory_space<any>> -> memref<1x128xf32, #tpu.memory_space<any>>
    %c58_i32_424 = arith.constant 58 : i32
    %c0_i32_425 = arith.constant 0 : i32
    %438 = tpu.memref_slice %arg9[%c58_i32_424, %c0_i32_425] : memref<64x128xf32, #tpu.memory_space<vmem>> -> memref<1x128xf32, #tpu.memory_space<vmem>>
    tpu.wait_dma2 semaphore(%arg10 : memref<!tpu.dma_semaphore, #tpu.memory_space<semaphore_mem>>) src(%437 : memref<1x128xf32, #tpu.memory_space<any>>) dst(%438 : memref<1x128xf32, #tpu.memory_space<vmem>>)
    %c0_i32_426 = arith.constant 0 : i32
    %439 = tpu.memref_slice %arg2[%298, %c0_i32_426] : memref<32x128xf32, #tpu.memory_space<any>> -> memref<1x128xf32, #tpu.memory_space<any>>
    %c59_i32_427 = arith.constant 59 : i32
    %c0_i32_428 = arith.constant 0 : i32
    %440 = tpu.memref_slice %arg9[%c59_i32_427, %c0_i32_428] : memref<64x128xf32, #tpu.memory_space<vmem>> -> memref<1x128xf32, #tpu.memory_space<vmem>>
    tpu.wait_dma2 semaphore(%arg10 : memref<!tpu.dma_semaphore, #tpu.memory_space<semaphore_mem>>) src(%439 : memref<1x128xf32, #tpu.memory_space<any>>) dst(%440 : memref<1x128xf32, #tpu.memory_space<vmem>>)
    %c0_i32_429 = arith.constant 0 : i32
    %441 = tpu.memref_slice %arg2[%303, %c0_i32_429] : memref<32x128xf32, #tpu.memory_space<any>> -> memref<1x128xf32, #tpu.memory_space<any>>
    %c60_i32_430 = arith.constant 60 : i32
    %c0_i32_431 = arith.constant 0 : i32
    %442 = tpu.memref_slice %arg9[%c60_i32_430, %c0_i32_431] : memref<64x128xf32, #tpu.memory_space<vmem>> -> memref<1x128xf32, #tpu.memory_space<vmem>>
    tpu.wait_dma2 semaphore(%arg10 : memref<!tpu.dma_semaphore, #tpu.memory_space<semaphore_mem>>) src(%441 : memref<1x128xf32, #tpu.memory_space<any>>) dst(%442 : memref<1x128xf32, #tpu.memory_space<vmem>>)
    %c0_i32_432 = arith.constant 0 : i32
    %443 = tpu.memref_slice %arg2[%308, %c0_i32_432] : memref<32x128xf32, #tpu.memory_space<any>> -> memref<1x128xf32, #tpu.memory_space<any>>
    %c61_i32_433 = arith.constant 61 : i32
    %c0_i32_434 = arith.constant 0 : i32
    %444 = tpu.memref_slice %arg9[%c61_i32_433, %c0_i32_434] : memref<64x128xf32, #tpu.memory_space<vmem>> -> memref<1x128xf32, #tpu.memory_space<vmem>>
    tpu.wait_dma2 semaphore(%arg10 : memref<!tpu.dma_semaphore, #tpu.memory_space<semaphore_mem>>) src(%443 : memref<1x128xf32, #tpu.memory_space<any>>) dst(%444 : memref<1x128xf32, #tpu.memory_space<vmem>>)
    %c0_i32_435 = arith.constant 0 : i32
    %445 = tpu.memref_slice %arg2[%313, %c0_i32_435] : memref<32x128xf32, #tpu.memory_space<any>> -> memref<1x128xf32, #tpu.memory_space<any>>
    %c62_i32_436 = arith.constant 62 : i32
    %c0_i32_437 = arith.constant 0 : i32
    %446 = tpu.memref_slice %arg9[%c62_i32_436, %c0_i32_437] : memref<64x128xf32, #tpu.memory_space<vmem>> -> memref<1x128xf32, #tpu.memory_space<vmem>>
    tpu.wait_dma2 semaphore(%arg10 : memref<!tpu.dma_semaphore, #tpu.memory_space<semaphore_mem>>) src(%445 : memref<1x128xf32, #tpu.memory_space<any>>) dst(%446 : memref<1x128xf32, #tpu.memory_space<vmem>>)
    %c0_i32_438 = arith.constant 0 : i32
    %447 = tpu.memref_slice %arg2[%318, %c0_i32_438] : memref<32x128xf32, #tpu.memory_space<any>> -> memref<1x128xf32, #tpu.memory_space<any>>
    %c63_i32_439 = arith.constant 63 : i32
    %c0_i32_440 = arith.constant 0 : i32
    %448 = tpu.memref_slice %arg9[%c63_i32_439, %c0_i32_440] : memref<64x128xf32, #tpu.memory_space<vmem>> -> memref<1x128xf32, #tpu.memory_space<vmem>>
    tpu.wait_dma2 semaphore(%arg10 : memref<!tpu.dma_semaphore, #tpu.memory_space<semaphore_mem>>) src(%447 : memref<1x128xf32, #tpu.memory_space<any>>) dst(%448 : memref<1x128xf32, #tpu.memory_space<vmem>>)
    %c0_441 = arith.constant 0 : index
    %c0_442 = arith.constant 0 : index
    %449 = vector.load %arg9[%c0_441, %c0_442] : memref<64x128xf32, #tpu.memory_space<vmem>>, vector<64x128xf32>
    %c0_443 = arith.constant 0 : index
    %c0_444 = arith.constant 0 : index
    %c0_445 = arith.constant 0 : index
    %450 = vector.load %arg3[%c0_443, %c0_444, %c0_445] : memref<3x128x128xbf16, #tpu.memory_space<vmem>>, vector<1x128x128xbf16>
    %451 = vector.shape_cast %450 : vector<1x128x128xbf16> to vector<128x128xbf16>
    %c0_446 = arith.constant 0 : index
    %c0_447 = arith.constant 0 : index
    %c0_448 = arith.constant 0 : index
    %452 = vector.load %arg4[%c0_446, %c0_447, %c0_448] : memref<3x128x128xbf16, #tpu.memory_space<vmem>>, vector<1x128x128xbf16>
    %453 = vector.shape_cast %452 : vector<1x128x128xbf16> to vector<128x128xbf16>
    %454 = arith.truncf %449 : vector<64x128xf32> to vector<64x128xbf16>
    %cst = arith.constant dense<0.000000e+00> : vector<64x128xf32>
    %455 = tpu.matmul %454, %451, %cst {dimension_numbers = #tpu.dot_dimension_numbers<[1], [0], [0], [1], [0, 0, 1, 1], [], []>} : vector<64x128xbf16>, vector<128x128xbf16>, vector<64x128xf32> -> vector<64x128xf32>
    %c0_449 = arith.constant 0 : index
    %c0_450 = arith.constant 0 : index
    %c0_451 = arith.constant 0 : index
    %456 = vector.load %arg5[%c0_449, %c0_450, %c0_451] : memref<3x1x128xf32, #tpu.memory_space<vmem>>, vector<1x1x128xf32>
    %457 = vector.shape_cast %456 : vector<1x1x128xf32> to vector<1x128xf32>
    %458 = vector.broadcast %457 : vector<1x128xf32> to vector<64x128xf32>
    %459 = arith.addf %455, %458 : vector<64x128xf32>
    %460 = vector.shape_cast %459 : vector<64x128xf32> to vector<8x8x128xf32>
    %c0_452 = arith.constant 0 : index
    %c0_453 = arith.constant 0 : index
    %c0_454 = arith.constant 0 : index
    %461 = vector.load %arg6[%c0_452, %c0_453, %c0_454] : memref<3x8x128xf32, #tpu.memory_space<vmem>>, vector<1x8x128xf32>
    %462 = vector.shape_cast %461 : vector<1x8x128xf32> to vector<8x128xf32>
    %463 = vector.extract_strided_slice %460 {offsets = [0, 0, 0], sizes = [1, 8, 128], strides = [1, 1, 1]} : vector<8x8x128xf32> to vector<1x8x128xf32>
    %464 = vector.shape_cast %463 : vector<1x8x128xf32> to vector<8x128xf32>
    %465 = arith.truncf %462 : vector<8x128xf32> to vector<8x128xbf16>
    %cst_455 = arith.constant dense<0.000000e+00> : vector<8x128xf32>
    %466 = tpu.matmul %465, %453, %cst_455 {dimension_numbers = #tpu.dot_dimension_numbers<[1], [0], [0], [1], [0, 0, 1, 1], [], []>} : vector<8x128xbf16>, vector<128x128xbf16>, vector<8x128xf32> -> vector<8x128xf32>
    %467 = arith.addf %464, %466 : vector<8x128xf32>
    %468 = math.tanh %467 : vector<8x128xf32>
    %469 = vector.extract_strided_slice %460 {offsets = [1, 0, 0], sizes = [1, 8, 128], strides = [1, 1, 1]} : vector<8x8x128xf32> to vector<1x8x128xf32>
    %470 = vector.shape_cast %469 : vector<1x8x128xf32> to vector<8x128xf32>
    %471 = arith.truncf %468 : vector<8x128xf32> to vector<8x128xbf16>
    %cst_456 = arith.constant dense<0.000000e+00> : vector<8x128xf32>
    %472 = tpu.matmul %471, %453, %cst_456 {dimension_numbers = #tpu.dot_dimension_numbers<[1], [0], [0], [1], [0, 0, 1, 1], [], []>} : vector<8x128xbf16>, vector<128x128xbf16>, vector<8x128xf32> -> vector<8x128xf32>
    %473 = arith.addf %470, %472 : vector<8x128xf32>
    %474 = math.tanh %473 : vector<8x128xf32>
    %475 = vector.extract_strided_slice %460 {offsets = [2, 0, 0], sizes = [1, 8, 128], strides = [1, 1, 1]} : vector<8x8x128xf32> to vector<1x8x128xf32>
    %476 = vector.shape_cast %475 : vector<1x8x128xf32> to vector<8x128xf32>
    %477 = arith.truncf %474 : vector<8x128xf32> to vector<8x128xbf16>
    %cst_457 = arith.constant dense<0.000000e+00> : vector<8x128xf32>
    %478 = tpu.matmul %477, %453, %cst_457 {dimension_numbers = #tpu.dot_dimension_numbers<[1], [0], [0], [1], [0, 0, 1, 1], [], []>} : vector<8x128xbf16>, vector<128x128xbf16>, vector<8x128xf32> -> vector<8x128xf32>
    %479 = arith.addf %476, %478 : vector<8x128xf32>
    %480 = math.tanh %479 : vector<8x128xf32>
    %481 = vector.extract_strided_slice %460 {offsets = [3, 0, 0], sizes = [1, 8, 128], strides = [1, 1, 1]} : vector<8x8x128xf32> to vector<1x8x128xf32>
    %482 = vector.shape_cast %481 : vector<1x8x128xf32> to vector<8x128xf32>
    %483 = arith.truncf %480 : vector<8x128xf32> to vector<8x128xbf16>
    %cst_458 = arith.constant dense<0.000000e+00> : vector<8x128xf32>
    %484 = tpu.matmul %483, %453, %cst_458 {dimension_numbers = #tpu.dot_dimension_numbers<[1], [0], [0], [1], [0, 0, 1, 1], [], []>} : vector<8x128xbf16>, vector<128x128xbf16>, vector<8x128xf32> -> vector<8x128xf32>
    %485 = arith.addf %482, %484 : vector<8x128xf32>
    %486 = math.tanh %485 : vector<8x128xf32>
    %487 = vector.extract_strided_slice %460 {offsets = [4, 0, 0], sizes = [1, 8, 128], strides = [1, 1, 1]} : vector<8x8x128xf32> to vector<1x8x128xf32>
    %488 = vector.shape_cast %487 : vector<1x8x128xf32> to vector<8x128xf32>
    %489 = arith.truncf %486 : vector<8x128xf32> to vector<8x128xbf16>
    %cst_459 = arith.constant dense<0.000000e+00> : vector<8x128xf32>
    %490 = tpu.matmul %489, %453, %cst_459 {dimension_numbers = #tpu.dot_dimension_numbers<[1], [0], [0], [1], [0, 0, 1, 1], [], []>} : vector<8x128xbf16>, vector<128x128xbf16>, vector<8x128xf32> -> vector<8x128xf32>
    %491 = arith.addf %488, %490 : vector<8x128xf32>
    %492 = math.tanh %491 : vector<8x128xf32>
    %493 = vector.extract_strided_slice %460 {offsets = [5, 0, 0], sizes = [1, 8, 128], strides = [1, 1, 1]} : vector<8x8x128xf32> to vector<1x8x128xf32>
    %494 = vector.shape_cast %493 : vector<1x8x128xf32> to vector<8x128xf32>
    %495 = arith.truncf %492 : vector<8x128xf32> to vector<8x128xbf16>
    %cst_460 = arith.constant dense<0.000000e+00> : vector<8x128xf32>
    %496 = tpu.matmul %495, %453, %cst_460 {dimension_numbers = #tpu.dot_dimension_numbers<[1], [0], [0], [1], [0, 0, 1, 1], [], []>} : vector<8x128xbf16>, vector<128x128xbf16>, vector<8x128xf32> -> vector<8x128xf32>
    %497 = arith.addf %494, %496 : vector<8x128xf32>
    %498 = math.tanh %497 : vector<8x128xf32>
    %499 = vector.extract_strided_slice %460 {offsets = [6, 0, 0], sizes = [1, 8, 128], strides = [1, 1, 1]} : vector<8x8x128xf32> to vector<1x8x128xf32>
    %500 = vector.shape_cast %499 : vector<1x8x128xf32> to vector<8x128xf32>
    %501 = arith.truncf %498 : vector<8x128xf32> to vector<8x128xbf16>
    %cst_461 = arith.constant dense<0.000000e+00> : vector<8x128xf32>
    %502 = tpu.matmul %501, %453, %cst_461 {dimension_numbers = #tpu.dot_dimension_numbers<[1], [0], [0], [1], [0, 0, 1, 1], [], []>} : vector<8x128xbf16>, vector<128x128xbf16>, vector<8x128xf32> -> vector<8x128xf32>
    %503 = arith.addf %500, %502 : vector<8x128xf32>
    %504 = math.tanh %503 : vector<8x128xf32>
    %505 = vector.extract_strided_slice %460 {offsets = [7, 0, 0], sizes = [1, 8, 128], strides = [1, 1, 1]} : vector<8x8x128xf32> to vector<1x8x128xf32>
    %506 = vector.shape_cast %505 : vector<1x8x128xf32> to vector<8x128xf32>
    %507 = arith.truncf %504 : vector<8x128xf32> to vector<8x128xbf16>
    %cst_462 = arith.constant dense<0.000000e+00> : vector<8x128xf32>
    %508 = tpu.matmul %507, %453, %cst_462 {dimension_numbers = #tpu.dot_dimension_numbers<[1], [0], [0], [1], [0, 0, 1, 1], [], []>} : vector<8x128xbf16>, vector<128x128xbf16>, vector<8x128xf32> -> vector<8x128xf32>
    %509 = arith.addf %506, %508 : vector<8x128xf32>
    %510 = math.tanh %509 : vector<8x128xf32>
    %c0_463 = arith.constant 0 : index
    %c0_464 = arith.constant 0 : index
    %c0_465 = arith.constant 0 : index
    %511 = vector.load %arg8[%c0_463, %c0_464, %c0_465] : memref<3x8x128xf32, #tpu.memory_space<vmem>>, vector<1x8x128xf32>
    %512 = vector.shape_cast %511 : vector<1x8x128xf32> to vector<8x128xf32>
    %513 = vector.shape_cast %510 : vector<8x128xf32> to vector<1x8x128xf32>
    tpu.vector_store %arg8[%c0_463, %c0_464, %c0_465], %513 {strides = array<i32>} : memref<3x8x128xf32, #tpu.memory_space<vmem>>, vector<1x8x128xf32>,
    %514 = tpu.concatenate %468, %474, %480, %486, %492, %498, %504, %510 in 0 : vector<8x128xf32>, vector<8x128xf32>, vector<8x128xf32>, vector<8x128xf32>, vector<8x128xf32>, vector<8x128xf32>, vector<8x128xf32>, vector<8x128xf32> -> vector<64x128xf32>
    %c1_466 = arith.constant 1 : index
    %c0_467 = arith.constant 0 : index
    %c0_468 = arith.constant 0 : index
    %515 = vector.load %arg3[%c1_466, %c0_467, %c0_468] : memref<3x128x128xbf16, #tpu.memory_space<vmem>>, vector<1x128x128xbf16>
    %516 = vector.shape_cast %515 : vector<1x128x128xbf16> to vector<128x128xbf16>
    %c1_469 = arith.constant 1 : index
    %c0_470 = arith.constant 0 : index
    %c0_471 = arith.constant 0 : index
    %517 = vector.load %arg4[%c1_469, %c0_470, %c0_471] : memref<3x128x128xbf16, #tpu.memory_space<vmem>>, vector<1x128x128xbf16>
    %518 = vector.shape_cast %517 : vector<1x128x128xbf16> to vector<128x128xbf16>
    %519 = arith.truncf %514 : vector<64x128xf32> to vector<64x128xbf16>
    %cst_472 = arith.constant dense<0.000000e+00> : vector<64x128xf32>
    %520 = tpu.matmul %519, %516, %cst_472 {dimension_numbers = #tpu.dot_dimension_numbers<[1], [0], [0], [1], [0, 0, 1, 1], [], []>} : vector<64x128xbf16>, vector<128x128xbf16>, vector<64x128xf32> -> vector<64x128xf32>
    %c1_473 = arith.constant 1 : index
    %c0_474 = arith.constant 0 : index
    %c0_475 = arith.constant 0 : index
    %521 = vector.load %arg5[%c1_473, %c0_474, %c0_475] : memref<3x1x128xf32, #tpu.memory_space<vmem>>, vector<1x1x128xf32>
    %522 = vector.shape_cast %521 : vector<1x1x128xf32> to vector<1x128xf32>
    %523 = vector.broadcast %522 : vector<1x128xf32> to vector<64x128xf32>
    %524 = arith.addf %520, %523 : vector<64x128xf32>
    %525 = vector.shape_cast %524 : vector<64x128xf32> to vector<8x8x128xf32>
    %c1_476 = arith.constant 1 : index
    %c0_477 = arith.constant 0 : index
    %c0_478 = arith.constant 0 : index
    %526 = vector.load %arg6[%c1_476, %c0_477, %c0_478] : memref<3x8x128xf32, #tpu.memory_space<vmem>>, vector<1x8x128xf32>
    %527 = vector.shape_cast %526 : vector<1x8x128xf32> to vector<8x128xf32>
    %528 = vector.extract_strided_slice %525 {offsets = [0, 0, 0], sizes = [1, 8, 128], strides = [1, 1, 1]} : vector<8x8x128xf32> to vector<1x8x128xf32>
    %529 = vector.shape_cast %528 : vector<1x8x128xf32> to vector<8x128xf32>
    %530 = arith.truncf %527 : vector<8x128xf32> to vector<8x128xbf16>
    %cst_479 = arith.constant dense<0.000000e+00> : vector<8x128xf32>
    %531 = tpu.matmul %530, %518, %cst_479 {dimension_numbers = #tpu.dot_dimension_numbers<[1], [0], [0], [1], [0, 0, 1, 1], [], []>} : vector<8x128xbf16>, vector<128x128xbf16>, vector<8x128xf32> -> vector<8x128xf32>
    %532 = arith.addf %529, %531 : vector<8x128xf32>
    %533 = math.tanh %532 : vector<8x128xf32>
    %534 = vector.extract_strided_slice %525 {offsets = [1, 0, 0], sizes = [1, 8, 128], strides = [1, 1, 1]} : vector<8x8x128xf32> to vector<1x8x128xf32>
    %535 = vector.shape_cast %534 : vector<1x8x128xf32> to vector<8x128xf32>
    %536 = arith.truncf %533 : vector<8x128xf32> to vector<8x128xbf16>
    %cst_480 = arith.constant dense<0.000000e+00> : vector<8x128xf32>
    %537 = tpu.matmul %536, %518, %cst_480 {dimension_numbers = #tpu.dot_dimension_numbers<[1], [0], [0], [1], [0, 0, 1, 1], [], []>} : vector<8x128xbf16>, vector<128x128xbf16>, vector<8x128xf32> -> vector<8x128xf32>
    %538 = arith.addf %535, %537 : vector<8x128xf32>
    %539 = math.tanh %538 : vector<8x128xf32>
    %540 = vector.extract_strided_slice %525 {offsets = [2, 0, 0], sizes = [1, 8, 128], strides = [1, 1, 1]} : vector<8x8x128xf32> to vector<1x8x128xf32>
    %541 = vector.shape_cast %540 : vector<1x8x128xf32> to vector<8x128xf32>
    %542 = arith.truncf %539 : vector<8x128xf32> to vector<8x128xbf16>
    %cst_481 = arith.constant dense<0.000000e+00> : vector<8x128xf32>
    %543 = tpu.matmul %542, %518, %cst_481 {dimension_numbers = #tpu.dot_dimension_numbers<[1], [0], [0], [1], [0, 0, 1, 1], [], []>} : vector<8x128xbf16>, vector<128x128xbf16>, vector<8x128xf32> -> vector<8x128xf32>
    %544 = arith.addf %541, %543 : vector<8x128xf32>
    %545 = math.tanh %544 : vector<8x128xf32>
    %546 = vector.extract_strided_slice %525 {offsets = [3, 0, 0], sizes = [1, 8, 128], strides = [1, 1, 1]} : vector<8x8x128xf32> to vector<1x8x128xf32>
    %547 = vector.shape_cast %546 : vector<1x8x128xf32> to vector<8x128xf32>
    %548 = arith.truncf %545 : vector<8x128xf32> to vector<8x128xbf16>
    %cst_482 = arith.constant dense<0.000000e+00> : vector<8x128xf32>
    %549 = tpu.matmul %548, %518, %cst_482 {dimension_numbers = #tpu.dot_dimension_numbers<[1], [0], [0], [1], [0, 0, 1, 1], [], []>} : vector<8x128xbf16>, vector<128x128xbf16>, vector<8x128xf32> -> vector<8x128xf32>
    %550 = arith.addf %547, %549 : vector<8x128xf32>
    %551 = math.tanh %550 : vector<8x128xf32>
    %552 = vector.extract_strided_slice %525 {offsets = [4, 0, 0], sizes = [1, 8, 128], strides = [1, 1, 1]} : vector<8x8x128xf32> to vector<1x8x128xf32>
    %553 = vector.shape_cast %552 : vector<1x8x128xf32> to vector<8x128xf32>
    %554 = arith.truncf %551 : vector<8x128xf32> to vector<8x128xbf16>
    %cst_483 = arith.constant dense<0.000000e+00> : vector<8x128xf32>
    %555 = tpu.matmul %554, %518, %cst_483 {dimension_numbers = #tpu.dot_dimension_numbers<[1], [0], [0], [1], [0, 0, 1, 1], [], []>} : vector<8x128xbf16>, vector<128x128xbf16>, vector<8x128xf32> -> vector<8x128xf32>
    %556 = arith.addf %553, %555 : vector<8x128xf32>
    %557 = math.tanh %556 : vector<8x128xf32>
    %558 = vector.extract_strided_slice %525 {offsets = [5, 0, 0], sizes = [1, 8, 128], strides = [1, 1, 1]} : vector<8x8x128xf32> to vector<1x8x128xf32>
    %559 = vector.shape_cast %558 : vector<1x8x128xf32> to vector<8x128xf32>
    %560 = arith.truncf %557 : vector<8x128xf32> to vector<8x128xbf16>
    %cst_484 = arith.constant dense<0.000000e+00> : vector<8x128xf32>
    %561 = tpu.matmul %560, %518, %cst_484 {dimension_numbers = #tpu.dot_dimension_numbers<[1], [0], [0], [1], [0, 0, 1, 1], [], []>} : vector<8x128xbf16>, vector<128x128xbf16>, vector<8x128xf32> -> vector<8x128xf32>
    %562 = arith.addf %559, %561 : vector<8x128xf32>
    %563 = math.tanh %562 : vector<8x128xf32>
    %564 = vector.extract_strided_slice %525 {offsets = [6, 0, 0], sizes = [1, 8, 128], strides = [1, 1, 1]} : vector<8x8x128xf32> to vector<1x8x128xf32>
    %565 = vector.shape_cast %564 : vector<1x8x128xf32> to vector<8x128xf32>
    %566 = arith.truncf %563 : vector<8x128xf32> to vector<8x128xbf16>
    %cst_485 = arith.constant dense<0.000000e+00> : vector<8x128xf32>
    %567 = tpu.matmul %566, %518, %cst_485 {dimension_numbers = #tpu.dot_dimension_numbers<[1], [0], [0], [1], [0, 0, 1, 1], [], []>} : vector<8x128xbf16>, vector<128x128xbf16>, vector<8x128xf32> -> vector<8x128xf32>
    %568 = arith.addf %565, %567 : vector<8x128xf32>
    %569 = math.tanh %568 : vector<8x128xf32>
    %570 = vector.extract_strided_slice %525 {offsets = [7, 0, 0], sizes = [1, 8, 128], strides = [1, 1, 1]} : vector<8x8x128xf32> to vector<1x8x128xf32>
    %571 = vector.shape_cast %570 : vector<1x8x128xf32> to vector<8x128xf32>
    %572 = arith.truncf %569 : vector<8x128xf32> to vector<8x128xbf16>
    %cst_486 = arith.constant dense<0.000000e+00> : vector<8x128xf32>
    %573 = tpu.matmul %572, %518, %cst_486 {dimension_numbers = #tpu.dot_dimension_numbers<[1], [0], [0], [1], [0, 0, 1, 1], [], []>} : vector<8x128xbf16>, vector<128x128xbf16>, vector<8x128xf32> -> vector<8x128xf32>
    %574 = arith.addf %571, %573 : vector<8x128xf32>
    %575 = math.tanh %574 : vector<8x128xf32>
    %c1_487 = arith.constant 1 : index
    %c0_488 = arith.constant 0 : index
    %c0_489 = arith.constant 0 : index
    %576 = vector.load %arg8[%c1_487, %c0_488, %c0_489] : memref<3x8x128xf32, #tpu.memory_space<vmem>>, vector<1x8x128xf32>
    %577 = vector.shape_cast %576 : vector<1x8x128xf32> to vector<8x128xf32>
    %578 = vector.shape_cast %575 : vector<8x128xf32> to vector<1x8x128xf32>
    tpu.vector_store %arg8[%c1_487, %c0_488, %c0_489], %578 {strides = array<i32>} : memref<3x8x128xf32, #tpu.memory_space<vmem>>, vector<1x8x128xf32>,
    %579 = tpu.concatenate %533, %539, %545, %551, %557, %563, %569, %575 in 0 : vector<8x128xf32>, vector<8x128xf32>, vector<8x128xf32>, vector<8x128xf32>, vector<8x128xf32>, vector<8x128xf32>, vector<8x128xf32>, vector<8x128xf32> -> vector<64x128xf32>
    %c2_490 = arith.constant 2 : index
    %c0_491 = arith.constant 0 : index
    %c0_492 = arith.constant 0 : index
    %580 = vector.load %arg3[%c2_490, %c0_491, %c0_492] : memref<3x128x128xbf16, #tpu.memory_space<vmem>>, vector<1x128x128xbf16>
    %581 = vector.shape_cast %580 : vector<1x128x128xbf16> to vector<128x128xbf16>
    %c2_493 = arith.constant 2 : index
    %c0_494 = arith.constant 0 : index
    %c0_495 = arith.constant 0 : index
    %582 = vector.load %arg4[%c2_493, %c0_494, %c0_495] : memref<3x128x128xbf16, #tpu.memory_space<vmem>>, vector<1x128x128xbf16>
    %583 = vector.shape_cast %582 : vector<1x128x128xbf16> to vector<128x128xbf16>
    %584 = arith.truncf %579 : vector<64x128xf32> to vector<64x128xbf16>
    %cst_496 = arith.constant dense<0.000000e+00> : vector<64x128xf32>
    %585 = tpu.matmul %584, %581, %cst_496 {dimension_numbers = #tpu.dot_dimension_numbers<[1], [0], [0], [1], [0, 0, 1, 1], [], []>} : vector<64x128xbf16>, vector<128x128xbf16>, vector<64x128xf32> -> vector<64x128xf32>
    %c2_497 = arith.constant 2 : index
    %c0_498 = arith.constant 0 : index
    %c0_499 = arith.constant 0 : index
    %586 = vector.load %arg5[%c2_497, %c0_498, %c0_499] : memref<3x1x128xf32, #tpu.memory_space<vmem>>, vector<1x1x128xf32>
    %587 = vector.shape_cast %586 : vector<1x1x128xf32> to vector<1x128xf32>
    %588 = vector.broadcast %587 : vector<1x128xf32> to vector<64x128xf32>
    %589 = arith.addf %585, %588 : vector<64x128xf32>
    %590 = vector.shape_cast %589 : vector<64x128xf32> to vector<8x8x128xf32>
    %c2_500 = arith.constant 2 : index
    %c0_501 = arith.constant 0 : index
    %c0_502 = arith.constant 0 : index
    %591 = vector.load %arg6[%c2_500, %c0_501, %c0_502] : memref<3x8x128xf32, #tpu.memory_space<vmem>>, vector<1x8x128xf32>
    %592 = vector.shape_cast %591 : vector<1x8x128xf32> to vector<8x128xf32>
    %593 = vector.extract_strided_slice %590 {offsets = [0, 0, 0], sizes = [1, 8, 128], strides = [1, 1, 1]} : vector<8x8x128xf32> to vector<1x8x128xf32>
    %594 = vector.shape_cast %593 : vector<1x8x128xf32> to vector<8x128xf32>
    %595 = arith.truncf %592 : vector<8x128xf32> to vector<8x128xbf16>
    %cst_503 = arith.constant dense<0.000000e+00> : vector<8x128xf32>
    %596 = tpu.matmul %595, %583, %cst_503 {dimension_numbers = #tpu.dot_dimension_numbers<[1], [0], [0], [1], [0, 0, 1, 1], [], []>} : vector<8x128xbf16>, vector<128x128xbf16>, vector<8x128xf32> -> vector<8x128xf32>
    %597 = arith.addf %594, %596 : vector<8x128xf32>
    %598 = math.tanh %597 : vector<8x128xf32>
    %599 = vector.extract_strided_slice %590 {offsets = [1, 0, 0], sizes = [1, 8, 128], strides = [1, 1, 1]} : vector<8x8x128xf32> to vector<1x8x128xf32>
    %600 = vector.shape_cast %599 : vector<1x8x128xf32> to vector<8x128xf32>
    %601 = arith.truncf %598 : vector<8x128xf32> to vector<8x128xbf16>
    %cst_504 = arith.constant dense<0.000000e+00> : vector<8x128xf32>
    %602 = tpu.matmul %601, %583, %cst_504 {dimension_numbers = #tpu.dot_dimension_numbers<[1], [0], [0], [1], [0, 0, 1, 1], [], []>} : vector<8x128xbf16>, vector<128x128xbf16>, vector<8x128xf32> -> vector<8x128xf32>
    %603 = arith.addf %600, %602 : vector<8x128xf32>
    %604 = math.tanh %603 : vector<8x128xf32>
    %605 = vector.extract_strided_slice %590 {offsets = [2, 0, 0], sizes = [1, 8, 128], strides = [1, 1, 1]} : vector<8x8x128xf32> to vector<1x8x128xf32>
    %606 = vector.shape_cast %605 : vector<1x8x128xf32> to vector<8x128xf32>
    %607 = arith.truncf %604 : vector<8x128xf32> to vector<8x128xbf16>
    %cst_505 = arith.constant dense<0.000000e+00> : vector<8x128xf32>
    %608 = tpu.matmul %607, %583, %cst_505 {dimension_numbers = #tpu.dot_dimension_numbers<[1], [0], [0], [1], [0, 0, 1, 1], [], []>} : vector<8x128xbf16>, vector<128x128xbf16>, vector<8x128xf32> -> vector<8x128xf32>
    %609 = arith.addf %606, %608 : vector<8x128xf32>
    %610 = math.tanh %609 : vector<8x128xf32>
    %611 = vector.extract_strided_slice %590 {offsets = [3, 0, 0], sizes = [1, 8, 128], strides = [1, 1, 1]} : vector<8x8x128xf32> to vector<1x8x128xf32>
    %612 = vector.shape_cast %611 : vector<1x8x128xf32> to vector<8x128xf32>
    %613 = arith.truncf %610 : vector<8x128xf32> to vector<8x128xbf16>
    %cst_506 = arith.constant dense<0.000000e+00> : vector<8x128xf32>
    %614 = tpu.matmul %613, %583, %cst_506 {dimension_numbers = #tpu.dot_dimension_numbers<[1], [0], [0], [1], [0, 0, 1, 1], [], []>} : vector<8x128xbf16>, vector<128x128xbf16>, vector<8x128xf32> -> vector<8x128xf32>
    %615 = arith.addf %612, %614 : vector<8x128xf32>
    %616 = math.tanh %615 : vector<8x128xf32>
    %617 = vector.extract_strided_slice %590 {offsets = [4, 0, 0], sizes = [1, 8, 128], strides = [1, 1, 1]} : vector<8x8x128xf32> to vector<1x8x128xf32>
    %618 = vector.shape_cast %617 : vector<1x8x128xf32> to vector<8x128xf32>
    %619 = arith.truncf %616 : vector<8x128xf32> to vector<8x128xbf16>
    %cst_507 = arith.constant dense<0.000000e+00> : vector<8x128xf32>
    %620 = tpu.matmul %619, %583, %cst_507 {dimension_numbers = #tpu.dot_dimension_numbers<[1], [0], [0], [1], [0, 0, 1, 1], [], []>} : vector<8x128xbf16>, vector<128x128xbf16>, vector<8x128xf32> -> vector<8x128xf32>
    %621 = arith.addf %618, %620 : vector<8x128xf32>
    %622 = math.tanh %621 : vector<8x128xf32>
    %623 = vector.extract_strided_slice %590 {offsets = [5, 0, 0], sizes = [1, 8, 128], strides = [1, 1, 1]} : vector<8x8x128xf32> to vector<1x8x128xf32>
    %624 = vector.shape_cast %623 : vector<1x8x128xf32> to vector<8x128xf32>
    %625 = arith.truncf %622 : vector<8x128xf32> to vector<8x128xbf16>
    %cst_508 = arith.constant dense<0.000000e+00> : vector<8x128xf32>
    %626 = tpu.matmul %625, %583, %cst_508 {dimension_numbers = #tpu.dot_dimension_numbers<[1], [0], [0], [1], [0, 0, 1, 1], [], []>} : vector<8x128xbf16>, vector<128x128xbf16>, vector<8x128xf32> -> vector<8x128xf32>
    %627 = arith.addf %624, %626 : vector<8x128xf32>
    %628 = math.tanh %627 : vector<8x128xf32>
    %629 = vector.extract_strided_slice %590 {offsets = [6, 0, 0], sizes = [1, 8, 128], strides = [1, 1, 1]} : vector<8x8x128xf32> to vector<1x8x128xf32>
    %630 = vector.shape_cast %629 : vector<1x8x128xf32> to vector<8x128xf32>
    %631 = arith.truncf %628 : vector<8x128xf32> to vector<8x128xbf16>
    %cst_509 = arith.constant dense<0.000000e+00> : vector<8x128xf32>
    %632 = tpu.matmul %631, %583, %cst_509 {dimension_numbers = #tpu.dot_dimension_numbers<[1], [0], [0], [1], [0, 0, 1, 1], [], []>} : vector<8x128xbf16>, vector<128x128xbf16>, vector<8x128xf32> -> vector<8x128xf32>
    %633 = arith.addf %630, %632 : vector<8x128xf32>
    %634 = math.tanh %633 : vector<8x128xf32>
    %635 = vector.extract_strided_slice %590 {offsets = [7, 0, 0], sizes = [1, 8, 128], strides = [1, 1, 1]} : vector<8x8x128xf32> to vector<1x8x128xf32>
    %636 = vector.shape_cast %635 : vector<1x8x128xf32> to vector<8x128xf32>
    %637 = arith.truncf %634 : vector<8x128xf32> to vector<8x128xbf16>
    %cst_510 = arith.constant dense<0.000000e+00> : vector<8x128xf32>
    %638 = tpu.matmul %637, %583, %cst_510 {dimension_numbers = #tpu.dot_dimension_numbers<[1], [0], [0], [1], [0, 0, 1, 1], [], []>} : vector<8x128xbf16>, vector<128x128xbf16>, vector<8x128xf32> -> vector<8x128xf32>
    %639 = arith.addf %636, %638 : vector<8x128xf32>
    %640 = math.tanh %639 : vector<8x128xf32>
    %c2_511 = arith.constant 2 : index
    %c0_512 = arith.constant 0 : index
    %c0_513 = arith.constant 0 : index
    %641 = vector.load %arg8[%c2_511, %c0_512, %c0_513] : memref<3x8x128xf32, #tpu.memory_space<vmem>>, vector<1x8x128xf32>
    %642 = vector.shape_cast %641 : vector<1x8x128xf32> to vector<8x128xf32>
    %643 = vector.shape_cast %640 : vector<8x128xf32> to vector<1x8x128xf32>
    tpu.vector_store %arg8[%c2_511, %c0_512, %c0_513], %643 {strides = array<i32>} : memref<3x8x128xf32, #tpu.memory_space<vmem>>, vector<1x8x128xf32>,
    %644 = tpu.concatenate %598, %604, %610, %616, %622, %628, %634, %640 in 0 : vector<8x128xf32>, vector<8x128xf32>, vector<8x128xf32>, vector<8x128xf32>, vector<8x128xf32>, vector<8x128xf32>, vector<8x128xf32>, vector<8x128xf32> -> vector<64x128xf32>
    %645 = vector.shape_cast %644 : vector<64x128xf32> to vector<8x8x128xf32>
    %c0_514 = arith.constant 0 : index
    %c0_515 = arith.constant 0 : index
    %c0_516 = arith.constant 0 : index
    %646 = vector.load %arg7[%c0_514, %c0_515, %c0_516] : memref<8x8x128xf32, #tpu.memory_space<vmem>>, vector<8x8x128xf32>
    tpu.vector_store %arg7[%c0_514, %c0_515, %c0_516], %645 {strides = array<i32>} : memref<8x8x128xf32, #tpu.memory_space<vmem>>, vector<8x8x128xf32>,
    return
  }
  func.func @transform_1(%arg0: i32, %arg1: memref<8x16xi32, #tpu.memory_space<smem>>) -> (i32, i32, i32) {
    %c0_i32 = arith.constant 0 : i32
    %c0_i32_0 = arith.constant 0 : i32
    %c0_i32_1 = arith.constant 0 : i32
    %c0_i32_2 = arith.constant 0 : i32
    return %c0_i32, %c0_i32_0, %c0_i32_1 : i32, i32, i32
  }
  func.func @transform_2(%arg0: i32, %arg1: memref<8x16xi32, #tpu.memory_space<smem>>) -> (i32, i32, i32) {
    %c0_i32 = arith.constant 0 : i32
    %c0_i32_0 = arith.constant 0 : i32
    %c0_i32_1 = arith.constant 0 : i32
    %c0_i32_2 = arith.constant 0 : i32
    return %c0_i32, %c0_i32_0, %c0_i32_1 : i32, i32, i32
  }
  func.func @transform_3(%arg0: i32, %arg1: memref<8x16xi32, #tpu.memory_space<smem>>) -> (i32, i32, i32) {
    %c0_i32 = arith.constant 0 : i32
    %c0_i32_0 = arith.constant 0 : i32
    %c0_i32_1 = arith.constant 0 : i32
    %c0_i32_2 = arith.constant 0 : i32
    return %c0_i32, %c0_i32_0, %c0_i32_1 : i32, i32, i32
  }
  func.func @transform_4(%arg0: i32, %arg1: memref<8x16xi32, #tpu.memory_space<smem>>) -> (i32, i32, i32) {
    %c0_i32 = arith.constant 0 : i32
    %c0_i32_0 = arith.constant 0 : i32
    %c0_i32_1 = arith.constant 0 : i32
    return %c0_i32, %arg0, %c0_i32_0 : i32, i32, i32
  }
  func.func @transform_5(%arg0: i32, %arg1: memref<8x16xi32, #tpu.memory_space<smem>>) -> (i32, i32, i32) {
    %c0_i32 = arith.constant 0 : i32
    %c0_i32_0 = arith.constant 0 : i32
    %c0_i32_1 = arith.constant 0 : i32
    return %c0_i32, %arg0, %c0_i32_0 : i32, i32, i32
  }
  func.func @transform_6(%arg0: i32, %arg1: memref<8x16xi32, #tpu.memory_space<smem>>) -> (i32, i32, i32) {
    %c0_i32 = arith.constant 0 : i32
    %c0_i32_0 = arith.constant 0 : i32
    %c0_i32_1 = arith.constant 0 : i32
    return %c0_i32, %arg0, %c0_i32_0 : i32, i32, i32
  }
}

</mosaic_0001>

<llo_original>
// kernel: tpu_custom_call.1
$region0: #{tpu_custom_call.1}
  #allocation0 [shape = 'u32[]', space=smem, size = 0x4, offset = 0x4, fixed_abs, tag = 'smem constant byte address 0x4 - core index']
  #allocation1 [shape = 'u32[144,128]{1,0:T(1,128)}', space=vmem, size = 0x12000, scoped, tag = 'internal scratch']
  #allocation2 [shape = 'f32[64,128]{1,0:T(8,128)}', space=vmem, size = 0x8000, scoped, tag = 'scratch operand']
  #allocation3 [shape = 's32[1]{0}', space=sflag, size = 0x4, scoped, tag = 'scratch operand']
  #allocation4 [shape = 's32[1]{0}', space=sflag, size = 0x4, scoped, tag = 'scoped memory for tpu_custom_call.1']
  #allocation5 [shape = 'u8[4096]{0}', space=smem, size = 0x1000, scoped, tag = 'prefetched SMEM operand 0']
  #allocation15 [shape = 's32[]', space=sflag, size = 0x4, offset = 0, fixed_abs, tag = 'sflag constant byte address 0x0 - dummy sync flag']
  #allocation16 [shape = 's32[]', space=sflag, size = 0x4, offset = 0, fixed_abs, tag = 'sflag constant byte address 0x0 - dummy sync flag']
  #allocation17 [shape = 'u32[]', space=smem, size = 0x4, offset = 0x44, fixed_abs, tag = 'smem constant byte address 0x44 - assertion arg 0']
  #allocation18 [shape = 'u32[]', space=smem, size = 0x4, offset = 0x48, fixed_abs, tag = 'smem constant byte address 0x48 - assertion arg 1']
  #allocation19 [shape = 's32[]', space=sflag, size = 0x4, offset = 0, fixed_abs, tag = 'sflag constant byte address 0x0 - dummy sync flag']
  #allocation20 [shape = 's32[]', space=sflag, size = 0x4, offset = 0, fixed_abs, tag = 'sflag constant byte address 0x0 - dummy sync flag']
  #allocation21 [shape = 's32[]', space=sflag, size = 0x4, offset = 0, fixed_abs, tag = 'sflag constant byte address 0x0 - dummy sync flag']
  #allocation22 [shape = 's32[]', space=sflag, size = 0x4, offset = 0, fixed_abs, tag = 'sflag constant byte address 0x0 - dummy sync flag']
  #allocation23 [shape = 's32[]', space=sflag, size = 0x4, offset = 0, fixed_abs, tag = 'sflag constant byte address 0x0 - dummy sync flag']
  #allocation24 [shape = 's32[]', space=sflag, size = 0x4, offset = 0, fixed_abs, tag = 'sflag constant byte address 0x0 - dummy sync flag']
  #allocation25 [shape = 's32[]', space=sflag, size = 0x4, offset = 0, fixed_abs, tag = 'sflag constant byte address 0x0 - dummy sync flag']
  #allocation26 [shape = 's32[]', space=sflag, size = 0x4, offset = 0, fixed_abs, tag = 'sflag constant byte address 0x0 - dummy sync flag']
  #allocation27 [shape = 's32[]', space=sflag, size = 0x4, offset = 0, fixed_abs, tag = 'sflag constant byte address 0x0 - dummy sync flag']
  #allocation28 [shape = 's32[]', space=sflag, size = 0x4, offset = 0, fixed_abs, tag = 'sflag constant byte address 0x0 - dummy sync flag']
  #allocation29 [shape = 's32[]', space=sflag, size = 0x4, offset = 0, fixed_abs, tag = 'sflag constant byte address 0x0 - dummy sync flag']
  #allocation30 [shape = 's32[]', space=sflag, size = 0x4, offset = 0, fixed_abs, tag = 'sflag constant byte address 0x0 - dummy sync flag']
  #allocation31 [shape = 's32[]', space=sflag, size = 0x4, offset = 0, fixed_abs, tag = 'sflag constant byte address 0x0 - dummy sync flag']
  #allocation32 [shape = 's32[]', space=sflag, size = 0x4, offset = 0, fixed_abs, tag = 'sflag constant byte address 0x0 - dummy sync flag']
  #allocation33 [shape = 's32[]', space=sflag, size = 0x4, offset = 0, fixed_abs, tag = 'sflag constant byte address 0x0 - dummy sync flag']
  #allocation34 [shape = 's32[]', space=sflag, size = 0x4, offset = 0, fixed_abs, tag = 'sflag constant byte address 0x0 - dummy sync flag']
  #allocation35 [shape = 's32[]', space=sflag, size = 0x4, offset = 0, fixed_abs, tag = 'sflag constant byte address 0x0 - dummy sync flag']
  #allocation36 [shape = 's32[]', space=sflag, size = 0x4, offset = 0, fixed_abs, tag = 'sflag constant byte address 0x0 - dummy sync flag']
  #allocation37 [shape = 's32[]', space=sflag, size = 0x4, offset = 0, fixed_abs, tag = 'sflag constant byte address 0x0 - dummy sync flag']
  #allocation38 [shape = 's32[]', space=sflag, size = 0x4, offset = 0, fixed_abs, tag = 'sflag constant byte address 0x0 - dummy sync flag']
  #allocation39 [shape = 's32[]', space=sflag, size = 0x4, offset = 0, fixed_abs, tag = 'sflag constant byte address 0x0 - dummy sync flag']
  #allocation40 [shape = 's32[]', space=sflag, size = 0x4, offset = 0, fixed_abs, tag = 'sflag constant byte address 0x0 - dummy sync flag']
  #allocation41 [shape = 's32[]', space=sflag, size = 0x4, offset = 0, fixed_abs, tag = 'sflag constant byte address 0x0 - dummy sync flag']
  #allocation42 [shape = 's32[]', space=sflag, size = 0x4, offset = 0, fixed_abs, tag = 'sflag constant byte address 0x0 - dummy sync flag']
  #allocation43 [shape = 's32[]', space=sflag, size = 0x4, offset = 0, fixed_abs, tag = 'sflag constant byte address 0x0 - dummy sync flag']
  #allocation44 [shape = 's32[]', space=sflag, size = 0x4, offset = 0, fixed_abs, tag = 'sflag constant byte address 0x0 - dummy sync flag']
  #allocation45 [shape = 's32[]', space=sflag, size = 0x4, offset = 0, fixed_abs, tag = 'sflag constant byte address 0x0 - dummy sync flag']
  #allocation46 [shape = 's32[]', space=sflag, size = 0x4, offset = 0, fixed_abs, tag = 'sflag constant byte address 0x0 - dummy sync flag']
  #allocation47 [shape = 's32[]', space=sflag, size = 0x4, offset = 0, fixed_abs, tag = 'sflag constant byte address 0x0 - dummy sync flag']
  #allocation48 [shape = 's32[]', space=sflag, size = 0x4, offset = 0, fixed_abs, tag = 'sflag constant byte address 0x0 - dummy sync flag']
  #allocation49 [shape = 's32[]', space=sflag, size = 0x4, offset = 0, fixed_abs, tag = 'sflag constant byte address 0x0 - dummy sync flag']
  #allocation50 [shape = 's32[]', space=sflag, size = 0x4, offset = 0, fixed_abs, tag = 'sflag constant byte address 0x0 - dummy sync flag']
  #allocation51 [shape = 's32[]', space=sflag, size = 0x4, offset = 0, fixed_abs, tag = 'sflag constant byte address 0x0 - dummy sync flag']
  #allocation52 [shape = 's32[]', space=sflag, size = 0x4, offset = 0, fixed_abs, tag = 'sflag constant byte address 0x0 - dummy sync flag']
  #allocation53 [shape = 's32[]', space=sflag, size = 0x4, offset = 0, fixed_abs, tag = 'sflag constant byte address 0x0 - dummy sync flag']
  #allocation54 [shape = 's32[]', space=sflag, size = 0x4, offset = 0, fixed_abs, tag = 'sflag constant byte address 0x0 - dummy sync flag']
  #allocation55 [shape = 's32[]', space=sflag, size = 0x4, offset = 0, fixed_abs, tag = 'sflag constant byte address 0x0 - dummy sync flag']
  #allocation56 [shape = 's32[]', space=sflag, size = 0x4, offset = 0, fixed_abs, tag = 'sflag constant byte address 0x0 - dummy sync flag']
  #allocation57 [shape = 's32[]', space=sflag, size = 0x4, offset = 0, fixed_abs, tag = 'sflag constant byte address 0x0 - dummy sync flag']
  #allocation58 [shape = 's32[]', space=sflag, size = 0x4, offset = 0, fixed_abs, tag = 'sflag constant byte address 0x0 - dummy sync flag']
  #allocation59 [shape = 's32[]', space=sflag, size = 0x4, offset = 0, fixed_abs, tag = 'sflag constant byte address 0x0 - dummy sync flag']
  #allocation60 [shape = 's32[]', space=sflag, size = 0x4, offset = 0, fixed_abs, tag = 'sflag constant byte address 0x0 - dummy sync flag']
  #allocation61 [shape = 's32[]', space=sflag, size = 0x4, offset = 0, fixed_abs, tag = 'sflag constant byte address 0x0 - dummy sync flag']
  #allocation62 [shape = 's32[]', space=sflag, size = 0x4, offset = 0, fixed_abs, tag = 'sflag constant byte address 0x0 - dummy sync flag']
  #allocation63 [shape = 's32[]', space=sflag, size = 0x4, offset = 0, fixed_abs, tag = 'sflag constant byte address 0x0 - dummy sync flag']
  #allocation64 [shape = 's32[]', space=sflag, size = 0x4, offset = 0, fixed_abs, tag = 'sflag constant byte address 0x0 - dummy sync flag']
  #allocation65 [shape = 's32[]', space=sflag, size = 0x4, offset = 0, fixed_abs, tag = 'sflag constant byte address 0x0 - dummy sync flag']
  #allocation66 [shape = 's32[]', space=sflag, size = 0x4, offset = 0, fixed_abs, tag = 'sflag constant byte address 0x0 - dummy sync flag']
  #allocation67 [shape = 's32[]', space=sflag, size = 0x4, offset = 0, fixed_abs, tag = 'sflag constant byte address 0x0 - dummy sync flag']
  #allocation68 [shape = 's32[]', space=sflag, size = 0x4, offset = 0, fixed_abs, tag = 'sflag constant byte address 0x0 - dummy sync flag']
  #allocation69 [shape = 's32[]', space=sflag, size = 0x4, offset = 0, fixed_abs, tag = 'sflag constant byte address 0x0 - dummy sync flag']
  #allocation70 [shape = 's32[]', space=sflag, size = 0x4, offset = 0, fixed_abs, tag = 'sflag constant byte address 0x0 - dummy sync flag']
  #allocation71 [shape = 's32[]', space=sflag, size = 0x4, offset = 0, fixed_abs, tag = 'sflag constant byte address 0x0 - dummy sync flag']
  #allocation72 [shape = 's32[]', space=sflag, size = 0x4, offset = 0, fixed_abs, tag = 'sflag constant byte address 0x0 - dummy sync flag']
  #allocation73 [shape = 's32[]', space=sflag, size = 0x4, offset = 0, fixed_abs, tag = 'sflag constant byte address 0x0 - dummy sync flag']
  #allocation74 [shape = 's32[]', space=sflag, size = 0x4, offset = 0, fixed_abs, tag = 'sflag constant byte address 0x0 - dummy sync flag']
  #allocation75 [shape = 's32[]', space=sflag, size = 0x4, offset = 0, fixed_abs, tag = 'sflag constant byte address 0x0 - dummy sync flag']
  #allocation76 [shape = 's32[]', space=sflag, size = 0x4, offset = 0, fixed_abs, tag = 'sflag constant byte address 0x0 - dummy sync flag']
  #allocation77 [shape = 's32[]', space=sflag, size = 0x4, offset = 0, fixed_abs, tag = 'sflag constant byte address 0x0 - dummy sync flag']
  #allocation78 [shape = 's32[]', space=sflag, size = 0x4, offset = 0, fixed_abs, tag = 'sflag constant byte address 0x0 - dummy sync flag']
  #allocation79 [shape = 's32[]', space=sflag, size = 0x4, offset = 0, fixed_abs, tag = 'sflag constant byte address 0x0 - dummy sync flag']
  #allocation80 [shape = 's32[]', space=sflag, size = 0x4, offset = 0, fixed_abs, tag = 'sflag constant byte address 0x0 - dummy sync flag']
  #allocation81 [shape = 's32[]', space=sflag, size = 0x4, offset = 0, fixed_abs, tag = 'sflag constant byte address 0x0 - dummy sync flag']
  #allocation82 [shape = 's32[]', space=sflag, size = 0x4, offset = 0, fixed_abs, tag = 'sflag constant byte address 0x0 - dummy sync flag']
  #allocation83 [shape = 's32[]', space=sflag, size = 0x4, offset = 0, fixed_abs, tag = 'sflag constant byte address 0x0 - dummy sync flag']
  #allocation84 [shape = 's32[]', space=sflag, size = 0x4, offset = 0, fixed_abs, tag = 'sflag constant byte address 0x0 - dummy sync flag']
  #allocation85 [shape = 's32[]', space=sflag, size = 0x4, offset = 0, fixed_abs, tag = 'sflag constant byte address 0x0 - dummy sync flag']
  #allocation86 [shape = 's32[]', space=sflag, size = 0x4, offset = 0, fixed_abs, tag = 'sflag constant byte address 0x0 - dummy sync flag']
  #allocation87 [shape = 's32[]', space=sflag, size = 0x4, offset = 0, fixed_abs, tag = 'sflag constant byte address 0x0 - dummy sync flag']
  #allocation88 [shape = 's32[]', space=sflag, size = 0x4, offset = 0, fixed_abs, tag = 'sflag constant byte address 0x0 - dummy sync flag']
  #allocation89 [shape = 's32[]', space=sflag, size = 0x4, offset = 0, fixed_abs, tag = 'sflag constant byte address 0x0 - dummy sync flag']
  #allocation90 [shape = 's32[]', space=sflag, size = 0x4, offset = 0, fixed_abs, tag = 'sflag constant byte address 0x0 - dummy sync flag']
  #allocation91 [shape = 's32[]', space=sflag, size = 0x4, offset = 0, fixed_abs, tag = 'sflag constant byte address 0x0 - dummy sync flag']
  #allocation92 [shape = 's32[]', space=sflag, size = 0x4, offset = 0, fixed_abs, tag = 'sflag constant byte address 0x0 - dummy sync flag']
  #allocation93 [shape = 's32[]', space=sflag, size = 0x4, offset = 0, fixed_abs, tag = 'sflag constant byte address 0x0 - dummy sync flag']
  #allocation94 [shape = 's32[]', space=sflag, size = 0x4, offset = 0, fixed_abs, tag = 'sflag constant byte address 0x0 - dummy sync flag']
  #allocation95 [shape = 's32[]', space=sflag, size = 0x4, offset = 0, fixed_abs, tag = 'sflag constant byte address 0x0 - dummy sync flag']
  #allocation96 [shape = 's32[]', space=sflag, size = 0x4, offset = 0, fixed_abs, tag = 'sflag constant byte address 0x0 - dummy sync flag']
  #allocation97 [shape = 's32[]', space=sflag, size = 0x4, offset = 0, fixed_abs, tag = 'sflag constant byte address 0x0 - dummy sync flag']
  #allocation98 [shape = 's32[]', space=sflag, size = 0x4, offset = 0, fixed_abs, tag = 'sflag constant byte address 0x0 - dummy sync flag']
  #allocation99 [shape = 's32[]', space=sflag, size = 0x4, offset = 0, fixed_abs, tag = 'sflag constant byte address 0x0 - dummy sync flag']
  #allocation100 [shape = 's32[]', space=sflag, size = 0x4, offset = 0, fixed_abs, tag = 'sflag constant byte address 0x0 - dummy sync flag']
  #allocation101 [shape = 's32[]', space=sflag, size = 0x4, offset = 0, fixed_abs, tag = 'sflag constant byte address 0x0 - dummy sync flag']
  #allocation102 [shape = 's32[]', space=sflag, size = 0x4, offset = 0, fixed_abs, tag = 'sflag constant byte address 0x0 - dummy sync flag']
  #allocation103 [shape = 's32[]', space=sflag, size = 0x4, offset = 0, fixed_abs, tag = 'sflag constant byte address 0x0 - dummy sync flag']
  #allocation104 [shape = 's32[]', space=sflag, size = 0x4, offset = 0, fixed_abs, tag = 'sflag constant byte address 0x0 - dummy sync flag']
  #allocation105 [shape = 's32[]', space=sflag, size = 0x4, offset = 0, fixed_abs, tag = 'sflag constant byte address 0x0 - dummy sync flag']
  #allocation106 [shape = 's32[]', space=sflag, size = 0x4, offset = 0, fixed_abs, tag = 'sflag constant byte address 0x0 - dummy sync flag']
  #allocation107 [shape = 's32[]', space=sflag, size = 0x4, offset = 0, fixed_abs, tag = 'sflag constant byte address 0x0 - dummy sync flag']
  #allocation108 [shape = 's32[]', space=sflag, size = 0x4, offset = 0, fixed_abs, tag = 'sflag constant byte address 0x0 - dummy sync flag']
  #allocation109 [shape = 's32[]', space=sflag, size = 0x4, offset = 0, fixed_abs, tag = 'sflag constant byte address 0x0 - dummy sync flag']
  #allocation110 [shape = 's32[]', space=sflag, size = 0x4, offset = 0, fixed_abs, tag = 'sflag constant byte address 0x0 - dummy sync flag']
  #allocation111 [shape = 's32[]', space=sflag, size = 0x4, offset = 0, fixed_abs, tag = 'sflag constant byte address 0x0 - dummy sync flag']
  #allocation112 [shape = 's32[]', space=sflag, size = 0x4, offset = 0, fixed_abs, tag = 'sflag constant byte address 0x0 - dummy sync flag']
  #allocation113 [shape = 's32[]', space=sflag, size = 0x4, offset = 0, fixed_abs, tag = 'sflag constant byte address 0x0 - dummy sync flag']
  #allocation114 [shape = 's32[]', space=sflag, size = 0x4, offset = 0, fixed_abs, tag = 'sflag constant byte address 0x0 - dummy sync flag']
  #allocation115 [shape = 's32[]', space=sflag, size = 0x4, offset = 0, fixed_abs, tag = 'sflag constant byte address 0x0 - dummy sync flag']
  #allocation116 [shape = 's32[]', space=sflag, size = 0x4, offset = 0, fixed_abs, tag = 'sflag constant byte address 0x0 - dummy sync flag']
  #allocation117 [shape = 's32[]', space=sflag, size = 0x4, offset = 0, fixed_abs, tag = 'sflag constant byte address 0x0 - dummy sync flag']
  #allocation118 [shape = 's32[]', space=sflag, size = 0x4, offset = 0, fixed_abs, tag = 'sflag constant byte address 0x0 - dummy sync flag']
  #allocation119 [shape = 's32[]', space=sflag, size = 0x4, offset = 0, fixed_abs, tag = 'sflag constant byte address 0x0 - dummy sync flag']
  #allocation120 [shape = 's32[]', space=sflag, size = 0x4, offset = 0, fixed_abs, tag = 'sflag constant byte address 0x0 - dummy sync flag']
  #allocation121 [shape = 's32[]', space=sflag, size = 0x4, offset = 0, fixed_abs, tag = 'sflag constant byte address 0x0 - dummy sync flag']
  #allocation122 [shape = 's32[]', space=sflag, size = 0x4, offset = 0, fixed_abs, tag = 'sflag constant byte address 0x0 - dummy sync flag']
  #allocation123 [shape = 's32[]', space=sflag, size = 0x4, offset = 0, fixed_abs, tag = 'sflag constant byte address 0x0 - dummy sync flag']
  #allocation124 [shape = 's32[]', space=sflag, size = 0x4, offset = 0, fixed_abs, tag = 'sflag constant byte address 0x0 - dummy sync flag']
  #allocation125 [shape = 's32[]', space=sflag, size = 0x4, offset = 0, fixed_abs, tag = 'sflag constant byte address 0x0 - dummy sync flag']
  #allocation126 [shape = 's32[]', space=sflag, size = 0x4, offset = 0, fixed_abs, tag = 'sflag constant byte address 0x0 - dummy sync flag']
  #allocation127 [shape = 's32[]', space=sflag, size = 0x4, offset = 0, fixed_abs, tag = 'sflag constant byte address 0x0 - dummy sync flag']
  #allocation128 [shape = 's32[]', space=sflag, size = 0x4, offset = 0, fixed_abs, tag = 'sflag constant byte address 0x0 - dummy sync flag']
  #allocation129 [shape = 's32[]', space=sflag, size = 0x4, offset = 0, fixed_abs, tag = 'sflag constant byte address 0x0 - dummy sync flag']
  #allocation130 [shape = 's32[]', space=sflag, size = 0x4, offset = 0, fixed_abs, tag = 'sflag constant byte address 0x0 - dummy sync flag']
  #allocation131 [shape = 's32[]', space=sflag, size = 0x4, offset = 0, fixed_abs, tag = 'sflag constant byte address 0x0 - dummy sync flag']
  #allocation132 [shape = 's32[]', space=sflag, size = 0x4, offset = 0, fixed_abs, tag = 'sflag constant byte address 0x0 - dummy sync flag']
  #allocation133 [shape = 's32[]', space=sflag, size = 0x4, offset = 0, fixed_abs, tag = 'sflag constant byte address 0x0 - dummy sync flag']
  #allocation134 [shape = 's32[]', space=sflag, size = 0x4, offset = 0, fixed_abs, tag = 'sflag constant byte address 0x0 - dummy sync flag']
  #allocation135 [shape = 's32[]', space=sflag, size = 0x4, offset = 0, fixed_abs, tag = 'sflag constant byte address 0x0 - dummy sync flag']
  #allocation136 [shape = 's32[]', space=sflag, size = 0x4, offset = 0, fixed_abs, tag = 'sflag constant byte address 0x0 - dummy sync flag']
  #allocation137 [shape = 's32[]', space=sflag, size = 0x4, offset = 0, fixed_abs, tag = 'sflag constant byte address 0x0 - dummy sync flag']
  #allocation138 [shape = 's32[]', space=sflag, size = 0x4, offset = 0, fixed_abs, tag = 'sflag constant byte address 0x0 - dummy sync flag']
  #allocation139 [shape = 's32[]', space=sflag, size = 0x4, offset = 0, fixed_abs, tag = 'sflag constant byte address 0x0 - dummy sync flag']
  #allocation140 [shape = 's32[]', space=sflag, size = 0x4, offset = 0, fixed_abs, tag = 'sflag constant byte address 0x0 - dummy sync flag']
  #allocation141 [shape = 's32[]', space=sflag, size = 0x4, offset = 0, fixed_abs, tag = 'sflag constant byte address 0x0 - dummy sync flag']
  #allocation142 [shape = 's32[]', space=sflag, size = 0x4, offset = 0, fixed_abs, tag = 'sflag constant byte address 0x0 - dummy sync flag']
  #allocation143 [shape = 's32[]', space=sflag, size = 0x4, offset = 0, fixed_abs, tag = 'sflag constant byte address 0x0 - dummy sync flag']
  #allocation144 [shape = 's32[]', space=sflag, size = 0x4, offset = 0, fixed_abs, tag = 'sflag constant byte address 0x0 - dummy sync flag']
  %s0 = inlined_call_operand.hbm [shape: s32[8,16], index: 0, kind: input, shape index: {}]
  %s1 = inlined_call_operand.hbm [shape: f32[32,128], index: 1, kind: input, shape index: {}]
  %s2 = inlined_call_operand.hbm [shape: bf16[3,128,128], index: 2, kind: input, shape index: {}]
  %s3 = inlined_call_operand.hbm [shape: bf16[3,128,128], index: 3, kind: input, shape index: {}]
  %s4 = inlined_call_operand.vmem [shape: f32[3,1,128], index: 4, kind: input, shape index: {}]
  %s5 = inlined_call_operand.hbm [shape: f32[3,16,128], index: 5, kind: input, shape index: {}]
  %s6 = inlined_call_operand.hbm [shape: f32[8,16,128], index: 6, kind: output, shape index: {0}]
  %s7 = inlined_call_operand.hbm [shape: f32[3,16,128], index: 7, kind: output, shape index: {1}]
  %8 = xla_tuple %s6, %s7
  %s9 = sld [smem:[#allocation0]]
  $region325: #{tpu_custom_call.1} parent=0
    _
  %s11 = ssub.s32 1, %s9
  %s12 = scalar_select 0, %s11, %s9
  %14 = dma.hbm_to_smem %s0, 128, [#allocation5], [#allocation4]
  %15 = dma.done [#allocation4], 128
  %16 = sfence
  $region1: #{tpu_custom_call.1} parent=0
    #allocation6 [shape = 'u8[98304]{0}', space=vmem, size = 0x18000, scoped, tag = 'input window, operand 2, single buffered']
    #allocation7 [shape = 's32[2]{0}', space=sflag, size = 0x8, scoped, tag = 'scoped memory for tpu_custom_call.1']
    #allocation8 [shape = 's32[2]{0}', space=sflag, size = 0x8, scoped, tag = 'scoped memory for tpu_custom_call.1']
    #allocation9 [shape = 'u8[98304]{0}', space=vmem, size = 0x18000, scoped, tag = 'input window, operand 3, single buffered']
    #allocation10 [shape = 's32[1]{0}', space=sflag, size = 0x4, scoped, tag = 'scoped memory for tpu_custom_call.1']
    #allocation11 [shape = 'u8[24576]{0}', space=vmem, size = 0x6000, scoped, tag = 'input window, operand 5']
    #allocation12 [shape = 'u8[65536]{0}', space=vmem, size = 0x10000, scoped, tag = 'output window, operand 0']
    #allocation13 [shape = 'u8[24576]{0}', space=vmem, size = 0x6000, scoped, tag = 'output window, operand 1']
    #allocation14 [shape = 's32[2]{0}', space=sflag, size = 0x8, scoped, tag = 'scoped memory for tpu_custom_call.1']
    %17 = vsyncpa [#allocation7], 0
    %18 = vsyncpa [#allocation10], 0
    %19 = vsyncpa [#allocation8], 0
    %s20 = scalar_lea.sflag [#allocation8], 1
    %21 = vsyncpa %s20, 0
    %22 = vsyncpa [#allocation14], 0
    %s23 = scalar_lea.sflag [#allocation14], 1
    %24 = vsyncpa %s23, 0
    loop: start=0, step=1, limit=4
    $region2: #{tpu_custom_call.1} parent=1 // loop_pre_header
      _
    $region3: #{tpu_custom_call.1} parent=1 // loop_header
      %s26 = sphi 0, %s30
      %p27 = scmp.ge.s32.totalorder %s26, 4
      %s34 = sphi 0, %s34
      %s36 = sphi 0, %s34
      %s37 = sphi 0, %s36
      %s51 = sphi 0, %s37
      %s55 = sphi 0, %s55
      %s57 = sphi 0, %s55
      %s58 = sphi 0, %s57
      %s72 = sphi 0, %s58
      %s76 = sphi 0, %s76
      %s78 = sphi 0, %s76
      %s79 = sphi 0, %s78
      %s93 = sphi 0, %s79
      %s99 = sphi 0, %s101
      %s102 = sphi 0, %s99
      %s103 = sphi 0, %s102
      %s119 = sphi 0, %s103
      %s125 = sphi 0, %s127
      %s128 = sphi 0, %s125
      %s129 = sphi 0, %s128
      %s145 = sphi 0, %s129
      %s151 = sphi 0, %s153
      %s154 = sphi 0, %s151
      %s155 = sphi 0, %s154
      %s171 = sphi 0, %s155
    $region4: #{tpu_custom_call.1} parent=1 // loop_header_branch
      %29 = sbr.rel (%p27) target = $region8
    $region5: #{tpu_custom_call.1} parent=1 // loop_body
      %s31 = ssub.s32 %s26, 1
      %s32 = ssub.s32 %s26, 2
      %s33 = sadd.s32 %s26, 1
      %s35 = sadd.s32 %s34, 1
      %p38 = scmp.eq.s32.totalorder %s26, 1
      %p39 = scmp.ne.s32.totalorder %s34, %s36
      %p40 = scmp.eq.s32.totalorder %s26, 0
      %p41 = por %p39, %p40
      %p42 = scmp.ne.s32.totalorder %s34, %s36
      %p43 = scmp.eq.s32.totalorder %s31, 1
      %p44 = por %p42, %p43
      %p45 = scmp.ne.s32.totalorder %s36, %s37
      %p46 = scmp.eq.s32.totalorder %s31, 0
      %p47 = por %p45, %p46
      %p48 = scmp.ne.s32.totalorder %s36, %s37
      %p49 = scmp.eq.s32.totalorder %s32, 1
      %p50 = por %p48, %p49
      %p52 = scmp.ne.s32.totalorder %s37, %s51
      %p53 = scmp.eq.s32.totalorder %s32, 0
      %p54 = por %p52, %p53
      %s56 = sadd.s32 %s55, 1
      %p59 = scmp.eq.s32.totalorder %s26, 1
      %p60 = scmp.ne.s32.totalorder %s55, %s57
      %p61 = scmp.eq.s32.totalorder %s26, 0
      %p62 = por %p60, %p61
      %p63 = scmp.ne.s32.totalorder %s55, %s57
      %p64 = scmp.eq.s32.totalorder %s31, 1
      %p65 = por %p63, %p64
      %p66 = scmp.ne.s32.totalorder %s57, %s58
      %p67 = scmp.eq.s32.totalorder %s31, 0
      %p68 = por %p66, %p67
      %p69 = scmp.ne.s32.totalorder %s57, %s58
      %p70 = scmp.eq.s32.totalorder %s32, 1
      %p71 = por %p69, %p70
      %p73 = scmp.ne.s32.totalorder %s58, %s72
      %p74 = scmp.eq.s32.totalorder %s32, 0
      %p75 = por %p73, %p74
      %s77 = sadd.s32 %s76, 1
      %p80 = scmp.eq.s32.totalorder %s26, 1
      %p81 = scmp.ne.s32.totalorder %s76, %s78
      %p82 = scmp.eq.s32.totalorder %s26, 0
      %p83 = por %p81, %p82
      %p84 = scmp.ne.s32.totalorder %s76, %s78
      %p85 = scmp.eq.s32.totalorder %s31, 1
      %p86 = por %p84, %p85
      %p87 = scmp.ne.s32.totalorder %s78, %s79
      %p88 = scmp.eq.s32.totalorder %s31, 0
      %p89 = por %p87, %p88
      %p90 = scmp.ne.s32.totalorder %s78, %s79
      %p91 = scmp.eq.s32.totalorder %s32, 1
      %p92 = por %p90, %p91
      %p94 = scmp.ne.s32.totalorder %s79, %s93
      %p95 = scmp.eq.s32.totalorder %s32, 0
      %p96 = por %p94, %p95
      %s97 = ssub.s32 %s26, %s33
      %p98 = scmp.eq.s32.totalorder %s97, 0
      %s100 = sadd.s32 %s99, 1
      %s101 = scalar_select %p98, %s99, %s100
      %p104 = pneg %p98
      %p105 = scmp.eq.s32.totalorder %s26, 1
      %p106 = por %p104, %p105
      %p107 = scmp.ne.s32.totalorder %s99, %s102
      %p108 = scmp.eq.s32.totalorder %s26, 0
      %p109 = por %p107, %p108
      %p110 = scmp.ne.s32.totalorder %s99, %s102
      %p111 = scmp.eq.s32.totalorder %s31, 1
      %p112 = por %p110, %p111
      %p113 = scmp.ne.s32.totalorder %s102, %s103
      %p114 = scmp.eq.s32.totalorder %s31, 0
      %p115 = por %p113, %p114
      %p116 = scmp.ne.s32.totalorder %s102, %s103
      %p117 = scmp.eq.s32.totalorder %s32, 1
      %p118 = por %p116, %p117
      %p120 = scmp.ne.s32.totalorder %s103, %s119
      %p121 = scmp.eq.s32.totalorder %s32, 0
      %p122 = por %p120, %p121
      %s123 = ssub.s32 %s26, %s33
      %p124 = scmp.eq.s32.totalorder %s123, 0
      %s126 = sadd.s32 %s125, 1
      %s127 = scalar_select %p124, %s125, %s126
      %p130 = pneg %p124
      %p131 = scmp.eq.s32.totalorder %s26, 1
      %p132 = por %p130, %p131
      %p133 = scmp.ne.s32.totalorder %s125, %s128
      %p134 = scmp.eq.s32.totalorder %s26, 0
      %p135 = por %p133, %p134
      %p136 = scmp.ne.s32.totalorder %s125, %s128
      %p137 = scmp.eq.s32.totalorder %s31, 1
      %p138 = por %p136, %p137
      %p139 = scmp.ne.s32.totalorder %s128, %s129
      %p140 = scmp.eq.s32.totalorder %s31, 0
      %p141 = por %p139, %p140
      %p142 = scmp.ne.s32.totalorder %s128, %s129
      %p143 = scmp.eq.s32.totalorder %s32, 1
      %p144 = por %p142, %p143
      %p146 = scmp.ne.s32.totalorder %s129, %s145
      %p147 = scmp.eq.s32.totalorder %s32, 0
      %p148 = por %p146, %p147
      %s149 = ssub.s32 %s26, %s33
      %p150 = scmp.eq.s32.totalorder %s149, 0
      %s152 = sadd.s32 %s151, 1
      %s153 = scalar_select %p150, %s151, %s152
      %p156 = pneg %p150
      %p157 = scmp.eq.s32.totalorder %s26, 1
      %p158 = por %p156, %p157
      %p159 = scmp.ne.s32.totalorder %s151, %s154
      %p160 = scmp.eq.s32.totalorder %s26, 0
      %p161 = por %p159, %p160
      %p162 = scmp.ne.s32.totalorder %s151, %s154
      %p163 = scmp.eq.s32.totalorder %s31, 1
      %p164 = por %p162, %p163
      %p165 = scmp.ne.s32.totalorder %s154, %s155
      %p166 = scmp.eq.s32.totalorder %s31, 0
      %p167 = por %p165, %p166
      %p168 = scmp.ne.s32.totalorder %s154, %s155
      %p169 = scmp.eq.s32.totalorder %s32, 1
      %p170 = por %p168, %p169
      %p172 = scmp.ne.s32.totalorder %s155, %s171
      %p173 = scmp.eq.s32.totalorder %s32, 0
      %p174 = por %p172, %p173
      %p175 = scmp.le.s32.totalorder 1, %s26
      %p176 = scmp.lt.s32.totalorder %s26, 3
      %p177 = pnand %p175, %p176
      %p178 = pneg %p177
      // Predicated region
      $region9: #{tpu_custom_call.1} parent=5 // pred_check
        _
      $region10: #{tpu_custom_call.1} parent=5 // pred_check_branch
        %180 = sbr.rel (%p177) target = $region12
      $region11: #{tpu_custom_call.1} parent=5 // pred_region
        %s181 = ssub.s32 %s26, 1
        // Predicated region
        $region13: #{tpu_custom_call.1} parent=11 // pred_check
          %p182 = pneg %p47
        $region14: #{tpu_custom_call.1} parent=11 // pred_check_branch
          %184 = sbr.rel (%p182) target = $region16
        $region15: #{tpu_custom_call.1} parent=11 // pred_region
          %s186 = ssub.s32 3072, 3072
          %187 = vsyncadd [#allocation7], %s186
          %s188 = sshll.u32 [#allocation6], 4
          %s189 = int_to_ptr.vmem [resolvable:$true] %s188
          %194 = dma.hbm_to_vmem [thread:$0]  %s2, 3072, %s189, [#allocation7], 64, 64, 4
        $region16: #{tpu_custom_call.1} parent=11 // pred_fallthru
          _
        // Predicated region
        $region17: #{tpu_custom_call.1} parent=11 // pred_check
          %p195 = pneg %p68
        $region18: #{tpu_custom_call.1} parent=11 // pred_check_branch
          %197 = sbr.rel (%p195) target = $region20
        $region19: #{tpu_custom_call.1} parent=11 // pred_region
          %s199 = ssub.s32 3072, 3072
          %200 = vsyncadd [#allocation10], %s199
          %s201 = sshll.u32 [#allocation9], 4
          %s202 = int_to_ptr.vmem [resolvable:$true] %s201
          %207 = dma.hbm_to_vmem [thread:$0]  %s3, 3072, %s202, [#allocation10], 64, 64, 4
        $region20: #{tpu_custom_call.1} parent=11 // pred_fallthru
          _
        // Predicated region
        $region21: #{tpu_custom_call.1} parent=11 // pred_check
          %p208 = pneg %p89
        $region22: #{tpu_custom_call.1} parent=11 // pred_check_branch
          %210 = sbr.rel (%p208) target = $region24
        $region23: #{tpu_custom_call.1} parent=11 // pred_region
          _
        $region24: #{tpu_custom_call.1} parent=11 // pred_fallthru
          _
      $region12: #{tpu_custom_call.1} parent=5 // pred_fallthru
        _
      %p211 = scmp.lt.s32.totalorder %s26, 2
      // Predicated region
      $region25: #{tpu_custom_call.1} parent=5 // pred_check
        %p212 = pneg %p211
      $region26: #{tpu_custom_call.1} parent=5 // pred_check_branch
        %214 = sbr.rel (%p212) target = $region28
      $region27: #{tpu_custom_call.1} parent=5 // pred_region
        // Predicated region
        $region29: #{tpu_custom_call.1} parent=27 // pred_check
          %p215 = pneg %p109
        $region30: #{tpu_custom_call.1} parent=27 // pred_check_branch
          %217 = sbr.rel (%p215) target = $region32
        $region31: #{tpu_custom_call.1} parent=27 // pred_region
          %s218 = sand.u32 %s26, 1
          %s219 = scalar_lea.sflag [#allocation7], %s218
          %s220 = sand.u32 %s99, 1
          %s221 = smul.addr %s220, 24
          %s222 = scalar_lea.vmem [#allocation11], %s221
          %s224 = ssub.s32 384, 384
          %225 = vsyncadd %s219, %s224
          %s226 = smul.addr %s26, 128
          %s227 = scalar_lea.hbm %s5, %s226
          %s228 = sshll.u32 %s222, 4
          %s229 = int_to_ptr.vmem [resolvable:$true] %s228
          %234 = dma.hbm_to_vmem [thread:$0]  %s227, 384, %s229, %s219, 256, 128, 8
        $region32: #{tpu_custom_call.1} parent=27 // pred_fallthru
          _
      $region28: #{tpu_custom_call.1} parent=5 // pred_fallthru
        _
      %p235 = scmp.le.s32.totalorder 1, %s26
      %p236 = scmp.lt.s32.totalorder %s26, 3
      %p237 = pnand %p235, %p236
      %p238 = pneg %p237
      // Predicated region
      $region33: #{tpu_custom_call.1} parent=5 // pred_check
        _
      $region34: #{tpu_custom_call.1} parent=5 // pred_check_branch
        %240 = sbr.rel (%p237) target = $region36
      $region35: #{tpu_custom_call.1} parent=5 // pred_region
        %s241 = ssub.s32 %s26, 1
        // Predicated region
        $region37: #{tpu_custom_call.1} parent=35 // pred_check
          %p242 = pneg %p47
        $region38: #{tpu_custom_call.1} parent=35 // pred_check_branch
          %244 = sbr.rel (%p242) target = $region40
        $region39: #{tpu_custom_call.1} parent=35 // pred_region
          %245 = dma.done [#allocation7], 3072
        $region40: #{tpu_custom_call.1} parent=35 // pred_fallthru
          _
        // Predicated region
        $region41: #{tpu_custom_call.1} parent=35 // pred_check
          %p246 = pneg %p68
        $region42: #{tpu_custom_call.1} parent=35 // pred_check_branch
          %248 = sbr.rel (%p246) target = $region44
        $region43: #{tpu_custom_call.1} parent=35 // pred_region
          %249 = dma.done [#allocation10], 3072
        $region44: #{tpu_custom_call.1} parent=35 // pred_fallthru
          _
        %s250 = sand.u32 %s31, 1
        %s251 = scalar_lea.sflag [#allocation7], %s250
        %s252 = sand.u32 %s102, 1
        %s253 = smul.addr %s252, 24
        %s254 = scalar_lea.vmem [#allocation11], %s253
        // Predicated region
        $region45: #{tpu_custom_call.1} parent=35 // pred_check
          %p255 = pneg %p115
        $region46: #{tpu_custom_call.1} parent=35 // pred_check_branch
          %257 = sbr.rel (%p255) target = $region48
        $region47: #{tpu_custom_call.1} parent=35 // pred_region
          %258 = dma.done %s251, 384
        $region48: #{tpu_custom_call.1} parent=35 // pred_fallthru
          _
        %p259 = pneg %p47
        %p260 = pneg %p44
        %p261 = pneg %p68
        %p262 = pneg %p65
        %p263 = pneg %p89
        %p264 = pneg %p86
        %s265 = sand.u32 %s31, 1
        %s266 = scalar_lea.sflag [#allocation7], %s265
        %s267 = sand.u32 %s102, 1
        %s268 = smul.addr %s267, 24
        %s269 = scalar_lea.vmem [#allocation11], %s268
        %p270 = pneg %p115
        %p271 = pneg %p112
        %p272 = pneg %p141
        %p273 = pneg %p138
        %s274 = sand.u32 %s128, 1
        %s275 = scalar_lea.sflag [#allocation8], %s274
        %s276 = sand.u32 %s128, 1
        %s277 = smul.addr %s276, 64
        %s278 = scalar_lea.vmem [#allocation12], %s277
        %p279 = pneg %p167
        %p280 = pneg %p164
        %s281 = sand.u32 %s154, 1
        %s282 = scalar_lea.sflag [#allocation14], %s281
        %s283 = sand.u32 %s154, 1
        %s284 = smul.addr %s283, 24
        %s285 = scalar_lea.vmem [#allocation13], %s284
        %s287 = smul.u32 %s31, 8
        %s288 = sld [smem:[#allocation5 + %s287]]
        %s289 = smul.addr %s288, 16
        %s290 = scalar_lea.hbm %s1, %s289
        // Predicated region
        $region49: #{tpu_custom_call.1} parent=35 // pred_check
          _
        $region50: #{tpu_custom_call.1} parent=35 // pred_check_branch
          %292 = sbr.rel target = $region52
        $region51: #{tpu_custom_call.1} parent=35 // pred_region
          %293 = sst [smem:[#allocation17]] [#allocation16]
          %294 = sst [smem:[#allocation18]] [#allocation15]
        $region52: #{tpu_custom_call.1} parent=35 // pred_fallthru
          _
        %296 = shalt.err (0)
        %s298 = sshll.u32 [#allocation2], 4
        %s299 = int_to_ptr.vmem [resolvable:$true] %s298
        %301 = dma.hbm_to_vmem [thread:$0]  %s290, 16, %s299, [#allocation3]
        %s302 = sadd.s32 %s287, 1
        %s303 = sld [smem:[#allocation5 + %s302]]
        %s304 = smul.addr %s303, 16
        %s305 = scalar_lea.hbm %s1, %s304
        %s306 = scalar_lea.vmem [#allocation2], 1
        // Predicated region
        $region53: #{tpu_custom_call.1} parent=35 // pred_check
          _
        $region54: #{tpu_custom_call.1} parent=35 // pred_check_branch
          %308 = sbr.rel target = $region56
        $region55: #{tpu_custom_call.1} parent=35 // pred_region
          %309 = sst [smem:[#allocation17]] [#allocation20]
          %310 = sst [smem:[#allocation18]] [#allocation19]
        $region56: #{tpu_custom_call.1} parent=35 // pred_fallthru
          _
        %312 = shalt.err (0)
        %s314 = sshll.u32 %s306, 4
        %s315 = int_to_ptr.vmem [resolvable:$true] %s314
        %317 = dma.hbm_to_vmem [thread:$0]  %s305, 16, %s315, [#allocation3]
        %s318 = sadd.s32 %s287, 2
        %s319 = sld [smem:[#allocation5 + %s318]]
        %s320 = smul.addr %s319, 16
        %s321 = scalar_lea.hbm %s1, %s320
        %s322 = scalar_lea.vmem [#allocation2], 2
        // Predicated region
        $region57: #{tpu_custom_call.1} parent=35 // pred_check
          _
        $region58: #{tpu_custom_call.1} parent=35 // pred_check_branch
          %324 = sbr.rel target = $region60
        $region59: #{tpu_custom_call.1} parent=35 // pred_region
          %325 = sst [smem:[#allocation17]] [#allocation22]
          %326 = sst [smem:[#allocation18]] [#allocation21]
        $region60: #{tpu_custom_call.1} parent=35 // pred_fallthru
          _
        %328 = shalt.err (0)
        %s330 = sshll.u32 %s322, 4
        %s331 = int_to_ptr.vmem [resolvable:$true] %s330
        %333 = dma.hbm_to_vmem [thread:$0]  %s321, 16, %s331, [#allocation3]
        %s334 = sadd.s32 %s287, 3
        %s335 = sld [smem:[#allocation5 + %s334]]
        %s336 = smul.addr %s335, 16
        %s337 = scalar_lea.hbm %s1, %s336
        %s338 = scalar_lea.vmem [#allocation2], 3
        // Predicated region
        $region61: #{tpu_custom_call.1} parent=35 // pred_check
          _
        $region62: #{tpu_custom_call.1} parent=35 // pred_check_branch
          %340 = sbr.rel target = $region64
        $region63: #{tpu_custom_call.1} parent=35 // pred_region
          %341 = sst [smem:[#allocation17]] [#allocation24]
          %342 = sst [smem:[#allocation18]] [#allocation23]
        $region64: #{tpu_custom_call.1} parent=35 // pred_fallthru
          _
        %344 = shalt.err (0)
        %s346 = sshll.u32 %s338, 4
        %s347 = int_to_ptr.vmem [resolvable:$true] %s346
        %349 = dma.hbm_to_vmem [thread:$0]  %s337, 16, %s347, [#allocation3]
        %s350 = sadd.s32 %s287, 4
        %s351 = sld [smem:[#allocation5 + %s350]]
        %s352 = smul.addr %s351, 16
        %s353 = scalar_lea.hbm %s1, %s352
        %s354 = scalar_lea.vmem [#allocation2], 4
        // Predicated region
        $region65: #{tpu_custom_call.1} parent=35 // pred_check
          _
        $region66: #{tpu_custom_call.1} parent=35 // pred_check_branch
          %356 = sbr.rel target = $region68
        $region67: #{tpu_custom_call.1} parent=35 // pred_region
          %357 = sst [smem:[#allocation17]] [#allocation26]
          %358 = sst [smem:[#allocation18]] [#allocation25]
        $region68: #{tpu_custom_call.1} parent=35 // pred_fallthru
          _
        %360 = shalt.err (0)
        %s362 = sshll.u32 %s354, 4
        %s363 = int_to_ptr.vmem [resolvable:$true] %s362
        %365 = dma.hbm_to_vmem [thread:$0]  %s353, 16, %s363, [#allocation3]
        %s366 = sadd.s32 %s287, 5
        %s367 = sld [smem:[#allocation5 + %s366]]
        %s368 = smul.addr %s367, 16
        %s369 = scalar_lea.hbm %s1, %s368
        %s370 = scalar_lea.vmem [#allocation2], 5
        // Predicated region
        $region69: #{tpu_custom_call.1} parent=35 // pred_check
          _
        $region70: #{tpu_custom_call.1} parent=35 // pred_check_branch
          %372 = sbr.rel target = $region72
        $region71: #{tpu_custom_call.1} parent=35 // pred_region
          %373 = sst [smem:[#allocation17]] [#allocation28]
          %374 = sst [smem:[#allocation18]] [#allocation27]
        $region72: #{tpu_custom_call.1} parent=35 // pred_fallthru
          _
        %376 = shalt.err (0)
        %s378 = sshll.u32 %s370, 4
        %s379 = int_to_ptr.vmem [resolvable:$true] %s378
        %381 = dma.hbm_to_vmem [thread:$0]  %s369, 16, %s379, [#allocation3]
        %s382 = sadd.s32 %s287, 6
        %s383 = sld [smem:[#allocation5 + %s382]]
        %s384 = smul.addr %s383, 16
        %s385 = scalar_lea.hbm %s1, %s384
        %s386 = scalar_lea.vmem [#allocation2], 6
        // Predicated region
        $region73: #{tpu_custom_call.1} parent=35 // pred_check
          _
        $region74: #{tpu_custom_call.1} parent=35 // pred_check_branch
          %388 = sbr.rel target = $region76
        $region75: #{tpu_custom_call.1} parent=35 // pred_region
          %389 = sst [smem:[#allocation17]] [#allocation30]
          %390 = sst [smem:[#allocation18]] [#allocation29]
        $region76: #{tpu_custom_call.1} parent=35 // pred_fallthru
          _
        %392 = shalt.err (0)
        %s394 = sshll.u32 %s386, 4
        %s395 = int_to_ptr.vmem [resolvable:$true] %s394
        %397 = dma.hbm_to_vmem [thread:$0]  %s385, 16, %s395, [#allocation3]
        %s398 = sadd.s32 %s287, 7
        %s399 = sld [smem:[#allocation5 + %s398]]
        %s400 = smul.addr %s399, 16
        %s401 = scalar_lea.hbm %s1, %s400
        %s402 = scalar_lea.vmem [#allocation2], 7
        // Predicated region
        $region77: #{tpu_custom_call.1} parent=35 // pred_check
          _
        $region78: #{tpu_custom_call.1} parent=35 // pred_check_branch
          %404 = sbr.rel target = $region80
        $region79: #{tpu_custom_call.1} parent=35 // pred_region
          %405 = sst [smem:[#allocation17]] [#allocation32]
          %406 = sst [smem:[#allocation18]] [#allocation31]
        $region80: #{tpu_custom_call.1} parent=35 // pred_fallthru
          _
        %408 = shalt.err (0)
        %s410 = sshll.u32 %s402, 4
        %s411 = int_to_ptr.vmem [resolvable:$true] %s410
        %413 = dma.hbm_to_vmem [thread:$0]  %s401, 16, %s411, [#allocation3]
        %s414 = sshra.s32 %s287, 7
        %s415 = sand.u32 %s287, 127
        %s416 = sadd.s32 %s414, 1
        %s417 = smul.u32 %s416, 128
        %s418 = sshra.s32 %s287, 7
        %s419 = sand.u32 %s287, 127
        %s420 = sadd.s32 %s417, %s419
        %s421 = sld [smem:[#allocation5 + %s420]]
        %s422 = smul.addr %s421, 16
        %s423 = scalar_lea.hbm %s1, %s422
        %s424 = scalar_lea.vmem [#allocation2], 8
        // Predicated region
        $region81: #{tpu_custom_call.1} parent=35 // pred_check
          _
        $region82: #{tpu_custom_call.1} parent=35 // pred_check_branch
          %426 = sbr.rel target = $region84
        $region83: #{tpu_custom_call.1} parent=35 // pred_region
          %427 = sst [smem:[#allocation17]] [#allocation34]
          %428 = sst [smem:[#allocation18]] [#allocation33]
        $region84: #{tpu_custom_call.1} parent=35 // pred_fallthru
          _
        %430 = shalt.err (0)
        %s432 = sshll.u32 %s424, 4
        %s433 = int_to_ptr.vmem [resolvable:$true] %s432
        %435 = dma.hbm_to_vmem [thread:$0]  %s423, 16, %s433, [#allocation3]
        %s436 = sshra.s32 %s302, 7
        %s437 = sand.u32 %s302, 127
        %s438 = sadd.s32 %s436, 1
        %s439 = smul.u32 %s438, 128
        %s440 = sshra.s32 %s302, 7
        %s441 = sand.u32 %s302, 127
        %s442 = sadd.s32 %s439, %s441
        %s443 = sld [smem:[#allocation5 + %s442]]
        %s444 = smul.addr %s443, 16
        %s445 = scalar_lea.hbm %s1, %s444
        %s446 = scalar_lea.vmem [#allocation2], 9
        // Predicated region
        $region85: #{tpu_custom_call.1} parent=35 // pred_check
          _
        $region86: #{tpu_custom_call.1} parent=35 // pred_check_branch
          %448 = sbr.rel target = $region88
        $region87: #{tpu_custom_call.1} parent=35 // pred_region
          %449 = sst [smem:[#allocation17]] [#allocation36]
          %450 = sst [smem:[#allocation18]] [#allocation35]
        $region88: #{tpu_custom_call.1} parent=35 // pred_fallthru
          _
        %452 = shalt.err (0)
        %s454 = sshll.u32 %s446, 4
        %s455 = int_to_ptr.vmem [resolvable:$true] %s454
        %457 = dma.hbm_to_vmem [thread:$0]  %s445, 16, %s455, [#allocation3]
        %s458 = sshra.s32 %s318, 7
        %s459 = sand.u32 %s318, 127
        %s460 = sadd.s32 %s458, 1
        %s461 = smul.u32 %s460, 128
        %s462 = sshra.s32 %s318, 7
        %s463 = sand.u32 %s318, 127
        %s464 = sadd.s32 %s461, %s463
        %s465 = sld [smem:[#allocation5 + %s464]]
        %s466 = smul.addr %s465, 16
        %s467 = scalar_lea.hbm %s1, %s466
        %s468 = scalar_lea.vmem [#allocation2], 10
        // Predicated region
        $region89: #{tpu_custom_call.1} parent=35 // pred_check
          _
        $region90: #{tpu_custom_call.1} parent=35 // pred_check_branch
          %470 = sbr.rel target = $region92
        $region91: #{tpu_custom_call.1} parent=35 // pred_region
          %471 = sst [smem:[#allocation17]] [#allocation38]
          %472 = sst [smem:[#allocation18]] [#allocation37]
        $region92: #{tpu_custom_call.1} parent=35 // pred_fallthru
          _
        %474 = shalt.err (0)
        %s476 = sshll.u32 %s468, 4
        %s477 = int_to_ptr.vmem [resolvable:$true] %s476
        %479 = dma.hbm_to_vmem [thread:$0]  %s467, 16, %s477, [#allocation3]
        %s480 = sshra.s32 %s334, 7
        %s481 = sand.u32 %s334, 127
        %s482 = sadd.s32 %s480, 1
        %s483 = smul.u32 %s482, 128
        %s484 = sshra.s32 %s334, 7
        %s485 = sand.u32 %s334, 127
        %s486 = sadd.s32 %s483, %s485
        %s487 = sld [smem:[#allocation5 + %s486]]
        %s488 = smul.addr %s487, 16
        %s489 = scalar_lea.hbm %s1, %s488
        %s490 = scalar_lea.vmem [#allocation2], 11
        // Predicated region
        $region93: #{tpu_custom_call.1} parent=35 // pred_check
          _
        $region94: #{tpu_custom_call.1} parent=35 // pred_check_branch
          %492 = sbr.rel target = $region96
        $region95: #{tpu_custom_call.1} parent=35 // pred_region
          %493 = sst [smem:[#allocation17]] [#allocation40]
          %494 = sst [smem:[#allocation18]] [#allocation39]
        $region96: #{tpu_custom_call.1} parent=35 // pred_fallthru
          _
        %496 = shalt.err (0)
        %s498 = sshll.u32 %s490, 4
        %s499 = int_to_ptr.vmem [resolvable:$true] %s498
        %501 = dma.hbm_to_vmem [thread:$0]  %s489, 16, %s499, [#allocation3]
        %s502 = sshra.s32 %s350, 7
        %s503 = sand.u32 %s350, 127
        %s504 = sadd.s32 %s502, 1
        %s505 = smul.u32 %s504, 128
        %s506 = sshra.s32 %s350, 7
        %s507 = sand.u32 %s350, 127
        %s508 = sadd.s32 %s505, %s507
        %s509 = sld [smem:[#allocation5 + %s508]]
        %s510 = smul.addr %s509, 16
        %s511 = scalar_lea.hbm %s1, %s510
        %s512 = scalar_lea.vmem [#allocation2], 12
        // Predicated region
        $region97: #{tpu_custom_call.1} parent=35 // pred_check
          _
        $region98: #{tpu_custom_call.1} parent=35 // pred_check_branch
          %514 = sbr.rel target = $region100
        $region99: #{tpu_custom_call.1} parent=35 // pred_region
          %515 = sst [smem:[#allocation17]] [#allocation42]
          %516 = sst [smem:[#allocation18]] [#allocation41]
        $region100: #{tpu_custom_call.1} parent=35 // pred_fallthru
          _
        %518 = shalt.err (0)
        %s520 = sshll.u32 %s512, 4
        %s521 = int_to_ptr.vmem [resolvable:$true] %s520
        %523 = dma.hbm_to_vmem [thread:$0]  %s511, 16, %s521, [#allocation3]
        %s524 = sshra.s32 %s366, 7
        %s525 = sand.u32 %s366, 127
        %s526 = sadd.s32 %s524, 1
        %s527 = smul.u32 %s526, 128
        %s528 = sshra.s32 %s366, 7
        %s529 = sand.u32 %s366, 127
        %s530 = sadd.s32 %s527, %s529
        %s531 = sld [smem:[#allocation5 + %s530]]
        %s532 = smul.addr %s531, 16
        %s533 = scalar_lea.hbm %s1, %s532
        %s534 = scalar_lea.vmem [#allocation2], 13
        // Predicated region
        $region101: #{tpu_custom_call.1} parent=35 // pred_check
          _
        $region102: #{tpu_custom_call.1} parent=35 // pred_check_branch
          %536 = sbr.rel target = $region104
        $region103: #{tpu_custom_call.1} parent=35 // pred_region
          %537 = sst [smem:[#allocation17]] [#allocation44]
          %538 = sst [smem:[#allocation18]] [#allocation43]
        $region104: #{tpu_custom_call.1} parent=35 // pred_fallthru
          _
        %540 = shalt.err (0)
        %s542 = sshll.u32 %s534, 4
        %s543 = int_to_ptr.vmem [resolvable:$true] %s542
        %545 = dma.hbm_to_vmem [thread:$0]  %s533, 16, %s543, [#allocation3]
        %s546 = sshra.s32 %s382, 7
        %s547 = sand.u32 %s382, 127
        %s548 = sadd.s32 %s546, 1
        %s549 = smul.u32 %s548, 128
        %s550 = sshra.s32 %s382, 7
        %s551 = sand.u32 %s382, 127
        %s552 = sadd.s32 %s549, %s551
        %s553 = sld [smem:[#allocation5 + %s552]]
        %s554 = smul.addr %s553, 16
        %s555 = scalar_lea.hbm %s1, %s554
        %s556 = scalar_lea.vmem [#allocation2], 14
        // Predicated region
        $region105: #{tpu_custom_call.1} parent=35 // pred_check
          _
        $region106: #{tpu_custom_call.1} parent=35 // pred_check_branch
          %558 = sbr.rel target = $region108
        $region107: #{tpu_custom_call.1} parent=35 // pred_region
          %559 = sst [smem:[#allocation17]] [#allocation46]
          %560 = sst [smem:[#allocation18]] [#allocation45]
        $region108: #{tpu_custom_call.1} parent=35 // pred_fallthru
          _
        %562 = shalt.err (0)
        %s564 = sshll.u32 %s556, 4
        %s565 = int_to_ptr.vmem [resolvable:$true] %s564
        %567 = dma.hbm_to_vmem [thread:$0]  %s555, 16, %s565, [#allocation3]
        %s568 = sshra.s32 %s398, 7
        %s569 = sand.u32 %s398, 127
        %s570 = sadd.s32 %s568, 1
        %s571 = smul.u32 %s570, 128
        %s572 = sshra.s32 %s398, 7
        %s573 = sand.u32 %s398, 127
        %s574 = sadd.s32 %s571, %s573
        %s575 = sld [smem:[#allocation5 + %s574]]
        %s576 = smul.addr %s575, 16
        %s577 = scalar_lea.hbm %s1, %s576
        %s578 = scalar_lea.vmem [#allocation2], 15
        // Predicated region
        $region109: #{tpu_custom_call.1} parent=35 // pred_check
          _
        $region110: #{tpu_custom_call.1} parent=35 // pred_check_branch
          %580 = sbr.rel target = $region112
        $region111: #{tpu_custom_call.1} parent=35 // pred_region
          %581 = sst [smem:[#allocation17]] [#allocation48]
          %582 = sst [smem:[#allocation18]] [#allocation47]
        $region112: #{tpu_custom_call.1} parent=35 // pred_fallthru
          _
        %584 = shalt.err (0)
        %s586 = sshll.u32 %s578, 4
        %s587 = int_to_ptr.vmem [resolvable:$true] %s586
        %589 = dma.hbm_to_vmem [thread:$0]  %s577, 16, %s587, [#allocation3]
        %s590 = sadd.s32 %s414, 2
        %s591 = smul.u32 %s590, 128
        %s592 = sadd.s32 %s591, %s419
        %s593 = sld [smem:[#allocation5 + %s592]]
        %s594 = smul.addr %s593, 16
        %s595 = scalar_lea.hbm %s1, %s594
        %s596 = scalar_lea.vmem [#allocation2], 16
        // Predicated region
        $region113: #{tpu_custom_call.1} parent=35 // pred_check
          _
        $region114: #{tpu_custom_call.1} parent=35 // pred_check_branch
          %598 = sbr.rel target = $region116
        $region115: #{tpu_custom_call.1} parent=35 // pred_region
          %599 = sst [smem:[#allocation17]] [#allocation50]
          %600 = sst [smem:[#allocation18]] [#allocation49]
        $region116: #{tpu_custom_call.1} parent=35 // pred_fallthru
          _
        %602 = shalt.err (0)
        %s604 = sshll.u32 %s596, 4
        %s605 = int_to_ptr.vmem [resolvable:$true] %s604
        %607 = dma.hbm_to_vmem [thread:$0]  %s595, 16, %s605, [#allocation3]
        %s608 = sadd.s32 %s436, 2
        %s609 = smul.u32 %s608, 128
        %s610 = sadd.s32 %s609, %s441
        %s611 = sld [smem:[#allocation5 + %s610]]
        %s612 = smul.addr %s611, 16
        %s613 = scalar_lea.hbm %s1, %s612
        %s614 = scalar_lea.vmem [#allocation2], 17
        // Predicated region
        $region117: #{tpu_custom_call.1} parent=35 // pred_check
          _
        $region118: #{tpu_custom_call.1} parent=35 // pred_check_branch
          %616 = sbr.rel target = $region120
        $region119: #{tpu_custom_call.1} parent=35 // pred_region
          %617 = sst [smem:[#allocation17]] [#allocation52]
          %618 = sst [smem:[#allocation18]] [#allocation51]
        $region120: #{tpu_custom_call.1} parent=35 // pred_fallthru
          _
        %620 = shalt.err (0)
        %s622 = sshll.u32 %s614, 4
        %s623 = int_to_ptr.vmem [resolvable:$true] %s622
        %625 = dma.hbm_to_vmem [thread:$0]  %s613, 16, %s623, [#allocation3]
        %s626 = sadd.s32 %s458, 2
        %s627 = smul.u32 %s626, 128
        %s628 = sadd.s32 %s627, %s463
        %s629 = sld [smem:[#allocation5 + %s628]]
        %s630 = smul.addr %s629, 16
        %s631 = scalar_lea.hbm %s1, %s630
        %s632 = scalar_lea.vmem [#allocation2], 18
        // Predicated region
        $region121: #{tpu_custom_call.1} parent=35 // pred_check
          _
        $region122: #{tpu_custom_call.1} parent=35 // pred_check_branch
          %634 = sbr.rel target = $region124
        $region123: #{tpu_custom_call.1} parent=35 // pred_region
          %635 = sst [smem:[#allocation17]] [#allocation54]
          %636 = sst [smem:[#allocation18]] [#allocation53]
        $region124: #{tpu_custom_call.1} parent=35 // pred_fallthru
          _
        %638 = shalt.err (0)
        %s640 = sshll.u32 %s632, 4
        %s641 = int_to_ptr.vmem [resolvable:$true] %s640
        %643 = dma.hbm_to_vmem [thread:$0]  %s631, 16, %s641, [#allocation3]
        %s644 = sadd.s32 %s480, 2
        %s645 = smul.u32 %s644, 128
        %s646 = sadd.s32 %s645, %s485
        %s647 = sld [smem:[#allocation5 + %s646]]
        %s648 = smul.addr %s647, 16
        %s649 = scalar_lea.hbm %s1, %s648
        %s650 = scalar_lea.vmem [#allocation2], 19
        // Predicated region
        $region125: #{tpu_custom_call.1} parent=35 // pred_check
          _
        $region126: #{tpu_custom_call.1} parent=35 // pred_check_branch
          %652 = sbr.rel target = $region128
        $region127: #{tpu_custom_call.1} parent=35 // pred_region
          %653 = sst [smem:[#allocation17]] [#allocation56]
          %654 = sst [smem:[#allocation18]] [#allocation55]
        $region128: #{tpu_custom_call.1} parent=35 // pred_fallthru
          _
        %656 = shalt.err (0)
        %s658 = sshll.u32 %s650, 4
        %s659 = int_to_ptr.vmem [resolvable:$true] %s658
        %661 = dma.hbm_to_vmem [thread:$0]  %s649, 16, %s659, [#allocation3]
        %s662 = sadd.s32 %s502, 2
        %s663 = smul.u32 %s662, 128
        %s664 = sadd.s32 %s663, %s507
        %s665 = sld [smem:[#allocation5 + %s664]]
        %s666 = smul.addr %s665, 16
        %s667 = scalar_lea.hbm %s1, %s666
        %s668 = scalar_lea.vmem [#allocation2], 20
        // Predicated region
        $region129: #{tpu_custom_call.1} parent=35 // pred_check
          _
        $region130: #{tpu_custom_call.1} parent=35 // pred_check_branch
          %670 = sbr.rel target = $region132
        $region131: #{tpu_custom_call.1} parent=35 // pred_region
          %671 = sst [smem:[#allocation17]] [#allocation58]
          %672 = sst [smem:[#allocation18]] [#allocation57]
        $region132: #{tpu_custom_call.1} parent=35 // pred_fallthru
          _
        %674 = shalt.err (0)
        %s676 = sshll.u32 %s668, 4
        %s677 = int_to_ptr.vmem [resolvable:$true] %s676
        %679 = dma.hbm_to_vmem [thread:$0]  %s667, 16, %s677, [#allocation3]
        %s680 = sadd.s32 %s524, 2
        %s681 = smul.u32 %s680, 128
        %s682 = sadd.s32 %s681, %s529
        %s683 = sld [smem:[#allocation5 + %s682]]
        %s684 = smul.addr %s683, 16
        %s685 = scalar_lea.hbm %s1, %s684
        %s686 = scalar_lea.vmem [#allocation2], 21
        // Predicated region
        $region133: #{tpu_custom_call.1} parent=35 // pred_check
          _
        $region134: #{tpu_custom_call.1} parent=35 // pred_check_branch
          %688 = sbr.rel target = $region136
        $region135: #{tpu_custom_call.1} parent=35 // pred_region
          %689 = sst [smem:[#allocation17]] [#allocation60]
          %690 = sst [smem:[#allocation18]] [#allocation59]
        $region136: #{tpu_custom_call.1} parent=35 // pred_fallthru
          _
        %692 = shalt.err (0)
        %s694 = sshll.u32 %s686, 4
        %s695 = int_to_ptr.vmem [resolvable:$true] %s694
        %697 = dma.hbm_to_vmem [thread:$0]  %s685, 16, %s695, [#allocation3]
        %s698 = sadd.s32 %s546, 2
        %s699 = smul.u32 %s698, 128
        %s700 = sadd.s32 %s699, %s551
        %s701 = sld [smem:[#allocation5 + %s700]]
        %s702 = smul.addr %s701, 16
        %s703 = scalar_lea.hbm %s1, %s702
        %s704 = scalar_lea.vmem [#allocation2], 22
        // Predicated region
        $region137: #{tpu_custom_call.1} parent=35 // pred_check
          _
        $region138: #{tpu_custom_call.1} parent=35 // pred_check_branch
          %706 = sbr.rel target = $region140
        $region139: #{tpu_custom_call.1} parent=35 // pred_region
          %707 = sst [smem:[#allocation17]] [#allocation62]
          %708 = sst [smem:[#allocation18]] [#allocation61]
        $region140: #{tpu_custom_call.1} parent=35 // pred_fallthru
          _
        %710 = shalt.err (0)
        %s712 = sshll.u32 %s704, 4
        %s713 = int_to_ptr.vmem [resolvable:$true] %s712
        %715 = dma.hbm_to_vmem [thread:$0]  %s703, 16, %s713, [#allocation3]
        %s716 = sadd.s32 %s568, 2
        %s717 = smul.u32 %s716, 128
        %s718 = sadd.s32 %s717, %s573
        %s719 = sld [smem:[#allocation5 + %s718]]
        %s720 = smul.addr %s719, 16
        %s721 = scalar_lea.hbm %s1, %s720
        %s722 = scalar_lea.vmem [#allocation2], 23
        // Predicated region
        $region141: #{tpu_custom_call.1} parent=35 // pred_check
          _
        $region142: #{tpu_custom_call.1} parent=35 // pred_check_branch
          %724 = sbr.rel target = $region144
        $region143: #{tpu_custom_call.1} parent=35 // pred_region
          %725 = sst [smem:[#allocation17]] [#allocation64]
          %726 = sst [smem:[#allocation18]] [#allocation63]
        $region144: #{tpu_custom_call.1} parent=35 // pred_fallthru
          _
        %728 = shalt.err (0)
        %s730 = sshll.u32 %s722, 4
        %s731 = int_to_ptr.vmem [resolvable:$true] %s730
        %733 = dma.hbm_to_vmem [thread:$0]  %s721, 16, %s731, [#allocation3]
        %s734 = sadd.s32 %s414, 3
        %s735 = smul.u32 %s734, 128
        %s736 = sadd.s32 %s735, %s419
        %s737 = sld [smem:[#allocation5 + %s736]]
        %s738 = smul.addr %s737, 16
        %s739 = scalar_lea.hbm %s1, %s738
        %s740 = scalar_lea.vmem [#allocation2], 24
        // Predicated region
        $region145: #{tpu_custom_call.1} parent=35 // pred_check
          _
        $region146: #{tpu_custom_call.1} parent=35 // pred_check_branch
          %742 = sbr.rel target = $region148
        $region147: #{tpu_custom_call.1} parent=35 // pred_region
          %743 = sst [smem:[#allocation17]] [#allocation66]
          %744 = sst [smem:[#allocation18]] [#allocation65]
        $region148: #{tpu_custom_call.1} parent=35 // pred_fallthru
          _
        %746 = shalt.err (0)
        %s748 = sshll.u32 %s740, 4
        %s749 = int_to_ptr.vmem [resolvable:$true] %s748
        %751 = dma.hbm_to_vmem [thread:$0]  %s739, 16, %s749, [#allocation3]
        %s752 = sadd.s32 %s436, 3
        %s753 = smul.u32 %s752, 128
        %s754 = sadd.s32 %s753, %s441
        %s755 = sld [smem:[#allocation5 + %s754]]
        %s756 = smul.addr %s755, 16
        %s757 = scalar_lea.hbm %s1, %s756
        %s758 = scalar_lea.vmem [#allocation2], 25
        // Predicated region
        $region149: #{tpu_custom_call.1} parent=35 // pred_check
          _
        $region150: #{tpu_custom_call.1} parent=35 // pred_check_branch
          %760 = sbr.rel target = $region152
        $region151: #{tpu_custom_call.1} parent=35 // pred_region
          %761 = sst [smem:[#allocation17]] [#allocation68]
          %762 = sst [smem:[#allocation18]] [#allocation67]
        $region152: #{tpu_custom_call.1} parent=35 // pred_fallthru
          _
        %764 = shalt.err (0)
        %s766 = sshll.u32 %s758, 4
        %s767 = int_to_ptr.vmem [resolvable:$true] %s766
        %769 = dma.hbm_to_vmem [thread:$0]  %s757, 16, %s767, [#allocation3]
        %s770 = sadd.s32 %s458, 3
        %s771 = smul.u32 %s770, 128
        %s772 = sadd.s32 %s771, %s463
        %s773 = sld [smem:[#allocation5 + %s772]]
        %s774 = smul.addr %s773, 16
        %s775 = scalar_lea.hbm %s1, %s774
        %s776 = scalar_lea.vmem [#allocation2], 26
        // Predicated region
        $region153: #{tpu_custom_call.1} parent=35 // pred_check
          _
        $region154: #{tpu_custom_call.1} parent=35 // pred_check_branch
          %778 = sbr.rel target = $region156
        $region155: #{tpu_custom_call.1} parent=35 // pred_region
          %779 = sst [smem:[#allocation17]] [#allocation70]
          %780 = sst [smem:[#allocation18]] [#allocation69]
        $region156: #{tpu_custom_call.1} parent=35 // pred_fallthru
          _
        %782 = shalt.err (0)
        %s784 = sshll.u32 %s776, 4
        %s785 = int_to_ptr.vmem [resolvable:$true] %s784
        %787 = dma.hbm_to_vmem [thread:$0]  %s775, 16, %s785, [#allocation3]
        %s788 = sadd.s32 %s480, 3
        %s789 = smul.u32 %s788, 128
        %s790 = sadd.s32 %s789, %s485
        %s791 = sld [smem:[#allocation5 + %s790]]
        %s792 = smul.addr %s791, 16
        %s793 = scalar_lea.hbm %s1, %s792
        %s794 = scalar_lea.vmem [#allocation2], 27
        // Predicated region
        $region157: #{tpu_custom_call.1} parent=35 // pred_check
          _
        $region158: #{tpu_custom_call.1} parent=35 // pred_check_branch
          %796 = sbr.rel target = $region160
        $region159: #{tpu_custom_call.1} parent=35 // pred_region
          %797 = sst [smem:[#allocation17]] [#allocation72]
          %798 = sst [smem:[#allocation18]] [#allocation71]
        $region160: #{tpu_custom_call.1} parent=35 // pred_fallthru
          _
        %800 = shalt.err (0)
        %s802 = sshll.u32 %s794, 4
        %s803 = int_to_ptr.vmem [resolvable:$true] %s802
        %805 = dma.hbm_to_vmem [thread:$0]  %s793, 16, %s803, [#allocation3]
        %s806 = sadd.s32 %s502, 3
        %s807 = smul.u32 %s806, 128
        %s808 = sadd.s32 %s807, %s507
        %s809 = sld [smem:[#allocation5 + %s808]]
        %s810 = smul.addr %s809, 16
        %s811 = scalar_lea.hbm %s1, %s810
        %s812 = scalar_lea.vmem [#allocation2], 28
        // Predicated region
        $region161: #{tpu_custom_call.1} parent=35 // pred_check
          _
        $region162: #{tpu_custom_call.1} parent=35 // pred_check_branch
          %814 = sbr.rel target = $region164
        $region163: #{tpu_custom_call.1} parent=35 // pred_region
          %815 = sst [smem:[#allocation17]] [#allocation74]
          %816 = sst [smem:[#allocation18]] [#allocation73]
        $region164: #{tpu_custom_call.1} parent=35 // pred_fallthru
          _
        %818 = shalt.err (0)
        %s820 = sshll.u32 %s812, 4
        %s821 = int_to_ptr.vmem [resolvable:$true] %s820
        %823 = dma.hbm_to_vmem [thread:$0]  %s811, 16, %s821, [#allocation3]
        %s824 = sadd.s32 %s524, 3
        %s825 = smul.u32 %s824, 128
        %s826 = sadd.s32 %s825, %s529
        %s827 = sld [smem:[#allocation5 + %s826]]
        %s828 = smul.addr %s827, 16
        %s829 = scalar_lea.hbm %s1, %s828
        %s830 = scalar_lea.vmem [#allocation2], 29
        // Predicated region
        $region165: #{tpu_custom_call.1} parent=35 // pred_check
          _
        $region166: #{tpu_custom_call.1} parent=35 // pred_check_branch
          %832 = sbr.rel target = $region168
        $region167: #{tpu_custom_call.1} parent=35 // pred_region
          %833 = sst [smem:[#allocation17]] [#allocation76]
          %834 = sst [smem:[#allocation18]] [#allocation75]
        $region168: #{tpu_custom_call.1} parent=35 // pred_fallthru
          _
        %836 = shalt.err (0)
        %s838 = sshll.u32 %s830, 4
        %s839 = int_to_ptr.vmem [resolvable:$true] %s838
        %841 = dma.hbm_to_vmem [thread:$0]  %s829, 16, %s839, [#allocation3]
        %s842 = sadd.s32 %s546, 3
        %s843 = smul.u32 %s842, 128
        %s844 = sadd.s32 %s843, %s551
        %s845 = sld [smem:[#allocation5 + %s844]]
        %s846 = smul.addr %s845, 16
        %s847 = scalar_lea.hbm %s1, %s846
        %s848 = scalar_lea.vmem [#allocation2], 30
        // Predicated region
        $region169: #{tpu_custom_call.1} parent=35 // pred_check
          _
        $region170: #{tpu_custom_call.1} parent=35 // pred_check_branch
          %850 = sbr.rel target = $region172
        $region171: #{tpu_custom_call.1} parent=35 // pred_region
          %851 = sst [smem:[#allocation17]] [#allocation78]
          %852 = sst [smem:[#allocation18]] [#allocation77]
        $region172: #{tpu_custom_call.1} parent=35 // pred_fallthru
          _
        %854 = shalt.err (0)
        %s856 = sshll.u32 %s848, 4
        %s857 = int_to_ptr.vmem [resolvable:$true] %s856
        %859 = dma.hbm_to_vmem [thread:$0]  %s847, 16, %s857, [#allocation3]
        %s860 = sadd.s32 %s568, 3
        %s861 = smul.u32 %s860, 128
        %s862 = sadd.s32 %s861, %s573
        %s863 = sld [smem:[#allocation5 + %s862]]
        %s864 = smul.addr %s863, 16
        %s865 = scalar_lea.hbm %s1, %s864
        %s866 = scalar_lea.vmem [#allocation2], 31
        // Predicated region
        $region173: #{tpu_custom_call.1} parent=35 // pred_check
          _
        $region174: #{tpu_custom_call.1} parent=35 // pred_check_branch
          %868 = sbr.rel target = $region176
        $region175: #{tpu_custom_call.1} parent=35 // pred_region
          %869 = sst [smem:[#allocation17]] [#allocation80]
          %870 = sst [smem:[#allocation18]] [#allocation79]
        $region176: #{tpu_custom_call.1} parent=35 // pred_fallthru
          _
        %872 = shalt.err (0)
        %s874 = sshll.u32 %s866, 4
        %s875 = int_to_ptr.vmem [resolvable:$true] %s874
        %877 = dma.hbm_to_vmem [thread:$0]  %s865, 16, %s875, [#allocation3]
        %s878 = sadd.s32 %s414, 4
        %s879 = smul.u32 %s878, 128
        %s880 = sadd.s32 %s879, %s419
        %s881 = sld [smem:[#allocation5 + %s880]]
        %s882 = smul.addr %s881, 16
        %s883 = scalar_lea.hbm %s1, %s882
        %s884 = scalar_lea.vmem [#allocation2], 32
        // Predicated region
        $region177: #{tpu_custom_call.1} parent=35 // pred_check
          _
        $region178: #{tpu_custom_call.1} parent=35 // pred_check_branch
          %886 = sbr.rel target = $region180
        $region179: #{tpu_custom_call.1} parent=35 // pred_region
          %887 = sst [smem:[#allocation17]] [#allocation82]
          %888 = sst [smem:[#allocation18]] [#allocation81]
        $region180: #{tpu_custom_call.1} parent=35 // pred_fallthru
          _
        %890 = shalt.err (0)
        %s892 = sshll.u32 %s884, 4
        %s893 = int_to_ptr.vmem [resolvable:$true] %s892
        %895 = dma.hbm_to_vmem [thread:$0]  %s883, 16, %s893, [#allocation3]
        %s896 = sadd.s32 %s436, 4
        %s897 = smul.u32 %s896, 128
        %s898 = sadd.s32 %s897, %s441
        %s899 = sld [smem:[#allocation5 + %s898]]
        %s900 = smul.addr %s899, 16
        %s901 = scalar_lea.hbm %s1, %s900
        %s902 = scalar_lea.vmem [#allocation2], 33
        // Predicated region
        $region181: #{tpu_custom_call.1} parent=35 // pred_check
          _
        $region182: #{tpu_custom_call.1} parent=35 // pred_check_branch
          %904 = sbr.rel target = $region184
        $region183: #{tpu_custom_call.1} parent=35 // pred_region
          %905 = sst [smem:[#allocation17]] [#allocation84]
          %906 = sst [smem:[#allocation18]] [#allocation83]
        $region184: #{tpu_custom_call.1} parent=35 // pred_fallthru
          _
        %908 = shalt.err (0)
        %s910 = sshll.u32 %s902, 4
        %s911 = int_to_ptr.vmem [resolvable:$true] %s910
        %913 = dma.hbm_to_vmem [thread:$0]  %s901, 16, %s911, [#allocation3]
        %s914 = sadd.s32 %s458, 4
        %s915 = smul.u32 %s914, 128
        %s916 = sadd.s32 %s915, %s463
        %s917 = sld [smem:[#allocation5 + %s916]]
        %s918 = smul.addr %s917, 16
        %s919 = scalar_lea.hbm %s1, %s918
        %s920 = scalar_lea.vmem [#allocation2], 34
        // Predicated region
        $region185: #{tpu_custom_call.1} parent=35 // pred_check
          _
        $region186: #{tpu_custom_call.1} parent=35 // pred_check_branch
          %922 = sbr.rel target = $region188
        $region187: #{tpu_custom_call.1} parent=35 // pred_region
          %923 = sst [smem:[#allocation17]] [#allocation86]
          %924 = sst [smem:[#allocation18]] [#allocation85]
        $region188: #{tpu_custom_call.1} parent=35 // pred_fallthru
          _
        %926 = shalt.err (0)
        %s928 = sshll.u32 %s920, 4
        %s929 = int_to_ptr.vmem [resolvable:$true] %s928
        %931 = dma.hbm_to_vmem [thread:$0]  %s919, 16, %s929, [#allocation3]
        %s932 = sadd.s32 %s480, 4
        %s933 = smul.u32 %s932, 128
        %s934 = sadd.s32 %s933, %s485
        %s935 = sld [smem:[#allocation5 + %s934]]
        %s936 = smul.addr %s935, 16
        %s937 = scalar_lea.hbm %s1, %s936
        %s938 = scalar_lea.vmem [#allocation2], 35
        // Predicated region
        $region189: #{tpu_custom_call.1} parent=35 // pred_check
          _
        $region190: #{tpu_custom_call.1} parent=35 // pred_check_branch
          %940 = sbr.rel target = $region192
        $region191: #{tpu_custom_call.1} parent=35 // pred_region
          %941 = sst [smem:[#allocation17]] [#allocation88]
          %942 = sst [smem:[#allocation18]] [#allocation87]
        $region192: #{tpu_custom_call.1} parent=35 // pred_fallthru
          _
        %944 = shalt.err (0)
        %s946 = sshll.u32 %s938, 4
        %s947 = int_to_ptr.vmem [resolvable:$true] %s946
        %949 = dma.hbm_to_vmem [thread:$0]  %s937, 16, %s947, [#allocation3]
        %s950 = sadd.s32 %s502, 4
        %s951 = smul.u32 %s950, 128
        %s952 = sadd.s32 %s951, %s507
        %s953 = sld [smem:[#allocation5 + %s952]]
        %s954 = smul.addr %s953, 16
        %s955 = scalar_lea.hbm %s1, %s954
        %s956 = scalar_lea.vmem [#allocation2], 36
        // Predicated region
        $region193: #{tpu_custom_call.1} parent=35 // pred_check
          _
        $region194: #{tpu_custom_call.1} parent=35 // pred_check_branch
          %958 = sbr.rel target = $region196
        $region195: #{tpu_custom_call.1} parent=35 // pred_region
          %959 = sst [smem:[#allocation17]] [#allocation90]
          %960 = sst [smem:[#allocation18]] [#allocation89]
        $region196: #{tpu_custom_call.1} parent=35 // pred_fallthru
          _
        %962 = shalt.err (0)
        %s964 = sshll.u32 %s956, 4
        %s965 = int_to_ptr.vmem [resolvable:$true] %s964
        %967 = dma.hbm_to_vmem [thread:$0]  %s955, 16, %s965, [#allocation3]
        %s968 = sadd.s32 %s524, 4
        %s969 = smul.u32 %s968, 128
        %s970 = sadd.s32 %s969, %s529
        %s971 = sld [smem:[#allocation5 + %s970]]
        %s972 = smul.addr %s971, 16
        %s973 = scalar_lea.hbm %s1, %s972
        %s974 = scalar_lea.vmem [#allocation2], 37
        // Predicated region
        $region197: #{tpu_custom_call.1} parent=35 // pred_check
          _
        $region198: #{tpu_custom_call.1} parent=35 // pred_check_branch
          %976 = sbr.rel target = $region200
        $region199: #{tpu_custom_call.1} parent=35 // pred_region
          %977 = sst [smem:[#allocation17]] [#allocation92]
          %978 = sst [smem:[#allocation18]] [#allocation91]
        $region200: #{tpu_custom_call.1} parent=35 // pred_fallthru
          _
        %980 = shalt.err (0)
        %s982 = sshll.u32 %s974, 4
        %s983 = int_to_ptr.vmem [resolvable:$true] %s982
        %985 = dma.hbm_to_vmem [thread:$0]  %s973, 16, %s983, [#allocation3]
        %s986 = sadd.s32 %s546, 4
        %s987 = smul.u32 %s986, 128
        %s988 = sadd.s32 %s987, %s551
        %s989 = sld [smem:[#allocation5 + %s988]]
        %s990 = smul.addr %s989, 16
        %s991 = scalar_lea.hbm %s1, %s990
        %s992 = scalar_lea.vmem [#allocation2], 38
        // Predicated region
        $region201: #{tpu_custom_call.1} parent=35 // pred_check
          _
        $region202: #{tpu_custom_call.1} parent=35 // pred_check_branch
          %994 = sbr.rel target = $region204
        $region203: #{tpu_custom_call.1} parent=35 // pred_region
          %995 = sst [smem:[#allocation17]] [#allocation94]
          %996 = sst [smem:[#allocation18]] [#allocation93]
        $region204: #{tpu_custom_call.1} parent=35 // pred_fallthru
          _
        %998 = shalt.err (0)
        %s1000 = sshll.u32 %s992, 4
        %s1001 = int_to_ptr.vmem [resolvable:$true] %s1000
        %1003 = dma.hbm_to_vmem [thread:$0]  %s991, 16, %s1001, [#allocation3]
        %s1004 = sadd.s32 %s568, 4
        %s1005 = smul.u32 %s1004, 128
        %s1006 = sadd.s32 %s1005, %s573
        %s1007 = sld [smem:[#allocation5 + %s1006]]
        %s1008 = smul.addr %s1007, 16
        %s1009 = scalar_lea.hbm %s1, %s1008
        %s1010 = scalar_lea.vmem [#allocation2], 39
        // Predicated region
        $region205: #{tpu_custom_call.1} parent=35 // pred_check
          _
        $region206: #{tpu_custom_call.1} parent=35 // pred_check_branch
          %1012 = sbr.rel target = $region208
        $region207: #{tpu_custom_call.1} parent=35 // pred_region
          %1013 = sst [smem:[#allocation17]] [#allocation96]
          %1014 = sst [smem:[#allocation18]] [#allocation95]
        $region208: #{tpu_custom_call.1} parent=35 // pred_fallthru
          _
        %1016 = shalt.err (0)
        %s1018 = sshll.u32 %s1010, 4
        %s1019 = int_to_ptr.vmem [resolvable:$true] %s1018
        %1021 = dma.hbm_to_vmem [thread:$0]  %s1009, 16, %s1019, [#allocation3]
        %s1022 = sadd.s32 %s414, 5
        %s1023 = smul.u32 %s1022, 128
        %s1024 = sadd.s32 %s1023, %s419
        %s1025 = sld [smem:[#allocation5 + %s1024]]
        %s1026 = smul.addr %s1025, 16
        %s1027 = scalar_lea.hbm %s1, %s1026
        %s1028 = scalar_lea.vmem [#allocation2], 40
        // Predicated region
        $region209: #{tpu_custom_call.1} parent=35 // pred_check
          _
        $region210: #{tpu_custom_call.1} parent=35 // pred_check_branch
          %1030 = sbr.rel target = $region212
        $region211: #{tpu_custom_call.1} parent=35 // pred_region
          %1031 = sst [smem:[#allocation17]] [#allocation98]
          %1032 = sst [smem:[#allocation18]] [#allocation97]
        $region212: #{tpu_custom_call.1} parent=35 // pred_fallthru
          _
        %1034 = shalt.err (0)
        %s1036 = sshll.u32 %s1028, 4
        %s1037 = int_to_ptr.vmem [resolvable:$true] %s1036
        %1039 = dma.hbm_to_vmem [thread:$0]  %s1027, 16, %s1037, [#allocation3]
        %s1040 = sadd.s32 %s436, 5
        %s1041 = smul.u32 %s1040, 128
        %s1042 = sadd.s32 %s1041, %s441
        %s1043 = sld [smem:[#allocation5 + %s1042]]
        %s1044 = smul.addr %s1043, 16
        %s1045 = scalar_lea.hbm %s1, %s1044
        %s1046 = scalar_lea.vmem [#allocation2], 41
        // Predicated region
        $region213: #{tpu_custom_call.1} parent=35 // pred_check
          _
        $region214: #{tpu_custom_call.1} parent=35 // pred_check_branch
          %1048 = sbr.rel target = $region216
        $region215: #{tpu_custom_call.1} parent=35 // pred_region
          %1049 = sst [smem:[#allocation17]] [#allocation100]
          %1050 = sst [smem:[#allocation18]] [#allocation99]
        $region216: #{tpu_custom_call.1} parent=35 // pred_fallthru
          _
        %1052 = shalt.err (0)
        %s1054 = sshll.u32 %s1046, 4
        %s1055 = int_to_ptr.vmem [resolvable:$true] %s1054
        %1057 = dma.hbm_to_vmem [thread:$0]  %s1045, 16, %s1055, [#allocation3]
        %s1058 = sadd.s32 %s458, 5
        %s1059 = smul.u32 %s1058, 128
        %s1060 = sadd.s32 %s1059, %s463
        %s1061 = sld [smem:[#allocation5 + %s1060]]
        %s1062 = smul.addr %s1061, 16
        %s1063 = scalar_lea.hbm %s1, %s1062
        %s1064 = scalar_lea.vmem [#allocation2], 42
        // Predicated region
        $region217: #{tpu_custom_call.1} parent=35 // pred_check
          _
        $region218: #{tpu_custom_call.1} parent=35 // pred_check_branch
          %1066 = sbr.rel target = $region220
        $region219: #{tpu_custom_call.1} parent=35 // pred_region
          %1067 = sst [smem:[#allocation17]] [#allocation102]
          %1068 = sst [smem:[#allocation18]] [#allocation101]
        $region220: #{tpu_custom_call.1} parent=35 // pred_fallthru
          _
        %1070 = shalt.err (0)
        %s1072 = sshll.u32 %s1064, 4
        %s1073 = int_to_ptr.vmem [resolvable:$true] %s1072
        %1075 = dma.hbm_to_vmem [thread:$0]  %s1063, 16, %s1073, [#allocation3]
        %s1076 = sadd.s32 %s480, 5
        %s1077 = smul.u32 %s1076, 128
        %s1078 = sadd.s32 %s1077, %s485
        %s1079 = sld [smem:[#allocation5 + %s1078]]
        %s1080 = smul.addr %s1079, 16
        %s1081 = scalar_lea.hbm %s1, %s1080
        %s1082 = scalar_lea.vmem [#allocation2], 43
        // Predicated region
        $region221: #{tpu_custom_call.1} parent=35 // pred_check
          _
        $region222: #{tpu_custom_call.1} parent=35 // pred_check_branch
          %1084 = sbr.rel target = $region224
        $region223: #{tpu_custom_call.1} parent=35 // pred_region
          %1085 = sst [smem:[#allocation17]] [#allocation104]
          %1086 = sst [smem:[#allocation18]] [#allocation103]
        $region224: #{tpu_custom_call.1} parent=35 // pred_fallthru
          _
        %1088 = shalt.err (0)
        %s1090 = sshll.u32 %s1082, 4
        %s1091 = int_to_ptr.vmem [resolvable:$true] %s1090
        %1093 = dma.hbm_to_vmem [thread:$0]  %s1081, 16, %s1091, [#allocation3]
        %s1094 = sadd.s32 %s502, 5
        %s1095 = smul.u32 %s1094, 128
        %s1096 = sadd.s32 %s1095, %s507
        %s1097 = sld [smem:[#allocation5 + %s1096]]
        %s1098 = smul.addr %s1097, 16
        %s1099 = scalar_lea.hbm %s1, %s1098
        %s1100 = scalar_lea.vmem [#allocation2], 44
        // Predicated region
        $region225: #{tpu_custom_call.1} parent=35 // pred_check
          _
        $region226: #{tpu_custom_call.1} parent=35 // pred_check_branch
          %1102 = sbr.rel target = $region228
        $region227: #{tpu_custom_call.1} parent=35 // pred_region
          %1103 = sst [smem:[#allocation17]] [#allocation106]
          %1104 = sst [smem:[#allocation18]] [#allocation105]
        $region228: #{tpu_custom_call.1} parent=35 // pred_fallthru
          _
        %1106 = shalt.err (0)
        %s1108 = sshll.u32 %s1100, 4
        %s1109 = int_to_ptr.vmem [resolvable:$true] %s1108
        %1111 = dma.hbm_to_vmem [thread:$0]  %s1099, 16, %s1109, [#allocation3]
        %s1112 = sadd.s32 %s524, 5
        %s1113 = smul.u32 %s1112, 128
        %s1114 = sadd.s32 %s1113, %s529
        %s1115 = sld [smem:[#allocation5 + %s1114]]
        %s1116 = smul.addr %s1115, 16
        %s1117 = scalar_lea.hbm %s1, %s1116
        %s1118 = scalar_lea.vmem [#allocation2], 45
        // Predicated region
        $region229: #{tpu_custom_call.1} parent=35 // pred_check
          _
        $region230: #{tpu_custom_call.1} parent=35 // pred_check_branch
          %1120 = sbr.rel target = $region232
        $region231: #{tpu_custom_call.1} parent=35 // pred_region
          %1121 = sst [smem:[#allocation17]] [#allocation108]
          %1122 = sst [smem:[#allocation18]] [#allocation107]
        $region232: #{tpu_custom_call.1} parent=35 // pred_fallthru
          _
        %1124 = shalt.err (0)
        %s1126 = sshll.u32 %s1118, 4
        %s1127 = int_to_ptr.vmem [resolvable:$true] %s1126
        %1129 = dma.hbm_to_vmem [thread:$0]  %s1117, 16, %s1127, [#allocation3]
        %s1130 = sadd.s32 %s546, 5
        %s1131 = smul.u32 %s1130, 128
        %s1132 = sadd.s32 %s1131, %s551
        %s1133 = sld [smem:[#allocation5 + %s1132]]
        %s1134 = smul.addr %s1133, 16
        %s1135 = scalar_lea.hbm %s1, %s1134
        %s1136 = scalar_lea.vmem [#allocation2], 46
        // Predicated region
        $region233: #{tpu_custom_call.1} parent=35 // pred_check
          _
        $region234: #{tpu_custom_call.1} parent=35 // pred_check_branch
          %1138 = sbr.rel target = $region236
        $region235: #{tpu_custom_call.1} parent=35 // pred_region
          %1139 = sst [smem:[#allocation17]] [#allocation110]
          %1140 = sst [smem:[#allocation18]] [#allocation109]
        $region236: #{tpu_custom_call.1} parent=35 // pred_fallthru
          _
        %1142 = shalt.err (0)
        %s1144 = sshll.u32 %s1136, 4
        %s1145 = int_to_ptr.vmem [resolvable:$true] %s1144
        %1147 = dma.hbm_to_vmem [thread:$0]  %s1135, 16, %s1145, [#allocation3]
        %s1148 = sadd.s32 %s568, 5
        %s1149 = smul.u32 %s1148, 128
        %s1150 = sadd.s32 %s1149, %s573
        %s1151 = sld [smem:[#allocation5 + %s1150]]
        %s1152 = smul.addr %s1151, 16
        %s1153 = scalar_lea.hbm %s1, %s1152
        %s1154 = scalar_lea.vmem [#allocation2], 47
        // Predicated region
        $region237: #{tpu_custom_call.1} parent=35 // pred_check
          _
        $region238: #{tpu_custom_call.1} parent=35 // pred_check_branch
          %1156 = sbr.rel target = $region240
        $region239: #{tpu_custom_call.1} parent=35 // pred_region
          %1157 = sst [smem:[#allocation17]] [#allocation112]
          %1158 = sst [smem:[#allocation18]] [#allocation111]
        $region240: #{tpu_custom_call.1} parent=35 // pred_fallthru
          _
        %1160 = shalt.err (0)
        %s1162 = sshll.u32 %s1154, 4
        %s1163 = int_to_ptr.vmem [resolvable:$true] %s1162
        %1165 = dma.hbm_to_vmem [thread:$0]  %s1153, 16, %s1163, [#allocation3]
        %s1166 = sadd.s32 %s414, 6
        %s1167 = smul.u32 %s1166, 128
        %s1168 = sadd.s32 %s1167, %s419
        %s1169 = sld [smem:[#allocation5 + %s1168]]
        %s1170 = smul.addr %s1169, 16
        %s1171 = scalar_lea.hbm %s1, %s1170
        %s1172 = scalar_lea.vmem [#allocation2], 48
        // Predicated region
        $region241: #{tpu_custom_call.1} parent=35 // pred_check
          _
        $region242: #{tpu_custom_call.1} parent=35 // pred_check_branch
          %1174 = sbr.rel target = $region244
        $region243: #{tpu_custom_call.1} parent=35 // pred_region
          %1175 = sst [smem:[#allocation17]] [#allocation114]
          %1176 = sst [smem:[#allocation18]] [#allocation113]
        $region244: #{tpu_custom_call.1} parent=35 // pred_fallthru
          _
        %1178 = shalt.err (0)
        %s1180 = sshll.u32 %s1172, 4
        %s1181 = int_to_ptr.vmem [resolvable:$true] %s1180
        %1183 = dma.hbm_to_vmem [thread:$0]  %s1171, 16, %s1181, [#allocation3]
        %s1184 = sadd.s32 %s436, 6
        %s1185 = smul.u32 %s1184, 128
        %s1186 = sadd.s32 %s1185, %s441
        %s1187 = sld [smem:[#allocation5 + %s1186]]
        %s1188 = smul.addr %s1187, 16
        %s1189 = scalar_lea.hbm %s1, %s1188
        %s1190 = scalar_lea.vmem [#allocation2], 49
        // Predicated region
        $region245: #{tpu_custom_call.1} parent=35 // pred_check
          _
        $region246: #{tpu_custom_call.1} parent=35 // pred_check_branch
          %1192 = sbr.rel target = $region248
        $region247: #{tpu_custom_call.1} parent=35 // pred_region
          %1193 = sst [smem:[#allocation17]] [#allocation116]
          %1194 = sst [smem:[#allocation18]] [#allocation115]
        $region248: #{tpu_custom_call.1} parent=35 // pred_fallthru
          _
        %1196 = shalt.err (0)
        %s1198 = sshll.u32 %s1190, 4
        %s1199 = int_to_ptr.vmem [resolvable:$true] %s1198
        %1201 = dma.hbm_to_vmem [thread:$0]  %s1189, 16, %s1199, [#allocation3]
        %s1202 = sadd.s32 %s458, 6
        %s1203 = smul.u32 %s1202, 128
        %s1204 = sadd.s32 %s1203, %s463
        %s1205 = sld [smem:[#allocation5 + %s1204]]
        %s1206 = smul.addr %s1205, 16
        %s1207 = scalar_lea.hbm %s1, %s1206
        %s1208 = scalar_lea.vmem [#allocation2], 50
        // Predicated region
        $region249: #{tpu_custom_call.1} parent=35 // pred_check
          _
        $region250: #{tpu_custom_call.1} parent=35 // pred_check_branch
          %1210 = sbr.rel target = $region252
        $region251: #{tpu_custom_call.1} parent=35 // pred_region
          %1211 = sst [smem:[#allocation17]] [#allocation118]
          %1212 = sst [smem:[#allocation18]] [#allocation117]
        $region252: #{tpu_custom_call.1} parent=35 // pred_fallthru
          _
        %1214 = shalt.err (0)
        %s1216 = sshll.u32 %s1208, 4
        %s1217 = int_to_ptr.vmem [resolvable:$true] %s1216
        %1219 = dma.hbm_to_vmem [thread:$0]  %s1207, 16, %s1217, [#allocation3]
        %s1220 = sadd.s32 %s480, 6
        %s1221 = smul.u32 %s1220, 128
        %s1222 = sadd.s32 %s1221, %s485
        %s1223 = sld [smem:[#allocation5 + %s1222]]
        %s1224 = smul.addr %s1223, 16
        %s1225 = scalar_lea.hbm %s1, %s1224
        %s1226 = scalar_lea.vmem [#allocation2], 51
        // Predicated region
        $region253: #{tpu_custom_call.1} parent=35 // pred_check
          _
        $region254: #{tpu_custom_call.1} parent=35 // pred_check_branch
          %1228 = sbr.rel target = $region256
        $region255: #{tpu_custom_call.1} parent=35 // pred_region
          %1229 = sst [smem:[#allocation17]] [#allocation120]
          %1230 = sst [smem:[#allocation18]] [#allocation119]
        $region256: #{tpu_custom_call.1} parent=35 // pred_fallthru
          _
        %1232 = shalt.err (0)
        %s1234 = sshll.u32 %s1226, 4
        %s1235 = int_to_ptr.vmem [resolvable:$true] %s1234
        %1237 = dma.hbm_to_vmem [thread:$0]  %s1225, 16, %s1235, [#allocation3]
        %s1238 = sadd.s32 %s502, 6
        %s1239 = smul.u32 %s1238, 128
        %s1240 = sadd.s32 %s1239, %s507
        %s1241 = sld [smem:[#allocation5 + %s1240]]
        %s1242 = smul.addr %s1241, 16
        %s1243 = scalar_lea.hbm %s1, %s1242
        %s1244 = scalar_lea.vmem [#allocation2], 52
        // Predicated region
        $region257: #{tpu_custom_call.1} parent=35 // pred_check
          _
        $region258: #{tpu_custom_call.1} parent=35 // pred_check_branch
          %1246 = sbr.rel target = $region260
        $region259: #{tpu_custom_call.1} parent=35 // pred_region
          %1247 = sst [smem:[#allocation17]] [#allocation122]
          %1248 = sst [smem:[#allocation18]] [#allocation121]
        $region260: #{tpu_custom_call.1} parent=35 // pred_fallthru
          _
        %1250 = shalt.err (0)
        %s1252 = sshll.u32 %s1244, 4
        %s1253 = int_to_ptr.vmem [resolvable:$true] %s1252
        %1255 = dma.hbm_to_vmem [thread:$0]  %s1243, 16, %s1253, [#allocation3]
        %s1256 = sadd.s32 %s524, 6
        %s1257 = smul.u32 %s1256, 128
        %s1258 = sadd.s32 %s1257, %s529
        %s1259 = sld [smem:[#allocation5 + %s1258]]
        %s1260 = smul.addr %s1259, 16
        %s1261 = scalar_lea.hbm %s1, %s1260
        %s1262 = scalar_lea.vmem [#allocation2], 53
        // Predicated region
        $region261: #{tpu_custom_call.1} parent=35 // pred_check
          _
        $region262: #{tpu_custom_call.1} parent=35 // pred_check_branch
          %1264 = sbr.rel target = $region264
        $region263: #{tpu_custom_call.1} parent=35 // pred_region
          %1265 = sst [smem:[#allocation17]] [#allocation124]
          %1266 = sst [smem:[#allocation18]] [#allocation123]
        $region264: #{tpu_custom_call.1} parent=35 // pred_fallthru
          _
        %1268 = shalt.err (0)
        %s1270 = sshll.u32 %s1262, 4
        %s1271 = int_to_ptr.vmem [resolvable:$true] %s1270
        %1273 = dma.hbm_to_vmem [thread:$0]  %s1261, 16, %s1271, [#allocation3]
        %s1274 = sadd.s32 %s546, 6
        %s1275 = smul.u32 %s1274, 128
        %s1276 = sadd.s32 %s1275, %s551
        %s1277 = sld [smem:[#allocation5 + %s1276]]
        %s1278 = smul.addr %s1277, 16
        %s1279 = scalar_lea.hbm %s1, %s1278
        %s1280 = scalar_lea.vmem [#allocation2], 54
        // Predicated region
        $region265: #{tpu_custom_call.1} parent=35 // pred_check
          _
        $region266: #{tpu_custom_call.1} parent=35 // pred_check_branch
          %1282 = sbr.rel target = $region268
        $region267: #{tpu_custom_call.1} parent=35 // pred_region
          %1283 = sst [smem:[#allocation17]] [#allocation126]
          %1284 = sst [smem:[#allocation18]] [#allocation125]
        $region268: #{tpu_custom_call.1} parent=35 // pred_fallthru
          _
        %1286 = shalt.err (0)
        %s1288 = sshll.u32 %s1280, 4
        %s1289 = int_to_ptr.vmem [resolvable:$true] %s1288
        %1291 = dma.hbm_to_vmem [thread:$0]  %s1279, 16, %s1289, [#allocation3]
        %s1292 = sadd.s32 %s568, 6
        %s1293 = smul.u32 %s1292, 128
        %s1294 = sadd.s32 %s1293, %s573
        %s1295 = sld [smem:[#allocation5 + %s1294]]
        %s1296 = smul.addr %s1295, 16
        %s1297 = scalar_lea.hbm %s1, %s1296
        %s1298 = scalar_lea.vmem [#allocation2], 55
        // Predicated region
        $region269: #{tpu_custom_call.1} parent=35 // pred_check
          _
        $region270: #{tpu_custom_call.1} parent=35 // pred_check_branch
          %1300 = sbr.rel target = $region272
        $region271: #{tpu_custom_call.1} parent=35 // pred_region
          %1301 = sst [smem:[#allocation17]] [#allocation128]
          %1302 = sst [smem:[#allocation18]] [#allocation127]
        $region272: #{tpu_custom_call.1} parent=35 // pred_fallthru
          _
        %1304 = shalt.err (0)
        %s1306 = sshll.u32 %s1298, 4
        %s1307 = int_to_ptr.vmem [resolvable:$true] %s1306
        %1309 = dma.hbm_to_vmem [thread:$0]  %s1297, 16, %s1307, [#allocation3]
        %s1310 = sadd.s32 %s414, 7
        %s1311 = smul.u32 %s1310, 128
        %s1312 = sadd.s32 %s1311, %s419
        %s1313 = sld [smem:[#allocation5 + %s1312]]
        %s1314 = smul.addr %s1313, 16
        %s1315 = scalar_lea.hbm %s1, %s1314
        %s1316 = scalar_lea.vmem [#allocation2], 56
        // Predicated region
        $region273: #{tpu_custom_call.1} parent=35 // pred_check
          _
        $region274: #{tpu_custom_call.1} parent=35 // pred_check_branch
          %1318 = sbr.rel target = $region276
        $region275: #{tpu_custom_call.1} parent=35 // pred_region
          %1319 = sst [smem:[#allocation17]] [#allocation130]
          %1320 = sst [smem:[#allocation18]] [#allocation129]
        $region276: #{tpu_custom_call.1} parent=35 // pred_fallthru
          _
        %1322 = shalt.err (0)
        %s1324 = sshll.u32 %s1316, 4
        %s1325 = int_to_ptr.vmem [resolvable:$true] %s1324
        %1327 = dma.hbm_to_vmem [thread:$0]  %s1315, 16, %s1325, [#allocation3]
        %s1328 = sadd.s32 %s436, 7
        %s1329 = smul.u32 %s1328, 128
        %s1330 = sadd.s32 %s1329, %s441
        %s1331 = sld [smem:[#allocation5 + %s1330]]
        %s1332 = smul.addr %s1331, 16
        %s1333 = scalar_lea.hbm %s1, %s1332
        %s1334 = scalar_lea.vmem [#allocation2], 57
        // Predicated region
        $region277: #{tpu_custom_call.1} parent=35 // pred_check
          _
        $region278: #{tpu_custom_call.1} parent=35 // pred_check_branch
          %1336 = sbr.rel target = $region280
        $region279: #{tpu_custom_call.1} parent=35 // pred_region
          %1337 = sst [smem:[#allocation17]] [#allocation132]
          %1338 = sst [smem:[#allocation18]] [#allocation131]
        $region280: #{tpu_custom_call.1} parent=35 // pred_fallthru
          _
        %1340 = shalt.err (0)
        %s1342 = sshll.u32 %s1334, 4
        %s1343 = int_to_ptr.vmem [resolvable:$true] %s1342
        %1345 = dma.hbm_to_vmem [thread:$0]  %s1333, 16, %s1343, [#allocation3]
        %s1346 = sadd.s32 %s458, 7
        %s1347 = smul.u32 %s1346, 128
        %s1348 = sadd.s32 %s1347, %s463
        %s1349 = sld [smem:[#allocation5 + %s1348]]
        %s1350 = smul.addr %s1349, 16
        %s1351 = scalar_lea.hbm %s1, %s1350
        %s1352 = scalar_lea.vmem [#allocation2], 58
        // Predicated region
        $region281: #{tpu_custom_call.1} parent=35 // pred_check
          _
        $region282: #{tpu_custom_call.1} parent=35 // pred_check_branch
          %1354 = sbr.rel target = $region284
        $region283: #{tpu_custom_call.1} parent=35 // pred_region
          %1355 = sst [smem:[#allocation17]] [#allocation134]
          %1356 = sst [smem:[#allocation18]] [#allocation133]
        $region284: #{tpu_custom_call.1} parent=35 // pred_fallthru
          _
        %1358 = shalt.err (0)
        %s1360 = sshll.u32 %s1352, 4
        %s1361 = int_to_ptr.vmem [resolvable:$true] %s1360
        %1363 = dma.hbm_to_vmem [thread:$0]  %s1351, 16, %s1361, [#allocation3]
        %s1364 = sadd.s32 %s480, 7
        %s1365 = smul.u32 %s1364, 128
        %s1366 = sadd.s32 %s1365, %s485
        %s1367 = sld [smem:[#allocation5 + %s1366]]
        %s1368 = smul.addr %s1367, 16
        %s1369 = scalar_lea.hbm %s1, %s1368
        %s1370 = scalar_lea.vmem [#allocation2], 59
        // Predicated region
        $region285: #{tpu_custom_call.1} parent=35 // pred_check
          _
        $region286: #{tpu_custom_call.1} parent=35 // pred_check_branch
          %1372 = sbr.rel target = $region288
        $region287: #{tpu_custom_call.1} parent=35 // pred_region
          %1373 = sst [smem:[#allocation17]] [#allocation136]
          %1374 = sst [smem:[#allocation18]] [#allocation135]
        $region288: #{tpu_custom_call.1} parent=35 // pred_fallthru
          _
        %1376 = shalt.err (0)
        %s1378 = sshll.u32 %s1370, 4
        %s1379 = int_to_ptr.vmem [resolvable:$true] %s1378
        %1381 = dma.hbm_to_vmem [thread:$0]  %s1369, 16, %s1379, [#allocation3]
        %s1382 = sadd.s32 %s502, 7
        %s1383 = smul.u32 %s1382, 128
        %s1384 = sadd.s32 %s1383, %s507
        %s1385 = sld [smem:[#allocation5 + %s1384]]
        %s1386 = smul.addr %s1385, 16
        %s1387 = scalar_lea.hbm %s1, %s1386
        %s1388 = scalar_lea.vmem [#allocation2], 60
        // Predicated region
        $region289: #{tpu_custom_call.1} parent=35 // pred_check
          _
        $region290: #{tpu_custom_call.1} parent=35 // pred_check_branch
          %1390 = sbr.rel target = $region292
        $region291: #{tpu_custom_call.1} parent=35 // pred_region
          %1391 = sst [smem:[#allocation17]] [#allocation138]
          %1392 = sst [smem:[#allocation18]] [#allocation137]
        $region292: #{tpu_custom_call.1} parent=35 // pred_fallthru
          _
        %1394 = shalt.err (0)
        %s1396 = sshll.u32 %s1388, 4
        %s1397 = int_to_ptr.vmem [resolvable:$true] %s1396
        %1399 = dma.hbm_to_vmem [thread:$0]  %s1387, 16, %s1397, [#allocation3]
        %s1400 = sadd.s32 %s524, 7
        %s1401 = smul.u32 %s1400, 128
        %s1402 = sadd.s32 %s1401, %s529
        %s1403 = sld [smem:[#allocation5 + %s1402]]
        %s1404 = smul.addr %s1403, 16
        %s1405 = scalar_lea.hbm %s1, %s1404
        %s1406 = scalar_lea.vmem [#allocation2], 61
        // Predicated region
        $region293: #{tpu_custom_call.1} parent=35 // pred_check
          _
        $region294: #{tpu_custom_call.1} parent=35 // pred_check_branch
          %1408 = sbr.rel target = $region296
        $region295: #{tpu_custom_call.1} parent=35 // pred_region
          %1409 = sst [smem:[#allocation17]] [#allocation140]
          %1410 = sst [smem:[#allocation18]] [#allocation139]
        $region296: #{tpu_custom_call.1} parent=35 // pred_fallthru
          _
        %1412 = shalt.err (0)
        %s1414 = sshll.u32 %s1406, 4
        %s1415 = int_to_ptr.vmem [resolvable:$true] %s1414
        %1417 = dma.hbm_to_vmem [thread:$0]  %s1405, 16, %s1415, [#allocation3]
        %s1418 = sadd.s32 %s546, 7
        %s1419 = smul.u32 %s1418, 128
        %s1420 = sadd.s32 %s1419, %s551
        %s1421 = sld [smem:[#allocation5 + %s1420]]
        %s1422 = smul.addr %s1421, 16
        %s1423 = scalar_lea.hbm %s1, %s1422
        %s1424 = scalar_lea.vmem [#allocation2], 62
        // Predicated region
        $region297: #{tpu_custom_call.1} parent=35 // pred_check
          _
        $region298: #{tpu_custom_call.1} parent=35 // pred_check_branch
          %1426 = sbr.rel target = $region300
        $region299: #{tpu_custom_call.1} parent=35 // pred_region
          %1427 = sst [smem:[#allocation17]] [#allocation142]
          %1428 = sst [smem:[#allocation18]] [#allocation141]
        $region300: #{tpu_custom_call.1} parent=35 // pred_fallthru
          _
        %1430 = shalt.err (0)
        %s1432 = sshll.u32 %s1424, 4
        %s1433 = int_to_ptr.vmem [resolvable:$true] %s1432
        %1435 = dma.hbm_to_vmem [thread:$0]  %s1423, 16, %s1433, [#allocation3]
        %s1436 = sadd.s32 %s568, 7
        %s1437 = smul.u32 %s1436, 128
        %s1438 = sadd.s32 %s1437, %s573
        %s1439 = sld [smem:[#allocation5 + %s1438]]
        %s1440 = smul.addr %s1439, 16
        %s1441 = scalar_lea.hbm %s1, %s1440
        %s1442 = scalar_lea.vmem [#allocation2], 63
        // Predicated region
        $region301: #{tpu_custom_call.1} parent=35 // pred_check
          _
        $region302: #{tpu_custom_call.1} parent=35 // pred_check_branch
          %1444 = sbr.rel target = $region304
        $region303: #{tpu_custom_call.1} parent=35 // pred_region
          %1445 = sst [smem:[#allocation17]] [#allocation144]
          %1446 = sst [smem:[#allocation18]] [#allocation143]
        $region304: #{tpu_custom_call.1} parent=35 // pred_fallthru
          _
        %1448 = shalt.err (0)
        %s1450 = sshll.u32 %s1442, 4
        %s1451 = int_to_ptr.vmem [resolvable:$true] %s1450
        %1453 = dma.hbm_to_vmem [thread:$0]  %s1441, 16, %s1451, [#allocation3]
        %s1454 = smul.u32 1, 1
        %s1455 = sshll.u32 %s1454, 4
        %1456 = dma.done [#allocation3], %s1455
        %s1457 = sshll.u32 %s1454, 4
        %1458 = dma.done [#allocation3], %s1457
        %s1459 = sshll.u32 %s1454, 4
        %1460 = dma.done [#allocation3], %s1459
        %s1461 = sshll.u32 %s1454, 4
        %1462 = dma.done [#allocation3], %s1461
        %s1463 = sshll.u32 %s1454, 4
        %1464 = dma.done [#allocation3], %s1463
        %s1465 = sshll.u32 %s1454, 4
        %1466 = dma.done [#allocation3], %s1465
        %s1467 = sshll.u32 %s1454, 4
        %1468 = dma.done [#allocation3], %s1467
        %s1469 = sshll.u32 %s1454, 4
        %1470 = dma.done [#allocation3], %s1469
        %s1471 = sshll.u32 %s1454, 4
        %1472 = dma.done [#allocation3], %s1471
        %s1473 = sshll.u32 %s1454, 4
        %1474 = dma.done [#allocation3], %s1473
        %s1475 = sshll.u32 %s1454, 4
        %1476 = dma.done [#allocation3], %s1475
        %s1477 = sshll.u32 %s1454, 4
        %1478 = dma.done [#allocation3], %s1477
        %s1479 = sshll.u32 %s1454, 4
        %1480 = dma.done [#allocation3], %s1479
        %s1481 = sshll.u32 %s1454, 4
        %1482 = dma.done [#allocation3], %s1481
        %s1483 = sshll.u32 %s1454, 4
        %1484 = dma.done [#allocation3], %s1483
        %s1485 = sshll.u32 %s1454, 4
        %1486 = dma.done [#allocation3], %s1485
        %s1487 = sshll.u32 %s1454, 4
        %1488 = dma.done [#allocation3], %s1487
        %s1489 = sshll.u32 %s1454, 4
        %1490 = dma.done [#allocation3], %s1489
        %s1491 = sshll.u32 %s1454, 4
        %1492 = dma.done [#allocation3], %s1491
        %s1493 = sshll.u32 %s1454, 4
        %1494 = dma.done [#allocation3], %s1493
        %s1495 = sshll.u32 %s1454, 4
        %1496 = dma.done [#allocation3], %s1495
        %s1497 = sshll.u32 %s1454, 4
        %1498 = dma.done [#allocation3], %s1497
        %s1499 = sshll.u32 %s1454, 4
        %1500 = dma.done [#allocation3], %s1499
        %s1501 = sshll.u32 %s1454, 4
        %1502 = dma.done [#allocation3], %s1501
        %s1503 = sshll.u32 %s1454, 4
        %1504 = dma.done [#allocation3], %s1503
        %s1505 = sshll.u32 %s1454, 4
        %1506 = dma.done [#allocation3], %s1505
        %s1507 = sshll.u32 %s1454, 4
        %1508 = dma.done [#allocation3], %s1507
        %s1509 = sshll.u32 %s1454, 4
        %1510 = dma.done [#allocation3], %s1509
        %s1511 = sshll.u32 %s1454, 4
        %1512 = dma.done [#allocation3], %s1511
        %s1513 = sshll.u32 %s1454, 4
        %1514 = dma.done [#allocation3], %s1513
        %s1515 = sshll.u32 %s1454, 4
        %1516 = dma.done [#allocation3], %s1515
        %s1517 = sshll.u32 %s1454, 4
        %1518 = dma.done [#allocation3], %s1517
        %s1519 = sshll.u32 %s1454, 4
        %1520 = dma.done [#allocation3], %s1519
        %s1521 = sshll.u32 %s1454, 4
        %1522 = dma.done [#allocation3], %s1521
        %s1523 = sshll.u32 %s1454, 4
        %1524 = dma.done [#allocation3], %s1523
        %s1525 = sshll.u32 %s1454, 4
        %1526 = dma.done [#allocation3], %s1525
        %s1527 = sshll.u32 %s1454, 4
        %1528 = dma.done [#allocation3], %s1527
        %s1529 = sshll.u32 %s1454, 4
        %1530 = dma.done [#allocation3], %s1529
        %s1531 = sshll.u32 %s1454, 4
        %1532 = dma.done [#allocation3], %s1531
        %s1533 = sshll.u32 %s1454, 4
        %1534 = dma.done [#allocation3], %s1533
        %s1535 = sshll.u32 %s1454, 4
        %1536 = dma.done [#allocation3], %s1535
        %s1537 = sshll.u32 %s1454, 4
        %1538 = dma.done [#allocation3], %s1537
        %s1539 = sshll.u32 %s1454, 4
        %1540 = dma.done [#allocation3], %s1539
        %s1541 = sshll.u32 %s1454, 4
        %1542 = dma.done [#allocation3], %s1541
        %s1543 = sshll.u32 %s1454, 4
        %1544 = dma.done [#allocation3], %s1543
        %s1545 = sshll.u32 %s1454, 4
        %1546 = dma.done [#allocation3], %s1545
        %s1547 = sshll.u32 %s1454, 4
        %1548 = dma.done [#allocation3], %s1547
        %s1549 = sshll.u32 %s1454, 4
        %1550 = dma.done [#allocation3], %s1549
        %s1551 = sshll.u32 %s1454, 4
        %1552 = dma.done [#allocation3], %s1551
        %s1553 = sshll.u32 %s1454, 4
        %1554 = dma.done [#allocation3], %s1553
        %s1555 = sshll.u32 %s1454, 4
        %1556 = dma.done [#allocation3], %s1555
        %s1557 = sshll.u32 %s1454, 4
        %1558 = dma.done [#allocation3], %s1557
        %s1559 = sshll.u32 %s1454, 4
        %1560 = dma.done [#allocation3], %s1559
        %s1561 = sshll.u32 %s1454, 4
        %1562 = dma.done [#allocation3], %s1561
        %s1563 = sshll.u32 %s1454, 4
        %1564 = dma.done [#allocation3], %s1563
        %s1565 = sshll.u32 %s1454, 4
        %1566 = dma.done [#allocation3], %s1565
        %s1567 = sshll.u32 %s1454, 4
        %1568 = dma.done [#allocation3], %s1567
        %s1569 = sshll.u32 %s1454, 4
        %1570 = dma.done [#allocation3], %s1569
        %s1571 = sshll.u32 %s1454, 4
        %1572 = dma.done [#allocation3], %s1571
        %s1573 = sshll.u32 %s1454, 4
        %1574 = dma.done [#allocation3], %s1573
        %s1575 = sshll.u32 %s1454, 4
        %1576 = dma.done [#allocation3], %s1575
        %s1577 = sshll.u32 %s1454, 4
        %1578 = dma.done [#allocation3], %s1577
        %s1579 = sshll.u32 %s1454, 4
        %1580 = dma.done [#allocation3], %s1579
        %s1581 = sshll.u32 %s1454, 4
        %1582 = dma.done [#allocation3], %s1581
        %v1583 = vld [vmem:[#allocation2] sm:$0xff]
        %v1584 = vld [vmem:[#allocation2 + $0x8] sm:$0xff]
        %v1585 = vld [vmem:[#allocation2 + $0x10] sm:$0xff]
        %v1586 = vld [vmem:[#allocation2 + $0x18] sm:$0xff]
        %v1587 = vld [vmem:[#allocation2 + $0x20] sm:$0xff]
        %v1588 = vld [vmem:[#allocation2 + $0x28] sm:$0xff]
        %v1589 = vld [vmem:[#allocation2 + $0x30] sm:$0xff]
        %v1590 = vld [vmem:[#allocation2 + $0x38] sm:$0xff]
        %v1591 = vld [vmem:[#allocation6] sm:$0xf]
        %v1592 = vld [vmem:[#allocation6 + $0x4] sm:$0xf]
        %v1593 = vld [vmem:[#allocation6 + $0x8] sm:$0xf]
        %v1594 = vld [vmem:[#allocation6 + $0xc] sm:$0xf]
        %v1595 = vld [vmem:[#allocation6 + $0x10] sm:$0xf]
        %v1596 = vld [vmem:[#allocation6 + $0x14] sm:$0xf]
        %v1597 = vld [vmem:[#allocation6 + $0x18] sm:$0xf]
        %v1598 = vld [vmem:[#allocation6 + $0x1c] sm:$0xf]
        %v1599 = vld [vmem:[#allocation6 + $0x20] sm:$0xf]
        %v1600 = vld [vmem:[#allocation6 + $0x24] sm:$0xf]
        %v1601 = vld [vmem:[#allocation6 + $0x28] sm:$0xf]
        %v1602 = vld [vmem:[#allocation6 + $0x2c] sm:$0xf]
        %v1603 = vld [vmem:[#allocation6 + $0x30] sm:$0xf]
        %v1604 = vld [vmem:[#allocation6 + $0x34] sm:$0xf]
        %v1605 = vld [vmem:[#allocation6 + $0x38] sm:$0xf]
        %v1606 = vld [vmem:[#allocation6 + $0x3c] sm:$0xf]
        %v1607 = vld [vmem:[#allocation9] sm:$0xf]
        %v1608 = vld [vmem:[#allocation9 + $0x4] sm:$0xf]
        %v1609 = vld [vmem:[#allocation9 + $0x8] sm:$0xf]
        %v1610 = vld [vmem:[#allocation9 + $0xc] sm:$0xf]
        %v1611 = vld [vmem:[#allocation9 + $0x10] sm:$0xf]
        %v1612 = vld [vmem:[#allocation9 + $0x14] sm:$0xf]
        %v1613 = vld [vmem:[#allocation9 + $0x18] sm:$0xf]
        %v1614 = vld [vmem:[#allocation9 + $0x1c] sm:$0xf]
        %v1615 = vld [vmem:[#allocation9 + $0x20] sm:$0xf]
        %v1616 = vld [vmem:[#allocation9 + $0x24] sm:$0xf]
        %v1617 = vld [vmem:[#allocation9 + $0x28] sm:$0xf]
        %v1618 = vld [vmem:[#allocation9 + $0x2c] sm:$0xf]
        %v1619 = vld [vmem:[#allocation9 + $0x30] sm:$0xf]
        %v1620 = vld [vmem:[#allocation9 + $0x34] sm:$0xf]
        %v1621 = vld [vmem:[#allocation9 + $0x38] sm:$0xf]
        %v1622 = vld [vmem:[#allocation9 + $0x3c] sm:$0xf]
        %v1623 = vpack.c.bf16 %v1584, %v1583
        %v1624 = vpack.c.bf16 %v1586, %v1585
        %v1625 = vpack.c.bf16 %v1588, %v1587
        %v1626 = vpack.c.bf16 %v1590, %v1589
        %v1627 = vld [vmem:[%s4] sm:$0x1]
        %v1629 = vlaneseq
        %v1630 = vshrl.u32 %v1629, 7
        %v1631 = vsub.s32 0, %v1630
        %v1632 = vrot.slane %v1627, %v1631
        %v1650 = vunpack.c.l.b16 %v1591
        %v1651 = vunpack.c.l.b16 %v1592
        %v1652 = vunpack.c.l.b16 %v1593
        %v1653 = vunpack.c.l.b16 %v1594
        %v1654 = vunpack.c.l.b16 %v1595
        %v1655 = vunpack.c.l.b16 %v1596
        %v1656 = vunpack.c.l.b16 %v1597
        %v1657 = vunpack.c.l.b16 %v1598
        %v1658 = vunpack.c.l.b16 %v1599
        %v1659 = vunpack.c.l.b16 %v1600
        %v1660 = vunpack.c.l.b16 %v1601
        %v1661 = vunpack.c.l.b16 %v1602
        %v1662 = vunpack.c.l.b16 %v1603
        %v1663 = vunpack.c.l.b16 %v1604
        %v1664 = vunpack.c.l.b16 %v1605
        %v1665 = vunpack.c.l.b16 %v1606
        %v1666 = vpack.c.b16 %v1651, %v1650
        %v1667 = vpack.c.b16 %v1653, %v1652
        %v1668 = vpack.c.b16 %v1655, %v1654
        %v1669 = vpack.c.b16 %v1657, %v1656
        %v1670 = vpack.c.b16 %v1659, %v1658
        %v1671 = vpack.c.b16 %v1661, %v1660
        %v1672 = vpack.c.b16 %v1663, %v1662
        %v1673 = vpack.c.b16 %v1665, %v1664
        %1682 = vmatprep.subr.bf16.mxu0 0
        %1683 = vmatpush1.bf16.msra.mxu0 %v1666
        %1684 = vmatprep.subr.bf16.mxu0 0
        %1685 = vmatpush1.bf16.msra.mxu0 %v1667
        %1686 = vmatprep.subr.bf16.mxu0 0
        %1687 = vmatpush1.bf16.msra.mxu0 %v1668
        %1688 = vmatprep.subr.bf16.mxu0 0
        %1689 = vmatpush1.bf16.msra.mxu0 %v1669
        %1690 = vmatprep.subr.bf16.mxu0 0
        %1691 = vmatpush1.bf16.msra.mxu0 %v1670
        %1692 = vmatprep.subr.bf16.mxu0 0
        %1693 = vmatpush1.bf16.msra.mxu0 %v1671
        %1694 = vmatprep.subr.bf16.mxu0 0
        %1695 = vmatpush1.bf16.msra.mxu0 %v1672
        %1696 = vmatprep.subr.bf16.mxu0 0
        %1697 = vmatpush1.bf16.msra.mxu0 %v1673
        %1698 = vmatprep.subr.bf16.mxu0 0
        %1699 = vmatpush1.bf16.msra.mxu0 0
        %1700 = vmatprep.subr.bf16.mxu0 0
        %1701 = vmatpush1.bf16.msra.mxu0 0
        %1702 = vmatprep.subr.bf16.mxu0 0
        %1703 = vmatpush1.bf16.msra.mxu0 0
        %1704 = vmatprep.subr.bf16.mxu0 0
        %1705 = vmatpush1.bf16.msra.mxu0 0
        %1706 = vmatprep.subr.bf16.mxu0 0
        %1707 = vmatpush1.bf16.msra.mxu0 0
        %1708 = vmatprep.subr.bf16.mxu0 0
        %1709 = vmatpush1.bf16.msra.mxu0 0
        %1710 = vmatprep.subr.bf16.mxu0 0
        %1711 = vmatpush1.bf16.msra.mxu0 0
        %1712 = vmatprep.subr.bf16.mxu0 0
        %1713 = vmatpush1.bf16.msra.mxu0 0
        %1714 = vmatprep.mubr.bf16.mxu0 0
        %1715 = vmatmul.mubr.bf16.gmra.mrb[0].mxu0 %v1623
        %v1716 = vpop.f32.mrb[0].mxu0
        %v1717 = vadd.f32 %v1632, %v1716
        %v1718 = vpop.f32.mrb[0].mxu0
        %v1719 = vpop.f32.mrb[0].mxu0
        %v1720 = vadd.f32 %v1632, %v1719
        %v1721 = vpop.f32.mrb[0].mxu0
        %1722 = vmatprep.mubr.bf16.mxu0 0
        %1723 = vmatmul.mubr.bf16.gmra.mrb[0].mxu0 %v1624
        %v1724 = vpop.f32.mrb[0].mxu0
        %v1725 = vadd.f32 %v1632, %v1724
        %v1726 = vpop.f32.mrb[0].mxu0
        %v1727 = vpop.f32.mrb[0].mxu0
        %v1728 = vadd.f32 %v1632, %v1727
        %v1729 = vpop.f32.mrb[0].mxu0
        %1730 = vmatprep.mubr.bf16.mxu0 0
        %1731 = vmatmul.mubr.bf16.gmra.mrb[0].mxu0 %v1625
        %v1732 = vpop.f32.mrb[0].mxu0
        %v1733 = vadd.f32 %v1632, %v1732
        %v1734 = vpop.f32.mrb[0].mxu0
        %v1735 = vpop.f32.mrb[0].mxu0
        %v1736 = vadd.f32 %v1632, %v1735
        %v1737 = vpop.f32.mrb[0].mxu0
        %1738 = vmatprep.mubr.bf16.mxu0 0
        %1739 = vmatmul.mubr.bf16.gmra.mrb[0].mxu0 %v1626
        %v1740 = vpop.f32.mrb[0].mxu0
        %v1741 = vadd.f32 %v1632, %v1740
        %v1742 = vpop.f32.mrb[0].mxu0
        %v1743 = vpop.f32.mrb[0].mxu0
        %v1744 = vadd.f32 %v1632, %v1743
        %v1745 = vpop.f32.mrb[0].mxu0
        %1746 = vdwg.mxu0
        %v1747 = vld [vmem:[%s254] sm:$0xff]
        %v1748 = vpack.c.bf16 %v1747, %v1747
        %v1765 = vunpack.c.l.b16 %v1607
        %v1766 = vunpack.c.l.b16 %v1608
        %v1767 = vunpack.c.l.b16 %v1609
        %v1768 = vunpack.c.l.b16 %v1610
        %v1769 = vunpack.c.l.b16 %v1611
        %v1770 = vunpack.c.l.b16 %v1612
        %v1771 = vunpack.c.l.b16 %v1613
        %v1772 = vunpack.c.l.b16 %v1614
        %v1773 = vunpack.c.l.b16 %v1615
        %v1774 = vunpack.c.l.b16 %v1616
        %v1775 = vunpack.c.l.b16 %v1617
        %v1776 = vunpack.c.l.b16 %v1618
        %v1777 = vunpack.c.l.b16 %v1619
        %v1778 = vunpack.c.l.b16 %v1620
        %v1779 = vunpack.c.l.b16 %v1621
        %v1780 = vunpack.c.l.b16 %v1622
        %v1781 = vpack.c.b16 %v1766, %v1765
        %v1782 = vpack.c.b16 %v1768, %v1767
        %v1783 = vpack.c.b16 %v1770, %v1769
        %v1784 = vpack.c.b16 %v1772, %v1771
        %v1785 = vpack.c.b16 %v1774, %v1773
        %v1786 = vpack.c.b16 %v1776, %v1775
        %v1787 = vpack.c.b16 %v1778, %v1777
        %v1788 = vpack.c.b16 %v1780, %v1779
        %1797 = vmatprep.subr.bf16.mxu0 0
        %1798 = vmatpush1.bf16.msra.mxu0 %v1781
        %1799 = vmatprep.subr.bf16.mxu0 0
        %1800 = vmatpush1.bf16.msra.mxu0 %v1782
        %1801 = vmatprep.subr.bf16.mxu0 0
        %1802 = vmatpush1.bf16.msra.mxu0 %v1783
        %1803 = vmatprep.subr.bf16.mxu0 0
        %1804 = vmatpush1.bf16.msra.mxu0 %v1784
        %1805 = vmatprep.subr.bf16.mxu0 0
        %1806 = vmatpush1.bf16.msra.mxu0 %v1785
        %1807 = vmatprep.subr.bf16.mxu0 0
        %1808 = vmatpush1.bf16.msra.mxu0 %v1786
        %1809 = vmatprep.subr.bf16.mxu0 0
        %1810 = vmatpush1.bf16.msra.mxu0 %v1787
        %1811 = vmatprep.subr.bf16.mxu0 0
        %1812 = vmatpush1.bf16.msra.mxu0 %v1788
        %1813 = vmatprep.subr.bf16.mxu0 0
        %1814 = vmatpush1.bf16.msra.mxu0 0
        %1815 = vmatprep.subr.bf16.mxu0 0
        %1816 = vmatpush1.bf16.msra.mxu0 0
        %1817 = vmatprep.subr.bf16.mxu0 0
        %1818 = vmatpush1.bf16.msra.mxu0 0
        %1819 = vmatprep.subr.bf16.mxu0 0
        %1820 = vmatpush1.bf16.msra.mxu0 0
        %1821 = vmatprep.subr.bf16.mxu0 0
        %1822 = vmatpush1.bf16.msra.mxu0 0
        %1823 = vmatprep.subr.bf16.mxu0 0
        %1824 = vmatpush1.bf16.msra.mxu0 0
        %1825 = vmatprep.subr.bf16.mxu0 0
        %1826 = vmatpush1.bf16.msra.mxu0 0
        %1827 = vmatprep.subr.bf16.mxu0 0
        %1828 = vmatpush1.bf16.msra.mxu0 0
        %1829 = vmatprep.mubr.bf16.mxu0 0
        %1830 = vmatmul.mubr.bf16.gmra.mrb[0].mxu0 %v1748
        %v1831 = vpop.f32.mrb[0].mxu0
        %v1832 = vadd.f32 0.0, %v1831
        %v1833 = vpop.f32.mrb[0].mxu0
        %v1834 = vpop.f32.mrb[0].mxu0
        %v1835 = vpop.f32.mrb[0].mxu0
        %1836 = vdwg.mxu0
        %v1837 = vadd.f32 %v1717, %v1832
        %v1838 = vtanh.pop %v1837
        %v1839 = vpack.c.bf16 %v1838, %v1838
        %1840 = vmatprep.subr.bf16.mxu0 0
        %1841 = vmatpush1.bf16.msra.mxu0 %v1781
        %1842 = vmatprep.subr.bf16.mxu0 0
        %1843 = vmatpush1.bf16.msra.mxu0 %v1782
        %1844 = vmatprep.subr.bf16.mxu0 0
        %1845 = vmatpush1.bf16.msra.mxu0 %v1783
        %1846 = vmatprep.subr.bf16.mxu0 0
        %1847 = vmatpush1.bf16.msra.mxu0 %v1784
        %1848 = vmatprep.subr.bf16.mxu0 0
        %1849 = vmatpush1.bf16.msra.mxu0 %v1785
        %1850 = vmatprep.subr.bf16.mxu0 0
        %1851 = vmatpush1.bf16.msra.mxu0 %v1786
        %1852 = vmatprep.subr.bf16.mxu0 0
        %1853 = vmatpush1.bf16.msra.mxu0 %v1787
        %1854 = vmatprep.subr.bf16.mxu0 0
        %1855 = vmatpush1.bf16.msra.mxu0 %v1788
        %1856 = vmatprep.subr.bf16.mxu0 0
        %1857 = vmatpush1.bf16.msra.mxu0 0
        %1858 = vmatprep.subr.bf16.mxu0 0
        %1859 = vmatpush1.bf16.msra.mxu0 0
        %1860 = vmatprep.subr.bf16.mxu0 0
        %1861 = vmatpush1.bf16.msra.mxu0 0
        %1862 = vmatprep.subr.bf16.mxu0 0
        %1863 = vmatpush1.bf16.msra.mxu0 0
        %1864 = vmatprep.subr.bf16.mxu0 0
        %1865 = vmatpush1.bf16.msra.mxu0 0
        %1866 = vmatprep.subr.bf16.mxu0 0
        %1867 = vmatpush1.bf16.msra.mxu0 0
        %1868 = vmatprep.subr.bf16.mxu0 0
        %1869 = vmatpush1.bf16.msra.mxu0 0
        %1870 = vmatprep.subr.bf16.mxu0 0
        %1871 = vmatpush1.bf16.msra.mxu0 0
        %1872 = vmatprep.mubr.bf16.mxu0 0
        %1873 = vmatmul.mubr.bf16.gmra.mrb[0].mxu0 %v1839
        %v1874 = vpop.f32.mrb[0].mxu0
        %v1875 = vadd.f32 0.0, %v1874
        %v1876 = vpop.f32.mrb[0].mxu0
        %v1877 = vpop.f32.mrb[0].mxu0
        %v1878 = vpop.f32.mrb[0].mxu0
        %1879 = vdwg.mxu0
        %v1880 = vadd.f32 %v1720, %v1875
        %v1881 = vtanh.pop %v1880
        %v1882 = vpack.c.bf16 %v1881, %v1881
        %1883 = vmatprep.subr.bf16.mxu0 0
        %1884 = vmatpush1.bf16.msra.mxu0 %v1781
        %1885 = vmatprep.subr.bf16.mxu0 0
        %1886 = vmatpush1.bf16.msra.mxu0 %v1782
        %1887 = vmatprep.subr.bf16.mxu0 0
        %1888 = vmatpush1.bf16.msra.mxu0 %v1783
        %1889 = vmatprep.subr.bf16.mxu0 0
        %1890 = vmatpush1.bf16.msra.mxu0 %v1784
        %1891 = vmatprep.subr.bf16.mxu0 0
        %1892 = vmatpush1.bf16.msra.mxu0 %v1785
        %1893 = vmatprep.subr.bf16.mxu0 0
        %1894 = vmatpush1.bf16.msra.mxu0 %v1786
        %1895 = vmatprep.subr.bf16.mxu0 0
        %1896 = vmatpush1.bf16.msra.mxu0 %v1787
        %1897 = vmatprep.subr.bf16.mxu0 0
        %1898 = vmatpush1.bf16.msra.mxu0 %v1788
        %1899 = vmatprep.subr.bf16.mxu0 0
        %1900 = vmatpush1.bf16.msra.mxu0 0
        %1901 = vmatprep.subr.bf16.mxu0 0
        %1902 = vmatpush1.bf16.msra.mxu0 0
        %1903 = vmatprep.subr.bf16.mxu0 0
        %1904 = vmatpush1.bf16.msra.mxu0 0
        %1905 = vmatprep.subr.bf16.mxu0 0
        %1906 = vmatpush1.bf16.msra.mxu0 0
        %1907 = vmatprep.subr.bf16.mxu0 0
        %1908 = vmatpush1.bf16.msra.mxu0 0
        %1909 = vmatprep.subr.bf16.mxu0 0
        %1910 = vmatpush1.bf16.msra.mxu0 0
        %1911 = vmatprep.subr.bf16.mxu0 0
        %1912 = vmatpush1.bf16.msra.mxu0 0
        %1913 = vmatprep.subr.bf16.mxu0 0
        %1914 = vmatpush1.bf16.msra.mxu0 0
        %1915 = vmatprep.mubr.bf16.mxu0 0
        %1916 = vmatmul.mubr.bf16.gmra.mrb[0].mxu0 %v1882
        %v1917 = vpop.f32.mrb[0].mxu0
        %v1918 = vadd.f32 0.0, %v1917
        %v1919 = vpop.f32.mrb[0].mxu0
        %v1920 = vpop.f32.mrb[0].mxu0
        %v1921 = vpop.f32.mrb[0].mxu0
        %1922 = vdwg.mxu0
        %v1923 = vadd.f32 %v1725, %v1918
        %v1924 = vtanh.pop %v1923
        %v1925 = vpack.c.bf16 %v1924, %v1924
        %1926 = vmatprep.subr.bf16.mxu0 0
        %1927 = vmatpush1.bf16.msra.mxu0 %v1781
        %1928 = vmatprep.subr.bf16.mxu0 0
        %1929 = vmatpush1.bf16.msra.mxu0 %v1782
        %1930 = vmatprep.subr.bf16.mxu0 0
        %1931 = vmatpush1.bf16.msra.mxu0 %v1783
        %1932 = vmatprep.subr.bf16.mxu0 0
        %1933 = vmatpush1.bf16.msra.mxu0 %v1784
        %1934 = vmatprep.subr.bf16.mxu0 0
        %1935 = vmatpush1.bf16.msra.mxu0 %v1785
        %1936 = vmatprep.subr.bf16.mxu0 0
        %1937 = vmatpush1.bf16.msra.mxu0 %v1786
        %1938 = vmatprep.subr.bf16.mxu0 0
        %1939 = vmatpush1.bf16.msra.mxu0 %v1787
        %1940 = vmatprep.subr.bf16.mxu0 0
        %1941 = vmatpush1.bf16.msra.mxu0 %v1788
        %1942 = vmatprep.subr.bf16.mxu0 0
        %1943 = vmatpush1.bf16.msra.mxu0 0
        %1944 = vmatprep.subr.bf16.mxu0 0
        %1945 = vmatpush1.bf16.msra.mxu0 0
        %1946 = vmatprep.subr.bf16.mxu0 0
        %1947 = vmatpush1.bf16.msra.mxu0 0
        %1948 = vmatprep.subr.bf16.mxu0 0
        %1949 = vmatpush1.bf16.msra.mxu0 0
        %1950 = vmatprep.subr.bf16.mxu0 0
        %1951 = vmatpush1.bf16.msra.mxu0 0
        %1952 = vmatprep.subr.bf16.mxu0 0
        %1953 = vmatpush1.bf16.msra.mxu0 0
        %1954 = vmatprep.subr.bf16.mxu0 0
        %1955 = vmatpush1.bf16.msra.mxu0 0
        %1956 = vmatprep.subr.bf16.mxu0 0
        %1957 = vmatpush1.bf16.msra.mxu0 0
        %1958 = vmatprep.mubr.bf16.mxu0 0
        %1959 = vmatmul.mubr.bf16.gmra.mrb[0].mxu0 %v1925
        %v1960 = vpop.f32.mrb[0].mxu0
        %v1961 = vadd.f32 0.0, %v1960
        %v1962 = vpop.f32.mrb[0].mxu0
        %v1963 = vpop.f32.mrb[0].mxu0
        %v1964 = vpop.f32.mrb[0].mxu0
        %1965 = vdwg.mxu0
        %v1966 = vadd.f32 %v1728, %v1961
        %v1967 = vtanh.pop %v1966
        %v1968 = vpack.c.bf16 %v1967, %v1967
        %1969 = vmatprep.subr.bf16.mxu0 0
        %1970 = vmatpush1.bf16.msra.mxu0 %v1781
        %1971 = vmatprep.subr.bf16.mxu0 0
        %1972 = vmatpush1.bf16.msra.mxu0 %v1782
        %1973 = vmatprep.subr.bf16.mxu0 0
        %1974 = vmatpush1.bf16.msra.mxu0 %v1783
        %1975 = vmatprep.subr.bf16.mxu0 0
        %1976 = vmatpush1.bf16.msra.mxu0 %v1784
        %1977 = vmatprep.subr.bf16.mxu0 0
        %1978 = vmatpush1.bf16.msra.mxu0 %v1785
        %1979 = vmatprep.subr.bf16.mxu0 0
        %1980 = vmatpush1.bf16.msra.mxu0 %v1786
        %1981 = vmatprep.subr.bf16.mxu0 0
        %1982 = vmatpush1.bf16.msra.mxu0 %v1787
        %1983 = vmatprep.subr.bf16.mxu0 0
        %1984 = vmatpush1.bf16.msra.mxu0 %v1788
        %1985 = vmatprep.subr.bf16.mxu0 0
        %1986 = vmatpush1.bf16.msra.mxu0 0
        %1987 = vmatprep.subr.bf16.mxu0 0
        %1988 = vmatpush1.bf16.msra.mxu0 0
        %1989 = vmatprep.subr.bf16.mxu0 0
        %1990 = vmatpush1.bf16.msra.mxu0 0
        %1991 = vmatprep.subr.bf16.mxu0 0
        %1992 = vmatpush1.bf16.msra.mxu0 0
        %1993 = vmatprep.subr.bf16.mxu0 0
        %1994 = vmatpush1.bf16.msra.mxu0 0
        %1995 = vmatprep.subr.bf16.mxu0 0
        %1996 = vmatpush1.bf16.msra.mxu0 0
        %1997 = vmatprep.subr.bf16.mxu0 0
        %1998 = vmatpush1.bf16.msra.mxu0 0
        %1999 = vmatprep.subr.bf16.mxu0 0
        %2000 = vmatpush1.bf16.msra.mxu0 0
        %2001 = vmatprep.mubr.bf16.mxu0 0
        %2002 = vmatmul.mubr.bf16.gmra.mrb[0].mxu0 %v1968
        %v2003 = vpop.f32.mrb[0].mxu0
        %v2004 = vadd.f32 0.0, %v2003
        %v2005 = vpop.f32.mrb[0].mxu0
        %v2006 = vpop.f32.mrb[0].mxu0
        %v2007 = vpop.f32.mrb[0].mxu0
        %2008 = vdwg.mxu0
        %v2009 = vadd.f32 %v1733, %v2004
        %v2010 = vtanh.pop %v2009
        %v2011 = vpack.c.bf16 %v2010, %v2010
        %2012 = vmatprep.subr.bf16.mxu0 0
        %2013 = vmatpush1.bf16.msra.mxu0 %v1781
        %2014 = vmatprep.subr.bf16.mxu0 0
        %2015 = vmatpush1.bf16.msra.mxu0 %v1782
        %2016 = vmatprep.subr.bf16.mxu0 0
        %2017 = vmatpush1.bf16.msra.mxu0 %v1783
        %2018 = vmatprep.subr.bf16.mxu0 0
        %2019 = vmatpush1.bf16.msra.mxu0 %v1784
        %2020 = vmatprep.subr.bf16.mxu0 0
        %2021 = vmatpush1.bf16.msra.mxu0 %v1785
        %2022 = vmatprep.subr.bf16.mxu0 0
        %2023 = vmatpush1.bf16.msra.mxu0 %v1786
        %2024 = vmatprep.subr.bf16.mxu0 0
        %2025 = vmatpush1.bf16.msra.mxu0 %v1787
        %2026 = vmatprep.subr.bf16.mxu0 0
        %2027 = vmatpush1.bf16.msra.mxu0 %v1788
        %2028 = vmatprep.subr.bf16.mxu0 0
        %2029 = vmatpush1.bf16.msra.mxu0 0
        %2030 = vmatprep.subr.bf16.mxu0 0
        %2031 = vmatpush1.bf16.msra.mxu0 0
        %2032 = vmatprep.subr.bf16.mxu0 0
        %2033 = vmatpush1.bf16.msra.mxu0 0
        %2034 = vmatprep.subr.bf16.mxu0 0
        %2035 = vmatpush1.bf16.msra.mxu0 0
        %2036 = vmatprep.subr.bf16.mxu0 0
        %2037 = vmatpush1.bf16.msra.mxu0 0
        %2038 = vmatprep.subr.bf16.mxu0 0
        %2039 = vmatpush1.bf16.msra.mxu0 0
        %2040 = vmatprep.subr.bf16.mxu0 0
        %2041 = vmatpush1.bf16.msra.mxu0 0
        %2042 = vmatprep.subr.bf16.mxu0 0
        %2043 = vmatpush1.bf16.msra.mxu0 0
        %2044 = vmatprep.mubr.bf16.mxu0 0
        %2045 = vmatmul.mubr.bf16.gmra.mrb[0].mxu0 %v2011
        %v2046 = vpop.f32.mrb[0].mxu0
        %v2047 = vadd.f32 0.0, %v2046
        %v2048 = vpop.f32.mrb[0].mxu0
        %v2049 = vpop.f32.mrb[0].mxu0
        %v2050 = vpop.f32.mrb[0].mxu0
        %2051 = vdwg.mxu0
        %v2052 = vadd.f32 %v1736, %v2047
        %v2053 = vtanh.pop %v2052
        %v2054 = vpack.c.bf16 %v2053, %v2053
        %2055 = vmatprep.subr.bf16.mxu0 0
        %2056 = vmatpush1.bf16.msra.mxu0 %v1781
        %2057 = vmatprep.subr.bf16.mxu0 0
        %2058 = vmatpush1.bf16.msra.mxu0 %v1782
        %2059 = vmatprep.subr.bf16.mxu0 0
        %2060 = vmatpush1.bf16.msra.mxu0 %v1783
        %2061 = vmatprep.subr.bf16.mxu0 0
        %2062 = vmatpush1.bf16.msra.mxu0 %v1784
        %2063 = vmatprep.subr.bf16.mxu0 0
        %2064 = vmatpush1.bf16.msra.mxu0 %v1785
        %2065 = vmatprep.subr.bf16.mxu0 0
        %2066 = vmatpush1.bf16.msra.mxu0 %v1786
        %2067 = vmatprep.subr.bf16.mxu0 0
        %2068 = vmatpush1.bf16.msra.mxu0 %v1787
        %2069 = vmatprep.subr.bf16.mxu0 0
        %2070 = vmatpush1.bf16.msra.mxu0 %v1788
        %2071 = vmatprep.subr.bf16.mxu0 0
        %2072 = vmatpush1.bf16.msra.mxu0 0
        %2073 = vmatprep.subr.bf16.mxu0 0
        %2074 = vmatpush1.bf16.msra.mxu0 0
        %2075 = vmatprep.subr.bf16.mxu0 0
        %2076 = vmatpush1.bf16.msra.mxu0 0
        %2077 = vmatprep.subr.bf16.mxu0 0
        %2078 = vmatpush1.bf16.msra.mxu0 0
        %2079 = vmatprep.subr.bf16.mxu0 0
        %2080 = vmatpush1.bf16.msra.mxu0 0
        %2081 = vmatprep.subr.bf16.mxu0 0
        %2082 = vmatpush1.bf16.msra.mxu0 0
        %2083 = vmatprep.subr.bf16.mxu0 0
        %2084 = vmatpush1.bf16.msra.mxu0 0
        %2085 = vmatprep.subr.bf16.mxu0 0
        %2086 = vmatpush1.bf16.msra.mxu0 0
        %2087 = vmatprep.mubr.bf16.mxu0 0
        %2088 = vmatmul.mubr.bf16.gmra.mrb[0].mxu0 %v2054
        %v2089 = vpop.f32.mrb[0].mxu0
        %v2090 = vadd.f32 0.0, %v2089
        %v2091 = vpop.f32.mrb[0].mxu0
        %v2092 = vpop.f32.mrb[0].mxu0
        %v2093 = vpop.f32.mrb[0].mxu0
        %2094 = vdwg.mxu0
        %v2095 = vadd.f32 %v1741, %v2090
        %v2096 = vtanh.pop %v2095
        %v2097 = vpack.c.bf16 %v2096, %v2096
        %2098 = vmatprep.subr.bf16.mxu0 0
        %2099 = vmatpush1.bf16.msra.mxu0 %v1781
        %2100 = vmatprep.subr.bf16.mxu0 0
        %2101 = vmatpush1.bf16.msra.mxu0 %v1782
        %2102 = vmatprep.subr.bf16.mxu0 0
        %2103 = vmatpush1.bf16.msra.mxu0 %v1783
        %2104 = vmatprep.subr.bf16.mxu0 0
        %2105 = vmatpush1.bf16.msra.mxu0 %v1784
        %2106 = vmatprep.subr.bf16.mxu0 0
        %2107 = vmatpush1.bf16.msra.mxu0 %v1785
        %2108 = vmatprep.subr.bf16.mxu0 0
        %2109 = vmatpush1.bf16.msra.mxu0 %v1786
        %2110 = vmatprep.subr.bf16.mxu0 0
        %2111 = vmatpush1.bf16.msra.mxu0 %v1787
        %2112 = vmatprep.subr.bf16.mxu0 0
        %2113 = vmatpush1.bf16.msra.mxu0 %v1788
        %2114 = vmatprep.subr.bf16.mxu0 0
        %2115 = vmatpush1.bf16.msra.mxu0 0
        %2116 = vmatprep.subr.bf16.mxu0 0
        %2117 = vmatpush1.bf16.msra.mxu0 0
        %2118 = vmatprep.subr.bf16.mxu0 0
        %2119 = vmatpush1.bf16.msra.mxu0 0
        %2120 = vmatprep.subr.bf16.mxu0 0
        %2121 = vmatpush1.bf16.msra.mxu0 0
        %2122 = vmatprep.subr.bf16.mxu0 0
        %2123 = vmatpush1.bf16.msra.mxu0 0
        %2124 = vmatprep.subr.bf16.mxu0 0
        %2125 = vmatpush1.bf16.msra.mxu0 0
        %2126 = vmatprep.subr.bf16.mxu0 0
        %2127 = vmatpush1.bf16.msra.mxu0 0
        %2128 = vmatprep.subr.bf16.mxu0 0
        %2129 = vmatpush1.bf16.msra.mxu0 0
        %2130 = vmatprep.mubr.bf16.mxu0 0
        %2131 = vmatmul.mubr.bf16.gmra.mrb[0].mxu0 %v2097
        %v2132 = vpop.f32.mrb[0].mxu0
        %v2133 = vadd.f32 0.0, %v2132
        %v2134 = vpop.f32.mrb[0].mxu0
        %v2135 = vpop.f32.mrb[0].mxu0
        %v2136 = vpop.f32.mrb[0].mxu0
        %2137 = vdwg.mxu0
        %v2138 = vadd.f32 %v1744, %v2133
        %v2139 = vtanh.pop %v2138
        %2140 = vst [vmem:[%s285] sm:$0xff] %v2139
        %s2141 = scalar_lea.vmem [#allocation6], 64
        %v2142 = vld [vmem:[%s2141] sm:$0xf]
        %v2143 = vld [vmem:[%s2141 + $0x4] sm:$0xf]
        %v2144 = vld [vmem:[%s2141 + $0x8] sm:$0xf]
        %v2145 = vld [vmem:[%s2141 + $0xc] sm:$0xf]
        %v2146 = vld [vmem:[%s2141 + $0x10] sm:$0xf]
        %v2147 = vld [vmem:[%s2141 + $0x14] sm:$0xf]
        %v2148 = vld [vmem:[%s2141 + $0x18] sm:$0xf]
        %v2149 = vld [vmem:[%s2141 + $0x1c] sm:$0xf]
        %v2150 = vld [vmem:[%s2141 + $0x20] sm:$0xf]
        %v2151 = vld [vmem:[%s2141 + $0x24] sm:$0xf]
        %v2152 = vld [vmem:[%s2141 + $0x28] sm:$0xf]
        %v2153 = vld [vmem:[%s2141 + $0x2c] sm:$0xf]
        %v2154 = vld [vmem:[%s2141 + $0x30] sm:$0xf]
        %v2155 = vld [vmem:[%s2141 + $0x34] sm:$0xf]
        %v2156 = vld [vmem:[%s2141 + $0x38] sm:$0xf]
        %v2157 = vld [vmem:[%s2141 + $0x3c] sm:$0xf]
        %s2158 = scalar_lea.vmem [#allocation9], 64
        %v2159 = vld [vmem:[%s2158] sm:$0xf]
        %v2160 = vld [vmem:[%s2158 + $0x4] sm:$0xf]
        %v2161 = vld [vmem:[%s2158 + $0x8] sm:$0xf]
        %v2162 = vld [vmem:[%s2158 + $0xc] sm:$0xf]
        %v2163 = vld [vmem:[%s2158 + $0x10] sm:$0xf]
        %v2164 = vld [vmem:[%s2158 + $0x14] sm:$0xf]
        %v2165 = vld [vmem:[%s2158 + $0x18] sm:$0xf]
        %v2166 = vld [vmem:[%s2158 + $0x1c] sm:$0xf]
        %v2167 = vld [vmem:[%s2158 + $0x20] sm:$0xf]
        %v2168 = vld [vmem:[%s2158 + $0x24] sm:$0xf]
        %v2169 = vld [vmem:[%s2158 + $0x28] sm:$0xf]
        %v2170 = vld [vmem:[%s2158 + $0x2c] sm:$0xf]
        %v2171 = vld [vmem:[%s2158 + $0x30] sm:$0xf]
        %v2172 = vld [vmem:[%s2158 + $0x34] sm:$0xf]
        %v2173 = vld [vmem:[%s2158 + $0x38] sm:$0xf]
        %v2174 = vld [vmem:[%s2158 + $0x3c] sm:$0xf]
        %v2175 = vpack.c.bf16 %v1881, %v1838
        %v2176 = vpack.c.bf16 %v1967, %v1924
        %v2177 = vpack.c.bf16 %v2053, %v2010
        %v2178 = vpack.c.bf16 %v2139, %v2096
        %s2179 = scalar_lea.vmem %s4, 1
        %v2180 = vld [vmem:[%s2179] sm:$0x1]
        %v2182 = vlaneseq
        %v2183 = vshrl.u32 %v2182, 7
        %v2184 = vsub.s32 0, %v2183
        %v2185 = vrot.slane %v2180, %v2184
        %v2203 = vunpack.c.l.b16 %v2142
        %v2204 = vunpack.c.l.b16 %v2143
        %v2205 = vunpack.c.l.b16 %v2144
        %v2206 = vunpack.c.l.b16 %v2145
        %v2207 = vunpack.c.l.b16 %v2146
        %v2208 = vunpack.c.l.b16 %v2147
        %v2209 = vunpack.c.l.b16 %v2148
        %v2210 = vunpack.c.l.b16 %v2149
        %v2211 = vunpack.c.l.b16 %v2150
        %v2212 = vunpack.c.l.b16 %v2151
        %v2213 = vunpack.c.l.b16 %v2152
        %v2214 = vunpack.c.l.b16 %v2153
        %v2215 = vunpack.c.l.b16 %v2154
        %v2216 = vunpack.c.l.b16 %v2155
        %v2217 = vunpack.c.l.b16 %v2156
        %v2218 = vunpack.c.l.b16 %v2157
        %v2219 = vpack.c.b16 %v2204, %v2203
        %v2220 = vpack.c.b16 %v2206, %v2205
        %v2221 = vpack.c.b16 %v2208, %v2207
        %v2222 = vpack.c.b16 %v2210, %v2209
        %v2223 = vpack.c.b16 %v2212, %v2211
        %v2224 = vpack.c.b16 %v2214, %v2213
        %v2225 = vpack.c.b16 %v2216, %v2215
        %v2226 = vpack.c.b16 %v2218, %v2217
        %2235 = vmatprep.subr.bf16.mxu0 0
        %2236 = vmatpush1.bf16.msra.mxu0 %v2219
        %2237 = vmatprep.subr.bf16.mxu0 0
        %2238 = vmatpush1.bf16.msra.mxu0 %v2220
        %2239 = vmatprep.subr.bf16.mxu0 0
        %2240 = vmatpush1.bf16.msra.mxu0 %v2221
        %2241 = vmatprep.subr.bf16.mxu0 0
        %2242 = vmatpush1.bf16.msra.mxu0 %v2222
        %2243 = vmatprep.subr.bf16.mxu0 0
        %2244 = vmatpush1.bf16.msra.mxu0 %v2223
        %2245 = vmatprep.subr.bf16.mxu0 0
        %2246 = vmatpush1.bf16.msra.mxu0 %v2224
        %2247 = vmatprep.subr.bf16.mxu0 0
        %2248 = vmatpush1.bf16.msra.mxu0 %v2225
        %2249 = vmatprep.subr.bf16.mxu0 0
        %2250 = vmatpush1.bf16.msra.mxu0 %v2226
        %2251 = vmatprep.subr.bf16.mxu0 0
        %2252 = vmatpush1.bf16.msra.mxu0 0
        %2253 = vmatprep.subr.bf16.mxu0 0
        %2254 = vmatpush1.bf16.msra.mxu0 0
        %2255 = vmatprep.subr.bf16.mxu0 0
        %2256 = vmatpush1.bf16.msra.mxu0 0
        %2257 = vmatprep.subr.bf16.mxu0 0
        %2258 = vmatpush1.bf16.msra.mxu0 0
        %2259 = vmatprep.subr.bf16.mxu0 0
        %2260 = vmatpush1.bf16.msra.mxu0 0
        %2261 = vmatprep.subr.bf16.mxu0 0
        %2262 = vmatpush1.bf16.msra.mxu0 0
        %2263 = vmatprep.subr.bf16.mxu0 0
        %2264 = vmatpush1.bf16.msra.mxu0 0
        %2265 = vmatprep.subr.bf16.mxu0 0
        %2266 = vmatpush1.bf16.msra.mxu0 0
        %2267 = vmatprep.mubr.bf16.mxu0 0
        %2268 = vmatmul.mubr.bf16.gmra.mrb[0].mxu0 %v2175
        %v2269 = vpop.f32.mrb[0].mxu0
        %v2270 = vadd.f32 %v2185, %v2269
        %v2271 = vpop.f32.mrb[0].mxu0
        %v2272 = vpop.f32.mrb[0].mxu0
        %v2273 = vadd.f32 %v2185, %v2272
        %v2274 = vpop.f32.mrb[0].mxu0
        %2275 = vmatprep.mubr.bf16.mxu0 0
        %2276 = vmatmul.mubr.bf16.gmra.mrb[0].mxu0 %v2176
        %v2277 = vpop.f32.mrb[0].mxu0
        %v2278 = vadd.f32 %v2185, %v2277
        %v2279 = vpop.f32.mrb[0].mxu0
        %v2280 = vpop.f32.mrb[0].mxu0
        %v2281 = vadd.f32 %v2185, %v2280
        %v2282 = vpop.f32.mrb[0].mxu0
        %2283 = vmatprep.mubr.bf16.mxu0 0
        %2284 = vmatmul.mubr.bf16.gmra.mrb[0].mxu0 %v2177
        %v2285 = vpop.f32.mrb[0].mxu0
        %v2286 = vadd.f32 %v2185, %v2285
        %v2287 = vpop.f32.mrb[0].mxu0
        %v2288 = vpop.f32.mrb[0].mxu0
        %v2289 = vadd.f32 %v2185, %v2288
        %v2290 = vpop.f32.mrb[0].mxu0
        %2291 = vmatprep.mubr.bf16.mxu0 0
        %2292 = vmatmul.mubr.bf16.gmra.mrb[0].mxu0 %v2178
        %v2293 = vpop.f32.mrb[0].mxu0
        %v2294 = vadd.f32 %v2185, %v2293
        %v2295 = vpop.f32.mrb[0].mxu0
        %v2296 = vpop.f32.mrb[0].mxu0
        %v2297 = vadd.f32 %v2185, %v2296
        %v2298 = vpop.f32.mrb[0].mxu0
        %2299 = vdwg.mxu0
        %s2300 = scalar_lea.vmem %s254, 8 [#allocation11]
        %v2301 = vld [vmem:[%s2300] sm:$0xff]
        %v2302 = vpack.c.bf16 %v2301, %v2301
        %v2319 = vunpack.c.l.b16 %v2159
        %v2320 = vunpack.c.l.b16 %v2160
        %v2321 = vunpack.c.l.b16 %v2161
        %v2322 = vunpack.c.l.b16 %v2162
        %v2323 = vunpack.c.l.b16 %v2163
        %v2324 = vunpack.c.l.b16 %v2164
        %v2325 = vunpack.c.l.b16 %v2165
        %v2326 = vunpack.c.l.b16 %v2166
        %v2327 = vunpack.c.l.b16 %v2167
        %v2328 = vunpack.c.l.b16 %v2168
        %v2329 = vunpack.c.l.b16 %v2169
        %v2330 = vunpack.c.l.b16 %v2170
        %v2331 = vunpack.c.l.b16 %v2171
        %v2332 = vunpack.c.l.b16 %v2172
        %v2333 = vunpack.c.l.b16 %v2173
        %v2334 = vunpack.c.l.b16 %v2174
        %v2335 = vpack.c.b16 %v2320, %v2319
        %v2336 = vpack.c.b16 %v2322, %v2321
        %v2337 = vpack.c.b16 %v2324, %v2323
        %v2338 = vpack.c.b16 %v2326, %v2325
        %v2339 = vpack.c.b16 %v2328, %v2327
        %v2340 = vpack.c.b16 %v2330, %v2329
        %v2341 = vpack.c.b16 %v2332, %v2331
        %v2342 = vpack.c.b16 %v2334, %v2333
        %2351 = vmatprep.subr.bf16.mxu0 0
        %2352 = vmatpush1.bf16.msra.mxu0 %v2335
        %2353 = vmatprep.subr.bf16.mxu0 0
        %2354 = vmatpush1.bf16.msra.mxu0 %v2336
        %2355 = vmatprep.subr.bf16.mxu0 0
        %2356 = vmatpush1.bf16.msra.mxu0 %v2337
        %2357 = vmatprep.subr.bf16.mxu0 0
        %2358 = vmatpush1.bf16.msra.mxu0 %v2338
        %2359 = vmatprep.subr.bf16.mxu0 0
        %2360 = vmatpush1.bf16.msra.mxu0 %v2339
        %2361 = vmatprep.subr.bf16.mxu0 0
        %2362 = vmatpush1.bf16.msra.mxu0 %v2340
        %2363 = vmatprep.subr.bf16.mxu0 0
        %2364 = vmatpush1.bf16.msra.mxu0 %v2341
        %2365 = vmatprep.subr.bf16.mxu0 0
        %2366 = vmatpush1.bf16.msra.mxu0 %v2342
        %2367 = vmatprep.subr.bf16.mxu0 0
        %2368 = vmatpush1.bf16.msra.mxu0 0
        %2369 = vmatprep.subr.bf16.mxu0 0
        %2370 = vmatpush1.bf16.msra.mxu0 0
        %2371 = vmatprep.subr.bf16.mxu0 0
        %2372 = vmatpush1.bf16.msra.mxu0 0
        %2373 = vmatprep.subr.bf16.mxu0 0
        %2374 = vmatpush1.bf16.msra.mxu0 0
        %2375 = vmatprep.subr.bf16.mxu0 0
        %2376 = vmatpush1.bf16.msra.mxu0 0
        %2377 = vmatprep.subr.bf16.mxu0 0
        %2378 = vmatpush1.bf16.msra.mxu0 0
        %2379 = vmatprep.subr.bf16.mxu0 0
        %2380 = vmatpush1.bf16.msra.mxu0 0
        %2381 = vmatprep.subr.bf16.mxu0 0
        %2382 = vmatpush1.bf16.msra.mxu0 0
        %2383 = vmatprep.mubr.bf16.mxu0 0
        %2384 = vmatmul.mubr.bf16.gmra.mrb[0].mxu0 %v2302
        %v2385 = vpop.f32.mrb[0].mxu0
        %v2386 = vadd.f32 0.0, %v2385
        %v2387 = vpop.f32.mrb[0].mxu0
        %v2388 = vpop.f32.mrb[0].mxu0
        %v2389 = vpop.f32.mrb[0].mxu0
        %2390 = vdwg.mxu0
        %v2391 = vadd.f32 %v2270, %v2386
        %v2392 = vtanh.pop %v2391
        %v2393 = vpack.c.bf16 %v2392, %v2392
        %2394 = vmatprep.subr.bf16.mxu0 0
        %2395 = vmatpush1.bf16.msra.mxu0 %v2335
        %2396 = vmatprep.subr.bf16.mxu0 0
        %2397 = vmatpush1.bf16.msra.mxu0 %v2336
        %2398 = vmatprep.subr.bf16.mxu0 0
        %2399 = vmatpush1.bf16.msra.mxu0 %v2337
        %2400 = vmatprep.subr.bf16.mxu0 0
        %2401 = vmatpush1.bf16.msra.mxu0 %v2338
        %2402 = vmatprep.subr.bf16.mxu0 0
        %2403 = vmatpush1.bf16.msra.mxu0 %v2339
        %2404 = vmatprep.subr.bf16.mxu0 0
        %2405 = vmatpush1.bf16.msra.mxu0 %v2340
        %2406 = vmatprep.subr.bf16.mxu0 0
        %2407 = vmatpush1.bf16.msra.mxu0 %v2341
        %2408 = vmatprep.subr.bf16.mxu0 0
        %2409 = vmatpush1.bf16.msra.mxu0 %v2342
        %2410 = vmatprep.subr.bf16.mxu0 0
        %2411 = vmatpush1.bf16.msra.mxu0 0
        %2412 = vmatprep.subr.bf16.mxu0 0
        %2413 = vmatpush1.bf16.msra.mxu0 0
        %2414 = vmatprep.subr.bf16.mxu0 0
        %2415 = vmatpush1.bf16.msra.mxu0 0
        %2416 = vmatprep.subr.bf16.mxu0 0
        %2417 = vmatpush1.bf16.msra.mxu0 0
        %2418 = vmatprep.subr.bf16.mxu0 0
        %2419 = vmatpush1.bf16.msra.mxu0 0
        %2420 = vmatprep.subr.bf16.mxu0 0
        %2421 = vmatpush1.bf16.msra.mxu0 0
        %2422 = vmatprep.subr.bf16.mxu0 0
        %2423 = vmatpush1.bf16.msra.mxu0 0
        %2424 = vmatprep.subr.bf16.mxu0 0
        %2425 = vmatpush1.bf16.msra.mxu0 0
        %2426 = vmatprep.mubr.bf16.mxu0 0
        %2427 = vmatmul.mubr.bf16.gmra.mrb[0].mxu0 %v2393
        %v2428 = vpop.f32.mrb[0].mxu0
        %v2429 = vadd.f32 0.0, %v2428
        %v2430 = vpop.f32.mrb[0].mxu0
        %v2431 = vpop.f32.mrb[0].mxu0
        %v2432 = vpop.f32.mrb[0].mxu0
        %2433 = vdwg.mxu0
        %v2434 = vadd.f32 %v2273, %v2429
        %v2435 = vtanh.pop %v2434
        %v2436 = vpack.c.bf16 %v2435, %v2435
        %2437 = vmatprep.subr.bf16.mxu0 0
        %2438 = vmatpush1.bf16.msra.mxu0 %v2335
        %2439 = vmatprep.subr.bf16.mxu0 0
        %2440 = vmatpush1.bf16.msra.mxu0 %v2336
        %2441 = vmatprep.subr.bf16.mxu0 0
        %2442 = vmatpush1.bf16.msra.mxu0 %v2337
        %2443 = vmatprep.subr.bf16.mxu0 0
        %2444 = vmatpush1.bf16.msra.mxu0 %v2338
        %2445 = vmatprep.subr.bf16.mxu0 0
        %2446 = vmatpush1.bf16.msra.mxu0 %v2339
        %2447 = vmatprep.subr.bf16.mxu0 0
        %2448 = vmatpush1.bf16.msra.mxu0 %v2340
        %2449 = vmatprep.subr.bf16.mxu0 0
        %2450 = vmatpush1.bf16.msra.mxu0 %v2341
        %2451 = vmatprep.subr.bf16.mxu0 0
        %2452 = vmatpush1.bf16.msra.mxu0 %v2342
        %2453 = vmatprep.subr.bf16.mxu0 0
        %2454 = vmatpush1.bf16.msra.mxu0 0
        %2455 = vmatprep.subr.bf16.mxu0 0
        %2456 = vmatpush1.bf16.msra.mxu0 0
        %2457 = vmatprep.subr.bf16.mxu0 0
        %2458 = vmatpush1.bf16.msra.mxu0 0
        %2459 = vmatprep.subr.bf16.mxu0 0
        %2460 = vmatpush1.bf16.msra.mxu0 0
        %2461 = vmatprep.subr.bf16.mxu0 0
        %2462 = vmatpush1.bf16.msra.mxu0 0
        %2463 = vmatprep.subr.bf16.mxu0 0
        %2464 = vmatpush1.bf16.msra.mxu0 0
        %2465 = vmatprep.subr.bf16.mxu0 0
        %2466 = vmatpush1.bf16.msra.mxu0 0
        %2467 = vmatprep.subr.bf16.mxu0 0
        %2468 = vmatpush1.bf16.msra.mxu0 0
        %2469 = vmatprep.mubr.bf16.mxu0 0
        %2470 = vmatmul.mubr.bf16.gmra.mrb[0].mxu0 %v2436
        %v2471 = vpop.f32.mrb[0].mxu0
        %v2472 = vadd.f32 0.0, %v2471
        %v2473 = vpop.f32.mrb[0].mxu0
        %v2474 = vpop.f32.mrb[0].mxu0
        %v2475 = vpop.f32.mrb[0].mxu0
        %2476 = vdwg.mxu0
        %v2477 = vadd.f32 %v2278, %v2472
        %v2478 = vtanh.pop %v2477
        %v2479 = vpack.c.bf16 %v2478, %v2478
        %2480 = vmatprep.subr.bf16.mxu0 0
        %2481 = vmatpush1.bf16.msra.mxu0 %v2335
        %2482 = vmatprep.subr.bf16.mxu0 0
        %2483 = vmatpush1.bf16.msra.mxu0 %v2336
        %2484 = vmatprep.subr.bf16.mxu0 0
        %2485 = vmatpush1.bf16.msra.mxu0 %v2337
        %2486 = vmatprep.subr.bf16.mxu0 0
        %2487 = vmatpush1.bf16.msra.mxu0 %v2338
        %2488 = vmatprep.subr.bf16.mxu0 0
        %2489 = vmatpush1.bf16.msra.mxu0 %v2339
        %2490 = vmatprep.subr.bf16.mxu0 0
        %2491 = vmatpush1.bf16.msra.mxu0 %v2340
        %2492 = vmatprep.subr.bf16.mxu0 0
        %2493 = vmatpush1.bf16.msra.mxu0 %v2341
        %2494 = vmatprep.subr.bf16.mxu0 0
        %2495 = vmatpush1.bf16.msra.mxu0 %v2342
        %2496 = vmatprep.subr.bf16.mxu0 0
        %2497 = vmatpush1.bf16.msra.mxu0 0
        %2498 = vmatprep.subr.bf16.mxu0 0
        %2499 = vmatpush1.bf16.msra.mxu0 0
        %2500 = vmatprep.subr.bf16.mxu0 0
        %2501 = vmatpush1.bf16.msra.mxu0 0
        %2502 = vmatprep.subr.bf16.mxu0 0
        %2503 = vmatpush1.bf16.msra.mxu0 0
        %2504 = vmatprep.subr.bf16.mxu0 0
        %2505 = vmatpush1.bf16.msra.mxu0 0
        %2506 = vmatprep.subr.bf16.mxu0 0
        %2507 = vmatpush1.bf16.msra.mxu0 0
        %2508 = vmatprep.subr.bf16.mxu0 0
        %2509 = vmatpush1.bf16.msra.mxu0 0
        %2510 = vmatprep.subr.bf16.mxu0 0
        %2511 = vmatpush1.bf16.msra.mxu0 0
        %2512 = vmatprep.mubr.bf16.mxu0 0
        %2513 = vmatmul.mubr.bf16.gmra.mrb[0].mxu0 %v2479
        %v2514 = vpop.f32.mrb[0].mxu0
        %v2515 = vadd.f32 0.0, %v2514
        %v2516 = vpop.f32.mrb[0].mxu0
        %v2517 = vpop.f32.mrb[0].mxu0
        %v2518 = vpop.f32.mrb[0].mxu0
        %2519 = vdwg.mxu0
        %v2520 = vadd.f32 %v2281, %v2515
        %v2521 = vtanh.pop %v2520
        %v2522 = vpack.c.bf16 %v2521, %v2521
        %2523 = vmatprep.subr.bf16.mxu0 0
        %2524 = vmatpush1.bf16.msra.mxu0 %v2335
        %2525 = vmatprep.subr.bf16.mxu0 0
        %2526 = vmatpush1.bf16.msra.mxu0 %v2336
        %2527 = vmatprep.subr.bf16.mxu0 0
        %2528 = vmatpush1.bf16.msra.mxu0 %v2337
        %2529 = vmatprep.subr.bf16.mxu0 0
        %2530 = vmatpush1.bf16.msra.mxu0 %v2338
        %2531 = vmatprep.subr.bf16.mxu0 0
        %2532 = vmatpush1.bf16.msra.mxu0 %v2339
        %2533 = vmatprep.subr.bf16.mxu0 0
        %2534 = vmatpush1.bf16.msra.mxu0 %v2340
        %2535 = vmatprep.subr.bf16.mxu0 0
        %2536 = vmatpush1.bf16.msra.mxu0 %v2341
        %2537 = vmatprep.subr.bf16.mxu0 0
        %2538 = vmatpush1.bf16.msra.mxu0 %v2342
        %2539 = vmatprep.subr.bf16.mxu0 0
        %2540 = vmatpush1.bf16.msra.mxu0 0
        %2541 = vmatprep.subr.bf16.mxu0 0
        %2542 = vmatpush1.bf16.msra.mxu0 0
        %2543 = vmatprep.subr.bf16.mxu0 0
        %2544 = vmatpush1.bf16.msra.mxu0 0
        %2545 = vmatprep.subr.bf16.mxu0 0
        %2546 = vmatpush1.bf16.msra.mxu0 0
        %2547 = vmatprep.subr.bf16.mxu0 0
        %2548 = vmatpush1.bf16.msra.mxu0 0
        %2549 = vmatprep.subr.bf16.mxu0 0
        %2550 = vmatpush1.bf16.msra.mxu0 0
        %2551 = vmatprep.subr.bf16.mxu0 0
        %2552 = vmatpush1.bf16.msra.mxu0 0
        %2553 = vmatprep.subr.bf16.mxu0 0
        %2554 = vmatpush1.bf16.msra.mxu0 0
        %2555 = vmatprep.mubr.bf16.mxu0 0
        %2556 = vmatmul.mubr.bf16.gmra.mrb[0].mxu0 %v2522
        %v2557 = vpop.f32.mrb[0].mxu0
        %v2558 = vadd.f32 0.0, %v2557
        %v2559 = vpop.f32.mrb[0].mxu0
        %v2560 = vpop.f32.mrb[0].mxu0
        %v2561 = vpop.f32.mrb[0].mxu0
        %2562 = vdwg.mxu0
        %v2563 = vadd.f32 %v2286, %v2558
        %v2564 = vtanh.pop %v2563
        %v2565 = vpack.c.bf16 %v2564, %v2564
        %2566 = vmatprep.subr.bf16.mxu0 0
        %2567 = vmatpush1.bf16.msra.mxu0 %v2335
        %2568 = vmatprep.subr.bf16.mxu0 0
        %2569 = vmatpush1.bf16.msra.mxu0 %v2336
        %2570 = vmatprep.subr.bf16.mxu0 0
        %2571 = vmatpush1.bf16.msra.mxu0 %v2337
        %2572 = vmatprep.subr.bf16.mxu0 0
        %2573 = vmatpush1.bf16.msra.mxu0 %v2338
        %2574 = vmatprep.subr.bf16.mxu0 0
        %2575 = vmatpush1.bf16.msra.mxu0 %v2339
        %2576 = vmatprep.subr.bf16.mxu0 0
        %2577 = vmatpush1.bf16.msra.mxu0 %v2340
        %2578 = vmatprep.subr.bf16.mxu0 0
        %2579 = vmatpush1.bf16.msra.mxu0 %v2341
        %2580 = vmatprep.subr.bf16.mxu0 0
        %2581 = vmatpush1.bf16.msra.mxu0 %v2342
        %2582 = vmatprep.subr.bf16.mxu0 0
        %2583 = vmatpush1.bf16.msra.mxu0 0
        %2584 = vmatprep.subr.bf16.mxu0 0
        %2585 = vmatpush1.bf16.msra.mxu0 0
        %2586 = vmatprep.subr.bf16.mxu0 0
        %2587 = vmatpush1.bf16.msra.mxu0 0
        %2588 = vmatprep.subr.bf16.mxu0 0
        %2589 = vmatpush1.bf16.msra.mxu0 0
        %2590 = vmatprep.subr.bf16.mxu0 0
        %2591 = vmatpush1.bf16.msra.mxu0 0
        %2592 = vmatprep.subr.bf16.mxu0 0
        %2593 = vmatpush1.bf16.msra.mxu0 0
        %2594 = vmatprep.subr.bf16.mxu0 0
        %2595 = vmatpush1.bf16.msra.mxu0 0
        %2596 = vmatprep.subr.bf16.mxu0 0
        %2597 = vmatpush1.bf16.msra.mxu0 0
        %2598 = vmatprep.mubr.bf16.mxu0 0
        %2599 = vmatmul.mubr.bf16.gmra.mrb[0].mxu0 %v2565
        %v2600 = vpop.f32.mrb[0].mxu0
        %v2601 = vadd.f32 0.0, %v2600
        %v2602 = vpop.f32.mrb[0].mxu0
        %v2603 = vpop.f32.mrb[0].mxu0
        %v2604 = vpop.f32.mrb[0].mxu0
        %2605 = vdwg.mxu0
        %v2606 = vadd.f32 %v2289, %v2601
        %v2607 = vtanh.pop %v2606
        %v2608 = vpack.c.bf16 %v2607, %v2607
        %2609 = vmatprep.subr.bf16.mxu0 0
        %2610 = vmatpush1.bf16.msra.mxu0 %v2335
        %2611 = vmatprep.subr.bf16.mxu0 0
        %2612 = vmatpush1.bf16.msra.mxu0 %v2336
        %2613 = vmatprep.subr.bf16.mxu0 0
        %2614 = vmatpush1.bf16.msra.mxu0 %v2337
        %2615 = vmatprep.subr.bf16.mxu0 0
        %2616 = vmatpush1.bf16.msra.mxu0 %v2338
        %2617 = vmatprep.subr.bf16.mxu0 0
        %2618 = vmatpush1.bf16.msra.mxu0 %v2339
        %2619 = vmatprep.subr.bf16.mxu0 0
        %2620 = vmatpush1.bf16.msra.mxu0 %v2340
        %2621 = vmatprep.subr.bf16.mxu0 0
        %2622 = vmatpush1.bf16.msra.mxu0 %v2341
        %2623 = vmatprep.subr.bf16.mxu0 0
        %2624 = vmatpush1.bf16.msra.mxu0 %v2342
        %2625 = vmatprep.subr.bf16.mxu0 0
        %2626 = vmatpush1.bf16.msra.mxu0 0
        %2627 = vmatprep.subr.bf16.mxu0 0
        %2628 = vmatpush1.bf16.msra.mxu0 0
        %2629 = vmatprep.subr.bf16.mxu0 0
        %2630 = vmatpush1.bf16.msra.mxu0 0
        %2631 = vmatprep.subr.bf16.mxu0 0
        %2632 = vmatpush1.bf16.msra.mxu0 0
        %2633 = vmatprep.subr.bf16.mxu0 0
        %2634 = vmatpush1.bf16.msra.mxu0 0
        %2635 = vmatprep.subr.bf16.mxu0 0
        %2636 = vmatpush1.bf16.msra.mxu0 0
        %2637 = vmatprep.subr.bf16.mxu0 0
        %2638 = vmatpush1.bf16.msra.mxu0 0
        %2639 = vmatprep.subr.bf16.mxu0 0
        %2640 = vmatpush1.bf16.msra.mxu0 0
        %2641 = vmatprep.mubr.bf16.mxu0 0
        %2642 = vmatmul.mubr.bf16.gmra.mrb[0].mxu0 %v2608
        %v2643 = vpop.f32.mrb[0].mxu0
        %v2644 = vadd.f32 0.0, %v2643
        %v2645 = vpop.f32.mrb[0].mxu0
        %v2646 = vpop.f32.mrb[0].mxu0
        %v2647 = vpop.f32.mrb[0].mxu0
        %2648 = vdwg.mxu0
        %v2649 = vadd.f32 %v2294, %v2644
        %v2650 = vtanh.pop %v2649
        %v2651 = vpack.c.bf16 %v2650, %v2650
        %2652 = vmatprep.subr.bf16.mxu0 0
        %2653 = vmatpush1.bf16.msra.mxu0 %v2335
        %2654 = vmatprep.subr.bf16.mxu0 0
        %2655 = vmatpush1.bf16.msra.mxu0 %v2336
        %2656 = vmatprep.subr.bf16.mxu0 0
        %2657 = vmatpush1.bf16.msra.mxu0 %v2337
        %2658 = vmatprep.subr.bf16.mxu0 0
        %2659 = vmatpush1.bf16.msra.mxu0 %v2338
        %2660 = vmatprep.subr.bf16.mxu0 0
        %2661 = vmatpush1.bf16.msra.mxu0 %v2339
        %2662 = vmatprep.subr.bf16.mxu0 0
        %2663 = vmatpush1.bf16.msra.mxu0 %v2340
        %2664 = vmatprep.subr.bf16.mxu0 0
        %2665 = vmatpush1.bf16.msra.mxu0 %v2341
        %2666 = vmatprep.subr.bf16.mxu0 0
        %2667 = vmatpush1.bf16.msra.mxu0 %v2342
        %2668 = vmatprep.subr.bf16.mxu0 0
        %2669 = vmatpush1.bf16.msra.mxu0 0
        %2670 = vmatprep.subr.bf16.mxu0 0
        %2671 = vmatpush1.bf16.msra.mxu0 0
        %2672 = vmatprep.subr.bf16.mxu0 0
        %2673 = vmatpush1.bf16.msra.mxu0 0
        %2674 = vmatprep.subr.bf16.mxu0 0
        %2675 = vmatpush1.bf16.msra.mxu0 0
        %2676 = vmatprep.subr.bf16.mxu0 0
        %2677 = vmatpush1.bf16.msra.mxu0 0
        %2678 = vmatprep.subr.bf16.mxu0 0
        %2679 = vmatpush1.bf16.msra.mxu0 0
        %2680 = vmatprep.subr.bf16.mxu0 0
        %2681 = vmatpush1.bf16.msra.mxu0 0
        %2682 = vmatprep.subr.bf16.mxu0 0
        %2683 = vmatpush1.bf16.msra.mxu0 0
        %2684 = vmatprep.mubr.bf16.mxu0 0
        %2685 = vmatmul.mubr.bf16.gmra.mrb[0].mxu0 %v2651
        %v2686 = vpop.f32.mrb[0].mxu0
        %v2687 = vadd.f32 0.0, %v2686
        %v2688 = vpop.f32.mrb[0].mxu0
        %v2689 = vpop.f32.mrb[0].mxu0
        %v2690 = vpop.f32.mrb[0].mxu0
        %2691 = vdwg.mxu0
        %v2692 = vadd.f32 %v2297, %v2687
        %v2693 = vtanh.pop %v2692
        %s2694 = scalar_lea.vmem %s285, 8 [#allocation13]
        %2695 = vst [vmem:[%s2694] sm:$0xff] %v2693
        %s2696 = scalar_lea.vmem [#allocation6], 128
        %v2697 = vld [vmem:[%s2696] sm:$0xf]
        %v2698 = vld [vmem:[%s2696 + $0x4] sm:$0xf]
        %v2699 = vld [vmem:[%s2696 + $0x8] sm:$0xf]
        %v2700 = vld [vmem:[%s2696 + $0xc] sm:$0xf]
        %v2701 = vld [vmem:[%s2696 + $0x10] sm:$0xf]
        %v2702 = vld [vmem:[%s2696 + $0x14] sm:$0xf]
        %v2703 = vld [vmem:[%s2696 + $0x18] sm:$0xf]
        %v2704 = vld [vmem:[%s2696 + $0x1c] sm:$0xf]
        %v2705 = vld [vmem:[%s2696 + $0x20] sm:$0xf]
        %v2706 = vld [vmem:[%s2696 + $0x24] sm:$0xf]
        %v2707 = vld [vmem:[%s2696 + $0x28] sm:$0xf]
        %v2708 = vld [vmem:[%s2696 + $0x2c] sm:$0xf]
        %v2709 = vld [vmem:[%s2696 + $0x30] sm:$0xf]
        %v2710 = vld [vmem:[%s2696 + $0x34] sm:$0xf]
        %v2711 = vld [vmem:[%s2696 + $0x38] sm:$0xf]
        %v2712 = vld [vmem:[%s2696 + $0x3c] sm:$0xf]
        %s2713 = scalar_lea.vmem [#allocation9], 128
        %v2714 = vld [vmem:[%s2713] sm:$0xf]
        %v2715 = vld [vmem:[%s2713 + $0x4] sm:$0xf]
        %v2716 = vld [vmem:[%s2713 + $0x8] sm:$0xf]
        %v2717 = vld [vmem:[%s2713 + $0xc] sm:$0xf]
        %v2718 = vld [vmem:[%s2713 + $0x10] sm:$0xf]
        %v2719 = vld [vmem:[%s2713 + $0x14] sm:$0xf]
        %v2720 = vld [vmem:[%s2713 + $0x18] sm:$0xf]
        %v2721 = vld [vmem:[%s2713 + $0x1c] sm:$0xf]
        %v2722 = vld [vmem:[%s2713 + $0x20] sm:$0xf]
        %v2723 = vld [vmem:[%s2713 + $0x24] sm:$0xf]
        %v2724 = vld [vmem:[%s2713 + $0x28] sm:$0xf]
        %v2725 = vld [vmem:[%s2713 + $0x2c] sm:$0xf]
        %v2726 = vld [vmem:[%s2713 + $0x30] sm:$0xf]
        %v2727 = vld [vmem:[%s2713 + $0x34] sm:$0xf]
        %v2728 = vld [vmem:[%s2713 + $0x38] sm:$0xf]
        %v2729 = vld [vmem:[%s2713 + $0x3c] sm:$0xf]
        %v2730 = vpack.c.bf16 %v2435, %v2392
        %v2731 = vpack.c.bf16 %v2521, %v2478
        %v2732 = vpack.c.bf16 %v2607, %v2564
        %v2733 = vpack.c.bf16 %v2693, %v2650
        %s2734 = scalar_lea.vmem %s4, 2
        %v2735 = vld [vmem:[%s2734] sm:$0x1]
        %v2737 = vlaneseq
        %v2738 = vshrl.u32 %v2737, 7
        %v2739 = vsub.s32 0, %v2738
        %v2740 = vrot.slane %v2735, %v2739
        %v2758 = vunpack.c.l.b16 %v2697
        %v2759 = vunpack.c.l.b16 %v2698
        %v2760 = vunpack.c.l.b16 %v2699
        %v2761 = vunpack.c.l.b16 %v2700
        %v2762 = vunpack.c.l.b16 %v2701
        %v2763 = vunpack.c.l.b16 %v2702
        %v2764 = vunpack.c.l.b16 %v2703
        %v2765 = vunpack.c.l.b16 %v2704
        %v2766 = vunpack.c.l.b16 %v2705
        %v2767 = vunpack.c.l.b16 %v2706
        %v2768 = vunpack.c.l.b16 %v2707
        %v2769 = vunpack.c.l.b16 %v2708
        %v2770 = vunpack.c.l.b16 %v2709
        %v2771 = vunpack.c.l.b16 %v2710
        %v2772 = vunpack.c.l.b16 %v2711
        %v2773 = vunpack.c.l.b16 %v2712
        %v2774 = vpack.c.b16 %v2759, %v2758
        %v2775 = vpack.c.b16 %v2761, %v2760
        %v2776 = vpack.c.b16 %v2763, %v2762
        %v2777 = vpack.c.b16 %v2765, %v2764
        %v2778 = vpack.c.b16 %v2767, %v2766
        %v2779 = vpack.c.b16 %v2769, %v2768
        %v2780 = vpack.c.b16 %v2771, %v2770
        %v2781 = vpack.c.b16 %v2773, %v2772
        %2790 = vmatprep.subr.bf16.mxu0 0
        %2791 = vmatpush1.bf16.msra.mxu0 %v2774
        %2792 = vmatprep.subr.bf16.mxu0 0
        %2793 = vmatpush1.bf16.msra.mxu0 %v2775
        %2794 = vmatprep.subr.bf16.mxu0 0
        %2795 = vmatpush1.bf16.msra.mxu0 %v2776
        %2796 = vmatprep.subr.bf16.mxu0 0
        %2797 = vmatpush1.bf16.msra.mxu0 %v2777
        %2798 = vmatprep.subr.bf16.mxu0 0
        %2799 = vmatpush1.bf16.msra.mxu0 %v2778
        %2800 = vmatprep.subr.bf16.mxu0 0
        %2801 = vmatpush1.bf16.msra.mxu0 %v2779
        %2802 = vmatprep.subr.bf16.mxu0 0
        %2803 = vmatpush1.bf16.msra.mxu0 %v2780
        %2804 = vmatprep.subr.bf16.mxu0 0
        %2805 = vmatpush1.bf16.msra.mxu0 %v2781
        %2806 = vmatprep.subr.bf16.mxu0 0
        %2807 = vmatpush1.bf16.msra.mxu0 0
        %2808 = vmatprep.subr.bf16.mxu0 0
        %2809 = vmatpush1.bf16.msra.mxu0 0
        %2810 = vmatprep.subr.bf16.mxu0 0
        %2811 = vmatpush1.bf16.msra.mxu0 0
        %2812 = vmatprep.subr.bf16.mxu0 0
        %2813 = vmatpush1.bf16.msra.mxu0 0
        %2814 = vmatprep.subr.bf16.mxu0 0
        %2815 = vmatpush1.bf16.msra.mxu0 0
        %2816 = vmatprep.subr.bf16.mxu0 0
        %2817 = vmatpush1.bf16.msra.mxu0 0
        %2818 = vmatprep.subr.bf16.mxu0 0
        %2819 = vmatpush1.bf16.msra.mxu0 0
        %2820 = vmatprep.subr.bf16.mxu0 0
        %2821 = vmatpush1.bf16.msra.mxu0 0
        %2822 = vmatprep.mubr.bf16.mxu0 0
        %2823 = vmatmul.mubr.bf16.gmra.mrb[0].mxu0 %v2730
        %v2824 = vpop.f32.mrb[0].mxu0
        %v2825 = vadd.f32 %v2740, %v2824
        %v2826 = vpop.f32.mrb[0].mxu0
        %v2827 = vpop.f32.mrb[0].mxu0
        %v2828 = vadd.f32 %v2740, %v2827
        %v2829 = vpop.f32.mrb[0].mxu0
        %2830 = vmatprep.mubr.bf16.mxu0 0
        %2831 = vmatmul.mubr.bf16.gmra.mrb[0].mxu0 %v2731
        %v2832 = vpop.f32.mrb[0].mxu0
        %v2833 = vadd.f32 %v2740, %v2832
        %v2834 = vpop.f32.mrb[0].mxu0
        %v2835 = vpop.f32.mrb[0].mxu0
        %v2836 = vadd.f32 %v2740, %v2835
        %v2837 = vpop.f32.mrb[0].mxu0
        %2838 = vmatprep.mubr.bf16.mxu0 0
        %2839 = vmatmul.mubr.bf16.gmra.mrb[0].mxu0 %v2732
        %v2840 = vpop.f32.mrb[0].mxu0
        %v2841 = vadd.f32 %v2740, %v2840
        %v2842 = vpop.f32.mrb[0].mxu0
        %v2843 = vpop.f32.mrb[0].mxu0
        %v2844 = vadd.f32 %v2740, %v2843
        %v2845 = vpop.f32.mrb[0].mxu0
        %2846 = vmatprep.mubr.bf16.mxu0 0
        %2847 = vmatmul.mubr.bf16.gmra.mrb[0].mxu0 %v2733
        %v2848 = vpop.f32.mrb[0].mxu0
        %v2849 = vadd.f32 %v2740, %v2848
        %v2850 = vpop.f32.mrb[0].mxu0
        %v2851 = vpop.f32.mrb[0].mxu0
        %v2852 = vadd.f32 %v2740, %v2851
        %v2853 = vpop.f32.mrb[0].mxu0
        %2854 = vdwg.mxu0
        %s2855 = scalar_lea.vmem %s254, 16 [#allocation11]
        %v2856 = vld [vmem:[%s2855] sm:$0xff]
        %v2857 = vpack.c.bf16 %v2856, %v2856
        %v2874 = vunpack.c.l.b16 %v2714
        %v2875 = vunpack.c.l.b16 %v2715
        %v2876 = vunpack.c.l.b16 %v2716
        %v2877 = vunpack.c.l.b16 %v2717
        %v2878 = vunpack.c.l.b16 %v2718
        %v2879 = vunpack.c.l.b16 %v2719
        %v2880 = vunpack.c.l.b16 %v2720
        %v2881 = vunpack.c.l.b16 %v2721
        %v2882 = vunpack.c.l.b16 %v2722
        %v2883 = vunpack.c.l.b16 %v2723
        %v2884 = vunpack.c.l.b16 %v2724
        %v2885 = vunpack.c.l.b16 %v2725
        %v2886 = vunpack.c.l.b16 %v2726
        %v2887 = vunpack.c.l.b16 %v2727
        %v2888 = vunpack.c.l.b16 %v2728
        %v2889 = vunpack.c.l.b16 %v2729
        %v2890 = vpack.c.b16 %v2875, %v2874
        %v2891 = vpack.c.b16 %v2877, %v2876
        %v2892 = vpack.c.b16 %v2879, %v2878
        %v2893 = vpack.c.b16 %v2881, %v2880
        %v2894 = vpack.c.b16 %v2883, %v2882
        %v2895 = vpack.c.b16 %v2885, %v2884
        %v2896 = vpack.c.b16 %v2887, %v2886
        %v2897 = vpack.c.b16 %v2889, %v2888
        %2906 = vmatprep.subr.bf16.mxu0 0
        %2907 = vmatpush1.bf16.msra.mxu0 %v2890
        %2908 = vmatprep.subr.bf16.mxu0 0
        %2909 = vmatpush1.bf16.msra.mxu0 %v2891
        %2910 = vmatprep.subr.bf16.mxu0 0
        %2911 = vmatpush1.bf16.msra.mxu0 %v2892
        %2912 = vmatprep.subr.bf16.mxu0 0
        %2913 = vmatpush1.bf16.msra.mxu0 %v2893
        %2914 = vmatprep.subr.bf16.mxu0 0
        %2915 = vmatpush1.bf16.msra.mxu0 %v2894
        %2916 = vmatprep.subr.bf16.mxu0 0
        %2917 = vmatpush1.bf16.msra.mxu0 %v2895
        %2918 = vmatprep.subr.bf16.mxu0 0
        %2919 = vmatpush1.bf16.msra.mxu0 %v2896
        %2920 = vmatprep.subr.bf16.mxu0 0
        %2921 = vmatpush1.bf16.msra.mxu0 %v2897
        %2922 = vmatprep.subr.bf16.mxu0 0
        %2923 = vmatpush1.bf16.msra.mxu0 0
        %2924 = vmatprep.subr.bf16.mxu0 0
        %2925 = vmatpush1.bf16.msra.mxu0 0
        %2926 = vmatprep.subr.bf16.mxu0 0
        %2927 = vmatpush1.bf16.msra.mxu0 0
        %2928 = vmatprep.subr.bf16.mxu0 0
        %2929 = vmatpush1.bf16.msra.mxu0 0
        %2930 = vmatprep.subr.bf16.mxu0 0
        %2931 = vmatpush1.bf16.msra.mxu0 0
        %2932 = vmatprep.subr.bf16.mxu0 0
        %2933 = vmatpush1.bf16.msra.mxu0 0
        %2934 = vmatprep.subr.bf16.mxu0 0
        %2935 = vmatpush1.bf16.msra.mxu0 0
        %2936 = vmatprep.subr.bf16.mxu0 0
        %2937 = vmatpush1.bf16.msra.mxu0 0
        %2938 = vmatprep.mubr.bf16.mxu0 0
        %2939 = vmatmul.mubr.bf16.gmra.mrb[0].mxu0 %v2857
        %v2940 = vpop.f32.mrb[0].mxu0
        %v2941 = vadd.f32 0.0, %v2940
        %v2942 = vpop.f32.mrb[0].mxu0
        %v2943 = vpop.f32.mrb[0].mxu0
        %v2944 = vpop.f32.mrb[0].mxu0
        %2945 = vdwg.mxu0
        %v2946 = vadd.f32 %v2825, %v2941
        %v2947 = vtanh.pop %v2946
        %v2948 = vpack.c.bf16 %v2947, %v2947
        %2949 = vmatprep.subr.bf16.mxu0 0
        %2950 = vmatpush1.bf16.msra.mxu0 %v2890
        %2951 = vmatprep.subr.bf16.mxu0 0
        %2952 = vmatpush1.bf16.msra.mxu0 %v2891
        %2953 = vmatprep.subr.bf16.mxu0 0
        %2954 = vmatpush1.bf16.msra.mxu0 %v2892
        %2955 = vmatprep.subr.bf16.mxu0 0
        %2956 = vmatpush1.bf16.msra.mxu0 %v2893
        %2957 = vmatprep.subr.bf16.mxu0 0
        %2958 = vmatpush1.bf16.msra.mxu0 %v2894
        %2959 = vmatprep.subr.bf16.mxu0 0
        %2960 = vmatpush1.bf16.msra.mxu0 %v2895
        %2961 = vmatprep.subr.bf16.mxu0 0
        %2962 = vmatpush1.bf16.msra.mxu0 %v2896
        %2963 = vmatprep.subr.bf16.mxu0 0
        %2964 = vmatpush1.bf16.msra.mxu0 %v2897
        %2965 = vmatprep.subr.bf16.mxu0 0
        %2966 = vmatpush1.bf16.msra.mxu0 0
        %2967 = vmatprep.subr.bf16.mxu0 0
        %2968 = vmatpush1.bf16.msra.mxu0 0
        %2969 = vmatprep.subr.bf16.mxu0 0
        %2970 = vmatpush1.bf16.msra.mxu0 0
        %2971 = vmatprep.subr.bf16.mxu0 0
        %2972 = vmatpush1.bf16.msra.mxu0 0
        %2973 = vmatprep.subr.bf16.mxu0 0
        %2974 = vmatpush1.bf16.msra.mxu0 0
        %2975 = vmatprep.subr.bf16.mxu0 0
        %2976 = vmatpush1.bf16.msra.mxu0 0
        %2977 = vmatprep.subr.bf16.mxu0 0
        %2978 = vmatpush1.bf16.msra.mxu0 0
        %2979 = vmatprep.subr.bf16.mxu0 0
        %2980 = vmatpush1.bf16.msra.mxu0 0
        %2981 = vmatprep.mubr.bf16.mxu0 0
        %2982 = vmatmul.mubr.bf16.gmra.mrb[0].mxu0 %v2948
        %v2983 = vpop.f32.mrb[0].mxu0
        %v2984 = vadd.f32 0.0, %v2983
        %v2985 = vpop.f32.mrb[0].mxu0
        %v2986 = vpop.f32.mrb[0].mxu0
        %v2987 = vpop.f32.mrb[0].mxu0
        %2988 = vdwg.mxu0
        %v2989 = vadd.f32 %v2828, %v2984
        %v2990 = vtanh.pop %v2989
        %v2991 = vpack.c.bf16 %v2990, %v2990
        %2992 = vmatprep.subr.bf16.mxu0 0
        %2993 = vmatpush1.bf16.msra.mxu0 %v2890
        %2994 = vmatprep.subr.bf16.mxu0 0
        %2995 = vmatpush1.bf16.msra.mxu0 %v2891
        %2996 = vmatprep.subr.bf16.mxu0 0
        %2997 = vmatpush1.bf16.msra.mxu0 %v2892
        %2998 = vmatprep.subr.bf16.mxu0 0
        %2999 = vmatpush1.bf16.msra.mxu0 %v2893
        %3000 = vmatprep.subr.bf16.mxu0 0
        %3001 = vmatpush1.bf16.msra.mxu0 %v2894
        %3002 = vmatprep.subr.bf16.mxu0 0
        %3003 = vmatpush1.bf16.msra.mxu0 %v2895
        %3004 = vmatprep.subr.bf16.mxu0 0
        %3005 = vmatpush1.bf16.msra.mxu0 %v2896
        %3006 = vmatprep.subr.bf16.mxu0 0
        %3007 = vmatpush1.bf16.msra.mxu0 %v2897
        %3008 = vmatprep.subr.bf16.mxu0 0
        %3009 = vmatpush1.bf16.msra.mxu0 0
        %3010 = vmatprep.subr.bf16.mxu0 0
        %3011 = vmatpush1.bf16.msra.mxu0 0
        %3012 = vmatprep.subr.bf16.mxu0 0
        %3013 = vmatpush1.bf16.msra.mxu0 0
        %3014 = vmatprep.subr.bf16.mxu0 0
        %3015 = vmatpush1.bf16.msra.mxu0 0
        %3016 = vmatprep.subr.bf16.mxu0 0
        %3017 = vmatpush1.bf16.msra.mxu0 0
        %3018 = vmatprep.subr.bf16.mxu0 0
        %3019 = vmatpush1.bf16.msra.mxu0 0
        %3020 = vmatprep.subr.bf16.mxu0 0
        %3021 = vmatpush1.bf16.msra.mxu0 0
        %3022 = vmatprep.subr.bf16.mxu0 0
        %3023 = vmatpush1.bf16.msra.mxu0 0
        %3024 = vmatprep.mubr.bf16.mxu0 0
        %3025 = vmatmul.mubr.bf16.gmra.mrb[0].mxu0 %v2991
        %v3026 = vpop.f32.mrb[0].mxu0
        %v3027 = vadd.f32 0.0, %v3026
        %v3028 = vpop.f32.mrb[0].mxu0
        %v3029 = vpop.f32.mrb[0].mxu0
        %v3030 = vpop.f32.mrb[0].mxu0
        %3031 = vdwg.mxu0
        %v3032 = vadd.f32 %v2833, %v3027
        %v3033 = vtanh.pop %v3032
        %v3034 = vpack.c.bf16 %v3033, %v3033
        %3035 = vmatprep.subr.bf16.mxu0 0
        %3036 = vmatpush1.bf16.msra.mxu0 %v2890
        %3037 = vmatprep.subr.bf16.mxu0 0
        %3038 = vmatpush1.bf16.msra.mxu0 %v2891
        %3039 = vmatprep.subr.bf16.mxu0 0
        %3040 = vmatpush1.bf16.msra.mxu0 %v2892
        %3041 = vmatprep.subr.bf16.mxu0 0
        %3042 = vmatpush1.bf16.msra.mxu0 %v2893
        %3043 = vmatprep.subr.bf16.mxu0 0
        %3044 = vmatpush1.bf16.msra.mxu0 %v2894
        %3045 = vmatprep.subr.bf16.mxu0 0
        %3046 = vmatpush1.bf16.msra.mxu0 %v2895
        %3047 = vmatprep.subr.bf16.mxu0 0
        %3048 = vmatpush1.bf16.msra.mxu0 %v2896
        %3049 = vmatprep.subr.bf16.mxu0 0
        %3050 = vmatpush1.bf16.msra.mxu0 %v2897
        %3051 = vmatprep.subr.bf16.mxu0 0
        %3052 = vmatpush1.bf16.msra.mxu0 0
        %3053 = vmatprep.subr.bf16.mxu0 0
        %3054 = vmatpush1.bf16.msra.mxu0 0
        %3055 = vmatprep.subr.bf16.mxu0 0
        %3056 = vmatpush1.bf16.msra.mxu0 0
        %3057 = vmatprep.subr.bf16.mxu0 0
        %3058 = vmatpush1.bf16.msra.mxu0 0
        %3059 = vmatprep.subr.bf16.mxu0 0
        %3060 = vmatpush1.bf16.msra.mxu0 0
        %3061 = vmatprep.subr.bf16.mxu0 0
        %3062 = vmatpush1.bf16.msra.mxu0 0
        %3063 = vmatprep.subr.bf16.mxu0 0
        %3064 = vmatpush1.bf16.msra.mxu0 0
        %3065 = vmatprep.subr.bf16.mxu0 0
        %3066 = vmatpush1.bf16.msra.mxu0 0
        %3067 = vmatprep.mubr.bf16.mxu0 0
        %3068 = vmatmul.mubr.bf16.gmra.mrb[0].mxu0 %v3034
        %v3069 = vpop.f32.mrb[0].mxu0
        %v3070 = vadd.f32 0.0, %v3069
        %v3071 = vpop.f32.mrb[0].mxu0
        %v3072 = vpop.f32.mrb[0].mxu0
        %v3073 = vpop.f32.mrb[0].mxu0
        %3074 = vdwg.mxu0
        %v3075 = vadd.f32 %v2836, %v3070
        %v3076 = vtanh.pop %v3075
        %v3077 = vpack.c.bf16 %v3076, %v3076
        %3078 = vmatprep.subr.bf16.mxu0 0
        %3079 = vmatpush1.bf16.msra.mxu0 %v2890
        %3080 = vmatprep.subr.bf16.mxu0 0
        %3081 = vmatpush1.bf16.msra.mxu0 %v2891
        %3082 = vmatprep.subr.bf16.mxu0 0
        %3083 = vmatpush1.bf16.msra.mxu0 %v2892
        %3084 = vmatprep.subr.bf16.mxu0 0
        %3085 = vmatpush1.bf16.msra.mxu0 %v2893
        %3086 = vmatprep.subr.bf16.mxu0 0
        %3087 = vmatpush1.bf16.msra.mxu0 %v2894
        %3088 = vmatprep.subr.bf16.mxu0 0
        %3089 = vmatpush1.bf16.msra.mxu0 %v2895
        %3090 = vmatprep.subr.bf16.mxu0 0
        %3091 = vmatpush1.bf16.msra.mxu0 %v2896
        %3092 = vmatprep.subr.bf16.mxu0 0
        %3093 = vmatpush1.bf16.msra.mxu0 %v2897
        %3094 = vmatprep.subr.bf16.mxu0 0
        %3095 = vmatpush1.bf16.msra.mxu0 0
        %3096 = vmatprep.subr.bf16.mxu0 0
        %3097 = vmatpush1.bf16.msra.mxu0 0
        %3098 = vmatprep.subr.bf16.mxu0 0
        %3099 = vmatpush1.bf16.msra.mxu0 0
        %3100 = vmatprep.subr.bf16.mxu0 0
        %3101 = vmatpush1.bf16.msra.mxu0 0
        %3102 = vmatprep.subr.bf16.mxu0 0
        %3103 = vmatpush1.bf16.msra.mxu0 0
        %3104 = vmatprep.subr.bf16.mxu0 0
        %3105 = vmatpush1.bf16.msra.mxu0 0
        %3106 = vmatprep.subr.bf16.mxu0 0
        %3107 = vmatpush1.bf16.msra.mxu0 0
        %3108 = vmatprep.subr.bf16.mxu0 0
        %3109 = vmatpush1.bf16.msra.mxu0 0
        %3110 = vmatprep.mubr.bf16.mxu0 0
        %3111 = vmatmul.mubr.bf16.gmra.mrb[0].mxu0 %v3077
        %v3112 = vpop.f32.mrb[0].mxu0
        %v3113 = vadd.f32 0.0, %v3112
        %v3114 = vpop.f32.mrb[0].mxu0
        %v3115 = vpop.f32.mrb[0].mxu0
        %v3116 = vpop.f32.mrb[0].mxu0
        %3117 = vdwg.mxu0
        %v3118 = vadd.f32 %v2841, %v3113
        %v3119 = vtanh.pop %v3118
        %v3120 = vpack.c.bf16 %v3119, %v3119
        %3121 = vmatprep.subr.bf16.mxu0 0
        %3122 = vmatpush1.bf16.msra.mxu0 %v2890
        %3123 = vmatprep.subr.bf16.mxu0 0
        %3124 = vmatpush1.bf16.msra.mxu0 %v2891
        %3125 = vmatprep.subr.bf16.mxu0 0
        %3126 = vmatpush1.bf16.msra.mxu0 %v2892
        %3127 = vmatprep.subr.bf16.mxu0 0
        %3128 = vmatpush1.bf16.msra.mxu0 %v2893
        %3129 = vmatprep.subr.bf16.mxu0 0
        %3130 = vmatpush1.bf16.msra.mxu0 %v2894
        %3131 = vmatprep.subr.bf16.mxu0 0
        %3132 = vmatpush1.bf16.msra.mxu0 %v2895
        %3133 = vmatprep.subr.bf16.mxu0 0
        %3134 = vmatpush1.bf16.msra.mxu0 %v2896
        %3135 = vmatprep.subr.bf16.mxu0 0
        %3136 = vmatpush1.bf16.msra.mxu0 %v2897
        %3137 = vmatprep.subr.bf16.mxu0 0
        %3138 = vmatpush1.bf16.msra.mxu0 0
        %3139 = vmatprep.subr.bf16.mxu0 0
        %3140 = vmatpush1.bf16.msra.mxu0 0
        %3141 = vmatprep.subr.bf16.mxu0 0
        %3142 = vmatpush1.bf16.msra.mxu0 0
        %3143 = vmatprep.subr.bf16.mxu0 0
        %3144 = vmatpush1.bf16.msra.mxu0 0
        %3145 = vmatprep.subr.bf16.mxu0 0
        %3146 = vmatpush1.bf16.msra.mxu0 0
        %3147 = vmatprep.subr.bf16.mxu0 0
        %3148 = vmatpush1.bf16.msra.mxu0 0
        %3149 = vmatprep.subr.bf16.mxu0 0
        %3150 = vmatpush1.bf16.msra.mxu0 0
        %3151 = vmatprep.subr.bf16.mxu0 0
        %3152 = vmatpush1.bf16.msra.mxu0 0
        %3153 = vmatprep.mubr.bf16.mxu0 0
        %3154 = vmatmul.mubr.bf16.gmra.mrb[0].mxu0 %v3120
        %v3155 = vpop.f32.mrb[0].mxu0
        %v3156 = vadd.f32 0.0, %v3155
        %v3157 = vpop.f32.mrb[0].mxu0
        %v3158 = vpop.f32.mrb[0].mxu0
        %v3159 = vpop.f32.mrb[0].mxu0
        %3160 = vdwg.mxu0
        %v3161 = vadd.f32 %v2844, %v3156
        %v3162 = vtanh.pop %v3161
        %v3163 = vpack.c.bf16 %v3162, %v3162
        %3164 = vmatprep.subr.bf16.mxu0 0
        %3165 = vmatpush1.bf16.msra.mxu0 %v2890
        %3166 = vmatprep.subr.bf16.mxu0 0
        %3167 = vmatpush1.bf16.msra.mxu0 %v2891
        %3168 = vmatprep.subr.bf16.mxu0 0
        %3169 = vmatpush1.bf16.msra.mxu0 %v2892
        %3170 = vmatprep.subr.bf16.mxu0 0
        %3171 = vmatpush1.bf16.msra.mxu0 %v2893
        %3172 = vmatprep.subr.bf16.mxu0 0
        %3173 = vmatpush1.bf16.msra.mxu0 %v2894
        %3174 = vmatprep.subr.bf16.mxu0 0
        %3175 = vmatpush1.bf16.msra.mxu0 %v2895
        %3176 = vmatprep.subr.bf16.mxu0 0
        %3177 = vmatpush1.bf16.msra.mxu0 %v2896
        %3178 = vmatprep.subr.bf16.mxu0 0
        %3179 = vmatpush1.bf16.msra.mxu0 %v2897
        %3180 = vmatprep.subr.bf16.mxu0 0
        %3181 = vmatpush1.bf16.msra.mxu0 0
        %3182 = vmatprep.subr.bf16.mxu0 0
        %3183 = vmatpush1.bf16.msra.mxu0 0
        %3184 = vmatprep.subr.bf16.mxu0 0
        %3185 = vmatpush1.bf16.msra.mxu0 0
        %3186 = vmatprep.subr.bf16.mxu0 0
        %3187 = vmatpush1.bf16.msra.mxu0 0
        %3188 = vmatprep.subr.bf16.mxu0 0
        %3189 = vmatpush1.bf16.msra.mxu0 0
        %3190 = vmatprep.subr.bf16.mxu0 0
        %3191 = vmatpush1.bf16.msra.mxu0 0
        %3192 = vmatprep.subr.bf16.mxu0 0
        %3193 = vmatpush1.bf16.msra.mxu0 0
        %3194 = vmatprep.subr.bf16.mxu0 0
        %3195 = vmatpush1.bf16.msra.mxu0 0
        %3196 = vmatprep.mubr.bf16.mxu0 0
        %3197 = vmatmul.mubr.bf16.gmra.mrb[0].mxu0 %v3163
        %v3198 = vpop.f32.mrb[0].mxu0
        %v3199 = vadd.f32 0.0, %v3198
        %v3200 = vpop.f32.mrb[0].mxu0
        %v3201 = vpop.f32.mrb[0].mxu0
        %v3202 = vpop.f32.mrb[0].mxu0
        %3203 = vdwg.mxu0
        %v3204 = vadd.f32 %v2849, %v3199
        %v3205 = vtanh.pop %v3204
        %v3206 = vpack.c.bf16 %v3205, %v3205
        %3207 = vmatprep.subr.bf16.mxu0 0
        %3208 = vmatpush1.bf16.msra.mxu0 %v2890
        %3209 = vmatprep.subr.bf16.mxu0 0
        %3210 = vmatpush1.bf16.msra.mxu0 %v2891
        %3211 = vmatprep.subr.bf16.mxu0 0
        %3212 = vmatpush1.bf16.msra.mxu0 %v2892
        %3213 = vmatprep.subr.bf16.mxu0 0
        %3214 = vmatpush1.bf16.msra.mxu0 %v2893
        %3215 = vmatprep.subr.bf16.mxu0 0
        %3216 = vmatpush1.bf16.msra.mxu0 %v2894
        %3217 = vmatprep.subr.bf16.mxu0 0
        %3218 = vmatpush1.bf16.msra.mxu0 %v2895
        %3219 = vmatprep.subr.bf16.mxu0 0
        %3220 = vmatpush1.bf16.msra.mxu0 %v2896
        %3221 = vmatprep.subr.bf16.mxu0 0
        %3222 = vmatpush1.bf16.msra.mxu0 %v2897
        %3223 = vmatprep.subr.bf16.mxu0 0
        %3224 = vmatpush1.bf16.msra.mxu0 0
        %3225 = vmatprep.subr.bf16.mxu0 0
        %3226 = vmatpush1.bf16.msra.mxu0 0
        %3227 = vmatprep.subr.bf16.mxu0 0
        %3228 = vmatpush1.bf16.msra.mxu0 0
        %3229 = vmatprep.subr.bf16.mxu0 0
        %3230 = vmatpush1.bf16.msra.mxu0 0
        %3231 = vmatprep.subr.bf16.mxu0 0
        %3232 = vmatpush1.bf16.msra.mxu0 0
        %3233 = vmatprep.subr.bf16.mxu0 0
        %3234 = vmatpush1.bf16.msra.mxu0 0
        %3235 = vmatprep.subr.bf16.mxu0 0
        %3236 = vmatpush1.bf16.msra.mxu0 0
        %3237 = vmatprep.subr.bf16.mxu0 0
        %3238 = vmatpush1.bf16.msra.mxu0 0
        %3239 = vmatprep.mubr.bf16.mxu0 0
        %3240 = vmatmul.mubr.bf16.gmra.mrb[0].mxu0 %v3206
        %v3241 = vpop.f32.mrb[0].mxu0
        %v3242 = vadd.f32 0.0, %v3241
        %v3243 = vpop.f32.mrb[0].mxu0
        %v3244 = vpop.f32.mrb[0].mxu0
        %v3245 = vpop.f32.mrb[0].mxu0
        %3246 = vdwg.mxu0
        %v3247 = vadd.f32 %v2852, %v3242
        %v3248 = vtanh.pop %v3247
        %s3249 = scalar_lea.vmem %s285, 16 [#allocation13]
        %3250 = vst [vmem:[%s3249] sm:$0xff] %v3248
        %3251 = vst [vmem:[%s278] sm:$0xff] %v2947
        %3252 = vst [vmem:[%s278 + $0x8] sm:$0xff] %v2990
        %3253 = vst [vmem:[%s278 + $0x10] sm:$0xff] %v3033
        %3254 = vst [vmem:[%s278 + $0x18] sm:$0xff] %v3076
        %3255 = vst [vmem:[%s278 + $0x20] sm:$0xff] %v3119
        %3256 = vst [vmem:[%s278 + $0x28] sm:$0xff] %v3162
        %3257 = vst [vmem:[%s278 + $0x30] sm:$0xff] %v3205
        %3258 = vst [vmem:[%s278 + $0x38] sm:$0xff] %v3248
        %s3259 = sand.u32 %s128, 1
        %s3260 = scalar_lea.sflag [#allocation8], %s3259
        %s3261 = sand.u32 %s128, 1
        %s3262 = smul.addr %s3261, 64
        %s3263 = scalar_lea.vmem [#allocation12], %s3262
        %s3264 = sand.u32 %s154, 1
        %s3265 = scalar_lea.sflag [#allocation14], %s3264
        %s3266 = sand.u32 %s154, 1
        %s3267 = smul.addr %s3266, 24
        %s3268 = scalar_lea.vmem [#allocation13], %s3267
        // Predicated region
        $region305: #{tpu_custom_call.1} parent=35 // pred_check
          %p3269 = pneg %p138
        $region306: #{tpu_custom_call.1} parent=35 // pred_check_branch
          %3271 = sbr.rel (%p3269) target = $region308
        $region307: #{tpu_custom_call.1} parent=35 // pred_region
          %s3273 = ssub.s32 1024, 1024
          %3274 = vsyncadd %s3260, %s3273
          %s3275 = smul.addr %s31, 128
          %s3276 = scalar_lea.hbm %s6, %s3275
          %s3277 = sshll.u32 %s3263, 4
          %s3278 = int_to_ptr.vmem [resolvable:$true] %s3277
          %3283 = dma.vmem_to_hbm [thread:$0]  %s3278, 1024, %s3276, %s3260, 128, 256, 8
        $region308: #{tpu_custom_call.1} parent=35 // pred_fallthru
          _
        // Predicated region
        $region309: #{tpu_custom_call.1} parent=35 // pred_check
          %p3284 = pneg %p164
        $region310: #{tpu_custom_call.1} parent=35 // pred_check_branch
          %3286 = sbr.rel (%p3284) target = $region312
        $region311: #{tpu_custom_call.1} parent=35 // pred_region
          %s3288 = ssub.s32 384, 384
          %3289 = vsyncadd %s3265, %s3288
          %s3290 = smul.addr %s31, 128
          %s3291 = scalar_lea.hbm %s7, %s3290
          %s3292 = sshll.u32 %s3268, 4
          %s3293 = int_to_ptr.vmem [resolvable:$true] %s3292
          %3298 = dma.vmem_to_hbm [thread:$0]  %s3293, 384, %s3291, %s3265, 128, 256, 8
        $region312: #{tpu_custom_call.1} parent=35 // pred_fallthru
          _
      $region36: #{tpu_custom_call.1} parent=5 // pred_fallthru
        _
      %p3299 = scmp.le.s32.totalorder 2, %s26
      // Predicated region
      $region313: #{tpu_custom_call.1} parent=5 // pred_check
        %p3300 = pneg %p3299
      $region314: #{tpu_custom_call.1} parent=5 // pred_check_branch
        %3302 = sbr.rel (%p3300) target = $region316
      $region315: #{tpu_custom_call.1} parent=5 // pred_region
        %s3303 = ssub.s32 %s26, 2
        // Predicated region
        $region317: #{tpu_custom_call.1} parent=315 // pred_check
          %p3304 = pneg %p144
        $region318: #{tpu_custom_call.1} parent=315 // pred_check_branch
          %3306 = sbr.rel (%p3304) target = $region320
        $region319: #{tpu_custom_call.1} parent=315 // pred_region
          %s3307 = sand.u32 %s129, 1
          %s3308 = scalar_lea.sflag [#allocation8], %s3307
          %s3309 = sand.u32 %s129, 1
          %s3310 = smul.addr %s3309, 64
          %s3311 = scalar_lea.vmem [#allocation12], %s3310
          %3312 = dma.done %s3308, 1024
        $region320: #{tpu_custom_call.1} parent=315 // pred_fallthru
          _
        // Predicated region
        $region321: #{tpu_custom_call.1} parent=315 // pred_check
          %p3313 = pneg %p170
        $region322: #{tpu_custom_call.1} parent=315 // pred_check_branch
          %3315 = sbr.rel (%p3313) target = $region324
        $region323: #{tpu_custom_call.1} parent=315 // pred_region
          %s3316 = sand.u32 %s155, 1
          %s3317 = scalar_lea.sflag [#allocation14], %s3316
          %s3318 = sand.u32 %s155, 1
          %s3319 = smul.addr %s3318, 24
          %s3320 = scalar_lea.vmem [#allocation13], %s3319
          %3321 = dma.done %s3317, 384
        $region324: #{tpu_custom_call.1} parent=315 // pred_fallthru
          _
      $region316: #{tpu_custom_call.1} parent=5 // pred_fallthru
        _
    $region6: #{tpu_custom_call.1} parent=1 // loop_footer
      %s30 = sadd.s32 1, %s26
    $region7: #{tpu_custom_call.1} parent=1 // loop_footer_branch
      %25 = sbr.rel target = $region3
    $region8: #{tpu_custom_call.1} parent=1 // loop_exit
      _
    %3322 = vsyncpa [#allocation7], 1
    %s3323 = scalar_lea.sflag [#allocation7], 1
    %3324 = vsyncpa %s3323, 1
    %3325 = vsyncpa [#allocation10], 1
    %3326 = vsyncpa [#allocation8], 1
    %s3327 = scalar_lea.sflag [#allocation8], 1
    %3328 = vsyncpa %s3327, 1
    %3329 = vsyncpa [#allocation14], 1
    %s3330 = scalar_lea.sflag [#allocation14], 1
    %3331 = vsyncpa %s3330, 1
  %3332 = vsyncmov [#allocation3]
  %s3333 = vpop.sfrf %3332
  %p3334 = scmp.eq.s32.totalorder %s3333, 0
  %p3335 = pneg %p3334
  %3337 = shalt.err (%p3335)

</llo_original>
